<compile_context>
chip_gen: v6e
topology: v6e:2x2x1
jax: 0.10.0
libtpu: 0.0.40
codegen_flags: <defaults>
</compile_context>

<pallas_src>
import functools
import math

import jax
import jax.numpy as jnp
import numpy as np
from jax import lax
from jax.experimental import pallas as pl
from jax.experimental.pallas import tpu as pltpu

# ----------------------------- config -----------------------------
B = 2          # batch
T = 8          # target (decoder) sequence length
S = 16         # source (memory) sequence length
D = 32         # model dim ("size")
H = 4          # attention heads
DK = D // H    # per-head dim
DFF = 64       # feed-forward hidden dim
EPS = 1e-6     # LayerNorm eps
DTYPE = jnp.float32


# ----------------------------- fused decoder-layer kernel -----------------------------
def _decoder_layer_kernel(x_ref, mem_ref, tb_ref, sb_ref, aw_ref, vec_ref,
                          w1_ref, w2_ref, o_ref, *,
                          batch, t_len, s_len, d_model, heads, dk):
    f32 = jnp.float32
    dp = d_model + 1
    nt = batch * t_len
    ns = batch * s_len
    hb = heads * batch
    scale = 1.0 / math.sqrt(dk)

    # batched dot_general forms (leading batch dim, as in the flash-attn example)
    dn_nt = (((2,), (2,)), ((0,), (0,)))   # contract minor dims:  A @ B^T
    dn_nn = (((2,), (1,)), ((0,), (0,)))   # standard batched matmul

    x = x_ref[...]            # (B*T, D)   flattened activations
    mem = mem_ref[...]        # (B*S, D)
    vec = vec_ref[...]        # (8, D)     [ln0_g, ln0_b, ln1_g, ln1_b, ln2_g, ln2_b, sa_bo, ca_bo]
    ones_t = jnp.ones((nt, 1), f32)
    ones_s = jnp.ones((ns, 1), f32)

    def ln(z, g, b):
        # torch LayerNorm variant used in this codebase:
        #   a_2 * (x - mean) / (std + eps) + b_2   with unbiased std (ddof=1)
        mean = jnp.mean(z, axis=-1, keepdims=True)
        cen = z - mean
        var = jnp.sum(cen * cen, axis=-1, keepdims=True) * (1.0 / (d_model - 1))
        inv = pl.reciprocal(jnp.sqrt(var) + EPS, approx=True)
        return g * (cen * inv) + b

    def heads_of(z_aug, rows):
        # (batch*rows, D+1)  ->  (heads*batch, rows, D+1), head-major, batch-minor
        z3 = z_aug.reshape(batch, rows, dp)
        return jnp.concatenate([z3] * heads, axis=0)

    def softmax(s):
        m = jnp.max(s, axis=-1, keepdims=True)
        e = jnp.exp(s - m)
        return e * pl.reciprocal(jnp.sum(e, axis=-1, keepdims=True), approx=True)

    def mha(lhs_q, lhs_kv, wq, wk, wv, wo, bias, bo, q_rows):
        # lhs_q: (HB, Tq, D+1)  lhs_kv: (HB, Tk, D+1)  w*: (HB, DK, D+1)
        # bias broadcastable to (HB, Tq, Tk);  bo: (1, D)
        q = lax.dot_general(lhs_q, wq, dn_nt, preferred_element_type=f32)    # (HB, Tq, DK)
        k = lax.dot_general(lhs_kv, wk, dn_nt, preferred_element_type=f32)   # (HB, Tk, DK)
        v = lax.dot_general(lhs_kv, wv, dn_nt, preferred_element_type=f32)   # (HB, Tk, DK)
        s = lax.dot_general(q, k, dn_nt, preferred_element_type=f32) * scale + bias
        p = softmax(s)                                                       # one slab, all heads
        ctx = lax.dot_general(p, v, dn_nn, preferred_element_type=f32)       # (HB, Tq, DK)
        o = lax.dot_general(ctx, wo, dn_nn, preferred_element_type=f32)      # (HB, Tq, D+1)
        o = o[:, :, :d_model]                                                # drop zero pad col
        o3 = o.reshape(heads, batch * q_rows, d_model)                       # head-major merge
        merged = o3[0]
        for h in range(1, heads):
            merged = merged + o3[h]
        return merged + bo

    # ---- sublayer 0: x = x + self_attn(LN(x))  (causal) ----
    xn = ln(x, vec[0:1], vec[1:2])
    xn_h = heads_of(jnp.concatenate([xn, ones_t], axis=1), t_len)
    x = x + mha(xn_h, xn_h,
                aw_ref[0], aw_ref[1], aw_ref[2], aw_ref[3],
                tb_ref[...], vec[6:7], t_len)

    # ---- sublayer 1: x = x + src_attn(LN(x), memory) ----
    xn = ln(x, vec[2:3], vec[3:4])
    xq_h = heads_of(jnp.concatenate([xn, ones_t], axis=1), t_len)
    mem_h = heads_of(jnp.concatenate([mem, ones_s], axis=1), s_len)
    x = x + mha(xq_h, mem_h,
                aw_ref[4], aw_ref[5], aw_ref[6], aw_ref[7],
                sb_ref[...], vec[7:8], t_len)

    # ---- sublayer 2: x = x + FFN(LN(x)) ----
    xn = ln(x, vec[4:5], vec[5:6])
    h1 = jnp.maximum(
        jnp.dot(jnp.concatenate([xn, ones_t], axis=1), w1_ref[...],
                preferred_element_type=f32), 0.0)
    x = x + jnp.dot(jnp.concatenate([h1, ones_t], axis=1), w2_ref[...],
                    preferred_element_type=f32)

    o_ref[...] = x.astype(o_ref.dtype)
    # TODO(synk): nn.Dropout is identity here (eval mode); training-time RNG dropout not reproduced.


# ----------------------------- wrapper -----------------------------
def _full_spec(a):
    nd = a.ndim
    return pl.BlockSpec(a.shape, lambda i, _nd=nd: (0,) * _nd)


@jax.jit
def decoder_layer_forward(x, memory, src_mask, tgt_mask, params):
    b, t, d = x.shape
    s = memory.shape[1]
    heads = H
    dk = d // heads
    dp = d + 1

    sa, ca, ff = params["self_attn"], params["src_attn"], params["ffn"]

    # --- one-time weight fusion / re-layout (free, outside the kernel) ---
    def head_qkv(w, bias):
        # (D, D) + (D,)  ->  (H*B, DK, D+1), head-major (bias folded into last column)
        wt = jnp.concatenate([w.T, bias[:, None]], axis=1)          # (D, D+1)
        return jnp.repeat(wt.reshape(heads, dk, dp), b, axis=0)

    def head_out(w):
        # (D, D)  ->  (H*B, DK, D+1)  (zero pad column on the output dim)
        wt = jnp.concatenate([w, jnp.zeros((d, 1), w.dtype)], axis=1)
        return jnp.repeat(wt.reshape(heads, dk, dp), b, axis=0)

    attn_w = jnp.stack([
        head_qkv(sa["wq"], sa["bq"]), head_qkv(sa["wk"], sa["bk"]),
        head_qkv(sa["wv"], sa["bv"]), head_out(sa["wo"]),
        head_qkv(ca["wq"], ca["bq"]), head_qkv(ca["wk"], ca["bk"]),
        head_qkv(ca["wv"], ca["bv"]), head_out(ca["wo"]),
    ])                                                               # (8, H*B, DK, D+1)

    vec = jnp.stack([params["ln0_g"], params["ln0_b"],
                     params["ln1_g"], params["ln1_b"],
                     params["ln2_g"], params["ln2_b"],
                     sa["bo"], ca["bo"]])                            # (8, D)

    ffw1 = jnp.concatenate([ff["w1"], ff["b1"][None, :]], axis=0)    # (D+1, DFF)
    ffw2 = jnp.concatenate([ff["w2"], ff["b2"][None, :]], axis=0)    # (DFF+1, D)

    # additive mask biases (0 = keep, -1e9 = masked)
    neg = jnp.float32(-1e9)
    tbias = jnp.where(tgt_mask[0] != 0, 0.0, neg).astype(jnp.float32)          # (T, T)
    sb = jnp.where(src_mask != 0, 0.0, neg).astype(jnp.float32)                # (B, 1, S)
    sbias = jnp.broadcast_to(sb[None], (heads, b, 1, s)).reshape(heads * b, 1, s)

    x2 = x.reshape(b * t, d)
    mem2 = memory.reshape(b * s, d)

    operands = [x2, mem2, tbias, sbias, attn_w, vec, ffw1, ffw2]

    kernel = functools.partial(_decoder_layer_kernel, batch=b, t_len=t,
                               s_len=s, d_model=d, heads=heads, dk=dk)

    out2 = pl.pallas_call(
        kernel,
        out_shape=jax.ShapeDtypeStruct((b * t, d), x.dtype),
        grid=(1,),                                     # single fused step: no per-step overhead
        in_specs=[_full_spec(a) for a in operands],
        out_specs=pl.BlockSpec((b * t, d), lambda i: (0, 0)),
        compiler_params=pltpu.CompilerParams(
            dimension_semantics=("arbitrary",)),
    )(*operands)
    return out2.reshape(b, t, d)


# ----------------------------- reference (plain JAX) -----------------------------
def _ref_ln(x, g, b):
    mean = x.mean(-1, keepdims=True)
    cen = x - mean
    std = jnp.sqrt((cen * cen).sum(-1, keepdims=True) / (x.shape[-1] - 1))
    return g * cen / (std + EPS) + b


def _ref_mha(xq, xkv, mask, p):
    b, tq, d = xq.shape
    tk = xkv.shape[1]
    q = (xq @ p["wq"] + p["bq"]).reshape(b, tq, H, DK).transpose(0, 2, 1, 3)
    k = (xkv @ p["wk"] + p["bk"]).reshape(b, tk, H, DK).transpose(0, 2, 1, 3)
    v = (xkv @ p["wv"] + p["bv"]).reshape(b, tk, H, DK).transpose(0, 2, 1, 3)
    sc = jnp.einsum("bhqd,bhkd->bhqk", q, k) / math.sqrt(DK)
    sc = jnp.where(mask[:, None, :, :] == 0, -1e9, sc)
    pr = jax.nn.softmax(sc, axis=-1)
    ctx = jnp.einsum("bhqk,bhkd->bhqd", pr, v).transpose(0, 2, 1, 3).reshape(b, tq, d)
    return ctx @ p["wo"] + p["bo"]


def ref_forward(x, memory, src_mask, tgt_mask, params):
    bsz, t, _ = x.shape
    tmask = jnp.broadcast_to(tgt_mask, (bsz, t, t))
    xn = _ref_ln(x, params["ln0_g"], params["ln0_b"])
    x = x + _ref_mha(xn, xn, tmask, params["self_attn"])
    xn = _ref_ln(x, params["ln1_g"], params["ln1_b"])
    x = x + _ref_mha(xn, memory, src_mask, params["src_attn"])
    xn = _ref_ln(x, params["ln2_g"], params["ln2_b"])
    p = params["ffn"]
    h = jnp.maximum(xn @ p["w1"] + p["b1"], 0.0)
    return x + h @ p["w2"] + p["b2"]


# ----------------------------- params / inputs -----------------------------
def make_params(key):
    ks = jax.random.split(key, 32)
    it = iter(ks)

    def w(shape, scale=0.02):
        return (scale * jax.random.normal(next(it), shape)).astype(DTYPE)

    def attn_params():
        return dict(
            wq=w((D, D)), bq=w((D,)), wk=w((D, D)), bk=w((D,)),
            wv=w((D, D)), bv=w((D,)), wo=w((D, D)), bo=w((D,)),
        )

    return dict(
        self_attn=attn_params(),
        src_attn=attn_params(),
        ffn=dict(w1=w((D, DFF)), b1=w((DFF,)), w2=w((DFF, D)), b2=w((D,))),
        ln0_g=(1.0 + 0.1 * jax.random.normal(next(it), (D,))).astype(DTYPE),
        ln0_b=w((D,), 0.1),
        ln1_g=(1.0 + 0.1 * jax.random.normal(next(it), (D,))).astype(DTYPE),
        ln1_b=w((D,), 0.1),
        ln2_g=(1.0 + 0.1 * jax.random.normal(next(it), (D,))).astype(DTYPE),
        ln2_b=w((D,), 0.1),
    )


if __name__ == "__main__":
    key = jax.random.PRNGKey(0)
    kx, km, kp = jax.random.split(key, 3)

    x = jax.random.normal(kx, (B, T, D), dtype=DTYPE)
    memory = jax.random.normal(km, (B, S, D), dtype=DTYPE)
    tgt_mask = jnp.tril(jnp.ones((1, T, T), dtype=jnp.int32))   # causal
    src_mask = jnp.ones((B, 1, S), dtype=jnp.int32)             # full source
    params = make_params(kp)

    out = decoder_layer_forward(x, memory, src_mask, tgt_mask, params)
    out = jax.block_until_ready(out)

    ref = ref_forward(x, memory, src_mask, tgt_mask, params)
    # tolerance accounts for approx=True EUP reciprocals in LayerNorm + softmax
    np.testing.assert_allclose(np.asarray(out), np.asarray(ref),
                               rtol=1e-3, atol=1e-3)
    print("KERNEL_OK")
</pallas_src>

<mosaic_0001>
module attributes {stable_mosaic.version = 11 : i64} {
  func.func @_decoder_layer_kernel(%arg0: i32, %arg1: memref<16x32xf32, #tpu.memory_space<vmem>>, %arg2: memref<32x32xf32, #tpu.memory_space<vmem>>, %arg3: memref<8x8xf32, #tpu.memory_space<vmem>>, %arg4: memref<8x1x16xf32, #tpu.memory_space<vmem>>, %arg5: memref<8x8x8x33xf32, #tpu.memory_space<vmem>>, %arg6: memref<8x32xf32, #tpu.memory_space<vmem>>, %arg7: memref<33x64xf32, #tpu.memory_space<vmem>>, %arg8: memref<65x32xf32, #tpu.memory_space<vmem>>, %arg9: memref<16x32xf32, #tpu.memory_space<vmem>>) attributes {dimension_semantics = [#tpu.dimension_semantics<arbitrary>], iteration_bounds = array<i64: 1>, scalar_prefetch = 0 : i64, scratch_operands = 0 : i64, tpu.core_type = #tpu.core_type<tc>, window_params = [{pipeline_mode = #tpu.pipeline_mode<synchronous>, transform_indices = @transform_0, window_bounds = array<i64: 16, 32>}, {pipeline_mode = #tpu.pipeline_mode<synchronous>, transform_indices = @transform_1, window_bounds = array<i64: 32, 32>}, {pipeline_mode = #tpu.pipeline_mode<synchronous>, transform_indices = @transform_2, window_bounds = array<i64: 8, 8>}, {pipeline_mode = #tpu.pipeline_mode<synchronous>, transform_indices = @transform_3, window_bounds = array<i64: 8, 1, 16>}, {pipeline_mode = #tpu.pipeline_mode<synchronous>, transform_indices = @transform_4, window_bounds = array<i64: 8, 8, 8, 33>}, {pipeline_mode = #tpu.pipeline_mode<synchronous>, transform_indices = @transform_5, window_bounds = array<i64: 8, 32>}, {pipeline_mode = #tpu.pipeline_mode<synchronous>, transform_indices = @transform_6, window_bounds = array<i64: 33, 64>}, {pipeline_mode = #tpu.pipeline_mode<synchronous>, transform_indices = @transform_7, window_bounds = array<i64: 65, 32>}, {pipeline_mode = #tpu.pipeline_mode<synchronous>, transform_indices = @transform_8, window_bounds = array<i64: 16, 32>}]} {
    %c0 = arith.constant 0 : index
    %c0_0 = arith.constant 0 : index
    %0 = vector.load %arg1[%c0, %c0_0] : memref<16x32xf32, #tpu.memory_space<vmem>>, vector<16x32xf32>
    %c0_1 = arith.constant 0 : index
    %c0_2 = arith.constant 0 : index
    %1 = vector.load %arg2[%c0_1, %c0_2] : memref<32x32xf32, #tpu.memory_space<vmem>>, vector<32x32xf32>
    %c0_3 = arith.constant 0 : index
    %c0_4 = arith.constant 0 : index
    %2 = vector.load %arg6[%c0_3, %c0_4] : memref<8x32xf32, #tpu.memory_space<vmem>>, vector<8x32xf32>
    %cst = arith.constant 1.000000e+00 : f32
    %3 = vector.broadcast %cst : f32 to vector<16x1xf32>
    %cst_5 = arith.constant 1.000000e+00 : f32
    %4 = vector.broadcast %cst_5 : f32 to vector<32x1xf32>
    %5 = vector.extract_strided_slice %2 {offsets = [0, 0], sizes = [1, 32], strides = [1, 1]} : vector<8x32xf32> to vector<1x32xf32>
    %6 = vector.extract_strided_slice %2 {offsets = [1, 0], sizes = [1, 32], strides = [1, 1]} : vector<8x32xf32> to vector<1x32xf32>
    %cst_6 = arith.constant dense<0.000000e+00> : vector<16xf32>
    %7 = vector.multi_reduction <add>, %0, %cst_6 [1] : vector<16x32xf32> to vector<16xf32>
    %8 = vector.shape_cast %7 : vector<16xf32> to vector<16x1xf32>
    %cst_7 = arith.constant 3.200000e+01 : f32
    %9 = vector.broadcast %cst_7 : f32 to vector<16x1xf32>
    %10 = arith.divf %8, %9 : vector<16x1xf32>
    %11 = vector.broadcast %10 : vector<16x1xf32> to vector<16x32xf32>
    %12 = arith.subf %0, %11 : vector<16x32xf32>
    %13 = arith.mulf %12, %12 : vector<16x32xf32>
    %cst_8 = arith.constant dense<0.000000e+00> : vector<16xf32>
    %14 = vector.multi_reduction <add>, %13, %cst_8 [1] : vector<16x32xf32> to vector<16xf32>
    %15 = vector.shape_cast %14 : vector<16xf32> to vector<16x1xf32>
    %cst_9 = arith.constant 0.0322580636 : f32
    %16 = vector.broadcast %cst_9 : f32 to vector<16x1xf32>
    %17 = arith.mulf %15, %16 : vector<16x1xf32>
    %18 = math.sqrt %17 : vector<16x1xf32>
    %cst_10 = arith.constant 9.99999997E-7 : f32
    %19 = vector.broadcast %cst_10 : f32 to vector<16x1xf32>
    %20 = arith.addf %18, %19 : vector<16x1xf32>
    %21 = tpu.reciprocal %20 {approx = true} : vector<16x1xf32> -> vector<16x1xf32>
    %22 = vector.broadcast %21 : vector<16x1xf32> to vector<16x32xf32>
    %23 = arith.mulf %12, %22 : vector<16x32xf32>
    %24 = vector.broadcast %5 : vector<1x32xf32> to vector<16x32xf32>
    %25 = arith.mulf %24, %23 : vector<16x32xf32>
    %26 = vector.broadcast %6 : vector<1x32xf32> to vector<16x32xf32>
    %27 = arith.addf %25, %26 : vector<16x32xf32>
    %28 = tpu.concatenate %27, %3 in 1 : vector<16x32xf32>, vector<16x1xf32> -> vector<16x33xf32>
    %29 = vector.shape_cast %28 : vector<16x33xf32> to vector<2x8x33xf32>
    %30 = tpu.concatenate %29, %29, %29, %29 in 0 : vector<2x8x33xf32>, vector<2x8x33xf32>, vector<2x8x33xf32>, vector<2x8x33xf32> -> vector<8x8x33xf32>
    %c0_11 = arith.constant 0 : index
    %c0_12 = arith.constant 0 : index
    %c0_13 = arith.constant 0 : index
    %c0_14 = arith.constant 0 : index
    %31 = vector.load %arg5[%c0_11, %c0_12, %c0_13, %c0_14] : memref<8x8x8x33xf32, #tpu.memory_space<vmem>>, vector<1x8x8x33xf32>
    %32 = vector.shape_cast %31 : vector<1x8x8x33xf32> to vector<8x8x33xf32>
    %c1 = arith.constant 1 : index
    %c0_15 = arith.constant 0 : index
    %c0_16 = arith.constant 0 : index
    %c0_17 = arith.constant 0 : index
    %33 = vector.load %arg5[%c1, %c0_15, %c0_16, %c0_17] : memref<8x8x8x33xf32, #tpu.memory_space<vmem>>, vector<1x8x8x33xf32>
    %34 = vector.shape_cast %33 : vector<1x8x8x33xf32> to vector<8x8x33xf32>
    %c2 = arith.constant 2 : index
    %c0_18 = arith.constant 0 : index
    %c0_19 = arith.constant 0 : index
    %c0_20 = arith.constant 0 : index
    %35 = vector.load %arg5[%c2, %c0_18, %c0_19, %c0_20] : memref<8x8x8x33xf32, #tpu.memory_space<vmem>>, vector<1x8x8x33xf32>
    %36 = vector.shape_cast %35 : vector<1x8x8x33xf32> to vector<8x8x33xf32>
    %c3 = arith.constant 3 : index
    %c0_21 = arith.constant 0 : index
    %c0_22 = arith.constant 0 : index
    %c0_23 = arith.constant 0 : index
    %37 = vector.load %arg5[%c3, %c0_21, %c0_22, %c0_23] : memref<8x8x8x33xf32, #tpu.memory_space<vmem>>, vector<1x8x8x33xf32>
    %38 = vector.shape_cast %37 : vector<1x8x8x33xf32> to vector<8x8x33xf32>
    %c0_24 = arith.constant 0 : index
    %c0_25 = arith.constant 0 : index
    %39 = vector.load %arg3[%c0_24, %c0_25] : memref<8x8xf32, #tpu.memory_space<vmem>>, vector<8x8xf32>
    %40 = vector.extract_strided_slice %2 {offsets = [6, 0], sizes = [1, 32], strides = [1, 1]} : vector<8x32xf32> to vector<1x32xf32>
    %cst_26 = arith.constant dense<0.000000e+00> : vector<8x8x8xf32>
    %41 = tpu.matmul %30, %32, %cst_26 {dimension_numbers = #tpu.dot_dimension_numbers<[2], [2], [1], [1], [0, 0, 0, 1, 1, 1], [0], [0]>} : vector<8x8x33xf32>, vector<8x8x33xf32>, vector<8x8x8xf32> -> vector<8x8x8xf32>
    %cst_27 = arith.constant dense<0.000000e+00> : vector<8x8x8xf32>
    %42 = tpu.matmul %30, %34, %cst_27 {dimension_numbers = #tpu.dot_dimension_numbers<[2], [2], [1], [1], [0, 0, 0, 1, 1, 1], [0], [0]>} : vector<8x8x33xf32>, vector<8x8x33xf32>, vector<8x8x8xf32> -> vector<8x8x8xf32>
    %cst_28 = arith.constant dense<0.000000e+00> : vector<8x8x8xf32>
    %43 = tpu.matmul %30, %36, %cst_28 {dimension_numbers = #tpu.dot_dimension_numbers<[2], [2], [1], [1], [0, 0, 0, 1, 1, 1], [0], [0]>} : vector<8x8x33xf32>, vector<8x8x33xf32>, vector<8x8x8xf32> -> vector<8x8x8xf32>
    %cst_29 = arith.constant dense<0.000000e+00> : vector<8x8x8xf32>
    %44 = tpu.matmul %41, %42, %cst_29 {dimension_numbers = #tpu.dot_dimension_numbers<[2], [2], [1], [1], [0, 0, 0, 1, 1, 1], [0], [0]>} : vector<8x8x8xf32>, vector<8x8x8xf32>, vector<8x8x8xf32> -> vector<8x8x8xf32>
    %cst_30 = arith.constant 0.353553385 : f32
    %45 = vector.broadcast %cst_30 : f32 to vector<8x8x8xf32>
    %46 = arith.mulf %44, %45 : vector<8x8x8xf32>
    %47 = vector.shape_cast %39 : vector<8x8xf32> to vector<1x8x8xf32>
    %48 = vector.broadcast %47 : vector<1x8x8xf32> to vector<8x8x8xf32>
    %49 = arith.addf %46, %48 : vector<8x8x8xf32>
    %cst_31 = arith.constant dense<0xFF800000> : vector<8x8xf32>
    %50 = vector.multi_reduction <maximumf>, %49, %cst_31 [2] : vector<8x8x8xf32> to vector<8x8xf32>
    %51 = vector.shape_cast %50 : vector<8x8xf32> to vector<8x8x1xf32>
    %52 = vector.broadcast %51 : vector<8x8x1xf32> to vector<8x8x8xf32>
    %53 = arith.subf %49, %52 : vector<8x8x8xf32>
    %54 = math.exp %53 : vector<8x8x8xf32>
    %cst_32 = arith.constant dense<0.000000e+00> : vector<8x8xf32>
    %55 = vector.multi_reduction <add>, %54, %cst_32 [2] : vector<8x8x8xf32> to vector<8x8xf32>
    %56 = vector.shape_cast %55 : vector<8x8xf32> to vector<8x8x1xf32>
    %57 = tpu.reciprocal %56 {approx = true} : vector<8x8x1xf32> -> vector<8x8x1xf32>
    %58 = vector.broadcast %57 : vector<8x8x1xf32> to vector<8x8x8xf32>
    %59 = arith.mulf %54, %58 : vector<8x8x8xf32>
    %cst_33 = arith.constant dense<0.000000e+00> : vector<8x8x8xf32>
    %60 = tpu.matmul %59, %43, %cst_33 {dimension_numbers = #tpu.dot_dimension_numbers<[2], [1], [1], [2], [0, 0, 0, 1, 1, 2], [0], [0]>} : vector<8x8x8xf32>, vector<8x8x8xf32>, vector<8x8x8xf32> -> vector<8x8x8xf32>
    %cst_34 = arith.constant dense<0.000000e+00> : vector<8x8x33xf32>
    %61 = tpu.matmul %60, %38, %cst_34 {dimension_numbers = #tpu.dot_dimension_numbers<[2], [1], [1], [2], [0, 0, 0, 1, 1, 2], [0], [0]>} : vector<8x8x8xf32>, vector<8x8x33xf32>, vector<8x8x33xf32> -> vector<8x8x33xf32>
    %62 = vector.extract_strided_slice %61 {offsets = [0, 0, 0], sizes = [8, 8, 32], strides = [1, 1, 1]} : vector<8x8x33xf32> to vector<8x8x32xf32>
    %63 = vector.shape_cast %62 : vector<8x8x32xf32> to vector<4x16x32xf32>
    %64 = vector.extract_strided_slice %63 {offsets = [0, 0, 0], sizes = [1, 16, 32], strides = [1, 1, 1]} : vector<4x16x32xf32> to vector<1x16x32xf32>
    %65 = vector.shape_cast %64 : vector<1x16x32xf32> to vector<16x32xf32>
    %66 = vector.extract_strided_slice %63 {offsets = [1, 0, 0], sizes = [1, 16, 32], strides = [1, 1, 1]} : vector<4x16x32xf32> to vector<1x16x32xf32>
    %67 = vector.shape_cast %66 : vector<1x16x32xf32> to vector<16x32xf32>
    %68 = arith.addf %65, %67 : vector<16x32xf32>
    %69 = vector.extract_strided_slice %63 {offsets = [2, 0, 0], sizes = [1, 16, 32], strides = [1, 1, 1]} : vector<4x16x32xf32> to vector<1x16x32xf32>
    %70 = vector.shape_cast %69 : vector<1x16x32xf32> to vector<16x32xf32>
    %71 = arith.addf %68, %70 : vector<16x32xf32>
    %72 = vector.extract_strided_slice %63 {offsets = [3, 0, 0], sizes = [1, 16, 32], strides = [1, 1, 1]} : vector<4x16x32xf32> to vector<1x16x32xf32>
    %73 = vector.shape_cast %72 : vector<1x16x32xf32> to vector<16x32xf32>
    %74 = arith.addf %71, %73 : vector<16x32xf32>
    %75 = vector.broadcast %40 : vector<1x32xf32> to vector<16x32xf32>
    %76 = arith.addf %74, %75 : vector<16x32xf32>
    %77 = arith.addf %0, %76 : vector<16x32xf32>
    %78 = vector.extract_strided_slice %2 {offsets = [2, 0], sizes = [1, 32], strides = [1, 1]} : vector<8x32xf32> to vector<1x32xf32>
    %79 = vector.extract_strided_slice %2 {offsets = [3, 0], sizes = [1, 32], strides = [1, 1]} : vector<8x32xf32> to vector<1x32xf32>
    %cst_35 = arith.constant dense<0.000000e+00> : vector<16xf32>
    %80 = vector.multi_reduction <add>, %77, %cst_35 [1] : vector<16x32xf32> to vector<16xf32>
    %81 = vector.shape_cast %80 : vector<16xf32> to vector<16x1xf32>
    %cst_36 = arith.constant 3.200000e+01 : f32
    %82 = vector.broadcast %cst_36 : f32 to vector<16x1xf32>
    %83 = arith.divf %81, %82 : vector<16x1xf32>
    %84 = vector.broadcast %83 : vector<16x1xf32> to vector<16x32xf32>
    %85 = arith.subf %77, %84 : vector<16x32xf32>
    %86 = arith.mulf %85, %85 : vector<16x32xf32>
    %cst_37 = arith.constant dense<0.000000e+00> : vector<16xf32>
    %87 = vector.multi_reduction <add>, %86, %cst_37 [1] : vector<16x32xf32> to vector<16xf32>
    %88 = vector.shape_cast %87 : vector<16xf32> to vector<16x1xf32>
    %cst_38 = arith.constant 0.0322580636 : f32
    %89 = vector.broadcast %cst_38 : f32 to vector<16x1xf32>
    %90 = arith.mulf %88, %89 : vector<16x1xf32>
    %91 = math.sqrt %90 : vector<16x1xf32>
    %cst_39 = arith.constant 9.99999997E-7 : f32
    %92 = vector.broadcast %cst_39 : f32 to vector<16x1xf32>
    %93 = arith.addf %91, %92 : vector<16x1xf32>
    %94 = tpu.reciprocal %93 {approx = true} : vector<16x1xf32> -> vector<16x1xf32>
    %95 = vector.broadcast %94 : vector<16x1xf32> to vector<16x32xf32>
    %96 = arith.mulf %85, %95 : vector<16x32xf32>
    %97 = vector.broadcast %78 : vector<1x32xf32> to vector<16x32xf32>
    %98 = arith.mulf %97, %96 : vector<16x32xf32>
    %99 = vector.broadcast %79 : vector<1x32xf32> to vector<16x32xf32>
    %100 = arith.addf %98, %99 : vector<16x32xf32>
    %101 = tpu.concatenate %100, %3 in 1 : vector<16x32xf32>, vector<16x1xf32> -> vector<16x33xf32>
    %102 = vector.shape_cast %101 : vector<16x33xf32> to vector<2x8x33xf32>
    %103 = tpu.concatenate %102, %102, %102, %102 in 0 : vector<2x8x33xf32>, vector<2x8x33xf32>, vector<2x8x33xf32>, vector<2x8x33xf32> -> vector<8x8x33xf32>
    %104 = tpu.concatenate %1, %4 in 1 : vector<32x32xf32>, vector<32x1xf32> -> vector<32x33xf32>
    %105 = vector.shape_cast %104 : vector<32x33xf32> to vector<2x16x33xf32>
    %106 = tpu.concatenate %105, %105, %105, %105 in 0 : vector<2x16x33xf32>, vector<2x16x33xf32>, vector<2x16x33xf32>, vector<2x16x33xf32> -> vector<8x16x33xf32>
    %c4 = arith.constant 4 : index
    %c0_40 = arith.constant 0 : index
    %c0_41 = arith.constant 0 : index
    %c0_42 = arith.constant 0 : index
    %107 = vector.load %arg5[%c4, %c0_40, %c0_41, %c0_42] : memref<8x8x8x33xf32, #tpu.memory_space<vmem>>, vector<1x8x8x33xf32>
    %108 = vector.shape_cast %107 : vector<1x8x8x33xf32> to vector<8x8x33xf32>
    %c5 = arith.constant 5 : index
    %c0_43 = arith.constant 0 : index
    %c0_44 = arith.constant 0 : index
    %c0_45 = arith.constant 0 : index
    %109 = vector.load %arg5[%c5, %c0_43, %c0_44, %c0_45] : memref<8x8x8x33xf32, #tpu.memory_space<vmem>>, vector<1x8x8x33xf32>
    %110 = vector.shape_cast %109 : vector<1x8x8x33xf32> to vector<8x8x33xf32>
    %c6 = arith.constant 6 : index
    %c0_46 = arith.constant 0 : index
    %c0_47 = arith.constant 0 : index
    %c0_48 = arith.constant 0 : index
    %111 = vector.load %arg5[%c6, %c0_46, %c0_47, %c0_48] : memref<8x8x8x33xf32, #tpu.memory_space<vmem>>, vector<1x8x8x33xf32>
    %112 = vector.shape_cast %111 : vector<1x8x8x33xf32> to vector<8x8x33xf32>
    %c7 = arith.constant 7 : index
    %c0_49 = arith.constant 0 : index
    %c0_50 = arith.constant 0 : index
    %c0_51 = arith.constant 0 : index
    %113 = vector.load %arg5[%c7, %c0_49, %c0_50, %c0_51] : memref<8x8x8x33xf32, #tpu.memory_space<vmem>>, vector<1x8x8x33xf32>
    %114 = vector.shape_cast %113 : vector<1x8x8x33xf32> to vector<8x8x33xf32>
    %c0_52 = arith.constant 0 : index
    %c0_53 = arith.constant 0 : index
    %c0_54 = arith.constant 0 : index
    %115 = vector.load %arg4[%c0_52, %c0_53, %c0_54] : memref<8x1x16xf32, #tpu.memory_space<vmem>>, vector<8x1x16xf32>
    %116 = vector.extract_strided_slice %2 {offsets = [7, 0], sizes = [1, 32], strides = [1, 1]} : vector<8x32xf32> to vector<1x32xf32>
    %cst_55 = arith.constant dense<0.000000e+00> : vector<8x8x8xf32>
    %117 = tpu.matmul %103, %108, %cst_55 {dimension_numbers = #tpu.dot_dimension_numbers<[2], [2], [1], [1], [0, 0, 0, 1, 1, 1], [0], [0]>} : vector<8x8x33xf32>, vector<8x8x33xf32>, vector<8x8x8xf32> -> vector<8x8x8xf32>
    %cst_56 = arith.constant dense<0.000000e+00> : vector<8x16x8xf32>
    %118 = tpu.matmul %106, %110, %cst_56 {dimension_numbers = #tpu.dot_dimension_numbers<[2], [2], [1], [1], [0, 0, 0, 1, 1, 1], [0], [0]>} : vector<8x16x33xf32>, vector<8x8x33xf32>, vector<8x16x8xf32> -> vector<8x16x8xf32>
    %cst_57 = arith.constant dense<0.000000e+00> : vector<8x16x8xf32>
    %119 = tpu.matmul %106, %112, %cst_57 {dimension_numbers = #tpu.dot_dimension_numbers<[2], [2], [1], [1], [0, 0, 0, 1, 1, 1], [0], [0]>} : vector<8x16x33xf32>, vector<8x8x33xf32>, vector<8x16x8xf32> -> vector<8x16x8xf32>
    %cst_58 = arith.constant dense<0.000000e+00> : vector<8x8x16xf32>
    %120 = tpu.matmul %117, %118, %cst_58 {dimension_numbers = #tpu.dot_dimension_numbers<[2], [2], [1], [1], [0, 0, 0, 1, 1, 1], [0], [0]>} : vector<8x8x8xf32>, vector<8x16x8xf32>, vector<8x8x16xf32> -> vector<8x8x16xf32>
    %cst_59 = arith.constant 0.353553385 : f32
    %121 = vector.broadcast %cst_59 : f32 to vector<8x8x16xf32>
    %122 = arith.mulf %120, %121 : vector<8x8x16xf32>
    %123 = vector.broadcast %115 : vector<8x1x16xf32> to vector<8x8x16xf32>
    %124 = arith.addf %122, %123 : vector<8x8x16xf32>
    %cst_60 = arith.constant dense<0xFF800000> : vector<8x8xf32>
    %125 = vector.multi_reduction <maximumf>, %124, %cst_60 [2] : vector<8x8x16xf32> to vector<8x8xf32>
    %126 = vector.shape_cast %125 : vector<8x8xf32> to vector<8x8x1xf32>
    %127 = vector.broadcast %126 : vector<8x8x1xf32> to vector<8x8x16xf32>
    %128 = arith.subf %124, %127 : vector<8x8x16xf32>
    %129 = math.exp %128 : vector<8x8x16xf32>
    %cst_61 = arith.constant dense<0.000000e+00> : vector<8x8xf32>
    %130 = vector.multi_reduction <add>, %129, %cst_61 [2] : vector<8x8x16xf32> to vector<8x8xf32>
    %131 = vector.shape_cast %130 : vector<8x8xf32> to vector<8x8x1xf32>
    %132 = tpu.reciprocal %131 {approx = true} : vector<8x8x1xf32> -> vector<8x8x1xf32>
    %133 = vector.broadcast %132 : vector<8x8x1xf32> to vector<8x8x16xf32>
    %134 = arith.mulf %129, %133 : vector<8x8x16xf32>
    %cst_62 = arith.constant dense<0.000000e+00> : vector<8x8x8xf32>
    %135 = tpu.matmul %134, %119, %cst_62 {dimension_numbers = #tpu.dot_dimension_numbers<[2], [1], [1], [2], [0, 0, 0, 1, 1, 2], [0], [0]>} : vector<8x8x16xf32>, vector<8x16x8xf32>, vector<8x8x8xf32> -> vector<8x8x8xf32>
    %cst_63 = arith.constant dense<0.000000e+00> : vector<8x8x33xf32>
    %136 = tpu.matmul %135, %114, %cst_63 {dimension_numbers = #tpu.dot_dimension_numbers<[2], [1], [1], [2], [0, 0, 0, 1, 1, 2], [0], [0]>} : vector<8x8x8xf32>, vector<8x8x33xf32>, vector<8x8x33xf32> -> vector<8x8x33xf32>
    %137 = vector.extract_strided_slice %136 {offsets = [0, 0, 0], sizes = [8, 8, 32], strides = [1, 1, 1]} : vector<8x8x33xf32> to vector<8x8x32xf32>
    %138 = vector.shape_cast %137 : vector<8x8x32xf32> to vector<4x16x32xf32>
    %139 = vector.extract_strided_slice %138 {offsets = [0, 0, 0], sizes = [1, 16, 32], strides = [1, 1, 1]} : vector<4x16x32xf32> to vector<1x16x32xf32>
    %140 = vector.shape_cast %139 : vector<1x16x32xf32> to vector<16x32xf32>
    %141 = vector.extract_strided_slice %138 {offsets = [1, 0, 0], sizes = [1, 16, 32], strides = [1, 1, 1]} : vector<4x16x32xf32> to vector<1x16x32xf32>
    %142 = vector.shape_cast %141 : vector<1x16x32xf32> to vector<16x32xf32>
    %143 = arith.addf %140, %142 : vector<16x32xf32>
    %144 = vector.extract_strided_slice %138 {offsets = [2, 0, 0], sizes = [1, 16, 32], strides = [1, 1, 1]} : vector<4x16x32xf32> to vector<1x16x32xf32>
    %145 = vector.shape_cast %144 : vector<1x16x32xf32> to vector<16x32xf32>
    %146 = arith.addf %143, %145 : vector<16x32xf32>
    %147 = vector.extract_strided_slice %138 {offsets = [3, 0, 0], sizes = [1, 16, 32], strides = [1, 1, 1]} : vector<4x16x32xf32> to vector<1x16x32xf32>
    %148 = vector.shape_cast %147 : vector<1x16x32xf32> to vector<16x32xf32>
    %149 = arith.addf %146, %148 : vector<16x32xf32>
    %150 = vector.broadcast %116 : vector<1x32xf32> to vector<16x32xf32>
    %151 = arith.addf %149, %150 : vector<16x32xf32>
    %152 = arith.addf %77, %151 : vector<16x32xf32>
    %153 = vector.extract_strided_slice %2 {offsets = [4, 0], sizes = [1, 32], strides = [1, 1]} : vector<8x32xf32> to vector<1x32xf32>
    %154 = vector.extract_strided_slice %2 {offsets = [5, 0], sizes = [1, 32], strides = [1, 1]} : vector<8x32xf32> to vector<1x32xf32>
    %cst_64 = arith.constant dense<0.000000e+00> : vector<16xf32>
    %155 = vector.multi_reduction <add>, %152, %cst_64 [1] : vector<16x32xf32> to vector<16xf32>
    %156 = vector.shape_cast %155 : vector<16xf32> to vector<16x1xf32>
    %cst_65 = arith.constant 3.200000e+01 : f32
    %157 = vector.broadcast %cst_65 : f32 to vector<16x1xf32>
    %158 = arith.divf %156, %157 : vector<16x1xf32>
    %159 = vector.broadcast %158 : vector<16x1xf32> to vector<16x32xf32>
    %160 = arith.subf %152, %159 : vector<16x32xf32>
    %161 = arith.mulf %160, %160 : vector<16x32xf32>
    %cst_66 = arith.constant dense<0.000000e+00> : vector<16xf32>
    %162 = vector.multi_reduction <add>, %161, %cst_66 [1] : vector<16x32xf32> to vector<16xf32>
    %163 = vector.shape_cast %162 : vector<16xf32> to vector<16x1xf32>
    %cst_67 = arith.constant 0.0322580636 : f32
    %164 = vector.broadcast %cst_67 : f32 to vector<16x1xf32>
    %165 = arith.mulf %163, %164 : vector<16x1xf32>
    %166 = math.sqrt %165 : vector<16x1xf32>
    %cst_68 = arith.constant 9.99999997E-7 : f32
    %167 = vector.broadcast %cst_68 : f32 to vector<16x1xf32>
    %168 = arith.addf %166, %167 : vector<16x1xf32>
    %169 = tpu.reciprocal %168 {approx = true} : vector<16x1xf32> -> vector<16x1xf32>
    %170 = vector.broadcast %169 : vector<16x1xf32> to vector<16x32xf32>
    %171 = arith.mulf %160, %170 : vector<16x32xf32>
    %172 = vector.broadcast %153 : vector<1x32xf32> to vector<16x32xf32>
    %173 = arith.mulf %172, %171 : vector<16x32xf32>
    %174 = vector.broadcast %154 : vector<1x32xf32> to vector<16x32xf32>
    %175 = arith.addf %173, %174 : vector<16x32xf32>
    %176 = tpu.concatenate %175, %3 in 1 : vector<16x32xf32>, vector<16x1xf32> -> vector<16x33xf32>
    %c0_69 = arith.constant 0 : index
    %c0_70 = arith.constant 0 : index
    %177 = vector.load %arg7[%c0_69, %c0_70] : memref<33x64xf32, #tpu.memory_space<vmem>>, vector<33x64xf32>
    %cst_71 = arith.constant dense<0.000000e+00> : vector<16x64xf32>
    %178 = tpu.matmul %176, %177, %cst_71 {dimension_numbers = #tpu.dot_dimension_numbers<[1], [0], [0], [1], [0, 0, 1, 1], [], []>} : vector<16x33xf32>, vector<33x64xf32>, vector<16x64xf32> -> vector<16x64xf32>
    %cst_72 = arith.constant 0.000000e+00 : f32
    %179 = vector.broadcast %cst_72 : f32 to vector<16x64xf32>
    %180 = arith.maximumf %178, %179 : vector<16x64xf32>
    %181 = tpu.concatenate %180, %3 in 1 : vector<16x64xf32>, vector<16x1xf32> -> vector<16x65xf32>
    %c0_73 = arith.constant 0 : index
    %c0_74 = arith.constant 0 : index
    %182 = vector.load %arg8[%c0_73, %c0_74] : memref<65x32xf32, #tpu.memory_space<vmem>>, vector<65x32xf32>
    %cst_75 = arith.constant dense<0.000000e+00> : vector<16x32xf32>
    %183 = tpu.matmul %181, %182, %cst_75 {dimension_numbers = #tpu.dot_dimension_numbers<[1], [0], [0], [1], [0, 0, 1, 1], [], []>} : vector<16x65xf32>, vector<65x32xf32>, vector<16x32xf32> -> vector<16x32xf32>
    %184 = arith.addf %152, %183 : vector<16x32xf32>
    %c0_76 = arith.constant 0 : index
    %c0_77 = arith.constant 0 : index
    %185 = vector.load %arg9[%c0_76, %c0_77] : memref<16x32xf32, #tpu.memory_space<vmem>>, vector<16x32xf32>
    tpu.vector_store %arg9[%c0_76, %c0_77], %184 {strides = array<i32>} : memref<16x32xf32, #tpu.memory_space<vmem>>, vector<16x32xf32>,
    return
  }
  func.func @transform_0(%arg0: i32) -> (i32, i32) {
    %c0_i32 = arith.constant 0 : i32
    %c0_i32_0 = arith.constant 0 : i32
    %c0_i32_1 = arith.constant 0 : i32
    return %c0_i32, %c0_i32_0 : i32, i32
  }
  func.func @transform_1(%arg0: i32) -> (i32, i32) {
    %c0_i32 = arith.constant 0 : i32
    %c0_i32_0 = arith.constant 0 : i32
    %c0_i32_1 = arith.constant 0 : i32
    return %c0_i32, %c0_i32_0 : i32, i32
  }
  func.func @transform_2(%arg0: i32) -> (i32, i32) {
    %c0_i32 = arith.constant 0 : i32
    %c0_i32_0 = arith.constant 0 : i32
    %c0_i32_1 = arith.constant 0 : i32
    return %c0_i32, %c0_i32_0 : i32, i32
  }
  func.func @transform_3(%arg0: i32) -> (i32, i32, i32) {
    %c0_i32 = arith.constant 0 : i32
    %c0_i32_0 = arith.constant 0 : i32
    %c0_i32_1 = arith.constant 0 : i32
    %c0_i32_2 = arith.constant 0 : i32
    return %c0_i32, %c0_i32_0, %c0_i32_1 : i32, i32, i32
  }
  func.func @transform_4(%arg0: i32) -> (i32, i32, i32, i32) {
    %c0_i32 = arith.constant 0 : i32
    %c0_i32_0 = arith.constant 0 : i32
    %c0_i32_1 = arith.constant 0 : i32
    %c0_i32_2 = arith.constant 0 : i32
    %c0_i32_3 = arith.constant 0 : i32
    return %c0_i32, %c0_i32_0, %c0_i32_1, %c0_i32_2 : i32, i32, i32, i32
  }
  func.func @transform_5(%arg0: i32) -> (i32, i32) {
    %c0_i32 = arith.constant 0 : i32
    %c0_i32_0 = arith.constant 0 : i32
    %c0_i32_1 = arith.constant 0 : i32
    return %c0_i32, %c0_i32_0 : i32, i32
  }
  func.func @transform_6(%arg0: i32) -> (i32, i32) {
    %c0_i32 = arith.constant 0 : i32
    %c0_i32_0 = arith.constant 0 : i32
    %c0_i32_1 = arith.constant 0 : i32
    return %c0_i32, %c0_i32_0 : i32, i32
  }
  func.func @transform_7(%arg0: i32) -> (i32, i32) {
    %c0_i32 = arith.constant 0 : i32
    %c0_i32_0 = arith.constant 0 : i32
    %c0_i32_1 = arith.constant 0 : i32
    return %c0_i32, %c0_i32_0 : i32, i32
  }
  func.func @transform_8(%arg0: i32) -> (i32, i32) {
    %c0_i32 = arith.constant 0 : i32
    %c0_i32_0 = arith.constant 0 : i32
    %c0_i32_1 = arith.constant 0 : i32
    return %c0_i32, %c0_i32_0 : i32, i32
  }
}

</mosaic_0001>

<llo_original>
// kernel: decoder_layer_forward.1
$region0: #{decoder_layer_forward.1}
  #allocation0 [shape = 'u32[]', space=smem, size = 0x4, offset = 0x4, fixed_abs, tag = 'smem constant byte address 0x4 - core index']
  #allocation1 [shape = 'u32[144,128]{1,0:T(1,128)}', space=vmem, size = 0x12000, scoped, tag = 'internal scratch']
  %s0 = inlined_call_operand.vmem [shape: f32[16,32], index: 0, kind: input, shape index: {}]
  %s1 = inlined_call_operand.vmem [shape: f32[32,32], index: 1, kind: input, shape index: {}]
  %s2 = inlined_call_operand.vmem [shape: f32[8,8], index: 2, kind: input, shape index: {}]
  %s3 = inlined_call_operand.vmem [shape: f32[8,1,16], index: 3, kind: input, shape index: {}]
  %s4 = inlined_call_operand.vmem [shape: f32[8,8,8,33], index: 4, kind: input, shape index: {}]
  %s5 = inlined_call_operand.vmem [shape: f32[8,32], index: 5, kind: input, shape index: {}]
  %s6 = inlined_call_operand.vmem [shape: f32[33,64], index: 6, kind: input, shape index: {}]
  %s7 = inlined_call_operand.vmem [shape: f32[65,32], index: 7, kind: input, shape index: {}]
  %s8 = inlined_call_operand.hbm [shape: f32[16,32], index: 8, kind: output, shape index: {}]
  %s9 = sld [smem:[#allocation0]]
  $region42: #{decoder_layer_forward.1} parent=0
    _
  %s11 = ssub.s32 1, %s9
  %s12 = scalar_select 0, %s11, %s9
  $region1: #{decoder_layer_forward.1} parent=0
    #allocation2 [shape = 'u8[8192]{0}', space=vmem, size = 0x2000, scoped, tag = 'output window, operand 0, single buffered']
    #allocation3 [shape = 's32[1]{0}', space=sflag, size = 0x4, scoped, tag = 'scoped memory for decoder_layer_forward.1']
    %13 = vsyncpa [#allocation3], 0
    // Predicated region
    $region2: #{decoder_layer_forward.1} parent=1 // pred_check
      _
    $region3: #{decoder_layer_forward.1} parent=1 // pred_check_branch
      %15 = sbr.rel (0) target = $region5
    $region4: #{decoder_layer_forward.1} parent=1 // pred_region
      _
    $region5: #{decoder_layer_forward.1} parent=1 // pred_fallthru
      _
    // Predicated region
    $region6: #{decoder_layer_forward.1} parent=1 // pred_check
      _
    $region7: #{decoder_layer_forward.1} parent=1 // pred_check_branch
      %17 = sbr.rel (0) target = $region9
    $region8: #{decoder_layer_forward.1} parent=1 // pred_region
      _
    $region9: #{decoder_layer_forward.1} parent=1 // pred_fallthru
      _
    // Predicated region
    $region10: #{decoder_layer_forward.1} parent=1 // pred_check
      _
    $region11: #{decoder_layer_forward.1} parent=1 // pred_check_branch
      %19 = sbr.rel (0) target = $region13
    $region12: #{decoder_layer_forward.1} parent=1 // pred_region
      _
    $region13: #{decoder_layer_forward.1} parent=1 // pred_fallthru
      _
    // Predicated region
    $region14: #{decoder_layer_forward.1} parent=1 // pred_check
      _
    $region15: #{decoder_layer_forward.1} parent=1 // pred_check_branch
      %21 = sbr.rel (0) target = $region17
    $region16: #{decoder_layer_forward.1} parent=1 // pred_region
      _
    $region17: #{decoder_layer_forward.1} parent=1 // pred_fallthru
      _
    // Predicated region
    $region18: #{decoder_layer_forward.1} parent=1 // pred_check
      _
    $region19: #{decoder_layer_forward.1} parent=1 // pred_check_branch
      %23 = sbr.rel (0) target = $region21
    $region20: #{decoder_layer_forward.1} parent=1 // pred_region
      _
    $region21: #{decoder_layer_forward.1} parent=1 // pred_fallthru
      _
    // Predicated region
    $region22: #{decoder_layer_forward.1} parent=1 // pred_check
      _
    $region23: #{decoder_layer_forward.1} parent=1 // pred_check_branch
      %25 = sbr.rel (0) target = $region25
    $region24: #{decoder_layer_forward.1} parent=1 // pred_region
      _
    $region25: #{decoder_layer_forward.1} parent=1 // pred_fallthru
      _
    // Predicated region
    $region26: #{decoder_layer_forward.1} parent=1 // pred_check
      _
    $region27: #{decoder_layer_forward.1} parent=1 // pred_check_branch
      %27 = sbr.rel (0) target = $region29
    $region28: #{decoder_layer_forward.1} parent=1 // pred_region
      _
    $region29: #{decoder_layer_forward.1} parent=1 // pred_fallthru
      _
    // Predicated region
    $region30: #{decoder_layer_forward.1} parent=1 // pred_check
      _
    $region31: #{decoder_layer_forward.1} parent=1 // pred_check_branch
      %29 = sbr.rel (0) target = $region33
    $region32: #{decoder_layer_forward.1} parent=1 // pred_region
      _
    $region33: #{decoder_layer_forward.1} parent=1 // pred_fallthru
      _
    %v30 = vld [vmem:[%s0] sm:$0xff]
    %v31 = vld [vmem:[%s0 + $0x8] sm:$0xff]
    %v32 = vld [vmem:[%s1] sm:$0xff]
    %v33 = vld [vmem:[%s1 + $0x8] sm:$0xff]
    %v34 = vld [vmem:[%s1 + $0x10] sm:$0xff]
    %v35 = vld [vmem:[%s1 + $0x18] sm:$0xff]
    %v36 = vld [vmem:[%s5] sm:$0xff]
    %vm37 = vcmask 261120
    %v38 = vsel %vm37, %v30, 0.0
    %39 = vadd.xlane.f32.xlu0 %v38
    %v40 = vpop.xlane.xlu0 %39
    %v41 = vsel %vm37, %v31, 0.0
    %42 = vadd.xlane.f32.xlu0 %v41
    %v43 = vpop.xlane.xlu0 %42
    %v44 = vrcp.pop 32.0
    %v45 = vmul.f32 %v40, %v44
    %v46 = vmul.f32 %v43, %v44
    %v47 = vsub.f32 %v30, %v45
    %v48 = vsub.f32 %v31, %v46
    %v49 = vmul.f32 %v47, %v47
    %v50 = vmul.f32 %v48, %v48
    %v51 = vsel %vm37, %v49, 0.0
    %52 = vadd.xlane.f32.xlu0 %v51
    %v53 = vpop.xlane.xlu0 %52
    %v54 = vsel %vm37, %v50, 0.0
    %55 = vadd.xlane.f32.xlu0 %v54
    %v56 = vpop.xlane.xlu0 %55
    %v57 = vmul.f32 %v53, 0.032258064
    %v58 = vmul.f32 %v56, 0.032258064
    %v59 = vrsqrt.pop %v57
    %v60 = vmul.f32 %v57, %v59
    %vm61 = vcmp.eq.f32.partialorder %v57, inf
    %v62 = vsel %vm61, %v57, %v60
    %vm63 = vcmp.eq.f32.partialorder %v57, 0.0
    %v64 = vand.u32 %v57, 2147483648
    %v65 = vsel %vm63, %v64, %v62
    %v66 = vrsqrt.pop %v58
    %v67 = vmul.f32 %v58, %v66
    %vm68 = vcmp.eq.f32.partialorder %v58, inf
    %v69 = vsel %vm68, %v58, %v67
    %vm70 = vcmp.eq.f32.partialorder %v58, 0.0
    %v71 = vand.u32 %v58, 2147483648
    %v72 = vsel %vm70, %v71, %v69
    %v73 = vadd.f32 %v65, 1e-06
    %v74 = vadd.f32 %v72, 1e-06
    %v75 = vrcp.pop %v73
    %v76 = vrcp.pop %v74
    %v77 = vmul.f32 %v47, %v75
    %v78 = vmul.f32 %v48, %v76
    %v79 = vlaneseq
    %v80 = vshrl.u32 %v79, 7
    %v81 = vsub.s32 0, %v80
    %v82 = vrot.slane %v36, %v81
    %v83 = vmul.f32 %v82, %v77
    %v84 = vmul.f32 %v82, %v78
    %v85 = vlaneseq
    %v86 = vshrl.u32 %v85, 7
    %v87 = vsub.s32 1, %v86
    %v88 = vrot.slane %v36, %v87
    %v89 = vadd.f32 %v83, %v88
    %v90 = vadd.f32 %v84, %v88
    %v91 = vsel %vm37, %v89, 1.0
    %v92 = vsel %vm37, %v90, 1.0
    %v93 = vld [vmem:[%s4] sm:$0xff]
    %v94 = vld [vmem:[%s4 + $0x8] sm:$0xff]
    %v95 = vld [vmem:[%s4 + $0x10] sm:$0xff]
    %v96 = vld [vmem:[%s4 + $0x18] sm:$0xff]
    %v97 = vld [vmem:[%s4 + $0x20] sm:$0xff]
    %v98 = vld [vmem:[%s4 + $0x28] sm:$0xff]
    %v99 = vld [vmem:[%s4 + $0x30] sm:$0xff]
    %v100 = vld [vmem:[%s4 + $0x38] sm:$0xff]
    %s101 = scalar_lea.vmem %s4, 64
    %v102 = vld [vmem:[%s101] sm:$0xff]
    %v103 = vld [vmem:[%s101 + $0x8] sm:$0xff]
    %v104 = vld [vmem:[%s101 + $0x10] sm:$0xff]
    %v105 = vld [vmem:[%s101 + $0x18] sm:$0xff]
    %v106 = vld [vmem:[%s101 + $0x20] sm:$0xff]
    %v107 = vld [vmem:[%s101 + $0x28] sm:$0xff]
    %v108 = vld [vmem:[%s101 + $0x30] sm:$0xff]
    %v109 = vld [vmem:[%s101 + $0x38] sm:$0xff]
    %s110 = scalar_lea.vmem %s4, 128
    %v111 = vld [vmem:[%s110] sm:$0xff]
    %v112 = vld [vmem:[%s110 + $0x8] sm:$0xff]
    %v113 = vld [vmem:[%s110 + $0x10] sm:$0xff]
    %v114 = vld [vmem:[%s110 + $0x18] sm:$0xff]
    %v115 = vld [vmem:[%s110 + $0x20] sm:$0xff]
    %v116 = vld [vmem:[%s110 + $0x28] sm:$0xff]
    %v117 = vld [vmem:[%s110 + $0x30] sm:$0xff]
    %v118 = vld [vmem:[%s110 + $0x38] sm:$0xff]
    %s119 = scalar_lea.vmem %s4, 192
    %v120 = vld [vmem:[%s119] sm:$0xff]
    %v121 = vld [vmem:[%s119 + $0x8] sm:$0xff]
    %v122 = vld [vmem:[%s119 + $0x10] sm:$0xff]
    %v123 = vld [vmem:[%s119 + $0x18] sm:$0xff]
    %v124 = vld [vmem:[%s119 + $0x20] sm:$0xff]
    %v125 = vld [vmem:[%s119 + $0x28] sm:$0xff]
    %v126 = vld [vmem:[%s119 + $0x30] sm:$0xff]
    %v127 = vld [vmem:[%s119 + $0x38] sm:$0xff]
    %v128 = vld [vmem:[%s2] sm:$0xff]
    %vm129 = vcmask 269312
    %v131 = vsel %vm129, %v91, 0
    %v134 = vsel %vm129, %v93, 0
    %136 = vmatprep.subr.mxu0 0.0
    %137 = vmatpush1.xpose.msra.mxu0 0.0
    %138 = vmatprep.subr.mxu0 0.0
    %139 = vmatpush1.xpose.msra.mxu0 0.0
    %140 = vmatprep.subr.mxu0 0.0
    %141 = vmatpush1.xpose.msra.mxu0 0.0
    %142 = vmatprep.subr.mxu0 0.0
    %143 = vmatpush1.xpose.msra.mxu0 0.0
    %144 = vmatprep.subr.mxu0 0.0
    %145 = vmatpush1.xpose.msra.mxu0 0.0
    %146 = vmatprep.subr.mxu0 0.0
    %147 = vmatpush1.xpose.msra.mxu0 0.0
    %148 = vmatprep.subr.mxu0 0.0
    %149 = vmatpush1.xpose.msra.mxu0 0.0
    %150 = vmatprep.subr.mxu0 0.0
    %151 = vmatpush1.xpose.msra.mxu0 0.0
    %152 = vmatprep.subr.mxu0 0.0
    %153 = vmatpush1.xpose.msra.mxu0 0.0
    %154 = vmatprep.subr.mxu0 0.0
    %155 = vmatpush1.xpose.msra.mxu0 0.0
    %156 = vmatprep.subr.mxu0 0.0
    %157 = vmatpush1.xpose.msra.mxu0 0.0
    %158 = vmatprep.subr.mxu0 0.0
    %159 = vmatpush1.xpose.msra.mxu0 0.0
    %160 = vmatprep.subr.mxu0 0.0
    %161 = vmatpush1.xpose.msra.mxu0 0.0
    %162 = vmatprep.subr.mxu0 0.0
    %163 = vmatpush1.xpose.msra.mxu0 0.0
    %164 = vmatprep.subr.mxu0 0.0
    %165 = vmatpush1.xpose.msra.mxu0 0.0
    %166 = vmatprep.subr.mxu0 0.0
    %167 = vmatpush1.xpose.msra.mxu0 %v134
    %168 = vmatprep.subr.mxu0 0.0
    %169 = vmatpush2.xpose.msra.mxu0 0.0
    %170 = vmatprep.subr.mxu0 0.0
    %171 = vmatpush2.xpose.msra.mxu0 0.0
    %172 = vmatprep.subr.mxu0 0.0
    %173 = vmatpush2.xpose.msra.mxu0 0.0
    %174 = vmatprep.subr.mxu0 0.0
    %175 = vmatpush2.xpose.msra.mxu0 0.0
    %176 = vmatprep.subr.mxu0 0.0
    %177 = vmatpush2.xpose.msra.mxu0 0.0
    %178 = vmatprep.subr.mxu0 0.0
    %179 = vmatpush2.xpose.msra.mxu0 0.0
    %180 = vmatprep.subr.mxu0 0.0
    %181 = vmatpush2.xpose.msra.mxu0 0.0
    %182 = vmatprep.subr.mxu0 0.0
    %183 = vmatpush2.xpose.msra.mxu0 0.0
    %184 = vmatprep.subr.mxu0 0.0
    %185 = vmatpush2.xpose.msra.mxu0 0.0
    %186 = vmatprep.subr.mxu0 0.0
    %187 = vmatpush2.xpose.msra.mxu0 0.0
    %188 = vmatprep.subr.mxu0 0.0
    %189 = vmatpush2.xpose.msra.mxu0 0.0
    %190 = vmatprep.subr.mxu0 0.0
    %191 = vmatpush2.xpose.msra.mxu0 0.0
    %192 = vmatprep.subr.mxu0 0.0
    %193 = vmatpush2.xpose.msra.mxu0 0.0
    %194 = vmatprep.subr.mxu0 0.0
    %195 = vmatpush2.xpose.msra.mxu0 0.0
    %196 = vmatprep.subr.mxu0 0.0
    %197 = vmatpush2.xpose.msra.mxu0 0.0
    %198 = vmatprep.subr.mxu0 0.0
    %199 = vmatpush2.xpose.msra.mxu0 0.0
    %200 = vmatprep.mubr.f32.mxu0 0.0
    %201 = vmatmul.mubr.f32.gmra.mxu0 %v131
    %v202 = vpop.f32.mrf.mxu0
    %v203 = vadd.f32 0.0, %v202
    %v204 = vpop.f32.mrf.mxu0
    %205 = vdwg.mxu0
    %v207 = vsel %vm129, %v92, 0
    %v210 = vsel %vm129, %v94, 0
    %212 = vmatprep.subr.mxu0 0.0
    %213 = vmatpush1.xpose.msra.mxu0 0.0
    %214 = vmatprep.subr.mxu0 0.0
    %215 = vmatpush1.xpose.msra.mxu0 0.0
    %216 = vmatprep.subr.mxu0 0.0
    %217 = vmatpush1.xpose.msra.mxu0 0.0
    %218 = vmatprep.subr.mxu0 0.0
    %219 = vmatpush1.xpose.msra.mxu0 0.0
    %220 = vmatprep.subr.mxu0 0.0
    %221 = vmatpush1.xpose.msra.mxu0 0.0
    %222 = vmatprep.subr.mxu0 0.0
    %223 = vmatpush1.xpose.msra.mxu0 0.0
    %224 = vmatprep.subr.mxu0 0.0
    %225 = vmatpush1.xpose.msra.mxu0 0.0
    %226 = vmatprep.subr.mxu0 0.0
    %227 = vmatpush1.xpose.msra.mxu0 0.0
    %228 = vmatprep.subr.mxu0 0.0
    %229 = vmatpush1.xpose.msra.mxu0 0.0
    %230 = vmatprep.subr.mxu0 0.0
    %231 = vmatpush1.xpose.msra.mxu0 0.0
    %232 = vmatprep.subr.mxu0 0.0
    %233 = vmatpush1.xpose.msra.mxu0 0.0
    %234 = vmatprep.subr.mxu0 0.0
    %235 = vmatpush1.xpose.msra.mxu0 0.0
    %236 = vmatprep.subr.mxu0 0.0
    %237 = vmatpush1.xpose.msra.mxu0 0.0
    %238 = vmatprep.subr.mxu0 0.0
    %239 = vmatpush1.xpose.msra.mxu0 0.0
    %240 = vmatprep.subr.mxu0 0.0
    %241 = vmatpush1.xpose.msra.mxu0 0.0
    %242 = vmatprep.subr.mxu0 0.0
    %243 = vmatpush1.xpose.msra.mxu0 %v210
    %244 = vmatprep.subr.mxu0 0.0
    %245 = vmatpush2.xpose.msra.mxu0 0.0
    %246 = vmatprep.subr.mxu0 0.0
    %247 = vmatpush2.xpose.msra.mxu0 0.0
    %248 = vmatprep.subr.mxu0 0.0
    %249 = vmatpush2.xpose.msra.mxu0 0.0
    %250 = vmatprep.subr.mxu0 0.0
    %251 = vmatpush2.xpose.msra.mxu0 0.0
    %252 = vmatprep.subr.mxu0 0.0
    %253 = vmatpush2.xpose.msra.mxu0 0.0
    %254 = vmatprep.subr.mxu0 0.0
    %255 = vmatpush2.xpose.msra.mxu0 0.0
    %256 = vmatprep.subr.mxu0 0.0
    %257 = vmatpush2.xpose.msra.mxu0 0.0
    %258 = vmatprep.subr.mxu0 0.0
    %259 = vmatpush2.xpose.msra.mxu0 0.0
    %260 = vmatprep.subr.mxu0 0.0
    %261 = vmatpush2.xpose.msra.mxu0 0.0
    %262 = vmatprep.subr.mxu0 0.0
    %263 = vmatpush2.xpose.msra.mxu0 0.0
    %264 = vmatprep.subr.mxu0 0.0
    %265 = vmatpush2.xpose.msra.mxu0 0.0
    %266 = vmatprep.subr.mxu0 0.0
    %267 = vmatpush2.xpose.msra.mxu0 0.0
    %268 = vmatprep.subr.mxu0 0.0
    %269 = vmatpush2.xpose.msra.mxu0 0.0
    %270 = vmatprep.subr.mxu0 0.0
    %271 = vmatpush2.xpose.msra.mxu0 0.0
    %272 = vmatprep.subr.mxu0 0.0
    %273 = vmatpush2.xpose.msra.mxu0 0.0
    %274 = vmatprep.subr.mxu0 0.0
    %275 = vmatpush2.xpose.msra.mxu0 0.0
    %276 = vmatprep.mubr.f32.mxu0 0.0
    %277 = vmatmul.mubr.f32.gmra.mxu0 %v207
    %v278 = vpop.f32.mrf.mxu0
    %v279 = vadd.f32 0.0, %v278
    %v280 = vpop.f32.mrf.mxu0
    %281 = vdwg.mxu0
    %v283 = vsel %vm129, %v95, 0
    %285 = vmatprep.subr.mxu0 0.0
    %286 = vmatpush1.xpose.msra.mxu0 0.0
    %287 = vmatprep.subr.mxu0 0.0
    %288 = vmatpush1.xpose.msra.mxu0 0.0
    %289 = vmatprep.subr.mxu0 0.0
    %290 = vmatpush1.xpose.msra.mxu0 0.0
    %291 = vmatprep.subr.mxu0 0.0
    %292 = vmatpush1.xpose.msra.mxu0 0.0
    %293 = vmatprep.subr.mxu0 0.0
    %294 = vmatpush1.xpose.msra.mxu0 0.0
    %295 = vmatprep.subr.mxu0 0.0
    %296 = vmatpush1.xpose.msra.mxu0 0.0
    %297 = vmatprep.subr.mxu0 0.0
    %298 = vmatpush1.xpose.msra.mxu0 0.0
    %299 = vmatprep.subr.mxu0 0.0
    %300 = vmatpush1.xpose.msra.mxu0 0.0
    %301 = vmatprep.subr.mxu0 0.0
    %302 = vmatpush1.xpose.msra.mxu0 0.0
    %303 = vmatprep.subr.mxu0 0.0
    %304 = vmatpush1.xpose.msra.mxu0 0.0
    %305 = vmatprep.subr.mxu0 0.0
    %306 = vmatpush1.xpose.msra.mxu0 0.0
    %307 = vmatprep.subr.mxu0 0.0
    %308 = vmatpush1.xpose.msra.mxu0 0.0
    %309 = vmatprep.subr.mxu0 0.0
    %310 = vmatpush1.xpose.msra.mxu0 0.0
    %311 = vmatprep.subr.mxu0 0.0
    %312 = vmatpush1.xpose.msra.mxu0 0.0
    %313 = vmatprep.subr.mxu0 0.0
    %314 = vmatpush1.xpose.msra.mxu0 0.0
    %315 = vmatprep.subr.mxu0 0.0
    %316 = vmatpush1.xpose.msra.mxu0 %v283
    %317 = vmatprep.subr.mxu0 0.0
    %318 = vmatpush2.xpose.msra.mxu0 0.0
    %319 = vmatprep.subr.mxu0 0.0
    %320 = vmatpush2.xpose.msra.mxu0 0.0
    %321 = vmatprep.subr.mxu0 0.0
    %322 = vmatpush2.xpose.msra.mxu0 0.0
    %323 = vmatprep.subr.mxu0 0.0
    %324 = vmatpush2.xpose.msra.mxu0 0.0
    %325 = vmatprep.subr.mxu0 0.0
    %326 = vmatpush2.xpose.msra.mxu0 0.0
    %327 = vmatprep.subr.mxu0 0.0
    %328 = vmatpush2.xpose.msra.mxu0 0.0
    %329 = vmatprep.subr.mxu0 0.0
    %330 = vmatpush2.xpose.msra.mxu0 0.0
    %331 = vmatprep.subr.mxu0 0.0
    %332 = vmatpush2.xpose.msra.mxu0 0.0
    %333 = vmatprep.subr.mxu0 0.0
    %334 = vmatpush2.xpose.msra.mxu0 0.0
    %335 = vmatprep.subr.mxu0 0.0
    %336 = vmatpush2.xpose.msra.mxu0 0.0
    %337 = vmatprep.subr.mxu0 0.0
    %338 = vmatpush2.xpose.msra.mxu0 0.0
    %339 = vmatprep.subr.mxu0 0.0
    %340 = vmatpush2.xpose.msra.mxu0 0.0
    %341 = vmatprep.subr.mxu0 0.0
    %342 = vmatpush2.xpose.msra.mxu0 0.0
    %343 = vmatprep.subr.mxu0 0.0
    %344 = vmatpush2.xpose.msra.mxu0 0.0
    %345 = vmatprep.subr.mxu0 0.0
    %346 = vmatpush2.xpose.msra.mxu0 0.0
    %347 = vmatprep.subr.mxu0 0.0
    %348 = vmatpush2.xpose.msra.mxu0 0.0
    %349 = vmatprep.mubr.f32.mxu0 0.0
    %350 = vmatmul.mubr.f32.gmra.mxu0 %v131
    %v351 = vpop.f32.mrf.mxu0
    %v352 = vadd.f32 0.0, %v351
    %v353 = vpop.f32.mrf.mxu0
    %354 = vdwg.mxu0
    %v356 = vsel %vm129, %v96, 0
    %358 = vmatprep.subr.mxu0 0.0
    %359 = vmatpush1.xpose.msra.mxu0 0.0
    %360 = vmatprep.subr.mxu0 0.0
    %361 = vmatpush1.xpose.msra.mxu0 0.0
    %362 = vmatprep.subr.mxu0 0.0
    %363 = vmatpush1.xpose.msra.mxu0 0.0
    %364 = vmatprep.subr.mxu0 0.0
    %365 = vmatpush1.xpose.msra.mxu0 0.0
    %366 = vmatprep.subr.mxu0 0.0
    %367 = vmatpush1.xpose.msra.mxu0 0.0
    %368 = vmatprep.subr.mxu0 0.0
    %369 = vmatpush1.xpose.msra.mxu0 0.0
    %370 = vmatprep.subr.mxu0 0.0
    %371 = vmatpush1.xpose.msra.mxu0 0.0
    %372 = vmatprep.subr.mxu0 0.0
    %373 = vmatpush1.xpose.msra.mxu0 0.0
    %374 = vmatprep.subr.mxu0 0.0
    %375 = vmatpush1.xpose.msra.mxu0 0.0
    %376 = vmatprep.subr.mxu0 0.0
    %377 = vmatpush1.xpose.msra.mxu0 0.0
    %378 = vmatprep.subr.mxu0 0.0
    %379 = vmatpush1.xpose.msra.mxu0 0.0
    %380 = vmatprep.subr.mxu0 0.0
    %381 = vmatpush1.xpose.msra.mxu0 0.0
    %382 = vmatprep.subr.mxu0 0.0
    %383 = vmatpush1.xpose.msra.mxu0 0.0
    %384 = vmatprep.subr.mxu0 0.0
    %385 = vmatpush1.xpose.msra.mxu0 0.0
    %386 = vmatprep.subr.mxu0 0.0
    %387 = vmatpush1.xpose.msra.mxu0 0.0
    %388 = vmatprep.subr.mxu0 0.0
    %389 = vmatpush1.xpose.msra.mxu0 %v356
    %390 = vmatprep.subr.mxu0 0.0
    %391 = vmatpush2.xpose.msra.mxu0 0.0
    %392 = vmatprep.subr.mxu0 0.0
    %393 = vmatpush2.xpose.msra.mxu0 0.0
    %394 = vmatprep.subr.mxu0 0.0
    %395 = vmatpush2.xpose.msra.mxu0 0.0
    %396 = vmatprep.subr.mxu0 0.0
    %397 = vmatpush2.xpose.msra.mxu0 0.0
    %398 = vmatprep.subr.mxu0 0.0
    %399 = vmatpush2.xpose.msra.mxu0 0.0
    %400 = vmatprep.subr.mxu0 0.0
    %401 = vmatpush2.xpose.msra.mxu0 0.0
    %402 = vmatprep.subr.mxu0 0.0
    %403 = vmatpush2.xpose.msra.mxu0 0.0
    %404 = vmatprep.subr.mxu0 0.0
    %405 = vmatpush2.xpose.msra.mxu0 0.0
    %406 = vmatprep.subr.mxu0 0.0
    %407 = vmatpush2.xpose.msra.mxu0 0.0
    %408 = vmatprep.subr.mxu0 0.0
    %409 = vmatpush2.xpose.msra.mxu0 0.0
    %410 = vmatprep.subr.mxu0 0.0
    %411 = vmatpush2.xpose.msra.mxu0 0.0
    %412 = vmatprep.subr.mxu0 0.0
    %413 = vmatpush2.xpose.msra.mxu0 0.0
    %414 = vmatprep.subr.mxu0 0.0
    %415 = vmatpush2.xpose.msra.mxu0 0.0
    %416 = vmatprep.subr.mxu0 0.0
    %417 = vmatpush2.xpose.msra.mxu0 0.0
    %418 = vmatprep.subr.mxu0 0.0
    %419 = vmatpush2.xpose.msra.mxu0 0.0
    %420 = vmatprep.subr.mxu0 0.0
    %421 = vmatpush2.xpose.msra.mxu0 0.0
    %422 = vmatprep.mubr.f32.mxu0 0.0
    %423 = vmatmul.mubr.f32.gmra.mxu0 %v207
    %v424 = vpop.f32.mrf.mxu0
    %v425 = vadd.f32 0.0, %v424
    %v426 = vpop.f32.mrf.mxu0
    %427 = vdwg.mxu0
    %v429 = vsel %vm129, %v97, 0
    %431 = vmatprep.subr.mxu0 0.0
    %432 = vmatpush1.xpose.msra.mxu0 0.0
    %433 = vmatprep.subr.mxu0 0.0
    %434 = vmatpush1.xpose.msra.mxu0 0.0
    %435 = vmatprep.subr.mxu0 0.0
    %436 = vmatpush1.xpose.msra.mxu0 0.0
    %437 = vmatprep.subr.mxu0 0.0
    %438 = vmatpush1.xpose.msra.mxu0 0.0
    %439 = vmatprep.subr.mxu0 0.0
    %440 = vmatpush1.xpose.msra.mxu0 0.0
    %441 = vmatprep.subr.mxu0 0.0
    %442 = vmatpush1.xpose.msra.mxu0 0.0
    %443 = vmatprep.subr.mxu0 0.0
    %444 = vmatpush1.xpose.msra.mxu0 0.0
    %445 = vmatprep.subr.mxu0 0.0
    %446 = vmatpush1.xpose.msra.mxu0 0.0
    %447 = vmatprep.subr.mxu0 0.0
    %448 = vmatpush1.xpose.msra.mxu0 0.0
    %449 = vmatprep.subr.mxu0 0.0
    %450 = vmatpush1.xpose.msra.mxu0 0.0
    %451 = vmatprep.subr.mxu0 0.0
    %452 = vmatpush1.xpose.msra.mxu0 0.0
    %453 = vmatprep.subr.mxu0 0.0
    %454 = vmatpush1.xpose.msra.mxu0 0.0
    %455 = vmatprep.subr.mxu0 0.0
    %456 = vmatpush1.xpose.msra.mxu0 0.0
    %457 = vmatprep.subr.mxu0 0.0
    %458 = vmatpush1.xpose.msra.mxu0 0.0
    %459 = vmatprep.subr.mxu0 0.0
    %460 = vmatpush1.xpose.msra.mxu0 0.0
    %461 = vmatprep.subr.mxu0 0.0
    %462 = vmatpush1.xpose.msra.mxu0 %v429
    %463 = vmatprep.subr.mxu0 0.0
    %464 = vmatpush2.xpose.msra.mxu0 0.0
    %465 = vmatprep.subr.mxu0 0.0
    %466 = vmatpush2.xpose.msra.mxu0 0.0
    %467 = vmatprep.subr.mxu0 0.0
    %468 = vmatpush2.xpose.msra.mxu0 0.0
    %469 = vmatprep.subr.mxu0 0.0
    %470 = vmatpush2.xpose.msra.mxu0 0.0
    %471 = vmatprep.subr.mxu0 0.0
    %472 = vmatpush2.xpose.msra.mxu0 0.0
    %473 = vmatprep.subr.mxu0 0.0
    %474 = vmatpush2.xpose.msra.mxu0 0.0
    %475 = vmatprep.subr.mxu0 0.0
    %476 = vmatpush2.xpose.msra.mxu0 0.0
    %477 = vmatprep.subr.mxu0 0.0
    %478 = vmatpush2.xpose.msra.mxu0 0.0
    %479 = vmatprep.subr.mxu0 0.0
    %480 = vmatpush2.xpose.msra.mxu0 0.0
    %481 = vmatprep.subr.mxu0 0.0
    %482 = vmatpush2.xpose.msra.mxu0 0.0
    %483 = vmatprep.subr.mxu0 0.0
    %484 = vmatpush2.xpose.msra.mxu0 0.0
    %485 = vmatprep.subr.mxu0 0.0
    %486 = vmatpush2.xpose.msra.mxu0 0.0
    %487 = vmatprep.subr.mxu0 0.0
    %488 = vmatpush2.xpose.msra.mxu0 0.0
    %489 = vmatprep.subr.mxu0 0.0
    %490 = vmatpush2.xpose.msra.mxu0 0.0
    %491 = vmatprep.subr.mxu0 0.0
    %492 = vmatpush2.xpose.msra.mxu0 0.0
    %493 = vmatprep.subr.mxu0 0.0
    %494 = vmatpush2.xpose.msra.mxu0 0.0
    %495 = vmatprep.mubr.f32.mxu0 0.0
    %496 = vmatmul.mubr.f32.gmra.mxu0 %v131
    %v497 = vpop.f32.mrf.mxu0
    %v498 = vadd.f32 0.0, %v497
    %v499 = vpop.f32.mrf.mxu0
    %500 = vdwg.mxu0
    %v502 = vsel %vm129, %v98, 0
    %504 = vmatprep.subr.mxu0 0.0
    %505 = vmatpush1.xpose.msra.mxu0 0.0
    %506 = vmatprep.subr.mxu0 0.0
    %507 = vmatpush1.xpose.msra.mxu0 0.0
    %508 = vmatprep.subr.mxu0 0.0
    %509 = vmatpush1.xpose.msra.mxu0 0.0
    %510 = vmatprep.subr.mxu0 0.0
    %511 = vmatpush1.xpose.msra.mxu0 0.0
    %512 = vmatprep.subr.mxu0 0.0
    %513 = vmatpush1.xpose.msra.mxu0 0.0
    %514 = vmatprep.subr.mxu0 0.0
    %515 = vmatpush1.xpose.msra.mxu0 0.0
    %516 = vmatprep.subr.mxu0 0.0
    %517 = vmatpush1.xpose.msra.mxu0 0.0
    %518 = vmatprep.subr.mxu0 0.0
    %519 = vmatpush1.xpose.msra.mxu0 0.0
    %520 = vmatprep.subr.mxu0 0.0
    %521 = vmatpush1.xpose.msra.mxu0 0.0
    %522 = vmatprep.subr.mxu0 0.0
    %523 = vmatpush1.xpose.msra.mxu0 0.0
    %524 = vmatprep.subr.mxu0 0.0
    %525 = vmatpush1.xpose.msra.mxu0 0.0
    %526 = vmatprep.subr.mxu0 0.0
    %527 = vmatpush1.xpose.msra.mxu0 0.0
    %528 = vmatprep.subr.mxu0 0.0
    %529 = vmatpush1.xpose.msra.mxu0 0.0
    %530 = vmatprep.subr.mxu0 0.0
    %531 = vmatpush1.xpose.msra.mxu0 0.0
    %532 = vmatprep.subr.mxu0 0.0
    %533 = vmatpush1.xpose.msra.mxu0 0.0
    %534 = vmatprep.subr.mxu0 0.0
    %535 = vmatpush1.xpose.msra.mxu0 %v502
    %536 = vmatprep.subr.mxu0 0.0
    %537 = vmatpush2.xpose.msra.mxu0 0.0
    %538 = vmatprep.subr.mxu0 0.0
    %539 = vmatpush2.xpose.msra.mxu0 0.0
    %540 = vmatprep.subr.mxu0 0.0
    %541 = vmatpush2.xpose.msra.mxu0 0.0
    %542 = vmatprep.subr.mxu0 0.0
    %543 = vmatpush2.xpose.msra.mxu0 0.0
    %544 = vmatprep.subr.mxu0 0.0
    %545 = vmatpush2.xpose.msra.mxu0 0.0
    %546 = vmatprep.subr.mxu0 0.0
    %547 = vmatpush2.xpose.msra.mxu0 0.0
    %548 = vmatprep.subr.mxu0 0.0
    %549 = vmatpush2.xpose.msra.mxu0 0.0
    %550 = vmatprep.subr.mxu0 0.0
    %551 = vmatpush2.xpose.msra.mxu0 0.0
    %552 = vmatprep.subr.mxu0 0.0
    %553 = vmatpush2.xpose.msra.mxu0 0.0
    %554 = vmatprep.subr.mxu0 0.0
    %555 = vmatpush2.xpose.msra.mxu0 0.0
    %556 = vmatprep.subr.mxu0 0.0
    %557 = vmatpush2.xpose.msra.mxu0 0.0
    %558 = vmatprep.subr.mxu0 0.0
    %559 = vmatpush2.xpose.msra.mxu0 0.0
    %560 = vmatprep.subr.mxu0 0.0
    %561 = vmatpush2.xpose.msra.mxu0 0.0
    %562 = vmatprep.subr.mxu0 0.0
    %563 = vmatpush2.xpose.msra.mxu0 0.0
    %564 = vmatprep.subr.mxu0 0.0
    %565 = vmatpush2.xpose.msra.mxu0 0.0
    %566 = vmatprep.subr.mxu0 0.0
    %567 = vmatpush2.xpose.msra.mxu0 0.0
    %568 = vmatprep.mubr.f32.mxu0 0.0
    %569 = vmatmul.mubr.f32.gmra.mxu0 %v207
    %v570 = vpop.f32.mrf.mxu0
    %v571 = vadd.f32 0.0, %v570
    %v572 = vpop.f32.mrf.mxu0
    %573 = vdwg.mxu0
    %v575 = vsel %vm129, %v99, 0
    %577 = vmatprep.subr.mxu0 0.0
    %578 = vmatpush1.xpose.msra.mxu0 0.0
    %579 = vmatprep.subr.mxu0 0.0
    %580 = vmatpush1.xpose.msra.mxu0 0.0
    %581 = vmatprep.subr.mxu0 0.0
    %582 = vmatpush1.xpose.msra.mxu0 0.0
    %583 = vmatprep.subr.mxu0 0.0
    %584 = vmatpush1.xpose.msra.mxu0 0.0
    %585 = vmatprep.subr.mxu0 0.0
    %586 = vmatpush1.xpose.msra.mxu0 0.0
    %587 = vmatprep.subr.mxu0 0.0
    %588 = vmatpush1.xpose.msra.mxu0 0.0
    %589 = vmatprep.subr.mxu0 0.0
    %590 = vmatpush1.xpose.msra.mxu0 0.0
    %591 = vmatprep.subr.mxu0 0.0
    %592 = vmatpush1.xpose.msra.mxu0 0.0
    %593 = vmatprep.subr.mxu0 0.0
    %594 = vmatpush1.xpose.msra.mxu0 0.0
    %595 = vmatprep.subr.mxu0 0.0
    %596 = vmatpush1.xpose.msra.mxu0 0.0
    %597 = vmatprep.subr.mxu0 0.0
    %598 = vmatpush1.xpose.msra.mxu0 0.0
    %599 = vmatprep.subr.mxu0 0.0
    %600 = vmatpush1.xpose.msra.mxu0 0.0
    %601 = vmatprep.subr.mxu0 0.0
    %602 = vmatpush1.xpose.msra.mxu0 0.0
    %603 = vmatprep.subr.mxu0 0.0
    %604 = vmatpush1.xpose.msra.mxu0 0.0
    %605 = vmatprep.subr.mxu0 0.0
    %606 = vmatpush1.xpose.msra.mxu0 0.0
    %607 = vmatprep.subr.mxu0 0.0
    %608 = vmatpush1.xpose.msra.mxu0 %v575
    %609 = vmatprep.subr.mxu0 0.0
    %610 = vmatpush2.xpose.msra.mxu0 0.0
    %611 = vmatprep.subr.mxu0 0.0
    %612 = vmatpush2.xpose.msra.mxu0 0.0
    %613 = vmatprep.subr.mxu0 0.0
    %614 = vmatpush2.xpose.msra.mxu0 0.0
    %615 = vmatprep.subr.mxu0 0.0
    %616 = vmatpush2.xpose.msra.mxu0 0.0
    %617 = vmatprep.subr.mxu0 0.0
    %618 = vmatpush2.xpose.msra.mxu0 0.0
    %619 = vmatprep.subr.mxu0 0.0
    %620 = vmatpush2.xpose.msra.mxu0 0.0
    %621 = vmatprep.subr.mxu0 0.0
    %622 = vmatpush2.xpose.msra.mxu0 0.0
    %623 = vmatprep.subr.mxu0 0.0
    %624 = vmatpush2.xpose.msra.mxu0 0.0
    %625 = vmatprep.subr.mxu0 0.0
    %626 = vmatpush2.xpose.msra.mxu0 0.0
    %627 = vmatprep.subr.mxu0 0.0
    %628 = vmatpush2.xpose.msra.mxu0 0.0
    %629 = vmatprep.subr.mxu0 0.0
    %630 = vmatpush2.xpose.msra.mxu0 0.0
    %631 = vmatprep.subr.mxu0 0.0
    %632 = vmatpush2.xpose.msra.mxu0 0.0
    %633 = vmatprep.subr.mxu0 0.0
    %634 = vmatpush2.xpose.msra.mxu0 0.0
    %635 = vmatprep.subr.mxu0 0.0
    %636 = vmatpush2.xpose.msra.mxu0 0.0
    %637 = vmatprep.subr.mxu0 0.0
    %638 = vmatpush2.xpose.msra.mxu0 0.0
    %639 = vmatprep.subr.mxu0 0.0
    %640 = vmatpush2.xpose.msra.mxu0 0.0
    %641 = vmatprep.mubr.f32.mxu0 0.0
    %642 = vmatmul.mubr.f32.gmra.mxu0 %v131
    %v643 = vpop.f32.mrf.mxu0
    %v644 = vadd.f32 0.0, %v643
    %v645 = vpop.f32.mrf.mxu0
    %646 = vdwg.mxu0
    %v648 = vsel %vm129, %v100, 0
    %650 = vmatprep.subr.mxu0 0.0
    %651 = vmatpush1.xpose.msra.mxu0 0.0
    %652 = vmatprep.subr.mxu0 0.0
    %653 = vmatpush1.xpose.msra.mxu0 0.0
    %654 = vmatprep.subr.mxu0 0.0
    %655 = vmatpush1.xpose.msra.mxu0 0.0
    %656 = vmatprep.subr.mxu0 0.0
    %657 = vmatpush1.xpose.msra.mxu0 0.0
    %658 = vmatprep.subr.mxu0 0.0
    %659 = vmatpush1.xpose.msra.mxu0 0.0
    %660 = vmatprep.subr.mxu0 0.0
    %661 = vmatpush1.xpose.msra.mxu0 0.0
    %662 = vmatprep.subr.mxu0 0.0
    %663 = vmatpush1.xpose.msra.mxu0 0.0
    %664 = vmatprep.subr.mxu0 0.0
    %665 = vmatpush1.xpose.msra.mxu0 0.0
    %666 = vmatprep.subr.mxu0 0.0
    %667 = vmatpush1.xpose.msra.mxu0 0.0
    %668 = vmatprep.subr.mxu0 0.0
    %669 = vmatpush1.xpose.msra.mxu0 0.0
    %670 = vmatprep.subr.mxu0 0.0
    %671 = vmatpush1.xpose.msra.mxu0 0.0
    %672 = vmatprep.subr.mxu0 0.0
    %673 = vmatpush1.xpose.msra.mxu0 0.0
    %674 = vmatprep.subr.mxu0 0.0
    %675 = vmatpush1.xpose.msra.mxu0 0.0
    %676 = vmatprep.subr.mxu0 0.0
    %677 = vmatpush1.xpose.msra.mxu0 0.0
    %678 = vmatprep.subr.mxu0 0.0
    %679 = vmatpush1.xpose.msra.mxu0 0.0
    %680 = vmatprep.subr.mxu0 0.0
    %681 = vmatpush1.xpose.msra.mxu0 %v648
    %682 = vmatprep.subr.mxu0 0.0
    %683 = vmatpush2.xpose.msra.mxu0 0.0
    %684 = vmatprep.subr.mxu0 0.0
    %685 = vmatpush2.xpose.msra.mxu0 0.0
    %686 = vmatprep.subr.mxu0 0.0
    %687 = vmatpush2.xpose.msra.mxu0 0.0
    %688 = vmatprep.subr.mxu0 0.0
    %689 = vmatpush2.xpose.msra.mxu0 0.0
    %690 = vmatprep.subr.mxu0 0.0
    %691 = vmatpush2.xpose.msra.mxu0 0.0
    %692 = vmatprep.subr.mxu0 0.0
    %693 = vmatpush2.xpose.msra.mxu0 0.0
    %694 = vmatprep.subr.mxu0 0.0
    %695 = vmatpush2.xpose.msra.mxu0 0.0
    %696 = vmatprep.subr.mxu0 0.0
    %697 = vmatpush2.xpose.msra.mxu0 0.0
    %698 = vmatprep.subr.mxu0 0.0
    %699 = vmatpush2.xpose.msra.mxu0 0.0
    %700 = vmatprep.subr.mxu0 0.0
    %701 = vmatpush2.xpose.msra.mxu0 0.0
    %702 = vmatprep.subr.mxu0 0.0
    %703 = vmatpush2.xpose.msra.mxu0 0.0
    %704 = vmatprep.subr.mxu0 0.0
    %705 = vmatpush2.xpose.msra.mxu0 0.0
    %706 = vmatprep.subr.mxu0 0.0
    %707 = vmatpush2.xpose.msra.mxu0 0.0
    %708 = vmatprep.subr.mxu0 0.0
    %709 = vmatpush2.xpose.msra.mxu0 0.0
    %710 = vmatprep.subr.mxu0 0.0
    %711 = vmatpush2.xpose.msra.mxu0 0.0
    %712 = vmatprep.subr.mxu0 0.0
    %713 = vmatpush2.xpose.msra.mxu0 0.0
    %714 = vmatprep.mubr.f32.mxu0 0.0
    %715 = vmatmul.mubr.f32.gmra.mxu0 %v207
    %v716 = vpop.f32.mrf.mxu0
    %v717 = vadd.f32 0.0, %v716
    %v718 = vpop.f32.mrf.mxu0
    %719 = vdwg.mxu0
    %v721 = vsel %vm129, %v102, 0
    %723 = vmatprep.subr.mxu0 0.0
    %724 = vmatpush1.xpose.msra.mxu0 0.0
    %725 = vmatprep.subr.mxu0 0.0
    %726 = vmatpush1.xpose.msra.mxu0 0.0
    %727 = vmatprep.subr.mxu0 0.0
    %728 = vmatpush1.xpose.msra.mxu0 0.0
    %729 = vmatprep.subr.mxu0 0.0
    %730 = vmatpush1.xpose.msra.mxu0 0.0
    %731 = vmatprep.subr.mxu0 0.0
    %732 = vmatpush1.xpose.msra.mxu0 0.0
    %733 = vmatprep.subr.mxu0 0.0
    %734 = vmatpush1.xpose.msra.mxu0 0.0
    %735 = vmatprep.subr.mxu0 0.0
    %736 = vmatpush1.xpose.msra.mxu0 0.0
    %737 = vmatprep.subr.mxu0 0.0
    %738 = vmatpush1.xpose.msra.mxu0 0.0
    %739 = vmatprep.subr.mxu0 0.0
    %740 = vmatpush1.xpose.msra.mxu0 0.0
    %741 = vmatprep.subr.mxu0 0.0
    %742 = vmatpush1.xpose.msra.mxu0 0.0
    %743 = vmatprep.subr.mxu0 0.0
    %744 = vmatpush1.xpose.msra.mxu0 0.0
    %745 = vmatprep.subr.mxu0 0.0
    %746 = vmatpush1.xpose.msra.mxu0 0.0
    %747 = vmatprep.subr.mxu0 0.0
    %748 = vmatpush1.xpose.msra.mxu0 0.0
    %749 = vmatprep.subr.mxu0 0.0
    %750 = vmatpush1.xpose.msra.mxu0 0.0
    %751 = vmatprep.subr.mxu0 0.0
    %752 = vmatpush1.xpose.msra.mxu0 0.0
    %753 = vmatprep.subr.mxu0 0.0
    %754 = vmatpush1.xpose.msra.mxu0 %v721
    %755 = vmatprep.subr.mxu0 0.0
    %756 = vmatpush2.xpose.msra.mxu0 0.0
    %757 = vmatprep.subr.mxu0 0.0
    %758 = vmatpush2.xpose.msra.mxu0 0.0
    %759 = vmatprep.subr.mxu0 0.0
    %760 = vmatpush2.xpose.msra.mxu0 0.0
    %761 = vmatprep.subr.mxu0 0.0
    %762 = vmatpush2.xpose.msra.mxu0 0.0
    %763 = vmatprep.subr.mxu0 0.0
    %764 = vmatpush2.xpose.msra.mxu0 0.0
    %765 = vmatprep.subr.mxu0 0.0
    %766 = vmatpush2.xpose.msra.mxu0 0.0
    %767 = vmatprep.subr.mxu0 0.0
    %768 = vmatpush2.xpose.msra.mxu0 0.0
    %769 = vmatprep.subr.mxu0 0.0
    %770 = vmatpush2.xpose.msra.mxu0 0.0
    %771 = vmatprep.subr.mxu0 0.0
    %772 = vmatpush2.xpose.msra.mxu0 0.0
    %773 = vmatprep.subr.mxu0 0.0
    %774 = vmatpush2.xpose.msra.mxu0 0.0
    %775 = vmatprep.subr.mxu0 0.0
    %776 = vmatpush2.xpose.msra.mxu0 0.0
    %777 = vmatprep.subr.mxu0 0.0
    %778 = vmatpush2.xpose.msra.mxu0 0.0
    %779 = vmatprep.subr.mxu0 0.0
    %780 = vmatpush2.xpose.msra.mxu0 0.0
    %781 = vmatprep.subr.mxu0 0.0
    %782 = vmatpush2.xpose.msra.mxu0 0.0
    %783 = vmatprep.subr.mxu0 0.0
    %784 = vmatpush2.xpose.msra.mxu0 0.0
    %785 = vmatprep.subr.mxu0 0.0
    %786 = vmatpush2.xpose.msra.mxu0 0.0
    %787 = vmatprep.mubr.f32.mxu0 0.0
    %788 = vmatmul.mubr.f32.gmra.mxu0 %v131
    %v789 = vpop.f32.mrf.mxu0
    %v790 = vadd.f32 0.0, %v789
    %v791 = vpop.f32.mrf.mxu0
    %792 = vdwg.mxu0
    %v794 = vsel %vm129, %v103, 0
    %796 = vmatprep.subr.mxu0 0.0
    %797 = vmatpush1.xpose.msra.mxu0 0.0
    %798 = vmatprep.subr.mxu0 0.0
    %799 = vmatpush1.xpose.msra.mxu0 0.0
    %800 = vmatprep.subr.mxu0 0.0
    %801 = vmatpush1.xpose.msra.mxu0 0.0
    %802 = vmatprep.subr.mxu0 0.0
    %803 = vmatpush1.xpose.msra.mxu0 0.0
    %804 = vmatprep.subr.mxu0 0.0
    %805 = vmatpush1.xpose.msra.mxu0 0.0
    %806 = vmatprep.subr.mxu0 0.0
    %807 = vmatpush1.xpose.msra.mxu0 0.0
    %808 = vmatprep.subr.mxu0 0.0
    %809 = vmatpush1.xpose.msra.mxu0 0.0
    %810 = vmatprep.subr.mxu0 0.0
    %811 = vmatpush1.xpose.msra.mxu0 0.0
    %812 = vmatprep.subr.mxu0 0.0
    %813 = vmatpush1.xpose.msra.mxu0 0.0
    %814 = vmatprep.subr.mxu0 0.0
    %815 = vmatpush1.xpose.msra.mxu0 0.0
    %816 = vmatprep.subr.mxu0 0.0
    %817 = vmatpush1.xpose.msra.mxu0 0.0
    %818 = vmatprep.subr.mxu0 0.0
    %819 = vmatpush1.xpose.msra.mxu0 0.0
    %820 = vmatprep.subr.mxu0 0.0
    %821 = vmatpush1.xpose.msra.mxu0 0.0
    %822 = vmatprep.subr.mxu0 0.0
    %823 = vmatpush1.xpose.msra.mxu0 0.0
    %824 = vmatprep.subr.mxu0 0.0
    %825 = vmatpush1.xpose.msra.mxu0 0.0
    %826 = vmatprep.subr.mxu0 0.0
    %827 = vmatpush1.xpose.msra.mxu0 %v794
    %828 = vmatprep.subr.mxu0 0.0
    %829 = vmatpush2.xpose.msra.mxu0 0.0
    %830 = vmatprep.subr.mxu0 0.0
    %831 = vmatpush2.xpose.msra.mxu0 0.0
    %832 = vmatprep.subr.mxu0 0.0
    %833 = vmatpush2.xpose.msra.mxu0 0.0
    %834 = vmatprep.subr.mxu0 0.0
    %835 = vmatpush2.xpose.msra.mxu0 0.0
    %836 = vmatprep.subr.mxu0 0.0
    %837 = vmatpush2.xpose.msra.mxu0 0.0
    %838 = vmatprep.subr.mxu0 0.0
    %839 = vmatpush2.xpose.msra.mxu0 0.0
    %840 = vmatprep.subr.mxu0 0.0
    %841 = vmatpush2.xpose.msra.mxu0 0.0
    %842 = vmatprep.subr.mxu0 0.0
    %843 = vmatpush2.xpose.msra.mxu0 0.0
    %844 = vmatprep.subr.mxu0 0.0
    %845 = vmatpush2.xpose.msra.mxu0 0.0
    %846 = vmatprep.subr.mxu0 0.0
    %847 = vmatpush2.xpose.msra.mxu0 0.0
    %848 = vmatprep.subr.mxu0 0.0
    %849 = vmatpush2.xpose.msra.mxu0 0.0
    %850 = vmatprep.subr.mxu0 0.0
    %851 = vmatpush2.xpose.msra.mxu0 0.0
    %852 = vmatprep.subr.mxu0 0.0
    %853 = vmatpush2.xpose.msra.mxu0 0.0
    %854 = vmatprep.subr.mxu0 0.0
    %855 = vmatpush2.xpose.msra.mxu0 0.0
    %856 = vmatprep.subr.mxu0 0.0
    %857 = vmatpush2.xpose.msra.mxu0 0.0
    %858 = vmatprep.subr.mxu0 0.0
    %859 = vmatpush2.xpose.msra.mxu0 0.0
    %860 = vmatprep.mubr.f32.mxu0 0.0
    %861 = vmatmul.mubr.f32.gmra.mxu0 %v207
    %v862 = vpop.f32.mrf.mxu0
    %v863 = vadd.f32 0.0, %v862
    %v864 = vpop.f32.mrf.mxu0
    %865 = vdwg.mxu0
    %v867 = vsel %vm129, %v104, 0
    %869 = vmatprep.subr.mxu0 0.0
    %870 = vmatpush1.xpose.msra.mxu0 0.0
    %871 = vmatprep.subr.mxu0 0.0
    %872 = vmatpush1.xpose.msra.mxu0 0.0
    %873 = vmatprep.subr.mxu0 0.0
    %874 = vmatpush1.xpose.msra.mxu0 0.0
    %875 = vmatprep.subr.mxu0 0.0
    %876 = vmatpush1.xpose.msra.mxu0 0.0
    %877 = vmatprep.subr.mxu0 0.0
    %878 = vmatpush1.xpose.msra.mxu0 0.0
    %879 = vmatprep.subr.mxu0 0.0
    %880 = vmatpush1.xpose.msra.mxu0 0.0
    %881 = vmatprep.subr.mxu0 0.0
    %882 = vmatpush1.xpose.msra.mxu0 0.0
    %883 = vmatprep.subr.mxu0 0.0
    %884 = vmatpush1.xpose.msra.mxu0 0.0
    %885 = vmatprep.subr.mxu0 0.0
    %886 = vmatpush1.xpose.msra.mxu0 0.0
    %887 = vmatprep.subr.mxu0 0.0
    %888 = vmatpush1.xpose.msra.mxu0 0.0
    %889 = vmatprep.subr.mxu0 0.0
    %890 = vmatpush1.xpose.msra.mxu0 0.0
    %891 = vmatprep.subr.mxu0 0.0
    %892 = vmatpush1.xpose.msra.mxu0 0.0
    %893 = vmatprep.subr.mxu0 0.0
    %894 = vmatpush1.xpose.msra.mxu0 0.0
    %895 = vmatprep.subr.mxu0 0.0
    %896 = vmatpush1.xpose.msra.mxu0 0.0
    %897 = vmatprep.subr.mxu0 0.0
    %898 = vmatpush1.xpose.msra.mxu0 0.0
    %899 = vmatprep.subr.mxu0 0.0
    %900 = vmatpush1.xpose.msra.mxu0 %v867
    %901 = vmatprep.subr.mxu0 0.0
    %902 = vmatpush2.xpose.msra.mxu0 0.0
    %903 = vmatprep.subr.mxu0 0.0
    %904 = vmatpush2.xpose.msra.mxu0 0.0
    %905 = vmatprep.subr.mxu0 0.0
    %906 = vmatpush2.xpose.msra.mxu0 0.0
    %907 = vmatprep.subr.mxu0 0.0
    %908 = vmatpush2.xpose.msra.mxu0 0.0
    %909 = vmatprep.subr.mxu0 0.0
    %910 = vmatpush2.xpose.msra.mxu0 0.0
    %911 = vmatprep.subr.mxu0 0.0
    %912 = vmatpush2.xpose.msra.mxu0 0.0
    %913 = vmatprep.subr.mxu0 0.0
    %914 = vmatpush2.xpose.msra.mxu0 0.0
    %915 = vmatprep.subr.mxu0 0.0
    %916 = vmatpush2.xpose.msra.mxu0 0.0
    %917 = vmatprep.subr.mxu0 0.0
    %918 = vmatpush2.xpose.msra.mxu0 0.0
    %919 = vmatprep.subr.mxu0 0.0
    %920 = vmatpush2.xpose.msra.mxu0 0.0
    %921 = vmatprep.subr.mxu0 0.0
    %922 = vmatpush2.xpose.msra.mxu0 0.0
    %923 = vmatprep.subr.mxu0 0.0
    %924 = vmatpush2.xpose.msra.mxu0 0.0
    %925 = vmatprep.subr.mxu0 0.0
    %926 = vmatpush2.xpose.msra.mxu0 0.0
    %927 = vmatprep.subr.mxu0 0.0
    %928 = vmatpush2.xpose.msra.mxu0 0.0
    %929 = vmatprep.subr.mxu0 0.0
    %930 = vmatpush2.xpose.msra.mxu0 0.0
    %931 = vmatprep.subr.mxu0 0.0
    %932 = vmatpush2.xpose.msra.mxu0 0.0
    %933 = vmatprep.mubr.f32.mxu0 0.0
    %934 = vmatmul.mubr.f32.gmra.mxu0 %v131
    %v935 = vpop.f32.mrf.mxu0
    %v936 = vadd.f32 0.0, %v935
    %v937 = vpop.f32.mrf.mxu0
    %938 = vdwg.mxu0
    %v940 = vsel %vm129, %v105, 0
    %942 = vmatprep.subr.mxu0 0.0
    %943 = vmatpush1.xpose.msra.mxu0 0.0
    %944 = vmatprep.subr.mxu0 0.0
    %945 = vmatpush1.xpose.msra.mxu0 0.0
    %946 = vmatprep.subr.mxu0 0.0
    %947 = vmatpush1.xpose.msra.mxu0 0.0
    %948 = vmatprep.subr.mxu0 0.0
    %949 = vmatpush1.xpose.msra.mxu0 0.0
    %950 = vmatprep.subr.mxu0 0.0
    %951 = vmatpush1.xpose.msra.mxu0 0.0
    %952 = vmatprep.subr.mxu0 0.0
    %953 = vmatpush1.xpose.msra.mxu0 0.0
    %954 = vmatprep.subr.mxu0 0.0
    %955 = vmatpush1.xpose.msra.mxu0 0.0
    %956 = vmatprep.subr.mxu0 0.0
    %957 = vmatpush1.xpose.msra.mxu0 0.0
    %958 = vmatprep.subr.mxu0 0.0
    %959 = vmatpush1.xpose.msra.mxu0 0.0
    %960 = vmatprep.subr.mxu0 0.0
    %961 = vmatpush1.xpose.msra.mxu0 0.0
    %962 = vmatprep.subr.mxu0 0.0
    %963 = vmatpush1.xpose.msra.mxu0 0.0
    %964 = vmatprep.subr.mxu0 0.0
    %965 = vmatpush1.xpose.msra.mxu0 0.0
    %966 = vmatprep.subr.mxu0 0.0
    %967 = vmatpush1.xpose.msra.mxu0 0.0
    %968 = vmatprep.subr.mxu0 0.0
    %969 = vmatpush1.xpose.msra.mxu0 0.0
    %970 = vmatprep.subr.mxu0 0.0
    %971 = vmatpush1.xpose.msra.mxu0 0.0
    %972 = vmatprep.subr.mxu0 0.0
    %973 = vmatpush1.xpose.msra.mxu0 %v940
    %974 = vmatprep.subr.mxu0 0.0
    %975 = vmatpush2.xpose.msra.mxu0 0.0
    %976 = vmatprep.subr.mxu0 0.0
    %977 = vmatpush2.xpose.msra.mxu0 0.0
    %978 = vmatprep.subr.mxu0 0.0
    %979 = vmatpush2.xpose.msra.mxu0 0.0
    %980 = vmatprep.subr.mxu0 0.0
    %981 = vmatpush2.xpose.msra.mxu0 0.0
    %982 = vmatprep.subr.mxu0 0.0
    %983 = vmatpush2.xpose.msra.mxu0 0.0
    %984 = vmatprep.subr.mxu0 0.0
    %985 = vmatpush2.xpose.msra.mxu0 0.0
    %986 = vmatprep.subr.mxu0 0.0
    %987 = vmatpush2.xpose.msra.mxu0 0.0
    %988 = vmatprep.subr.mxu0 0.0
    %989 = vmatpush2.xpose.msra.mxu0 0.0
    %990 = vmatprep.subr.mxu0 0.0
    %991 = vmatpush2.xpose.msra.mxu0 0.0
    %992 = vmatprep.subr.mxu0 0.0
    %993 = vmatpush2.xpose.msra.mxu0 0.0
    %994 = vmatprep.subr.mxu0 0.0
    %995 = vmatpush2.xpose.msra.mxu0 0.0
    %996 = vmatprep.subr.mxu0 0.0
    %997 = vmatpush2.xpose.msra.mxu0 0.0
    %998 = vmatprep.subr.mxu0 0.0
    %999 = vmatpush2.xpose.msra.mxu0 0.0
    %1000 = vmatprep.subr.mxu0 0.0
    %1001 = vmatpush2.xpose.msra.mxu0 0.0
    %1002 = vmatprep.subr.mxu0 0.0
    %1003 = vmatpush2.xpose.msra.mxu0 0.0
    %1004 = vmatprep.subr.mxu0 0.0
    %1005 = vmatpush2.xpose.msra.mxu0 0.0
    %1006 = vmatprep.mubr.f32.mxu0 0.0
    %1007 = vmatmul.mubr.f32.gmra.mxu0 %v207
    %v1008 = vpop.f32.mrf.mxu0
    %v1009 = vadd.f32 0.0, %v1008
    %v1010 = vpop.f32.mrf.mxu0
    %1011 = vdwg.mxu0
    %v1013 = vsel %vm129, %v106, 0
    %1015 = vmatprep.subr.mxu0 0.0
    %1016 = vmatpush1.xpose.msra.mxu0 0.0
    %1017 = vmatprep.subr.mxu0 0.0
    %1018 = vmatpush1.xpose.msra.mxu0 0.0
    %1019 = vmatprep.subr.mxu0 0.0
    %1020 = vmatpush1.xpose.msra.mxu0 0.0
    %1021 = vmatprep.subr.mxu0 0.0
    %1022 = vmatpush1.xpose.msra.mxu0 0.0
    %1023 = vmatprep.subr.mxu0 0.0
    %1024 = vmatpush1.xpose.msra.mxu0 0.0
    %1025 = vmatprep.subr.mxu0 0.0
    %1026 = vmatpush1.xpose.msra.mxu0 0.0
    %1027 = vmatprep.subr.mxu0 0.0
    %1028 = vmatpush1.xpose.msra.mxu0 0.0
    %1029 = vmatprep.subr.mxu0 0.0
    %1030 = vmatpush1.xpose.msra.mxu0 0.0
    %1031 = vmatprep.subr.mxu0 0.0
    %1032 = vmatpush1.xpose.msra.mxu0 0.0
    %1033 = vmatprep.subr.mxu0 0.0
    %1034 = vmatpush1.xpose.msra.mxu0 0.0
    %1035 = vmatprep.subr.mxu0 0.0
    %1036 = vmatpush1.xpose.msra.mxu0 0.0
    %1037 = vmatprep.subr.mxu0 0.0
    %1038 = vmatpush1.xpose.msra.mxu0 0.0
    %1039 = vmatprep.subr.mxu0 0.0
    %1040 = vmatpush1.xpose.msra.mxu0 0.0
    %1041 = vmatprep.subr.mxu0 0.0
    %1042 = vmatpush1.xpose.msra.mxu0 0.0
    %1043 = vmatprep.subr.mxu0 0.0
    %1044 = vmatpush1.xpose.msra.mxu0 0.0
    %1045 = vmatprep.subr.mxu0 0.0
    %1046 = vmatpush1.xpose.msra.mxu0 %v1013
    %1047 = vmatprep.subr.mxu0 0.0
    %1048 = vmatpush2.xpose.msra.mxu0 0.0
    %1049 = vmatprep.subr.mxu0 0.0
    %1050 = vmatpush2.xpose.msra.mxu0 0.0
    %1051 = vmatprep.subr.mxu0 0.0
    %1052 = vmatpush2.xpose.msra.mxu0 0.0
    %1053 = vmatprep.subr.mxu0 0.0
    %1054 = vmatpush2.xpose.msra.mxu0 0.0
    %1055 = vmatprep.subr.mxu0 0.0
    %1056 = vmatpush2.xpose.msra.mxu0 0.0
    %1057 = vmatprep.subr.mxu0 0.0
    %1058 = vmatpush2.xpose.msra.mxu0 0.0
    %1059 = vmatprep.subr.mxu0 0.0
    %1060 = vmatpush2.xpose.msra.mxu0 0.0
    %1061 = vmatprep.subr.mxu0 0.0
    %1062 = vmatpush2.xpose.msra.mxu0 0.0
    %1063 = vmatprep.subr.mxu0 0.0
    %1064 = vmatpush2.xpose.msra.mxu0 0.0
    %1065 = vmatprep.subr.mxu0 0.0
    %1066 = vmatpush2.xpose.msra.mxu0 0.0
    %1067 = vmatprep.subr.mxu0 0.0
    %1068 = vmatpush2.xpose.msra.mxu0 0.0
    %1069 = vmatprep.subr.mxu0 0.0
    %1070 = vmatpush2.xpose.msra.mxu0 0.0
    %1071 = vmatprep.subr.mxu0 0.0
    %1072 = vmatpush2.xpose.msra.mxu0 0.0
    %1073 = vmatprep.subr.mxu0 0.0
    %1074 = vmatpush2.xpose.msra.mxu0 0.0
    %1075 = vmatprep.subr.mxu0 0.0
    %1076 = vmatpush2.xpose.msra.mxu0 0.0
    %1077 = vmatprep.subr.mxu0 0.0
    %1078 = vmatpush2.xpose.msra.mxu0 0.0
    %1079 = vmatprep.mubr.f32.mxu0 0.0
    %1080 = vmatmul.mubr.f32.gmra.mxu0 %v131
    %v1081 = vpop.f32.mrf.mxu0
    %v1082 = vadd.f32 0.0, %v1081
    %v1083 = vpop.f32.mrf.mxu0
    %1084 = vdwg.mxu0
    %v1086 = vsel %vm129, %v107, 0
    %1088 = vmatprep.subr.mxu0 0.0
    %1089 = vmatpush1.xpose.msra.mxu0 0.0
    %1090 = vmatprep.subr.mxu0 0.0
    %1091 = vmatpush1.xpose.msra.mxu0 0.0
    %1092 = vmatprep.subr.mxu0 0.0
    %1093 = vmatpush1.xpose.msra.mxu0 0.0
    %1094 = vmatprep.subr.mxu0 0.0
    %1095 = vmatpush1.xpose.msra.mxu0 0.0
    %1096 = vmatprep.subr.mxu0 0.0
    %1097 = vmatpush1.xpose.msra.mxu0 0.0
    %1098 = vmatprep.subr.mxu0 0.0
    %1099 = vmatpush1.xpose.msra.mxu0 0.0
    %1100 = vmatprep.subr.mxu0 0.0
    %1101 = vmatpush1.xpose.msra.mxu0 0.0
    %1102 = vmatprep.subr.mxu0 0.0
    %1103 = vmatpush1.xpose.msra.mxu0 0.0
    %1104 = vmatprep.subr.mxu0 0.0
    %1105 = vmatpush1.xpose.msra.mxu0 0.0
    %1106 = vmatprep.subr.mxu0 0.0
    %1107 = vmatpush1.xpose.msra.mxu0 0.0
    %1108 = vmatprep.subr.mxu0 0.0
    %1109 = vmatpush1.xpose.msra.mxu0 0.0
    %1110 = vmatprep.subr.mxu0 0.0
    %1111 = vmatpush1.xpose.msra.mxu0 0.0
    %1112 = vmatprep.subr.mxu0 0.0
    %1113 = vmatpush1.xpose.msra.mxu0 0.0
    %1114 = vmatprep.subr.mxu0 0.0
    %1115 = vmatpush1.xpose.msra.mxu0 0.0
    %1116 = vmatprep.subr.mxu0 0.0
    %1117 = vmatpush1.xpose.msra.mxu0 0.0
    %1118 = vmatprep.subr.mxu0 0.0
    %1119 = vmatpush1.xpose.msra.mxu0 %v1086
    %1120 = vmatprep.subr.mxu0 0.0
    %1121 = vmatpush2.xpose.msra.mxu0 0.0
    %1122 = vmatprep.subr.mxu0 0.0
    %1123 = vmatpush2.xpose.msra.mxu0 0.0
    %1124 = vmatprep.subr.mxu0 0.0
    %1125 = vmatpush2.xpose.msra.mxu0 0.0
    %1126 = vmatprep.subr.mxu0 0.0
    %1127 = vmatpush2.xpose.msra.mxu0 0.0
    %1128 = vmatprep.subr.mxu0 0.0
    %1129 = vmatpush2.xpose.msra.mxu0 0.0
    %1130 = vmatprep.subr.mxu0 0.0
    %1131 = vmatpush2.xpose.msra.mxu0 0.0
    %1132 = vmatprep.subr.mxu0 0.0
    %1133 = vmatpush2.xpose.msra.mxu0 0.0
    %1134 = vmatprep.subr.mxu0 0.0
    %1135 = vmatpush2.xpose.msra.mxu0 0.0
    %1136 = vmatprep.subr.mxu0 0.0
    %1137 = vmatpush2.xpose.msra.mxu0 0.0
    %1138 = vmatprep.subr.mxu0 0.0
    %1139 = vmatpush2.xpose.msra.mxu0 0.0
    %1140 = vmatprep.subr.mxu0 0.0
    %1141 = vmatpush2.xpose.msra.mxu0 0.0
    %1142 = vmatprep.subr.mxu0 0.0
    %1143 = vmatpush2.xpose.msra.mxu0 0.0
    %1144 = vmatprep.subr.mxu0 0.0
    %1145 = vmatpush2.xpose.msra.mxu0 0.0
    %1146 = vmatprep.subr.mxu0 0.0
    %1147 = vmatpush2.xpose.msra.mxu0 0.0
    %1148 = vmatprep.subr.mxu0 0.0
    %1149 = vmatpush2.xpose.msra.mxu0 0.0
    %1150 = vmatprep.subr.mxu0 0.0
    %1151 = vmatpush2.xpose.msra.mxu0 0.0
    %1152 = vmatprep.mubr.f32.mxu0 0.0
    %1153 = vmatmul.mubr.f32.gmra.mxu0 %v207
    %v1154 = vpop.f32.mrf.mxu0
    %v1155 = vadd.f32 0.0, %v1154
    %v1156 = vpop.f32.mrf.mxu0
    %1157 = vdwg.mxu0
    %v1159 = vsel %vm129, %v108, 0
    %1161 = vmatprep.subr.mxu0 0.0
    %1162 = vmatpush1.xpose.msra.mxu0 0.0
    %1163 = vmatprep.subr.mxu0 0.0
    %1164 = vmatpush1.xpose.msra.mxu0 0.0
    %1165 = vmatprep.subr.mxu0 0.0
    %1166 = vmatpush1.xpose.msra.mxu0 0.0
    %1167 = vmatprep.subr.mxu0 0.0
    %1168 = vmatpush1.xpose.msra.mxu0 0.0
    %1169 = vmatprep.subr.mxu0 0.0
    %1170 = vmatpush1.xpose.msra.mxu0 0.0
    %1171 = vmatprep.subr.mxu0 0.0
    %1172 = vmatpush1.xpose.msra.mxu0 0.0
    %1173 = vmatprep.subr.mxu0 0.0
    %1174 = vmatpush1.xpose.msra.mxu0 0.0
    %1175 = vmatprep.subr.mxu0 0.0
    %1176 = vmatpush1.xpose.msra.mxu0 0.0
    %1177 = vmatprep.subr.mxu0 0.0
    %1178 = vmatpush1.xpose.msra.mxu0 0.0
    %1179 = vmatprep.subr.mxu0 0.0
    %1180 = vmatpush1.xpose.msra.mxu0 0.0
    %1181 = vmatprep.subr.mxu0 0.0
    %1182 = vmatpush1.xpose.msra.mxu0 0.0
    %1183 = vmatprep.subr.mxu0 0.0
    %1184 = vmatpush1.xpose.msra.mxu0 0.0
    %1185 = vmatprep.subr.mxu0 0.0
    %1186 = vmatpush1.xpose.msra.mxu0 0.0
    %1187 = vmatprep.subr.mxu0 0.0
    %1188 = vmatpush1.xpose.msra.mxu0 0.0
    %1189 = vmatprep.subr.mxu0 0.0
    %1190 = vmatpush1.xpose.msra.mxu0 0.0
    %1191 = vmatprep.subr.mxu0 0.0
    %1192 = vmatpush1.xpose.msra.mxu0 %v1159
    %1193 = vmatprep.subr.mxu0 0.0
    %1194 = vmatpush2.xpose.msra.mxu0 0.0
    %1195 = vmatprep.subr.mxu0 0.0
    %1196 = vmatpush2.xpose.msra.mxu0 0.0
    %1197 = vmatprep.subr.mxu0 0.0
    %1198 = vmatpush2.xpose.msra.mxu0 0.0
    %1199 = vmatprep.subr.mxu0 0.0
    %1200 = vmatpush2.xpose.msra.mxu0 0.0
    %1201 = vmatprep.subr.mxu0 0.0
    %1202 = vmatpush2.xpose.msra.mxu0 0.0
    %1203 = vmatprep.subr.mxu0 0.0
    %1204 = vmatpush2.xpose.msra.mxu0 0.0
    %1205 = vmatprep.subr.mxu0 0.0
    %1206 = vmatpush2.xpose.msra.mxu0 0.0
    %1207 = vmatprep.subr.mxu0 0.0
    %1208 = vmatpush2.xpose.msra.mxu0 0.0
    %1209 = vmatprep.subr.mxu0 0.0
    %1210 = vmatpush2.xpose.msra.mxu0 0.0
    %1211 = vmatprep.subr.mxu0 0.0
    %1212 = vmatpush2.xpose.msra.mxu0 0.0
    %1213 = vmatprep.subr.mxu0 0.0
    %1214 = vmatpush2.xpose.msra.mxu0 0.0
    %1215 = vmatprep.subr.mxu0 0.0
    %1216 = vmatpush2.xpose.msra.mxu0 0.0
    %1217 = vmatprep.subr.mxu0 0.0
    %1218 = vmatpush2.xpose.msra.mxu0 0.0
    %1219 = vmatprep.subr.mxu0 0.0
    %1220 = vmatpush2.xpose.msra.mxu0 0.0
    %1221 = vmatprep.subr.mxu0 0.0
    %1222 = vmatpush2.xpose.msra.mxu0 0.0
    %1223 = vmatprep.subr.mxu0 0.0
    %1224 = vmatpush2.xpose.msra.mxu0 0.0
    %1225 = vmatprep.mubr.f32.mxu0 0.0
    %1226 = vmatmul.mubr.f32.gmra.mxu0 %v131
    %v1227 = vpop.f32.mrf.mxu0
    %v1228 = vadd.f32 0.0, %v1227
    %v1229 = vpop.f32.mrf.mxu0
    %1230 = vdwg.mxu0
    %v1232 = vsel %vm129, %v109, 0
    %1234 = vmatprep.subr.mxu0 0.0
    %1235 = vmatpush1.xpose.msra.mxu0 0.0
    %1236 = vmatprep.subr.mxu0 0.0
    %1237 = vmatpush1.xpose.msra.mxu0 0.0
    %1238 = vmatprep.subr.mxu0 0.0
    %1239 = vmatpush1.xpose.msra.mxu0 0.0
    %1240 = vmatprep.subr.mxu0 0.0
    %1241 = vmatpush1.xpose.msra.mxu0 0.0
    %1242 = vmatprep.subr.mxu0 0.0
    %1243 = vmatpush1.xpose.msra.mxu0 0.0
    %1244 = vmatprep.subr.mxu0 0.0
    %1245 = vmatpush1.xpose.msra.mxu0 0.0
    %1246 = vmatprep.subr.mxu0 0.0
    %1247 = vmatpush1.xpose.msra.mxu0 0.0
    %1248 = vmatprep.subr.mxu0 0.0
    %1249 = vmatpush1.xpose.msra.mxu0 0.0
    %1250 = vmatprep.subr.mxu0 0.0
    %1251 = vmatpush1.xpose.msra.mxu0 0.0
    %1252 = vmatprep.subr.mxu0 0.0
    %1253 = vmatpush1.xpose.msra.mxu0 0.0
    %1254 = vmatprep.subr.mxu0 0.0
    %1255 = vmatpush1.xpose.msra.mxu0 0.0
    %1256 = vmatprep.subr.mxu0 0.0
    %1257 = vmatpush1.xpose.msra.mxu0 0.0
    %1258 = vmatprep.subr.mxu0 0.0
    %1259 = vmatpush1.xpose.msra.mxu0 0.0
    %1260 = vmatprep.subr.mxu0 0.0
    %1261 = vmatpush1.xpose.msra.mxu0 0.0
    %1262 = vmatprep.subr.mxu0 0.0
    %1263 = vmatpush1.xpose.msra.mxu0 0.0
    %1264 = vmatprep.subr.mxu0 0.0
    %1265 = vmatpush1.xpose.msra.mxu0 %v1232
    %1266 = vmatprep.subr.mxu0 0.0
    %1267 = vmatpush2.xpose.msra.mxu0 0.0
    %1268 = vmatprep.subr.mxu0 0.0
    %1269 = vmatpush2.xpose.msra.mxu0 0.0
    %1270 = vmatprep.subr.mxu0 0.0
    %1271 = vmatpush2.xpose.msra.mxu0 0.0
    %1272 = vmatprep.subr.mxu0 0.0
    %1273 = vmatpush2.xpose.msra.mxu0 0.0
    %1274 = vmatprep.subr.mxu0 0.0
    %1275 = vmatpush2.xpose.msra.mxu0 0.0
    %1276 = vmatprep.subr.mxu0 0.0
    %1277 = vmatpush2.xpose.msra.mxu0 0.0
    %1278 = vmatprep.subr.mxu0 0.0
    %1279 = vmatpush2.xpose.msra.mxu0 0.0
    %1280 = vmatprep.subr.mxu0 0.0
    %1281 = vmatpush2.xpose.msra.mxu0 0.0
    %1282 = vmatprep.subr.mxu0 0.0
    %1283 = vmatpush2.xpose.msra.mxu0 0.0
    %1284 = vmatprep.subr.mxu0 0.0
    %1285 = vmatpush2.xpose.msra.mxu0 0.0
    %1286 = vmatprep.subr.mxu0 0.0
    %1287 = vmatpush2.xpose.msra.mxu0 0.0
    %1288 = vmatprep.subr.mxu0 0.0
    %1289 = vmatpush2.xpose.msra.mxu0 0.0
    %1290 = vmatprep.subr.mxu0 0.0
    %1291 = vmatpush2.xpose.msra.mxu0 0.0
    %1292 = vmatprep.subr.mxu0 0.0
    %1293 = vmatpush2.xpose.msra.mxu0 0.0
    %1294 = vmatprep.subr.mxu0 0.0
    %1295 = vmatpush2.xpose.msra.mxu0 0.0
    %1296 = vmatprep.subr.mxu0 0.0
    %1297 = vmatpush2.xpose.msra.mxu0 0.0
    %1298 = vmatprep.mubr.f32.mxu0 0.0
    %1299 = vmatmul.mubr.f32.gmra.mxu0 %v207
    %v1300 = vpop.f32.mrf.mxu0
    %v1301 = vadd.f32 0.0, %v1300
    %v1302 = vpop.f32.mrf.mxu0
    %1303 = vdwg.mxu0
    %v1305 = vsel %vm129, %v111, 0
    %1307 = vmatprep.subr.mxu0 0.0
    %1308 = vmatpush1.xpose.msra.mxu0 0.0
    %1309 = vmatprep.subr.mxu0 0.0
    %1310 = vmatpush1.xpose.msra.mxu0 0.0
    %1311 = vmatprep.subr.mxu0 0.0
    %1312 = vmatpush1.xpose.msra.mxu0 0.0
    %1313 = vmatprep.subr.mxu0 0.0
    %1314 = vmatpush1.xpose.msra.mxu0 0.0
    %1315 = vmatprep.subr.mxu0 0.0
    %1316 = vmatpush1.xpose.msra.mxu0 0.0
    %1317 = vmatprep.subr.mxu0 0.0
    %1318 = vmatpush1.xpose.msra.mxu0 0.0
    %1319 = vmatprep.subr.mxu0 0.0
    %1320 = vmatpush1.xpose.msra.mxu0 0.0
    %1321 = vmatprep.subr.mxu0 0.0
    %1322 = vmatpush1.xpose.msra.mxu0 0.0
    %1323 = vmatprep.subr.mxu0 0.0
    %1324 = vmatpush1.xpose.msra.mxu0 0.0
    %1325 = vmatprep.subr.mxu0 0.0
    %1326 = vmatpush1.xpose.msra.mxu0 0.0
    %1327 = vmatprep.subr.mxu0 0.0
    %1328 = vmatpush1.xpose.msra.mxu0 0.0
    %1329 = vmatprep.subr.mxu0 0.0
    %1330 = vmatpush1.xpose.msra.mxu0 0.0
    %1331 = vmatprep.subr.mxu0 0.0
    %1332 = vmatpush1.xpose.msra.mxu0 0.0
    %1333 = vmatprep.subr.mxu0 0.0
    %1334 = vmatpush1.xpose.msra.mxu0 0.0
    %1335 = vmatprep.subr.mxu0 0.0
    %1336 = vmatpush1.xpose.msra.mxu0 0.0
    %1337 = vmatprep.subr.mxu0 0.0
    %1338 = vmatpush1.xpose.msra.mxu0 %v1305
    %1339 = vmatprep.subr.mxu0 0.0
    %1340 = vmatpush2.xpose.msra.mxu0 0.0
    %1341 = vmatprep.subr.mxu0 0.0
    %1342 = vmatpush2.xpose.msra.mxu0 0.0
    %1343 = vmatprep.subr.mxu0 0.0
    %1344 = vmatpush2.xpose.msra.mxu0 0.0
    %1345 = vmatprep.subr.mxu0 0.0
    %1346 = vmatpush2.xpose.msra.mxu0 0.0
    %1347 = vmatprep.subr.mxu0 0.0
    %1348 = vmatpush2.xpose.msra.mxu0 0.0
    %1349 = vmatprep.subr.mxu0 0.0
    %1350 = vmatpush2.xpose.msra.mxu0 0.0
    %1351 = vmatprep.subr.mxu0 0.0
    %1352 = vmatpush2.xpose.msra.mxu0 0.0
    %1353 = vmatprep.subr.mxu0 0.0
    %1354 = vmatpush2.xpose.msra.mxu0 0.0
    %1355 = vmatprep.subr.mxu0 0.0
    %1356 = vmatpush2.xpose.msra.mxu0 0.0
    %1357 = vmatprep.subr.mxu0 0.0
    %1358 = vmatpush2.xpose.msra.mxu0 0.0
    %1359 = vmatprep.subr.mxu0 0.0
    %1360 = vmatpush2.xpose.msra.mxu0 0.0
    %1361 = vmatprep.subr.mxu0 0.0
    %1362 = vmatpush2.xpose.msra.mxu0 0.0
    %1363 = vmatprep.subr.mxu0 0.0
    %1364 = vmatpush2.xpose.msra.mxu0 0.0
    %1365 = vmatprep.subr.mxu0 0.0
    %1366 = vmatpush2.xpose.msra.mxu0 0.0
    %1367 = vmatprep.subr.mxu0 0.0
    %1368 = vmatpush2.xpose.msra.mxu0 0.0
    %1369 = vmatprep.subr.mxu0 0.0
    %1370 = vmatpush2.xpose.msra.mxu0 0.0
    %1371 = vmatprep.mubr.f32.mxu0 0.0
    %1372 = vmatmul.mubr.f32.gmra.mxu0 %v131
    %v1373 = vpop.f32.mrf.mxu0
    %v1374 = vadd.f32 0.0, %v1373
    %v1375 = vpop.f32.mrf.mxu0
    %1376 = vdwg.mxu0
    %v1378 = vsel %vm129, %v112, 0
    %1380 = vmatprep.subr.mxu0 0.0
    %1381 = vmatpush1.xpose.msra.mxu0 0.0
    %1382 = vmatprep.subr.mxu0 0.0
    %1383 = vmatpush1.xpose.msra.mxu0 0.0
    %1384 = vmatprep.subr.mxu0 0.0
    %1385 = vmatpush1.xpose.msra.mxu0 0.0
    %1386 = vmatprep.subr.mxu0 0.0
    %1387 = vmatpush1.xpose.msra.mxu0 0.0
    %1388 = vmatprep.subr.mxu0 0.0
    %1389 = vmatpush1.xpose.msra.mxu0 0.0
    %1390 = vmatprep.subr.mxu0 0.0
    %1391 = vmatpush1.xpose.msra.mxu0 0.0
    %1392 = vmatprep.subr.mxu0 0.0
    %1393 = vmatpush1.xpose.msra.mxu0 0.0
    %1394 = vmatprep.subr.mxu0 0.0
    %1395 = vmatpush1.xpose.msra.mxu0 0.0
    %1396 = vmatprep.subr.mxu0 0.0
    %1397 = vmatpush1.xpose.msra.mxu0 0.0
    %1398 = vmatprep.subr.mxu0 0.0
    %1399 = vmatpush1.xpose.msra.mxu0 0.0
    %1400 = vmatprep.subr.mxu0 0.0
    %1401 = vmatpush1.xpose.msra.mxu0 0.0
    %1402 = vmatprep.subr.mxu0 0.0
    %1403 = vmatpush1.xpose.msra.mxu0 0.0
    %1404 = vmatprep.subr.mxu0 0.0
    %1405 = vmatpush1.xpose.msra.mxu0 0.0
    %1406 = vmatprep.subr.mxu0 0.0
    %1407 = vmatpush1.xpose.msra.mxu0 0.0
    %1408 = vmatprep.subr.mxu0 0.0
    %1409 = vmatpush1.xpose.msra.mxu0 0.0
    %1410 = vmatprep.subr.mxu0 0.0
    %1411 = vmatpush1.xpose.msra.mxu0 %v1378
    %1412 = vmatprep.subr.mxu0 0.0
    %1413 = vmatpush2.xpose.msra.mxu0 0.0
    %1414 = vmatprep.subr.mxu0 0.0
    %1415 = vmatpush2.xpose.msra.mxu0 0.0
    %1416 = vmatprep.subr.mxu0 0.0
    %1417 = vmatpush2.xpose.msra.mxu0 0.0
    %1418 = vmatprep.subr.mxu0 0.0
    %1419 = vmatpush2.xpose.msra.mxu0 0.0
    %1420 = vmatprep.subr.mxu0 0.0
    %1421 = vmatpush2.xpose.msra.mxu0 0.0
    %1422 = vmatprep.subr.mxu0 0.0
    %1423 = vmatpush2.xpose.msra.mxu0 0.0
    %1424 = vmatprep.subr.mxu0 0.0
    %1425 = vmatpush2.xpose.msra.mxu0 0.0
    %1426 = vmatprep.subr.mxu0 0.0
    %1427 = vmatpush2.xpose.msra.mxu0 0.0
    %1428 = vmatprep.subr.mxu0 0.0
    %1429 = vmatpush2.xpose.msra.mxu0 0.0
    %1430 = vmatprep.subr.mxu0 0.0
    %1431 = vmatpush2.xpose.msra.mxu0 0.0
    %1432 = vmatprep.subr.mxu0 0.0
    %1433 = vmatpush2.xpose.msra.mxu0 0.0
    %1434 = vmatprep.subr.mxu0 0.0
    %1435 = vmatpush2.xpose.msra.mxu0 0.0
    %1436 = vmatprep.subr.mxu0 0.0
    %1437 = vmatpush2.xpose.msra.mxu0 0.0
    %1438 = vmatprep.subr.mxu0 0.0
    %1439 = vmatpush2.xpose.msra.mxu0 0.0
    %1440 = vmatprep.subr.mxu0 0.0
    %1441 = vmatpush2.xpose.msra.mxu0 0.0
    %1442 = vmatprep.subr.mxu0 0.0
    %1443 = vmatpush2.xpose.msra.mxu0 0.0
    %1444 = vmatprep.mubr.f32.mxu0 0.0
    %1445 = vmatmul.mubr.f32.gmra.mxu0 %v207
    %v1446 = vpop.f32.mrf.mxu0
    %v1447 = vadd.f32 0.0, %v1446
    %v1448 = vpop.f32.mrf.mxu0
    %1449 = vdwg.mxu0
    %v1451 = vsel %vm129, %v113, 0
    %1453 = vmatprep.subr.mxu0 0.0
    %1454 = vmatpush1.xpose.msra.mxu0 0.0
    %1455 = vmatprep.subr.mxu0 0.0
    %1456 = vmatpush1.xpose.msra.mxu0 0.0
    %1457 = vmatprep.subr.mxu0 0.0
    %1458 = vmatpush1.xpose.msra.mxu0 0.0
    %1459 = vmatprep.subr.mxu0 0.0
    %1460 = vmatpush1.xpose.msra.mxu0 0.0
    %1461 = vmatprep.subr.mxu0 0.0
    %1462 = vmatpush1.xpose.msra.mxu0 0.0
    %1463 = vmatprep.subr.mxu0 0.0
    %1464 = vmatpush1.xpose.msra.mxu0 0.0
    %1465 = vmatprep.subr.mxu0 0.0
    %1466 = vmatpush1.xpose.msra.mxu0 0.0
    %1467 = vmatprep.subr.mxu0 0.0
    %1468 = vmatpush1.xpose.msra.mxu0 0.0
    %1469 = vmatprep.subr.mxu0 0.0
    %1470 = vmatpush1.xpose.msra.mxu0 0.0
    %1471 = vmatprep.subr.mxu0 0.0
    %1472 = vmatpush1.xpose.msra.mxu0 0.0
    %1473 = vmatprep.subr.mxu0 0.0
    %1474 = vmatpush1.xpose.msra.mxu0 0.0
    %1475 = vmatprep.subr.mxu0 0.0
    %1476 = vmatpush1.xpose.msra.mxu0 0.0
    %1477 = vmatprep.subr.mxu0 0.0
    %1478 = vmatpush1.xpose.msra.mxu0 0.0
    %1479 = vmatprep.subr.mxu0 0.0
    %1480 = vmatpush1.xpose.msra.mxu0 0.0
    %1481 = vmatprep.subr.mxu0 0.0
    %1482 = vmatpush1.xpose.msra.mxu0 0.0
    %1483 = vmatprep.subr.mxu0 0.0
    %1484 = vmatpush1.xpose.msra.mxu0 %v1451
    %1485 = vmatprep.subr.mxu0 0.0
    %1486 = vmatpush2.xpose.msra.mxu0 0.0
    %1487 = vmatprep.subr.mxu0 0.0
    %1488 = vmatpush2.xpose.msra.mxu0 0.0
    %1489 = vmatprep.subr.mxu0 0.0
    %1490 = vmatpush2.xpose.msra.mxu0 0.0
    %1491 = vmatprep.subr.mxu0 0.0
    %1492 = vmatpush2.xpose.msra.mxu0 0.0
    %1493 = vmatprep.subr.mxu0 0.0
    %1494 = vmatpush2.xpose.msra.mxu0 0.0
    %1495 = vmatprep.subr.mxu0 0.0
    %1496 = vmatpush2.xpose.msra.mxu0 0.0
    %1497 = vmatprep.subr.mxu0 0.0
    %1498 = vmatpush2.xpose.msra.mxu0 0.0
    %1499 = vmatprep.subr.mxu0 0.0
    %1500 = vmatpush2.xpose.msra.mxu0 0.0
    %1501 = vmatprep.subr.mxu0 0.0
    %1502 = vmatpush2.xpose.msra.mxu0 0.0
    %1503 = vmatprep.subr.mxu0 0.0
    %1504 = vmatpush2.xpose.msra.mxu0 0.0
    %1505 = vmatprep.subr.mxu0 0.0
    %1506 = vmatpush2.xpose.msra.mxu0 0.0
    %1507 = vmatprep.subr.mxu0 0.0
    %1508 = vmatpush2.xpose.msra.mxu0 0.0
    %1509 = vmatprep.subr.mxu0 0.0
    %1510 = vmatpush2.xpose.msra.mxu0 0.0
    %1511 = vmatprep.subr.mxu0 0.0
    %1512 = vmatpush2.xpose.msra.mxu0 0.0
    %1513 = vmatprep.subr.mxu0 0.0
    %1514 = vmatpush2.xpose.msra.mxu0 0.0
    %1515 = vmatprep.subr.mxu0 0.0
    %1516 = vmatpush2.xpose.msra.mxu0 0.0
    %1517 = vmatprep.mubr.f32.mxu0 0.0
    %1518 = vmatmul.mubr.f32.gmra.mxu0 %v131
    %v1519 = vpop.f32.mrf.mxu0
    %v1520 = vadd.f32 0.0, %v1519
    %v1521 = vpop.f32.mrf.mxu0
    %1522 = vdwg.mxu0
    %v1524 = vsel %vm129, %v114, 0
    %1526 = vmatprep.subr.mxu0 0.0
    %1527 = vmatpush1.xpose.msra.mxu0 0.0
    %1528 = vmatprep.subr.mxu0 0.0
    %1529 = vmatpush1.xpose.msra.mxu0 0.0
    %1530 = vmatprep.subr.mxu0 0.0
    %1531 = vmatpush1.xpose.msra.mxu0 0.0
    %1532 = vmatprep.subr.mxu0 0.0
    %1533 = vmatpush1.xpose.msra.mxu0 0.0
    %1534 = vmatprep.subr.mxu0 0.0
    %1535 = vmatpush1.xpose.msra.mxu0 0.0
    %1536 = vmatprep.subr.mxu0 0.0
    %1537 = vmatpush1.xpose.msra.mxu0 0.0
    %1538 = vmatprep.subr.mxu0 0.0
    %1539 = vmatpush1.xpose.msra.mxu0 0.0
    %1540 = vmatprep.subr.mxu0 0.0
    %1541 = vmatpush1.xpose.msra.mxu0 0.0
    %1542 = vmatprep.subr.mxu0 0.0
    %1543 = vmatpush1.xpose.msra.mxu0 0.0
    %1544 = vmatprep.subr.mxu0 0.0
    %1545 = vmatpush1.xpose.msra.mxu0 0.0
    %1546 = vmatprep.subr.mxu0 0.0
    %1547 = vmatpush1.xpose.msra.mxu0 0.0
    %1548 = vmatprep.subr.mxu0 0.0
    %1549 = vmatpush1.xpose.msra.mxu0 0.0
    %1550 = vmatprep.subr.mxu0 0.0
    %1551 = vmatpush1.xpose.msra.mxu0 0.0
    %1552 = vmatprep.subr.mxu0 0.0
    %1553 = vmatpush1.xpose.msra.mxu0 0.0
    %1554 = vmatprep.subr.mxu0 0.0
    %1555 = vmatpush1.xpose.msra.mxu0 0.0
    %1556 = vmatprep.subr.mxu0 0.0
    %1557 = vmatpush1.xpose.msra.mxu0 %v1524
    %1558 = vmatprep.subr.mxu0 0.0
    %1559 = vmatpush2.xpose.msra.mxu0 0.0
    %1560 = vmatprep.subr.mxu0 0.0
    %1561 = vmatpush2.xpose.msra.mxu0 0.0
    %1562 = vmatprep.subr.mxu0 0.0
    %1563 = vmatpush2.xpose.msra.mxu0 0.0
    %1564 = vmatprep.subr.mxu0 0.0
    %1565 = vmatpush2.xpose.msra.mxu0 0.0
    %1566 = vmatprep.subr.mxu0 0.0
    %1567 = vmatpush2.xpose.msra.mxu0 0.0
    %1568 = vmatprep.subr.mxu0 0.0
    %1569 = vmatpush2.xpose.msra.mxu0 0.0
    %1570 = vmatprep.subr.mxu0 0.0
    %1571 = vmatpush2.xpose.msra.mxu0 0.0
    %1572 = vmatprep.subr.mxu0 0.0
    %1573 = vmatpush2.xpose.msra.mxu0 0.0
    %1574 = vmatprep.subr.mxu0 0.0
    %1575 = vmatpush2.xpose.msra.mxu0 0.0
    %1576 = vmatprep.subr.mxu0 0.0
    %1577 = vmatpush2.xpose.msra.mxu0 0.0
    %1578 = vmatprep.subr.mxu0 0.0
    %1579 = vmatpush2.xpose.msra.mxu0 0.0
    %1580 = vmatprep.subr.mxu0 0.0
    %1581 = vmatpush2.xpose.msra.mxu0 0.0
    %1582 = vmatprep.subr.mxu0 0.0
    %1583 = vmatpush2.xpose.msra.mxu0 0.0
    %1584 = vmatprep.subr.mxu0 0.0
    %1585 = vmatpush2.xpose.msra.mxu0 0.0
    %1586 = vmatprep.subr.mxu0 0.0
    %1587 = vmatpush2.xpose.msra.mxu0 0.0
    %1588 = vmatprep.subr.mxu0 0.0
    %1589 = vmatpush2.xpose.msra.mxu0 0.0
    %1590 = vmatprep.mubr.f32.mxu0 0.0
    %1591 = vmatmul.mubr.f32.gmra.mxu0 %v207
    %v1592 = vpop.f32.mrf.mxu0
    %v1593 = vadd.f32 0.0, %v1592
    %v1594 = vpop.f32.mrf.mxu0
    %1595 = vdwg.mxu0
    %v1597 = vsel %vm129, %v115, 0
    %1599 = vmatprep.subr.mxu0 0.0
    %1600 = vmatpush1.xpose.msra.mxu0 0.0
    %1601 = vmatprep.subr.mxu0 0.0
    %1602 = vmatpush1.xpose.msra.mxu0 0.0
    %1603 = vmatprep.subr.mxu0 0.0
    %1604 = vmatpush1.xpose.msra.mxu0 0.0
    %1605 = vmatprep.subr.mxu0 0.0
    %1606 = vmatpush1.xpose.msra.mxu0 0.0
    %1607 = vmatprep.subr.mxu0 0.0
    %1608 = vmatpush1.xpose.msra.mxu0 0.0
    %1609 = vmatprep.subr.mxu0 0.0
    %1610 = vmatpush1.xpose.msra.mxu0 0.0
    %1611 = vmatprep.subr.mxu0 0.0
    %1612 = vmatpush1.xpose.msra.mxu0 0.0
    %1613 = vmatprep.subr.mxu0 0.0
    %1614 = vmatpush1.xpose.msra.mxu0 0.0
    %1615 = vmatprep.subr.mxu0 0.0
    %1616 = vmatpush1.xpose.msra.mxu0 0.0
    %1617 = vmatprep.subr.mxu0 0.0
    %1618 = vmatpush1.xpose.msra.mxu0 0.0
    %1619 = vmatprep.subr.mxu0 0.0
    %1620 = vmatpush1.xpose.msra.mxu0 0.0
    %1621 = vmatprep.subr.mxu0 0.0
    %1622 = vmatpush1.xpose.msra.mxu0 0.0
    %1623 = vmatprep.subr.mxu0 0.0
    %1624 = vmatpush1.xpose.msra.mxu0 0.0
    %1625 = vmatprep.subr.mxu0 0.0
    %1626 = vmatpush1.xpose.msra.mxu0 0.0
    %1627 = vmatprep.subr.mxu0 0.0
    %1628 = vmatpush1.xpose.msra.mxu0 0.0
    %1629 = vmatprep.subr.mxu0 0.0
    %1630 = vmatpush1.xpose.msra.mxu0 %v1597
    %1631 = vmatprep.subr.mxu0 0.0
    %1632 = vmatpush2.xpose.msra.mxu0 0.0
    %1633 = vmatprep.subr.mxu0 0.0
    %1634 = vmatpush2.xpose.msra.mxu0 0.0
    %1635 = vmatprep.subr.mxu0 0.0
    %1636 = vmatpush2.xpose.msra.mxu0 0.0
    %1637 = vmatprep.subr.mxu0 0.0
    %1638 = vmatpush2.xpose.msra.mxu0 0.0
    %1639 = vmatprep.subr.mxu0 0.0
    %1640 = vmatpush2.xpose.msra.mxu0 0.0
    %1641 = vmatprep.subr.mxu0 0.0
    %1642 = vmatpush2.xpose.msra.mxu0 0.0
    %1643 = vmatprep.subr.mxu0 0.0
    %1644 = vmatpush2.xpose.msra.mxu0 0.0
    %1645 = vmatprep.subr.mxu0 0.0
    %1646 = vmatpush2.xpose.msra.mxu0 0.0
    %1647 = vmatprep.subr.mxu0 0.0
    %1648 = vmatpush2.xpose.msra.mxu0 0.0
    %1649 = vmatprep.subr.mxu0 0.0
    %1650 = vmatpush2.xpose.msra.mxu0 0.0
    %1651 = vmatprep.subr.mxu0 0.0
    %1652 = vmatpush2.xpose.msra.mxu0 0.0
    %1653 = vmatprep.subr.mxu0 0.0
    %1654 = vmatpush2.xpose.msra.mxu0 0.0
    %1655 = vmatprep.subr.mxu0 0.0
    %1656 = vmatpush2.xpose.msra.mxu0 0.0
    %1657 = vmatprep.subr.mxu0 0.0
    %1658 = vmatpush2.xpose.msra.mxu0 0.0
    %1659 = vmatprep.subr.mxu0 0.0
    %1660 = vmatpush2.xpose.msra.mxu0 0.0
    %1661 = vmatprep.subr.mxu0 0.0
    %1662 = vmatpush2.xpose.msra.mxu0 0.0
    %1663 = vmatprep.mubr.f32.mxu0 0.0
    %1664 = vmatmul.mubr.f32.gmra.mxu0 %v131
    %v1665 = vpop.f32.mrf.mxu0
    %v1666 = vadd.f32 0.0, %v1665
    %v1667 = vpop.f32.mrf.mxu0
    %1668 = vdwg.mxu0
    %v1670 = vsel %vm129, %v116, 0
    %1672 = vmatprep.subr.mxu0 0.0
    %1673 = vmatpush1.xpose.msra.mxu0 0.0
    %1674 = vmatprep.subr.mxu0 0.0
    %1675 = vmatpush1.xpose.msra.mxu0 0.0
    %1676 = vmatprep.subr.mxu0 0.0
    %1677 = vmatpush1.xpose.msra.mxu0 0.0
    %1678 = vmatprep.subr.mxu0 0.0
    %1679 = vmatpush1.xpose.msra.mxu0 0.0
    %1680 = vmatprep.subr.mxu0 0.0
    %1681 = vmatpush1.xpose.msra.mxu0 0.0
    %1682 = vmatprep.subr.mxu0 0.0
    %1683 = vmatpush1.xpose.msra.mxu0 0.0
    %1684 = vmatprep.subr.mxu0 0.0
    %1685 = vmatpush1.xpose.msra.mxu0 0.0
    %1686 = vmatprep.subr.mxu0 0.0
    %1687 = vmatpush1.xpose.msra.mxu0 0.0
    %1688 = vmatprep.subr.mxu0 0.0
    %1689 = vmatpush1.xpose.msra.mxu0 0.0
    %1690 = vmatprep.subr.mxu0 0.0
    %1691 = vmatpush1.xpose.msra.mxu0 0.0
    %1692 = vmatprep.subr.mxu0 0.0
    %1693 = vmatpush1.xpose.msra.mxu0 0.0
    %1694 = vmatprep.subr.mxu0 0.0
    %1695 = vmatpush1.xpose.msra.mxu0 0.0
    %1696 = vmatprep.subr.mxu0 0.0
    %1697 = vmatpush1.xpose.msra.mxu0 0.0
    %1698 = vmatprep.subr.mxu0 0.0
    %1699 = vmatpush1.xpose.msra.mxu0 0.0
    %1700 = vmatprep.subr.mxu0 0.0
    %1701 = vmatpush1.xpose.msra.mxu0 0.0
    %1702 = vmatprep.subr.mxu0 0.0
    %1703 = vmatpush1.xpose.msra.mxu0 %v1670
    %1704 = vmatprep.subr.mxu0 0.0
    %1705 = vmatpush2.xpose.msra.mxu0 0.0
    %1706 = vmatprep.subr.mxu0 0.0
    %1707 = vmatpush2.xpose.msra.mxu0 0.0
    %1708 = vmatprep.subr.mxu0 0.0
    %1709 = vmatpush2.xpose.msra.mxu0 0.0
    %1710 = vmatprep.subr.mxu0 0.0
    %1711 = vmatpush2.xpose.msra.mxu0 0.0
    %1712 = vmatprep.subr.mxu0 0.0
    %1713 = vmatpush2.xpose.msra.mxu0 0.0
    %1714 = vmatprep.subr.mxu0 0.0
    %1715 = vmatpush2.xpose.msra.mxu0 0.0
    %1716 = vmatprep.subr.mxu0 0.0
    %1717 = vmatpush2.xpose.msra.mxu0 0.0
    %1718 = vmatprep.subr.mxu0 0.0
    %1719 = vmatpush2.xpose.msra.mxu0 0.0
    %1720 = vmatprep.subr.mxu0 0.0
    %1721 = vmatpush2.xpose.msra.mxu0 0.0
    %1722 = vmatprep.subr.mxu0 0.0
    %1723 = vmatpush2.xpose.msra.mxu0 0.0
    %1724 = vmatprep.subr.mxu0 0.0
    %1725 = vmatpush2.xpose.msra.mxu0 0.0
    %1726 = vmatprep.subr.mxu0 0.0
    %1727 = vmatpush2.xpose.msra.mxu0 0.0
    %1728 = vmatprep.subr.mxu0 0.0
    %1729 = vmatpush2.xpose.msra.mxu0 0.0
    %1730 = vmatprep.subr.mxu0 0.0
    %1731 = vmatpush2.xpose.msra.mxu0 0.0
    %1732 = vmatprep.subr.mxu0 0.0
    %1733 = vmatpush2.xpose.msra.mxu0 0.0
    %1734 = vmatprep.subr.mxu0 0.0
    %1735 = vmatpush2.xpose.msra.mxu0 0.0
    %1736 = vmatprep.mubr.f32.mxu0 0.0
    %1737 = vmatmul.mubr.f32.gmra.mxu0 %v207
    %v1738 = vpop.f32.mrf.mxu0
    %v1739 = vadd.f32 0.0, %v1738
    %v1740 = vpop.f32.mrf.mxu0
    %1741 = vdwg.mxu0
    %v1743 = vsel %vm129, %v117, 0
    %1745 = vmatprep.subr.mxu0 0.0
    %1746 = vmatpush1.xpose.msra.mxu0 0.0
    %1747 = vmatprep.subr.mxu0 0.0
    %1748 = vmatpush1.xpose.msra.mxu0 0.0
    %1749 = vmatprep.subr.mxu0 0.0
    %1750 = vmatpush1.xpose.msra.mxu0 0.0
    %1751 = vmatprep.subr.mxu0 0.0
    %1752 = vmatpush1.xpose.msra.mxu0 0.0
    %1753 = vmatprep.subr.mxu0 0.0
    %1754 = vmatpush1.xpose.msra.mxu0 0.0
    %1755 = vmatprep.subr.mxu0 0.0
    %1756 = vmatpush1.xpose.msra.mxu0 0.0
    %1757 = vmatprep.subr.mxu0 0.0
    %1758 = vmatpush1.xpose.msra.mxu0 0.0
    %1759 = vmatprep.subr.mxu0 0.0
    %1760 = vmatpush1.xpose.msra.mxu0 0.0
    %1761 = vmatprep.subr.mxu0 0.0
    %1762 = vmatpush1.xpose.msra.mxu0 0.0
    %1763 = vmatprep.subr.mxu0 0.0
    %1764 = vmatpush1.xpose.msra.mxu0 0.0
    %1765 = vmatprep.subr.mxu0 0.0
    %1766 = vmatpush1.xpose.msra.mxu0 0.0
    %1767 = vmatprep.subr.mxu0 0.0
    %1768 = vmatpush1.xpose.msra.mxu0 0.0
    %1769 = vmatprep.subr.mxu0 0.0
    %1770 = vmatpush1.xpose.msra.mxu0 0.0
    %1771 = vmatprep.subr.mxu0 0.0
    %1772 = vmatpush1.xpose.msra.mxu0 0.0
    %1773 = vmatprep.subr.mxu0 0.0
    %1774 = vmatpush1.xpose.msra.mxu0 0.0
    %1775 = vmatprep.subr.mxu0 0.0
    %1776 = vmatpush1.xpose.msra.mxu0 %v1743
    %1777 = vmatprep.subr.mxu0 0.0
    %1778 = vmatpush2.xpose.msra.mxu0 0.0
    %1779 = vmatprep.subr.mxu0 0.0
    %1780 = vmatpush2.xpose.msra.mxu0 0.0
    %1781 = vmatprep.subr.mxu0 0.0
    %1782 = vmatpush2.xpose.msra.mxu0 0.0
    %1783 = vmatprep.subr.mxu0 0.0
    %1784 = vmatpush2.xpose.msra.mxu0 0.0
    %1785 = vmatprep.subr.mxu0 0.0
    %1786 = vmatpush2.xpose.msra.mxu0 0.0
    %1787 = vmatprep.subr.mxu0 0.0
    %1788 = vmatpush2.xpose.msra.mxu0 0.0
    %1789 = vmatprep.subr.mxu0 0.0
    %1790 = vmatpush2.xpose.msra.mxu0 0.0
    %1791 = vmatprep.subr.mxu0 0.0
    %1792 = vmatpush2.xpose.msra.mxu0 0.0
    %1793 = vmatprep.subr.mxu0 0.0
    %1794 = vmatpush2.xpose.msra.mxu0 0.0
    %1795 = vmatprep.subr.mxu0 0.0
    %1796 = vmatpush2.xpose.msra.mxu0 0.0
    %1797 = vmatprep.subr.mxu0 0.0
    %1798 = vmatpush2.xpose.msra.mxu0 0.0
    %1799 = vmatprep.subr.mxu0 0.0
    %1800 = vmatpush2.xpose.msra.mxu0 0.0
    %1801 = vmatprep.subr.mxu0 0.0
    %1802 = vmatpush2.xpose.msra.mxu0 0.0
    %1803 = vmatprep.subr.mxu0 0.0
    %1804 = vmatpush2.xpose.msra.mxu0 0.0
    %1805 = vmatprep.subr.mxu0 0.0
    %1806 = vmatpush2.xpose.msra.mxu0 0.0
    %1807 = vmatprep.subr.mxu0 0.0
    %1808 = vmatpush2.xpose.msra.mxu0 0.0
    %1809 = vmatprep.mubr.f32.mxu0 0.0
    %1810 = vmatmul.mubr.f32.gmra.mxu0 %v131
    %v1811 = vpop.f32.mrf.mxu0
    %v1812 = vadd.f32 0.0, %v1811
    %v1813 = vpop.f32.mrf.mxu0
    %1814 = vdwg.mxu0
    %v1816 = vsel %vm129, %v118, 0
    %1818 = vmatprep.subr.mxu0 0.0
    %1819 = vmatpush1.xpose.msra.mxu0 0.0
    %1820 = vmatprep.subr.mxu0 0.0
    %1821 = vmatpush1.xpose.msra.mxu0 0.0
    %1822 = vmatprep.subr.mxu0 0.0
    %1823 = vmatpush1.xpose.msra.mxu0 0.0
    %1824 = vmatprep.subr.mxu0 0.0
    %1825 = vmatpush1.xpose.msra.mxu0 0.0
    %1826 = vmatprep.subr.mxu0 0.0
    %1827 = vmatpush1.xpose.msra.mxu0 0.0
    %1828 = vmatprep.subr.mxu0 0.0
    %1829 = vmatpush1.xpose.msra.mxu0 0.0
    %1830 = vmatprep.subr.mxu0 0.0
    %1831 = vmatpush1.xpose.msra.mxu0 0.0
    %1832 = vmatprep.subr.mxu0 0.0
    %1833 = vmatpush1.xpose.msra.mxu0 0.0
    %1834 = vmatprep.subr.mxu0 0.0
    %1835 = vmatpush1.xpose.msra.mxu0 0.0
    %1836 = vmatprep.subr.mxu0 0.0
    %1837 = vmatpush1.xpose.msra.mxu0 0.0
    %1838 = vmatprep.subr.mxu0 0.0
    %1839 = vmatpush1.xpose.msra.mxu0 0.0
    %1840 = vmatprep.subr.mxu0 0.0
    %1841 = vmatpush1.xpose.msra.mxu0 0.0
    %1842 = vmatprep.subr.mxu0 0.0
    %1843 = vmatpush1.xpose.msra.mxu0 0.0
    %1844 = vmatprep.subr.mxu0 0.0
    %1845 = vmatpush1.xpose.msra.mxu0 0.0
    %1846 = vmatprep.subr.mxu0 0.0
    %1847 = vmatpush1.xpose.msra.mxu0 0.0
    %1848 = vmatprep.subr.mxu0 0.0
    %1849 = vmatpush1.xpose.msra.mxu0 %v1816
    %1850 = vmatprep.subr.mxu0 0.0
    %1851 = vmatpush2.xpose.msra.mxu0 0.0
    %1852 = vmatprep.subr.mxu0 0.0
    %1853 = vmatpush2.xpose.msra.mxu0 0.0
    %1854 = vmatprep.subr.mxu0 0.0
    %1855 = vmatpush2.xpose.msra.mxu0 0.0
    %1856 = vmatprep.subr.mxu0 0.0
    %1857 = vmatpush2.xpose.msra.mxu0 0.0
    %1858 = vmatprep.subr.mxu0 0.0
    %1859 = vmatpush2.xpose.msra.mxu0 0.0
    %1860 = vmatprep.subr.mxu0 0.0
    %1861 = vmatpush2.xpose.msra.mxu0 0.0
    %1862 = vmatprep.subr.mxu0 0.0
    %1863 = vmatpush2.xpose.msra.mxu0 0.0
    %1864 = vmatprep.subr.mxu0 0.0
    %1865 = vmatpush2.xpose.msra.mxu0 0.0
    %1866 = vmatprep.subr.mxu0 0.0
    %1867 = vmatpush2.xpose.msra.mxu0 0.0
    %1868 = vmatprep.subr.mxu0 0.0
    %1869 = vmatpush2.xpose.msra.mxu0 0.0
    %1870 = vmatprep.subr.mxu0 0.0
    %1871 = vmatpush2.xpose.msra.mxu0 0.0
    %1872 = vmatprep.subr.mxu0 0.0
    %1873 = vmatpush2.xpose.msra.mxu0 0.0
    %1874 = vmatprep.subr.mxu0 0.0
    %1875 = vmatpush2.xpose.msra.mxu0 0.0
    %1876 = vmatprep.subr.mxu0 0.0
    %1877 = vmatpush2.xpose.msra.mxu0 0.0
    %1878 = vmatprep.subr.mxu0 0.0
    %1879 = vmatpush2.xpose.msra.mxu0 0.0
    %1880 = vmatprep.subr.mxu0 0.0
    %1881 = vmatpush2.xpose.msra.mxu0 0.0
    %1882 = vmatprep.mubr.f32.mxu0 0.0
    %1883 = vmatmul.mubr.f32.gmra.mxu0 %v207
    %v1884 = vpop.f32.mrf.mxu0
    %v1885 = vadd.f32 0.0, %v1884
    %v1886 = vpop.f32.mrf.mxu0
    %1887 = vdwg.mxu0
    %vm1888 = vcmask 64512
    %v1890 = vsel %vm1888, %v203, 0
    %v1893 = vsel %vm1888, %v790, 0
    %1895 = vmatprep.subr.mxu0 0.0
    %1896 = vmatpush1.xpose.msra.mxu0 0.0
    %1897 = vmatprep.subr.mxu0 0.0
    %1898 = vmatpush1.xpose.msra.mxu0 0.0
    %1899 = vmatprep.subr.mxu0 0.0
    %1900 = vmatpush1.xpose.msra.mxu0 0.0
    %1901 = vmatprep.subr.mxu0 0.0
    %1902 = vmatpush1.xpose.msra.mxu0 0.0
    %1903 = vmatprep.subr.mxu0 0.0
    %1904 = vmatpush1.xpose.msra.mxu0 0.0
    %1905 = vmatprep.subr.mxu0 0.0
    %1906 = vmatpush1.xpose.msra.mxu0 0.0
    %1907 = vmatprep.subr.mxu0 0.0
    %1908 = vmatpush1.xpose.msra.mxu0 0.0
    %1909 = vmatprep.subr.mxu0 0.0
    %1910 = vmatpush1.xpose.msra.mxu0 0.0
    %1911 = vmatprep.subr.mxu0 0.0
    %1912 = vmatpush1.xpose.msra.mxu0 0.0
    %1913 = vmatprep.subr.mxu0 0.0
    %1914 = vmatpush1.xpose.msra.mxu0 0.0
    %1915 = vmatprep.subr.mxu0 0.0
    %1916 = vmatpush1.xpose.msra.mxu0 0.0
    %1917 = vmatprep.subr.mxu0 0.0
    %1918 = vmatpush1.xpose.msra.mxu0 0.0
    %1919 = vmatprep.subr.mxu0 0.0
    %1920 = vmatpush1.xpose.msra.mxu0 0.0
    %1921 = vmatprep.subr.mxu0 0.0
    %1922 = vmatpush1.xpose.msra.mxu0 0.0
    %1923 = vmatprep.subr.mxu0 0.0
    %1924 = vmatpush1.xpose.msra.mxu0 0.0
    %1925 = vmatprep.subr.mxu0 0.0
    %1926 = vmatpush1.xpose.msra.mxu0 %v1893
    %1927 = vmatprep.subr.mxu0 0.0
    %1928 = vmatpush2.xpose.msra.mxu0 0.0
    %1929 = vmatprep.subr.mxu0 0.0
    %1930 = vmatpush2.xpose.msra.mxu0 0.0
    %1931 = vmatprep.subr.mxu0 0.0
    %1932 = vmatpush2.xpose.msra.mxu0 0.0
    %1933 = vmatprep.subr.mxu0 0.0
    %1934 = vmatpush2.xpose.msra.mxu0 0.0
    %1935 = vmatprep.subr.mxu0 0.0
    %1936 = vmatpush2.xpose.msra.mxu0 0.0
    %1937 = vmatprep.subr.mxu0 0.0
    %1938 = vmatpush2.xpose.msra.mxu0 0.0
    %1939 = vmatprep.subr.mxu0 0.0
    %1940 = vmatpush2.xpose.msra.mxu0 0.0
    %1941 = vmatprep.subr.mxu0 0.0
    %1942 = vmatpush2.xpose.msra.mxu0 0.0
    %1943 = vmatprep.subr.mxu0 0.0
    %1944 = vmatpush2.xpose.msra.mxu0 0.0
    %1945 = vmatprep.subr.mxu0 0.0
    %1946 = vmatpush2.xpose.msra.mxu0 0.0
    %1947 = vmatprep.subr.mxu0 0.0
    %1948 = vmatpush2.xpose.msra.mxu0 0.0
    %1949 = vmatprep.subr.mxu0 0.0
    %1950 = vmatpush2.xpose.msra.mxu0 0.0
    %1951 = vmatprep.subr.mxu0 0.0
    %1952 = vmatpush2.xpose.msra.mxu0 0.0
    %1953 = vmatprep.subr.mxu0 0.0
    %1954 = vmatpush2.xpose.msra.mxu0 0.0
    %1955 = vmatprep.subr.mxu0 0.0
    %1956 = vmatpush2.xpose.msra.mxu0 0.0
    %1957 = vmatprep.subr.mxu0 0.0
    %1958 = vmatpush2.xpose.msra.mxu0 0.0
    %1959 = vmatprep.mubr.f32.mxu0 0.0
    %1960 = vmatmul.mubr.f32.gmra.mxu0 %v1890
    %v1961 = vpop.f32.mrf.mxu0
    %v1962 = vadd.f32 0.0, %v1961
    %v1963 = vpop.f32.mrf.mxu0
    %1964 = vdwg.mxu0
    %v1966 = vsel %vm1888, %v279, 0
    %v1969 = vsel %vm1888, %v863, 0
    %1971 = vmatprep.subr.mxu0 0.0
    %1972 = vmatpush1.xpose.msra.mxu0 0.0
    %1973 = vmatprep.subr.mxu0 0.0
    %1974 = vmatpush1.xpose.msra.mxu0 0.0
    %1975 = vmatprep.subr.mxu0 0.0
    %1976 = vmatpush1.xpose.msra.mxu0 0.0
    %1977 = vmatprep.subr.mxu0 0.0
    %1978 = vmatpush1.xpose.msra.mxu0 0.0
    %1979 = vmatprep.subr.mxu0 0.0
    %1980 = vmatpush1.xpose.msra.mxu0 0.0
    %1981 = vmatprep.subr.mxu0 0.0
    %1982 = vmatpush1.xpose.msra.mxu0 0.0
    %1983 = vmatprep.subr.mxu0 0.0
    %1984 = vmatpush1.xpose.msra.mxu0 0.0
    %1985 = vmatprep.subr.mxu0 0.0
    %1986 = vmatpush1.xpose.msra.mxu0 0.0
    %1987 = vmatprep.subr.mxu0 0.0
    %1988 = vmatpush1.xpose.msra.mxu0 0.0
    %1989 = vmatprep.subr.mxu0 0.0
    %1990 = vmatpush1.xpose.msra.mxu0 0.0
    %1991 = vmatprep.subr.mxu0 0.0
    %1992 = vmatpush1.xpose.msra.mxu0 0.0
    %1993 = vmatprep.subr.mxu0 0.0
    %1994 = vmatpush1.xpose.msra.mxu0 0.0
    %1995 = vmatprep.subr.mxu0 0.0
    %1996 = vmatpush1.xpose.msra.mxu0 0.0
    %1997 = vmatprep.subr.mxu0 0.0
    %1998 = vmatpush1.xpose.msra.mxu0 0.0
    %1999 = vmatprep.subr.mxu0 0.0
    %2000 = vmatpush1.xpose.msra.mxu0 0.0
    %2001 = vmatprep.subr.mxu0 0.0
    %2002 = vmatpush1.xpose.msra.mxu0 %v1969
    %2003 = vmatprep.subr.mxu0 0.0
    %2004 = vmatpush2.xpose.msra.mxu0 0.0
    %2005 = vmatprep.subr.mxu0 0.0
    %2006 = vmatpush2.xpose.msra.mxu0 0.0
    %2007 = vmatprep.subr.mxu0 0.0
    %2008 = vmatpush2.xpose.msra.mxu0 0.0
    %2009 = vmatprep.subr.mxu0 0.0
    %2010 = vmatpush2.xpose.msra.mxu0 0.0
    %2011 = vmatprep.subr.mxu0 0.0
    %2012 = vmatpush2.xpose.msra.mxu0 0.0
    %2013 = vmatprep.subr.mxu0 0.0
    %2014 = vmatpush2.xpose.msra.mxu0 0.0
    %2015 = vmatprep.subr.mxu0 0.0
    %2016 = vmatpush2.xpose.msra.mxu0 0.0
    %2017 = vmatprep.subr.mxu0 0.0
    %2018 = vmatpush2.xpose.msra.mxu0 0.0
    %2019 = vmatprep.subr.mxu0 0.0
    %2020 = vmatpush2.xpose.msra.mxu0 0.0
    %2021 = vmatprep.subr.mxu0 0.0
    %2022 = vmatpush2.xpose.msra.mxu0 0.0
    %2023 = vmatprep.subr.mxu0 0.0
    %2024 = vmatpush2.xpose.msra.mxu0 0.0
    %2025 = vmatprep.subr.mxu0 0.0
    %2026 = vmatpush2.xpose.msra.mxu0 0.0
    %2027 = vmatprep.subr.mxu0 0.0
    %2028 = vmatpush2.xpose.msra.mxu0 0.0
    %2029 = vmatprep.subr.mxu0 0.0
    %2030 = vmatpush2.xpose.msra.mxu0 0.0
    %2031 = vmatprep.subr.mxu0 0.0
    %2032 = vmatpush2.xpose.msra.mxu0 0.0
    %2033 = vmatprep.subr.mxu0 0.0
    %2034 = vmatpush2.xpose.msra.mxu0 0.0
    %2035 = vmatprep.mubr.f32.mxu0 0.0
    %2036 = vmatmul.mubr.f32.gmra.mxu0 %v1966
    %v2037 = vpop.f32.mrf.mxu0
    %v2038 = vadd.f32 0.0, %v2037
    %v2039 = vpop.f32.mrf.mxu0
    %2040 = vdwg.mxu0
    %v2042 = vsel %vm1888, %v352, 0
    %v2045 = vsel %vm1888, %v936, 0
    %2047 = vmatprep.subr.mxu0 0.0
    %2048 = vmatpush1.xpose.msra.mxu0 0.0
    %2049 = vmatprep.subr.mxu0 0.0
    %2050 = vmatpush1.xpose.msra.mxu0 0.0
    %2051 = vmatprep.subr.mxu0 0.0
    %2052 = vmatpush1.xpose.msra.mxu0 0.0
    %2053 = vmatprep.subr.mxu0 0.0
    %2054 = vmatpush1.xpose.msra.mxu0 0.0
    %2055 = vmatprep.subr.mxu0 0.0
    %2056 = vmatpush1.xpose.msra.mxu0 0.0
    %2057 = vmatprep.subr.mxu0 0.0
    %2058 = vmatpush1.xpose.msra.mxu0 0.0
    %2059 = vmatprep.subr.mxu0 0.0
    %2060 = vmatpush1.xpose.msra.mxu0 0.0
    %2061 = vmatprep.subr.mxu0 0.0
    %2062 = vmatpush1.xpose.msra.mxu0 0.0
    %2063 = vmatprep.subr.mxu0 0.0
    %2064 = vmatpush1.xpose.msra.mxu0 0.0
    %2065 = vmatprep.subr.mxu0 0.0
    %2066 = vmatpush1.xpose.msra.mxu0 0.0
    %2067 = vmatprep.subr.mxu0 0.0
    %2068 = vmatpush1.xpose.msra.mxu0 0.0
    %2069 = vmatprep.subr.mxu0 0.0
    %2070 = vmatpush1.xpose.msra.mxu0 0.0
    %2071 = vmatprep.subr.mxu0 0.0
    %2072 = vmatpush1.xpose.msra.mxu0 0.0
    %2073 = vmatprep.subr.mxu0 0.0
    %2074 = vmatpush1.xpose.msra.mxu0 0.0
    %2075 = vmatprep.subr.mxu0 0.0
    %2076 = vmatpush1.xpose.msra.mxu0 0.0
    %2077 = vmatprep.subr.mxu0 0.0
    %2078 = vmatpush1.xpose.msra.mxu0 %v2045
    %2079 = vmatprep.subr.mxu0 0.0
    %2080 = vmatpush2.xpose.msra.mxu0 0.0
    %2081 = vmatprep.subr.mxu0 0.0
    %2082 = vmatpush2.xpose.msra.mxu0 0.0
    %2083 = vmatprep.subr.mxu0 0.0
    %2084 = vmatpush2.xpose.msra.mxu0 0.0
    %2085 = vmatprep.subr.mxu0 0.0
    %2086 = vmatpush2.xpose.msra.mxu0 0.0
    %2087 = vmatprep.subr.mxu0 0.0
    %2088 = vmatpush2.xpose.msra.mxu0 0.0
    %2089 = vmatprep.subr.mxu0 0.0
    %2090 = vmatpush2.xpose.msra.mxu0 0.0
    %2091 = vmatprep.subr.mxu0 0.0
    %2092 = vmatpush2.xpose.msra.mxu0 0.0
    %2093 = vmatprep.subr.mxu0 0.0
    %2094 = vmatpush2.xpose.msra.mxu0 0.0
    %2095 = vmatprep.subr.mxu0 0.0
    %2096 = vmatpush2.xpose.msra.mxu0 0.0
    %2097 = vmatprep.subr.mxu0 0.0
    %2098 = vmatpush2.xpose.msra.mxu0 0.0
    %2099 = vmatprep.subr.mxu0 0.0
    %2100 = vmatpush2.xpose.msra.mxu0 0.0
    %2101 = vmatprep.subr.mxu0 0.0
    %2102 = vmatpush2.xpose.msra.mxu0 0.0
    %2103 = vmatprep.subr.mxu0 0.0
    %2104 = vmatpush2.xpose.msra.mxu0 0.0
    %2105 = vmatprep.subr.mxu0 0.0
    %2106 = vmatpush2.xpose.msra.mxu0 0.0
    %2107 = vmatprep.subr.mxu0 0.0
    %2108 = vmatpush2.xpose.msra.mxu0 0.0
    %2109 = vmatprep.subr.mxu0 0.0
    %2110 = vmatpush2.xpose.msra.mxu0 0.0
    %2111 = vmatprep.mubr.f32.mxu0 0.0
    %2112 = vmatmul.mubr.f32.gmra.mxu0 %v2042
    %v2113 = vpop.f32.mrf.mxu0
    %v2114 = vadd.f32 0.0, %v2113
    %v2115 = vpop.f32.mrf.mxu0
    %2116 = vdwg.mxu0
    %v2118 = vsel %vm1888, %v425, 0
    %v2121 = vsel %vm1888, %v1009, 0
    %2123 = vmatprep.subr.mxu0 0.0
    %2124 = vmatpush1.xpose.msra.mxu0 0.0
    %2125 = vmatprep.subr.mxu0 0.0
    %2126 = vmatpush1.xpose.msra.mxu0 0.0
    %2127 = vmatprep.subr.mxu0 0.0
    %2128 = vmatpush1.xpose.msra.mxu0 0.0
    %2129 = vmatprep.subr.mxu0 0.0
    %2130 = vmatpush1.xpose.msra.mxu0 0.0
    %2131 = vmatprep.subr.mxu0 0.0
    %2132 = vmatpush1.xpose.msra.mxu0 0.0
    %2133 = vmatprep.subr.mxu0 0.0
    %2134 = vmatpush1.xpose.msra.mxu0 0.0
    %2135 = vmatprep.subr.mxu0 0.0
    %2136 = vmatpush1.xpose.msra.mxu0 0.0
    %2137 = vmatprep.subr.mxu0 0.0
    %2138 = vmatpush1.xpose.msra.mxu0 0.0
    %2139 = vmatprep.subr.mxu0 0.0
    %2140 = vmatpush1.xpose.msra.mxu0 0.0
    %2141 = vmatprep.subr.mxu0 0.0
    %2142 = vmatpush1.xpose.msra.mxu0 0.0
    %2143 = vmatprep.subr.mxu0 0.0
    %2144 = vmatpush1.xpose.msra.mxu0 0.0
    %2145 = vmatprep.subr.mxu0 0.0
    %2146 = vmatpush1.xpose.msra.mxu0 0.0
    %2147 = vmatprep.subr.mxu0 0.0
    %2148 = vmatpush1.xpose.msra.mxu0 0.0
    %2149 = vmatprep.subr.mxu0 0.0
    %2150 = vmatpush1.xpose.msra.mxu0 0.0
    %2151 = vmatprep.subr.mxu0 0.0
    %2152 = vmatpush1.xpose.msra.mxu0 0.0
    %2153 = vmatprep.subr.mxu0 0.0
    %2154 = vmatpush1.xpose.msra.mxu0 %v2121
    %2155 = vmatprep.subr.mxu0 0.0
    %2156 = vmatpush2.xpose.msra.mxu0 0.0
    %2157 = vmatprep.subr.mxu0 0.0
    %2158 = vmatpush2.xpose.msra.mxu0 0.0
    %2159 = vmatprep.subr.mxu0 0.0
    %2160 = vmatpush2.xpose.msra.mxu0 0.0
    %2161 = vmatprep.subr.mxu0 0.0
    %2162 = vmatpush2.xpose.msra.mxu0 0.0
    %2163 = vmatprep.subr.mxu0 0.0
    %2164 = vmatpush2.xpose.msra.mxu0 0.0
    %2165 = vmatprep.subr.mxu0 0.0
    %2166 = vmatpush2.xpose.msra.mxu0 0.0
    %2167 = vmatprep.subr.mxu0 0.0
    %2168 = vmatpush2.xpose.msra.mxu0 0.0
    %2169 = vmatprep.subr.mxu0 0.0
    %2170 = vmatpush2.xpose.msra.mxu0 0.0
    %2171 = vmatprep.subr.mxu0 0.0
    %2172 = vmatpush2.xpose.msra.mxu0 0.0
    %2173 = vmatprep.subr.mxu0 0.0
    %2174 = vmatpush2.xpose.msra.mxu0 0.0
    %2175 = vmatprep.subr.mxu0 0.0
    %2176 = vmatpush2.xpose.msra.mxu0 0.0
    %2177 = vmatprep.subr.mxu0 0.0
    %2178 = vmatpush2.xpose.msra.mxu0 0.0
    %2179 = vmatprep.subr.mxu0 0.0
    %2180 = vmatpush2.xpose.msra.mxu0 0.0
    %2181 = vmatprep.subr.mxu0 0.0
    %2182 = vmatpush2.xpose.msra.mxu0 0.0
    %2183 = vmatprep.subr.mxu0 0.0
    %2184 = vmatpush2.xpose.msra.mxu0 0.0
    %2185 = vmatprep.subr.mxu0 0.0
    %2186 = vmatpush2.xpose.msra.mxu0 0.0
    %2187 = vmatprep.mubr.f32.mxu0 0.0
    %2188 = vmatmul.mubr.f32.gmra.mxu0 %v2118
    %v2189 = vpop.f32.mrf.mxu0
    %v2190 = vadd.f32 0.0, %v2189
    %v2191 = vpop.f32.mrf.mxu0
    %2192 = vdwg.mxu0
    %v2194 = vsel %vm1888, %v498, 0
    %v2197 = vsel %vm1888, %v1082, 0
    %2199 = vmatprep.subr.mxu0 0.0
    %2200 = vmatpush1.xpose.msra.mxu0 0.0
    %2201 = vmatprep.subr.mxu0 0.0
    %2202 = vmatpush1.xpose.msra.mxu0 0.0
    %2203 = vmatprep.subr.mxu0 0.0
    %2204 = vmatpush1.xpose.msra.mxu0 0.0
    %2205 = vmatprep.subr.mxu0 0.0
    %2206 = vmatpush1.xpose.msra.mxu0 0.0
    %2207 = vmatprep.subr.mxu0 0.0
    %2208 = vmatpush1.xpose.msra.mxu0 0.0
    %2209 = vmatprep.subr.mxu0 0.0
    %2210 = vmatpush1.xpose.msra.mxu0 0.0
    %2211 = vmatprep.subr.mxu0 0.0
    %2212 = vmatpush1.xpose.msra.mxu0 0.0
    %2213 = vmatprep.subr.mxu0 0.0
    %2214 = vmatpush1.xpose.msra.mxu0 0.0
    %2215 = vmatprep.subr.mxu0 0.0
    %2216 = vmatpush1.xpose.msra.mxu0 0.0
    %2217 = vmatprep.subr.mxu0 0.0
    %2218 = vmatpush1.xpose.msra.mxu0 0.0
    %2219 = vmatprep.subr.mxu0 0.0
    %2220 = vmatpush1.xpose.msra.mxu0 0.0
    %2221 = vmatprep.subr.mxu0 0.0
    %2222 = vmatpush1.xpose.msra.mxu0 0.0
    %2223 = vmatprep.subr.mxu0 0.0
    %2224 = vmatpush1.xpose.msra.mxu0 0.0
    %2225 = vmatprep.subr.mxu0 0.0
    %2226 = vmatpush1.xpose.msra.mxu0 0.0
    %2227 = vmatprep.subr.mxu0 0.0
    %2228 = vmatpush1.xpose.msra.mxu0 0.0
    %2229 = vmatprep.subr.mxu0 0.0
    %2230 = vmatpush1.xpose.msra.mxu0 %v2197
    %2231 = vmatprep.subr.mxu0 0.0
    %2232 = vmatpush2.xpose.msra.mxu0 0.0
    %2233 = vmatprep.subr.mxu0 0.0
    %2234 = vmatpush2.xpose.msra.mxu0 0.0
    %2235 = vmatprep.subr.mxu0 0.0
    %2236 = vmatpush2.xpose.msra.mxu0 0.0
    %2237 = vmatprep.subr.mxu0 0.0
    %2238 = vmatpush2.xpose.msra.mxu0 0.0
    %2239 = vmatprep.subr.mxu0 0.0
    %2240 = vmatpush2.xpose.msra.mxu0 0.0
    %2241 = vmatprep.subr.mxu0 0.0
    %2242 = vmatpush2.xpose.msra.mxu0 0.0
    %2243 = vmatprep.subr.mxu0 0.0
    %2244 = vmatpush2.xpose.msra.mxu0 0.0
    %2245 = vmatprep.subr.mxu0 0.0
    %2246 = vmatpush2.xpose.msra.mxu0 0.0
    %2247 = vmatprep.subr.mxu0 0.0
    %2248 = vmatpush2.xpose.msra.mxu0 0.0
    %2249 = vmatprep.subr.mxu0 0.0
    %2250 = vmatpush2.xpose.msra.mxu0 0.0
    %2251 = vmatprep.subr.mxu0 0.0
    %2252 = vmatpush2.xpose.msra.mxu0 0.0
    %2253 = vmatprep.subr.mxu0 0.0
    %2254 = vmatpush2.xpose.msra.mxu0 0.0
    %2255 = vmatprep.subr.mxu0 0.0
    %2256 = vmatpush2.xpose.msra.mxu0 0.0
    %2257 = vmatprep.subr.mxu0 0.0
    %2258 = vmatpush2.xpose.msra.mxu0 0.0
    %2259 = vmatprep.subr.mxu0 0.0
    %2260 = vmatpush2.xpose.msra.mxu0 0.0
    %2261 = vmatprep.subr.mxu0 0.0
    %2262 = vmatpush2.xpose.msra.mxu0 0.0
    %2263 = vmatprep.mubr.f32.mxu0 0.0
    %2264 = vmatmul.mubr.f32.gmra.mxu0 %v2194
    %v2265 = vpop.f32.mrf.mxu0
    %v2266 = vadd.f32 0.0, %v2265
    %v2267 = vpop.f32.mrf.mxu0
    %2268 = vdwg.mxu0
    %v2270 = vsel %vm1888, %v571, 0
    %v2273 = vsel %vm1888, %v1155, 0
    %2275 = vmatprep.subr.mxu0 0.0
    %2276 = vmatpush1.xpose.msra.mxu0 0.0
    %2277 = vmatprep.subr.mxu0 0.0
    %2278 = vmatpush1.xpose.msra.mxu0 0.0
    %2279 = vmatprep.subr.mxu0 0.0
    %2280 = vmatpush1.xpose.msra.mxu0 0.0
    %2281 = vmatprep.subr.mxu0 0.0
    %2282 = vmatpush1.xpose.msra.mxu0 0.0
    %2283 = vmatprep.subr.mxu0 0.0
    %2284 = vmatpush1.xpose.msra.mxu0 0.0
    %2285 = vmatprep.subr.mxu0 0.0
    %2286 = vmatpush1.xpose.msra.mxu0 0.0
    %2287 = vmatprep.subr.mxu0 0.0
    %2288 = vmatpush1.xpose.msra.mxu0 0.0
    %2289 = vmatprep.subr.mxu0 0.0
    %2290 = vmatpush1.xpose.msra.mxu0 0.0
    %2291 = vmatprep.subr.mxu0 0.0
    %2292 = vmatpush1.xpose.msra.mxu0 0.0
    %2293 = vmatprep.subr.mxu0 0.0
    %2294 = vmatpush1.xpose.msra.mxu0 0.0
    %2295 = vmatprep.subr.mxu0 0.0
    %2296 = vmatpush1.xpose.msra.mxu0 0.0
    %2297 = vmatprep.subr.mxu0 0.0
    %2298 = vmatpush1.xpose.msra.mxu0 0.0
    %2299 = vmatprep.subr.mxu0 0.0
    %2300 = vmatpush1.xpose.msra.mxu0 0.0
    %2301 = vmatprep.subr.mxu0 0.0
    %2302 = vmatpush1.xpose.msra.mxu0 0.0
    %2303 = vmatprep.subr.mxu0 0.0
    %2304 = vmatpush1.xpose.msra.mxu0 0.0
    %2305 = vmatprep.subr.mxu0 0.0
    %2306 = vmatpush1.xpose.msra.mxu0 %v2273
    %2307 = vmatprep.subr.mxu0 0.0
    %2308 = vmatpush2.xpose.msra.mxu0 0.0
    %2309 = vmatprep.subr.mxu0 0.0
    %2310 = vmatpush2.xpose.msra.mxu0 0.0
    %2311 = vmatprep.subr.mxu0 0.0
    %2312 = vmatpush2.xpose.msra.mxu0 0.0
    %2313 = vmatprep.subr.mxu0 0.0
    %2314 = vmatpush2.xpose.msra.mxu0 0.0
    %2315 = vmatprep.subr.mxu0 0.0
    %2316 = vmatpush2.xpose.msra.mxu0 0.0
    %2317 = vmatprep.subr.mxu0 0.0
    %2318 = vmatpush2.xpose.msra.mxu0 0.0
    %2319 = vmatprep.subr.mxu0 0.0
    %2320 = vmatpush2.xpose.msra.mxu0 0.0
    %2321 = vmatprep.subr.mxu0 0.0
    %2322 = vmatpush2.xpose.msra.mxu0 0.0
    %2323 = vmatprep.subr.mxu0 0.0
    %2324 = vmatpush2.xpose.msra.mxu0 0.0
    %2325 = vmatprep.subr.mxu0 0.0
    %2326 = vmatpush2.xpose.msra.mxu0 0.0
    %2327 = vmatprep.subr.mxu0 0.0
    %2328 = vmatpush2.xpose.msra.mxu0 0.0
    %2329 = vmatprep.subr.mxu0 0.0
    %2330 = vmatpush2.xpose.msra.mxu0 0.0
    %2331 = vmatprep.subr.mxu0 0.0
    %2332 = vmatpush2.xpose.msra.mxu0 0.0
    %2333 = vmatprep.subr.mxu0 0.0
    %2334 = vmatpush2.xpose.msra.mxu0 0.0
    %2335 = vmatprep.subr.mxu0 0.0
    %2336 = vmatpush2.xpose.msra.mxu0 0.0
    %2337 = vmatprep.subr.mxu0 0.0
    %2338 = vmatpush2.xpose.msra.mxu0 0.0
    %2339 = vmatprep.mubr.f32.mxu0 0.0
    %2340 = vmatmul.mubr.f32.gmra.mxu0 %v2270
    %v2341 = vpop.f32.mrf.mxu0
    %v2342 = vadd.f32 0.0, %v2341
    %v2343 = vpop.f32.mrf.mxu0
    %2344 = vdwg.mxu0
    %v2346 = vsel %vm1888, %v644, 0
    %v2349 = vsel %vm1888, %v1228, 0
    %2351 = vmatprep.subr.mxu0 0.0
    %2352 = vmatpush1.xpose.msra.mxu0 0.0
    %2353 = vmatprep.subr.mxu0 0.0
    %2354 = vmatpush1.xpose.msra.mxu0 0.0
    %2355 = vmatprep.subr.mxu0 0.0
    %2356 = vmatpush1.xpose.msra.mxu0 0.0
    %2357 = vmatprep.subr.mxu0 0.0
    %2358 = vmatpush1.xpose.msra.mxu0 0.0
    %2359 = vmatprep.subr.mxu0 0.0
    %2360 = vmatpush1.xpose.msra.mxu0 0.0
    %2361 = vmatprep.subr.mxu0 0.0
    %2362 = vmatpush1.xpose.msra.mxu0 0.0
    %2363 = vmatprep.subr.mxu0 0.0
    %2364 = vmatpush1.xpose.msra.mxu0 0.0
    %2365 = vmatprep.subr.mxu0 0.0
    %2366 = vmatpush1.xpose.msra.mxu0 0.0
    %2367 = vmatprep.subr.mxu0 0.0
    %2368 = vmatpush1.xpose.msra.mxu0 0.0
    %2369 = vmatprep.subr.mxu0 0.0
    %2370 = vmatpush1.xpose.msra.mxu0 0.0
    %2371 = vmatprep.subr.mxu0 0.0
    %2372 = vmatpush1.xpose.msra.mxu0 0.0
    %2373 = vmatprep.subr.mxu0 0.0
    %2374 = vmatpush1.xpose.msra.mxu0 0.0
    %2375 = vmatprep.subr.mxu0 0.0
    %2376 = vmatpush1.xpose.msra.mxu0 0.0
    %2377 = vmatprep.subr.mxu0 0.0
    %2378 = vmatpush1.xpose.msra.mxu0 0.0
    %2379 = vmatprep.subr.mxu0 0.0
    %2380 = vmatpush1.xpose.msra.mxu0 0.0
    %2381 = vmatprep.subr.mxu0 0.0
    %2382 = vmatpush1.xpose.msra.mxu0 %v2349
    %2383 = vmatprep.subr.mxu0 0.0
    %2384 = vmatpush2.xpose.msra.mxu0 0.0
    %2385 = vmatprep.subr.mxu0 0.0
    %2386 = vmatpush2.xpose.msra.mxu0 0.0
    %2387 = vmatprep.subr.mxu0 0.0
    %2388 = vmatpush2.xpose.msra.mxu0 0.0
    %2389 = vmatprep.subr.mxu0 0.0
    %2390 = vmatpush2.xpose.msra.mxu0 0.0
    %2391 = vmatprep.subr.mxu0 0.0
    %2392 = vmatpush2.xpose.msra.mxu0 0.0
    %2393 = vmatprep.subr.mxu0 0.0
    %2394 = vmatpush2.xpose.msra.mxu0 0.0
    %2395 = vmatprep.subr.mxu0 0.0
    %2396 = vmatpush2.xpose.msra.mxu0 0.0
    %2397 = vmatprep.subr.mxu0 0.0
    %2398 = vmatpush2.xpose.msra.mxu0 0.0
    %2399 = vmatprep.subr.mxu0 0.0
    %2400 = vmatpush2.xpose.msra.mxu0 0.0
    %2401 = vmatprep.subr.mxu0 0.0
    %2402 = vmatpush2.xpose.msra.mxu0 0.0
    %2403 = vmatprep.subr.mxu0 0.0
    %2404 = vmatpush2.xpose.msra.mxu0 0.0
    %2405 = vmatprep.subr.mxu0 0.0
    %2406 = vmatpush2.xpose.msra.mxu0 0.0
    %2407 = vmatprep.subr.mxu0 0.0
    %2408 = vmatpush2.xpose.msra.mxu0 0.0
    %2409 = vmatprep.subr.mxu0 0.0
    %2410 = vmatpush2.xpose.msra.mxu0 0.0
    %2411 = vmatprep.subr.mxu0 0.0
    %2412 = vmatpush2.xpose.msra.mxu0 0.0
    %2413 = vmatprep.subr.mxu0 0.0
    %2414 = vmatpush2.xpose.msra.mxu0 0.0
    %2415 = vmatprep.mubr.f32.mxu0 0.0
    %2416 = vmatmul.mubr.f32.gmra.mxu0 %v2346
    %v2417 = vpop.f32.mrf.mxu0
    %v2418 = vadd.f32 0.0, %v2417
    %v2419 = vpop.f32.mrf.mxu0
    %2420 = vdwg.mxu0
    %v2422 = vsel %vm1888, %v717, 0
    %v2425 = vsel %vm1888, %v1301, 0
    %2427 = vmatprep.subr.mxu0 0.0
    %2428 = vmatpush1.xpose.msra.mxu0 0.0
    %2429 = vmatprep.subr.mxu0 0.0
    %2430 = vmatpush1.xpose.msra.mxu0 0.0
    %2431 = vmatprep.subr.mxu0 0.0
    %2432 = vmatpush1.xpose.msra.mxu0 0.0
    %2433 = vmatprep.subr.mxu0 0.0
    %2434 = vmatpush1.xpose.msra.mxu0 0.0
    %2435 = vmatprep.subr.mxu0 0.0
    %2436 = vmatpush1.xpose.msra.mxu0 0.0
    %2437 = vmatprep.subr.mxu0 0.0
    %2438 = vmatpush1.xpose.msra.mxu0 0.0
    %2439 = vmatprep.subr.mxu0 0.0
    %2440 = vmatpush1.xpose.msra.mxu0 0.0
    %2441 = vmatprep.subr.mxu0 0.0
    %2442 = vmatpush1.xpose.msra.mxu0 0.0
    %2443 = vmatprep.subr.mxu0 0.0
    %2444 = vmatpush1.xpose.msra.mxu0 0.0
    %2445 = vmatprep.subr.mxu0 0.0
    %2446 = vmatpush1.xpose.msra.mxu0 0.0
    %2447 = vmatprep.subr.mxu0 0.0
    %2448 = vmatpush1.xpose.msra.mxu0 0.0
    %2449 = vmatprep.subr.mxu0 0.0
    %2450 = vmatpush1.xpose.msra.mxu0 0.0
    %2451 = vmatprep.subr.mxu0 0.0
    %2452 = vmatpush1.xpose.msra.mxu0 0.0
    %2453 = vmatprep.subr.mxu0 0.0
    %2454 = vmatpush1.xpose.msra.mxu0 0.0
    %2455 = vmatprep.subr.mxu0 0.0
    %2456 = vmatpush1.xpose.msra.mxu0 0.0
    %2457 = vmatprep.subr.mxu0 0.0
    %2458 = vmatpush1.xpose.msra.mxu0 %v2425
    %2459 = vmatprep.subr.mxu0 0.0
    %2460 = vmatpush2.xpose.msra.mxu0 0.0
    %2461 = vmatprep.subr.mxu0 0.0
    %2462 = vmatpush2.xpose.msra.mxu0 0.0
    %2463 = vmatprep.subr.mxu0 0.0
    %2464 = vmatpush2.xpose.msra.mxu0 0.0
    %2465 = vmatprep.subr.mxu0 0.0
    %2466 = vmatpush2.xpose.msra.mxu0 0.0
    %2467 = vmatprep.subr.mxu0 0.0
    %2468 = vmatpush2.xpose.msra.mxu0 0.0
    %2469 = vmatprep.subr.mxu0 0.0
    %2470 = vmatpush2.xpose.msra.mxu0 0.0
    %2471 = vmatprep.subr.mxu0 0.0
    %2472 = vmatpush2.xpose.msra.mxu0 0.0
    %2473 = vmatprep.subr.mxu0 0.0
    %2474 = vmatpush2.xpose.msra.mxu0 0.0
    %2475 = vmatprep.subr.mxu0 0.0
    %2476 = vmatpush2.xpose.msra.mxu0 0.0
    %2477 = vmatprep.subr.mxu0 0.0
    %2478 = vmatpush2.xpose.msra.mxu0 0.0
    %2479 = vmatprep.subr.mxu0 0.0
    %2480 = vmatpush2.xpose.msra.mxu0 0.0
    %2481 = vmatprep.subr.mxu0 0.0
    %2482 = vmatpush2.xpose.msra.mxu0 0.0
    %2483 = vmatprep.subr.mxu0 0.0
    %2484 = vmatpush2.xpose.msra.mxu0 0.0
    %2485 = vmatprep.subr.mxu0 0.0
    %2486 = vmatpush2.xpose.msra.mxu0 0.0
    %2487 = vmatprep.subr.mxu0 0.0
    %2488 = vmatpush2.xpose.msra.mxu0 0.0
    %2489 = vmatprep.subr.mxu0 0.0
    %2490 = vmatpush2.xpose.msra.mxu0 0.0
    %2491 = vmatprep.mubr.f32.mxu0 0.0
    %2492 = vmatmul.mubr.f32.gmra.mxu0 %v2422
    %v2493 = vpop.f32.mrf.mxu0
    %v2494 = vadd.f32 0.0, %v2493
    %v2495 = vpop.f32.mrf.mxu0
    %2496 = vdwg.mxu0
    %v2497 = vmul.f32 %v1962, 0.35355338
    %v2498 = vmul.f32 %v2038, 0.35355338
    %v2499 = vmul.f32 %v2114, 0.35355338
    %v2500 = vmul.f32 %v2190, 0.35355338
    %v2501 = vmul.f32 %v2266, 0.35355338
    %v2502 = vmul.f32 %v2342, 0.35355338
    %v2503 = vmul.f32 %v2418, 0.35355338
    %v2504 = vmul.f32 %v2494, 0.35355338
    %v2505 = vadd.f32 %v2497, %v128
    %v2506 = vadd.f32 %v2498, %v128
    %v2507 = vadd.f32 %v2499, %v128
    %v2508 = vadd.f32 %v2500, %v128
    %v2509 = vadd.f32 %v2501, %v128
    %v2510 = vadd.f32 %v2502, %v128
    %v2511 = vadd.f32 %v2503, %v128
    %v2512 = vadd.f32 %v2504, %v128
    %v2513 = vsel %vm1888, %v2505, -inf
    %2514 = vmax.xlane.f32.xlu0 %v2513
    %v2515 = vpop.xlane.xlu0 %2514
    %v2516 = vsel %vm1888, %v2506, -inf
    %2517 = vmax.xlane.f32.xlu0 %v2516
    %v2518 = vpop.xlane.xlu0 %2517
    %v2519 = vsel %vm1888, %v2507, -inf
    %2520 = vmax.xlane.f32.xlu0 %v2519
    %v2521 = vpop.xlane.xlu0 %2520
    %v2522 = vsel %vm1888, %v2508, -inf
    %2523 = vmax.xlane.f32.xlu0 %v2522
    %v2524 = vpop.xlane.xlu0 %2523
    %v2525 = vsel %vm1888, %v2509, -inf
    %2526 = vmax.xlane.f32.xlu0 %v2525
    %v2527 = vpop.xlane.xlu0 %2526
    %v2528 = vsel %vm1888, %v2510, -inf
    %2529 = vmax.xlane.f32.xlu0 %v2528
    %v2530 = vpop.xlane.xlu0 %2529
    %v2531 = vsel %vm1888, %v2511, -inf
    %2532 = vmax.xlane.f32.xlu0 %v2531
    %v2533 = vpop.xlane.xlu0 %2532
    %v2534 = vsel %vm1888, %v2512, -inf
    %2535 = vmax.xlane.f32.xlu0 %v2534
    %v2536 = vpop.xlane.xlu0 %2535
    %v2537 = vsub.f32 %v2505, %v2515
    %v2538 = vsub.f32 %v2506, %v2518
    %v2539 = vsub.f32 %v2507, %v2521
    %v2540 = vsub.f32 %v2508, %v2524
    %v2541 = vsub.f32 %v2509, %v2527
    %v2542 = vsub.f32 %v2510, %v2530
    %v2543 = vsub.f32 %v2511, %v2533
    %v2544 = vsub.f32 %v2512, %v2536
    %v2545 = vmul.f32 %v2537, 1.442695
    %v2546 = vpow.pop %v2545
    %v2547 = vmul.f32 %v2538, 1.442695
    %v2548 = vpow.pop %v2547
    %v2549 = vmul.f32 %v2539, 1.442695
    %v2550 = vpow.pop %v2549
    %v2551 = vmul.f32 %v2540, 1.442695
    %v2552 = vpow.pop %v2551
    %v2553 = vmul.f32 %v2541, 1.442695
    %v2554 = vpow.pop %v2553
    %v2555 = vmul.f32 %v2542, 1.442695
    %v2556 = vpow.pop %v2555
    %v2557 = vmul.f32 %v2543, 1.442695
    %v2558 = vpow.pop %v2557
    %v2559 = vmul.f32 %v2544, 1.442695
    %v2560 = vpow.pop %v2559
    %v2561 = vsel %vm1888, %v2546, 0.0
    %2562 = vadd.xlane.f32.xlu0 %v2561
    %v2563 = vpop.xlane.xlu0 %2562
    %v2564 = vsel %vm1888, %v2548, 0.0
    %2565 = vadd.xlane.f32.xlu0 %v2564
    %v2566 = vpop.xlane.xlu0 %2565
    %v2567 = vsel %vm1888, %v2550, 0.0
    %2568 = vadd.xlane.f32.xlu0 %v2567
    %v2569 = vpop.xlane.xlu0 %2568
    %v2570 = vsel %vm1888, %v2552, 0.0
    %2571 = vadd.xlane.f32.xlu0 %v2570
    %v2572 = vpop.xlane.xlu0 %2571
    %v2573 = vsel %vm1888, %v2554, 0.0
    %2574 = vadd.xlane.f32.xlu0 %v2573
    %v2575 = vpop.xlane.xlu0 %2574
    %v2576 = vsel %vm1888, %v2556, 0.0
    %2577 = vadd.xlane.f32.xlu0 %v2576
    %v2578 = vpop.xlane.xlu0 %2577
    %v2579 = vsel %vm1888, %v2558, 0.0
    %2580 = vadd.xlane.f32.xlu0 %v2579
    %v2581 = vpop.xlane.xlu0 %2580
    %v2582 = vsel %vm1888, %v2560, 0.0
    %2583 = vadd.xlane.f32.xlu0 %v2582
    %v2584 = vpop.xlane.xlu0 %2583
    %v2585 = vrcp.pop %v2563
    %v2586 = vrcp.pop %v2566
    %v2587 = vrcp.pop %v2569
    %v2588 = vrcp.pop %v2572
    %v2589 = vrcp.pop %v2575
    %v2590 = vrcp.pop %v2578
    %v2591 = vrcp.pop %v2581
    %v2592 = vrcp.pop %v2584
    %v2593 = vmul.f32 %v2546, %v2585
    %v2594 = vmul.f32 %v2548, %v2586
    %v2595 = vmul.f32 %v2550, %v2587
    %v2596 = vmul.f32 %v2552, %v2588
    %v2597 = vmul.f32 %v2554, %v2589
    %v2598 = vmul.f32 %v2556, %v2590
    %v2599 = vmul.f32 %v2558, %v2591
    %v2600 = vmul.f32 %v2560, %v2592
    %v2602 = vsel %vm1888, %v2593, 0
    %2604 = vmatprep.subr.mxu0 0.0
    %2605 = vmatpush1.msra.mxu0 0.0
    %2606 = vmatprep.subr.mxu0 0.0
    %2607 = vmatpush1.msra.mxu0 0.0
    %2608 = vmatprep.subr.mxu0 0.0
    %2609 = vmatpush1.msra.mxu0 0.0
    %2610 = vmatprep.subr.mxu0 0.0
    %2611 = vmatpush1.msra.mxu0 0.0
    %2612 = vmatprep.subr.mxu0 0.0
    %2613 = vmatpush1.msra.mxu0 0.0
    %2614 = vmatprep.subr.mxu0 0.0
    %2615 = vmatpush1.msra.mxu0 0.0
    %2616 = vmatprep.subr.mxu0 0.0
    %2617 = vmatpush1.msra.mxu0 0.0
    %2618 = vmatprep.subr.mxu0 0.0
    %2619 = vmatpush1.msra.mxu0 0.0
    %2620 = vmatprep.subr.mxu0 0.0
    %2621 = vmatpush1.msra.mxu0 0.0
    %2622 = vmatprep.subr.mxu0 0.0
    %2623 = vmatpush1.msra.mxu0 0.0
    %2624 = vmatprep.subr.mxu0 0.0
    %2625 = vmatpush1.msra.mxu0 0.0
    %2626 = vmatprep.subr.mxu0 0.0
    %2627 = vmatpush1.msra.mxu0 0.0
    %2628 = vmatprep.subr.mxu0 0.0
    %2629 = vmatpush1.msra.mxu0 0.0
    %2630 = vmatprep.subr.mxu0 0.0
    %2631 = vmatpush1.msra.mxu0 0.0
    %2632 = vmatprep.subr.mxu0 0.0
    %2633 = vmatpush1.msra.mxu0 0.0
    %2634 = vmatprep.subr.mxu0 0.0
    %2635 = vmatpush1.msra.mxu0 %v1374
    %2636 = vmatprep.subr.mxu0 0.0
    %2637 = vmatpush2.msra.mxu0 0.0
    %2638 = vmatprep.subr.mxu0 0.0
    %2639 = vmatpush2.msra.mxu0 0.0
    %2640 = vmatprep.subr.mxu0 0.0
    %2641 = vmatpush2.msra.mxu0 0.0
    %2642 = vmatprep.subr.mxu0 0.0
    %2643 = vmatpush2.msra.mxu0 0.0
    %2644 = vmatprep.subr.mxu0 0.0
    %2645 = vmatpush2.msra.mxu0 0.0
    %2646 = vmatprep.subr.mxu0 0.0
    %2647 = vmatpush2.msra.mxu0 0.0
    %2648 = vmatprep.subr.mxu0 0.0
    %2649 = vmatpush2.msra.mxu0 0.0
    %2650 = vmatprep.subr.mxu0 0.0
    %2651 = vmatpush2.msra.mxu0 0.0
    %2652 = vmatprep.subr.mxu0 0.0
    %2653 = vmatpush2.msra.mxu0 0.0
    %2654 = vmatprep.subr.mxu0 0.0
    %2655 = vmatpush2.msra.mxu0 0.0
    %2656 = vmatprep.subr.mxu0 0.0
    %2657 = vmatpush2.msra.mxu0 0.0
    %2658 = vmatprep.subr.mxu0 0.0
    %2659 = vmatpush2.msra.mxu0 0.0
    %2660 = vmatprep.subr.mxu0 0.0
    %2661 = vmatpush2.msra.mxu0 0.0
    %2662 = vmatprep.subr.mxu0 0.0
    %2663 = vmatpush2.msra.mxu0 0.0
    %2664 = vmatprep.subr.mxu0 0.0
    %2665 = vmatpush2.msra.mxu0 0.0
    %2666 = vmatprep.subr.mxu0 0.0
    %2667 = vmatpush2.msra.mxu0 0.0
    %2668 = vmatprep.mubr.f32.mxu0 0.0
    %2669 = vmatmul.mubr.f32.gmra.mxu0 %v2602
    %v2670 = vpop.f32.mrf.mxu0
    %v2671 = vadd.f32 0.0, %v2670
    %v2672 = vpop.f32.mrf.mxu0
    %2673 = vdwg.mxu0
    %v2675 = vsel %vm1888, %v2594, 0
    %2677 = vmatprep.subr.mxu0 0.0
    %2678 = vmatpush1.msra.mxu0 0.0
    %2679 = vmatprep.subr.mxu0 0.0
    %2680 = vmatpush1.msra.mxu0 0.0
    %2681 = vmatprep.subr.mxu0 0.0
    %2682 = vmatpush1.msra.mxu0 0.0
    %2683 = vmatprep.subr.mxu0 0.0
    %2684 = vmatpush1.msra.mxu0 0.0
    %2685 = vmatprep.subr.mxu0 0.0
    %2686 = vmatpush1.msra.mxu0 0.0
    %2687 = vmatprep.subr.mxu0 0.0
    %2688 = vmatpush1.msra.mxu0 0.0
    %2689 = vmatprep.subr.mxu0 0.0
    %2690 = vmatpush1.msra.mxu0 0.0
    %2691 = vmatprep.subr.mxu0 0.0
    %2692 = vmatpush1.msra.mxu0 0.0
    %2693 = vmatprep.subr.mxu0 0.0
    %2694 = vmatpush1.msra.mxu0 0.0
    %2695 = vmatprep.subr.mxu0 0.0
    %2696 = vmatpush1.msra.mxu0 0.0
    %2697 = vmatprep.subr.mxu0 0.0
    %2698 = vmatpush1.msra.mxu0 0.0
    %2699 = vmatprep.subr.mxu0 0.0
    %2700 = vmatpush1.msra.mxu0 0.0
    %2701 = vmatprep.subr.mxu0 0.0
    %2702 = vmatpush1.msra.mxu0 0.0
    %2703 = vmatprep.subr.mxu0 0.0
    %2704 = vmatpush1.msra.mxu0 0.0
    %2705 = vmatprep.subr.mxu0 0.0
    %2706 = vmatpush1.msra.mxu0 0.0
    %2707 = vmatprep.subr.mxu0 0.0
    %2708 = vmatpush1.msra.mxu0 %v1447
    %2709 = vmatprep.subr.mxu0 0.0
    %2710 = vmatpush2.msra.mxu0 0.0
    %2711 = vmatprep.subr.mxu0 0.0
    %2712 = vmatpush2.msra.mxu0 0.0
    %2713 = vmatprep.subr.mxu0 0.0
    %2714 = vmatpush2.msra.mxu0 0.0
    %2715 = vmatprep.subr.mxu0 0.0
    %2716 = vmatpush2.msra.mxu0 0.0
    %2717 = vmatprep.subr.mxu0 0.0
    %2718 = vmatpush2.msra.mxu0 0.0
    %2719 = vmatprep.subr.mxu0 0.0
    %2720 = vmatpush2.msra.mxu0 0.0
    %2721 = vmatprep.subr.mxu0 0.0
    %2722 = vmatpush2.msra.mxu0 0.0
    %2723 = vmatprep.subr.mxu0 0.0
    %2724 = vmatpush2.msra.mxu0 0.0
    %2725 = vmatprep.subr.mxu0 0.0
    %2726 = vmatpush2.msra.mxu0 0.0
    %2727 = vmatprep.subr.mxu0 0.0
    %2728 = vmatpush2.msra.mxu0 0.0
    %2729 = vmatprep.subr.mxu0 0.0
    %2730 = vmatpush2.msra.mxu0 0.0
    %2731 = vmatprep.subr.mxu0 0.0
    %2732 = vmatpush2.msra.mxu0 0.0
    %2733 = vmatprep.subr.mxu0 0.0
    %2734 = vmatpush2.msra.mxu0 0.0
    %2735 = vmatprep.subr.mxu0 0.0
    %2736 = vmatpush2.msra.mxu0 0.0
    %2737 = vmatprep.subr.mxu0 0.0
    %2738 = vmatpush2.msra.mxu0 0.0
    %2739 = vmatprep.subr.mxu0 0.0
    %2740 = vmatpush2.msra.mxu0 0.0
    %2741 = vmatprep.mubr.f32.mxu0 0.0
    %2742 = vmatmul.mubr.f32.gmra.mxu0 %v2675
    %v2743 = vpop.f32.mrf.mxu0
    %v2744 = vadd.f32 0.0, %v2743
    %v2745 = vpop.f32.mrf.mxu0
    %2746 = vdwg.mxu0
    %v2748 = vsel %vm1888, %v2595, 0
    %2750 = vmatprep.subr.mxu0 0.0
    %2751 = vmatpush1.msra.mxu0 0.0
    %2752 = vmatprep.subr.mxu0 0.0
    %2753 = vmatpush1.msra.mxu0 0.0
    %2754 = vmatprep.subr.mxu0 0.0
    %2755 = vmatpush1.msra.mxu0 0.0
    %2756 = vmatprep.subr.mxu0 0.0
    %2757 = vmatpush1.msra.mxu0 0.0
    %2758 = vmatprep.subr.mxu0 0.0
    %2759 = vmatpush1.msra.mxu0 0.0
    %2760 = vmatprep.subr.mxu0 0.0
    %2761 = vmatpush1.msra.mxu0 0.0
    %2762 = vmatprep.subr.mxu0 0.0
    %2763 = vmatpush1.msra.mxu0 0.0
    %2764 = vmatprep.subr.mxu0 0.0
    %2765 = vmatpush1.msra.mxu0 0.0
    %2766 = vmatprep.subr.mxu0 0.0
    %2767 = vmatpush1.msra.mxu0 0.0
    %2768 = vmatprep.subr.mxu0 0.0
    %2769 = vmatpush1.msra.mxu0 0.0
    %2770 = vmatprep.subr.mxu0 0.0
    %2771 = vmatpush1.msra.mxu0 0.0
    %2772 = vmatprep.subr.mxu0 0.0
    %2773 = vmatpush1.msra.mxu0 0.0
    %2774 = vmatprep.subr.mxu0 0.0
    %2775 = vmatpush1.msra.mxu0 0.0
    %2776 = vmatprep.subr.mxu0 0.0
    %2777 = vmatpush1.msra.mxu0 0.0
    %2778 = vmatprep.subr.mxu0 0.0
    %2779 = vmatpush1.msra.mxu0 0.0
    %2780 = vmatprep.subr.mxu0 0.0
    %2781 = vmatpush1.msra.mxu0 %v1520
    %2782 = vmatprep.subr.mxu0 0.0
    %2783 = vmatpush2.msra.mxu0 0.0
    %2784 = vmatprep.subr.mxu0 0.0
    %2785 = vmatpush2.msra.mxu0 0.0
    %2786 = vmatprep.subr.mxu0 0.0
    %2787 = vmatpush2.msra.mxu0 0.0
    %2788 = vmatprep.subr.mxu0 0.0
    %2789 = vmatpush2.msra.mxu0 0.0
    %2790 = vmatprep.subr.mxu0 0.0
    %2791 = vmatpush2.msra.mxu0 0.0
    %2792 = vmatprep.subr.mxu0 0.0
    %2793 = vmatpush2.msra.mxu0 0.0
    %2794 = vmatprep.subr.mxu0 0.0
    %2795 = vmatpush2.msra.mxu0 0.0
    %2796 = vmatprep.subr.mxu0 0.0
    %2797 = vmatpush2.msra.mxu0 0.0
    %2798 = vmatprep.subr.mxu0 0.0
    %2799 = vmatpush2.msra.mxu0 0.0
    %2800 = vmatprep.subr.mxu0 0.0
    %2801 = vmatpush2.msra.mxu0 0.0
    %2802 = vmatprep.subr.mxu0 0.0
    %2803 = vmatpush2.msra.mxu0 0.0
    %2804 = vmatprep.subr.mxu0 0.0
    %2805 = vmatpush2.msra.mxu0 0.0
    %2806 = vmatprep.subr.mxu0 0.0
    %2807 = vmatpush2.msra.mxu0 0.0
    %2808 = vmatprep.subr.mxu0 0.0
    %2809 = vmatpush2.msra.mxu0 0.0
    %2810 = vmatprep.subr.mxu0 0.0
    %2811 = vmatpush2.msra.mxu0 0.0
    %2812 = vmatprep.subr.mxu0 0.0
    %2813 = vmatpush2.msra.mxu0 0.0
    %2814 = vmatprep.mubr.f32.mxu0 0.0
    %2815 = vmatmul.mubr.f32.gmra.mxu0 %v2748
    %v2816 = vpop.f32.mrf.mxu0
    %v2817 = vadd.f32 0.0, %v2816
    %v2818 = vpop.f32.mrf.mxu0
    %2819 = vdwg.mxu0
    %v2821 = vsel %vm1888, %v2596, 0
    %2823 = vmatprep.subr.mxu0 0.0
    %2824 = vmatpush1.msra.mxu0 0.0
    %2825 = vmatprep.subr.mxu0 0.0
    %2826 = vmatpush1.msra.mxu0 0.0
    %2827 = vmatprep.subr.mxu0 0.0
    %2828 = vmatpush1.msra.mxu0 0.0
    %2829 = vmatprep.subr.mxu0 0.0
    %2830 = vmatpush1.msra.mxu0 0.0
    %2831 = vmatprep.subr.mxu0 0.0
    %2832 = vmatpush1.msra.mxu0 0.0
    %2833 = vmatprep.subr.mxu0 0.0
    %2834 = vmatpush1.msra.mxu0 0.0
    %2835 = vmatprep.subr.mxu0 0.0
    %2836 = vmatpush1.msra.mxu0 0.0
    %2837 = vmatprep.subr.mxu0 0.0
    %2838 = vmatpush1.msra.mxu0 0.0
    %2839 = vmatprep.subr.mxu0 0.0
    %2840 = vmatpush1.msra.mxu0 0.0
    %2841 = vmatprep.subr.mxu0 0.0
    %2842 = vmatpush1.msra.mxu0 0.0
    %2843 = vmatprep.subr.mxu0 0.0
    %2844 = vmatpush1.msra.mxu0 0.0
    %2845 = vmatprep.subr.mxu0 0.0
    %2846 = vmatpush1.msra.mxu0 0.0
    %2847 = vmatprep.subr.mxu0 0.0
    %2848 = vmatpush1.msra.mxu0 0.0
    %2849 = vmatprep.subr.mxu0 0.0
    %2850 = vmatpush1.msra.mxu0 0.0
    %2851 = vmatprep.subr.mxu0 0.0
    %2852 = vmatpush1.msra.mxu0 0.0
    %2853 = vmatprep.subr.mxu0 0.0
    %2854 = vmatpush1.msra.mxu0 %v1593
    %2855 = vmatprep.subr.mxu0 0.0
    %2856 = vmatpush2.msra.mxu0 0.0
    %2857 = vmatprep.subr.mxu0 0.0
    %2858 = vmatpush2.msra.mxu0 0.0
    %2859 = vmatprep.subr.mxu0 0.0
    %2860 = vmatpush2.msra.mxu0 0.0
    %2861 = vmatprep.subr.mxu0 0.0
    %2862 = vmatpush2.msra.mxu0 0.0
    %2863 = vmatprep.subr.mxu0 0.0
    %2864 = vmatpush2.msra.mxu0 0.0
    %2865 = vmatprep.subr.mxu0 0.0
    %2866 = vmatpush2.msra.mxu0 0.0
    %2867 = vmatprep.subr.mxu0 0.0
    %2868 = vmatpush2.msra.mxu0 0.0
    %2869 = vmatprep.subr.mxu0 0.0
    %2870 = vmatpush2.msra.mxu0 0.0
    %2871 = vmatprep.subr.mxu0 0.0
    %2872 = vmatpush2.msra.mxu0 0.0
    %2873 = vmatprep.subr.mxu0 0.0
    %2874 = vmatpush2.msra.mxu0 0.0
    %2875 = vmatprep.subr.mxu0 0.0
    %2876 = vmatpush2.msra.mxu0 0.0
    %2877 = vmatprep.subr.mxu0 0.0
    %2878 = vmatpush2.msra.mxu0 0.0
    %2879 = vmatprep.subr.mxu0 0.0
    %2880 = vmatpush2.msra.mxu0 0.0
    %2881 = vmatprep.subr.mxu0 0.0
    %2882 = vmatpush2.msra.mxu0 0.0
    %2883 = vmatprep.subr.mxu0 0.0
    %2884 = vmatpush2.msra.mxu0 0.0
    %2885 = vmatprep.subr.mxu0 0.0
    %2886 = vmatpush2.msra.mxu0 0.0
    %2887 = vmatprep.mubr.f32.mxu0 0.0
    %2888 = vmatmul.mubr.f32.gmra.mxu0 %v2821
    %v2889 = vpop.f32.mrf.mxu0
    %v2890 = vadd.f32 0.0, %v2889
    %v2891 = vpop.f32.mrf.mxu0
    %2892 = vdwg.mxu0
    %v2894 = vsel %vm1888, %v2597, 0
    %2896 = vmatprep.subr.mxu0 0.0
    %2897 = vmatpush1.msra.mxu0 0.0
    %2898 = vmatprep.subr.mxu0 0.0
    %2899 = vmatpush1.msra.mxu0 0.0
    %2900 = vmatprep.subr.mxu0 0.0
    %2901 = vmatpush1.msra.mxu0 0.0
    %2902 = vmatprep.subr.mxu0 0.0
    %2903 = vmatpush1.msra.mxu0 0.0
    %2904 = vmatprep.subr.mxu0 0.0
    %2905 = vmatpush1.msra.mxu0 0.0
    %2906 = vmatprep.subr.mxu0 0.0
    %2907 = vmatpush1.msra.mxu0 0.0
    %2908 = vmatprep.subr.mxu0 0.0
    %2909 = vmatpush1.msra.mxu0 0.0
    %2910 = vmatprep.subr.mxu0 0.0
    %2911 = vmatpush1.msra.mxu0 0.0
    %2912 = vmatprep.subr.mxu0 0.0
    %2913 = vmatpush1.msra.mxu0 0.0
    %2914 = vmatprep.subr.mxu0 0.0
    %2915 = vmatpush1.msra.mxu0 0.0
    %2916 = vmatprep.subr.mxu0 0.0
    %2917 = vmatpush1.msra.mxu0 0.0
    %2918 = vmatprep.subr.mxu0 0.0
    %2919 = vmatpush1.msra.mxu0 0.0
    %2920 = vmatprep.subr.mxu0 0.0
    %2921 = vmatpush1.msra.mxu0 0.0
    %2922 = vmatprep.subr.mxu0 0.0
    %2923 = vmatpush1.msra.mxu0 0.0
    %2924 = vmatprep.subr.mxu0 0.0
    %2925 = vmatpush1.msra.mxu0 0.0
    %2926 = vmatprep.subr.mxu0 0.0
    %2927 = vmatpush1.msra.mxu0 %v1666
    %2928 = vmatprep.subr.mxu0 0.0
    %2929 = vmatpush2.msra.mxu0 0.0
    %2930 = vmatprep.subr.mxu0 0.0
    %2931 = vmatpush2.msra.mxu0 0.0
    %2932 = vmatprep.subr.mxu0 0.0
    %2933 = vmatpush2.msra.mxu0 0.0
    %2934 = vmatprep.subr.mxu0 0.0
    %2935 = vmatpush2.msra.mxu0 0.0
    %2936 = vmatprep.subr.mxu0 0.0
    %2937 = vmatpush2.msra.mxu0 0.0
    %2938 = vmatprep.subr.mxu0 0.0
    %2939 = vmatpush2.msra.mxu0 0.0
    %2940 = vmatprep.subr.mxu0 0.0
    %2941 = vmatpush2.msra.mxu0 0.0
    %2942 = vmatprep.subr.mxu0 0.0
    %2943 = vmatpush2.msra.mxu0 0.0
    %2944 = vmatprep.subr.mxu0 0.0
    %2945 = vmatpush2.msra.mxu0 0.0
    %2946 = vmatprep.subr.mxu0 0.0
    %2947 = vmatpush2.msra.mxu0 0.0
    %2948 = vmatprep.subr.mxu0 0.0
    %2949 = vmatpush2.msra.mxu0 0.0
    %2950 = vmatprep.subr.mxu0 0.0
    %2951 = vmatpush2.msra.mxu0 0.0
    %2952 = vmatprep.subr.mxu0 0.0
    %2953 = vmatpush2.msra.mxu0 0.0
    %2954 = vmatprep.subr.mxu0 0.0
    %2955 = vmatpush2.msra.mxu0 0.0
    %2956 = vmatprep.subr.mxu0 0.0
    %2957 = vmatpush2.msra.mxu0 0.0
    %2958 = vmatprep.subr.mxu0 0.0
    %2959 = vmatpush2.msra.mxu0 0.0
    %2960 = vmatprep.mubr.f32.mxu0 0.0
    %2961 = vmatmul.mubr.f32.gmra.mxu0 %v2894
    %v2962 = vpop.f32.mrf.mxu0
    %v2963 = vadd.f32 0.0, %v2962
    %v2964 = vpop.f32.mrf.mxu0
    %2965 = vdwg.mxu0
    %v2967 = vsel %vm1888, %v2598, 0
    %2969 = vmatprep.subr.mxu0 0.0
    %2970 = vmatpush1.msra.mxu0 0.0
    %2971 = vmatprep.subr.mxu0 0.0
    %2972 = vmatpush1.msra.mxu0 0.0
    %2973 = vmatprep.subr.mxu0 0.0
    %2974 = vmatpush1.msra.mxu0 0.0
    %2975 = vmatprep.subr.mxu0 0.0
    %2976 = vmatpush1.msra.mxu0 0.0
    %2977 = vmatprep.subr.mxu0 0.0
    %2978 = vmatpush1.msra.mxu0 0.0
    %2979 = vmatprep.subr.mxu0 0.0
    %2980 = vmatpush1.msra.mxu0 0.0
    %2981 = vmatprep.subr.mxu0 0.0
    %2982 = vmatpush1.msra.mxu0 0.0
    %2983 = vmatprep.subr.mxu0 0.0
    %2984 = vmatpush1.msra.mxu0 0.0
    %2985 = vmatprep.subr.mxu0 0.0
    %2986 = vmatpush1.msra.mxu0 0.0
    %2987 = vmatprep.subr.mxu0 0.0
    %2988 = vmatpush1.msra.mxu0 0.0
    %2989 = vmatprep.subr.mxu0 0.0
    %2990 = vmatpush1.msra.mxu0 0.0
    %2991 = vmatprep.subr.mxu0 0.0
    %2992 = vmatpush1.msra.mxu0 0.0
    %2993 = vmatprep.subr.mxu0 0.0
    %2994 = vmatpush1.msra.mxu0 0.0
    %2995 = vmatprep.subr.mxu0 0.0
    %2996 = vmatpush1.msra.mxu0 0.0
    %2997 = vmatprep.subr.mxu0 0.0
    %2998 = vmatpush1.msra.mxu0 0.0
    %2999 = vmatprep.subr.mxu0 0.0
    %3000 = vmatpush1.msra.mxu0 %v1739
    %3001 = vmatprep.subr.mxu0 0.0
    %3002 = vmatpush2.msra.mxu0 0.0
    %3003 = vmatprep.subr.mxu0 0.0
    %3004 = vmatpush2.msra.mxu0 0.0
    %3005 = vmatprep.subr.mxu0 0.0
    %3006 = vmatpush2.msra.mxu0 0.0
    %3007 = vmatprep.subr.mxu0 0.0
    %3008 = vmatpush2.msra.mxu0 0.0
    %3009 = vmatprep.subr.mxu0 0.0
    %3010 = vmatpush2.msra.mxu0 0.0
    %3011 = vmatprep.subr.mxu0 0.0
    %3012 = vmatpush2.msra.mxu0 0.0
    %3013 = vmatprep.subr.mxu0 0.0
    %3014 = vmatpush2.msra.mxu0 0.0
    %3015 = vmatprep.subr.mxu0 0.0
    %3016 = vmatpush2.msra.mxu0 0.0
    %3017 = vmatprep.subr.mxu0 0.0
    %3018 = vmatpush2.msra.mxu0 0.0
    %3019 = vmatprep.subr.mxu0 0.0
    %3020 = vmatpush2.msra.mxu0 0.0
    %3021 = vmatprep.subr.mxu0 0.0
    %3022 = vmatpush2.msra.mxu0 0.0
    %3023 = vmatprep.subr.mxu0 0.0
    %3024 = vmatpush2.msra.mxu0 0.0
    %3025 = vmatprep.subr.mxu0 0.0
    %3026 = vmatpush2.msra.mxu0 0.0
    %3027 = vmatprep.subr.mxu0 0.0
    %3028 = vmatpush2.msra.mxu0 0.0
    %3029 = vmatprep.subr.mxu0 0.0
    %3030 = vmatpush2.msra.mxu0 0.0
    %3031 = vmatprep.subr.mxu0 0.0
    %3032 = vmatpush2.msra.mxu0 0.0
    %3033 = vmatprep.mubr.f32.mxu0 0.0
    %3034 = vmatmul.mubr.f32.gmra.mxu0 %v2967
    %v3035 = vpop.f32.mrf.mxu0
    %v3036 = vadd.f32 0.0, %v3035
    %v3037 = vpop.f32.mrf.mxu0
    %3038 = vdwg.mxu0
    %v3040 = vsel %vm1888, %v2599, 0
    %3042 = vmatprep.subr.mxu0 0.0
    %3043 = vmatpush1.msra.mxu0 0.0
    %3044 = vmatprep.subr.mxu0 0.0
    %3045 = vmatpush1.msra.mxu0 0.0
    %3046 = vmatprep.subr.mxu0 0.0
    %3047 = vmatpush1.msra.mxu0 0.0
    %3048 = vmatprep.subr.mxu0 0.0
    %3049 = vmatpush1.msra.mxu0 0.0
    %3050 = vmatprep.subr.mxu0 0.0
    %3051 = vmatpush1.msra.mxu0 0.0
    %3052 = vmatprep.subr.mxu0 0.0
    %3053 = vmatpush1.msra.mxu0 0.0
    %3054 = vmatprep.subr.mxu0 0.0
    %3055 = vmatpush1.msra.mxu0 0.0
    %3056 = vmatprep.subr.mxu0 0.0
    %3057 = vmatpush1.msra.mxu0 0.0
    %3058 = vmatprep.subr.mxu0 0.0
    %3059 = vmatpush1.msra.mxu0 0.0
    %3060 = vmatprep.subr.mxu0 0.0
    %3061 = vmatpush1.msra.mxu0 0.0
    %3062 = vmatprep.subr.mxu0 0.0
    %3063 = vmatpush1.msra.mxu0 0.0
    %3064 = vmatprep.subr.mxu0 0.0
    %3065 = vmatpush1.msra.mxu0 0.0
    %3066 = vmatprep.subr.mxu0 0.0
    %3067 = vmatpush1.msra.mxu0 0.0
    %3068 = vmatprep.subr.mxu0 0.0
    %3069 = vmatpush1.msra.mxu0 0.0
    %3070 = vmatprep.subr.mxu0 0.0
    %3071 = vmatpush1.msra.mxu0 0.0
    %3072 = vmatprep.subr.mxu0 0.0
    %3073 = vmatpush1.msra.mxu0 %v1812
    %3074 = vmatprep.subr.mxu0 0.0
    %3075 = vmatpush2.msra.mxu0 0.0
    %3076 = vmatprep.subr.mxu0 0.0
    %3077 = vmatpush2.msra.mxu0 0.0
    %3078 = vmatprep.subr.mxu0 0.0
    %3079 = vmatpush2.msra.mxu0 0.0
    %3080 = vmatprep.subr.mxu0 0.0
    %3081 = vmatpush2.msra.mxu0 0.0
    %3082 = vmatprep.subr.mxu0 0.0
    %3083 = vmatpush2.msra.mxu0 0.0
    %3084 = vmatprep.subr.mxu0 0.0
    %3085 = vmatpush2.msra.mxu0 0.0
    %3086 = vmatprep.subr.mxu0 0.0
    %3087 = vmatpush2.msra.mxu0 0.0
    %3088 = vmatprep.subr.mxu0 0.0
    %3089 = vmatpush2.msra.mxu0 0.0
    %3090 = vmatprep.subr.mxu0 0.0
    %3091 = vmatpush2.msra.mxu0 0.0
    %3092 = vmatprep.subr.mxu0 0.0
    %3093 = vmatpush2.msra.mxu0 0.0
    %3094 = vmatprep.subr.mxu0 0.0
    %3095 = vmatpush2.msra.mxu0 0.0
    %3096 = vmatprep.subr.mxu0 0.0
    %3097 = vmatpush2.msra.mxu0 0.0
    %3098 = vmatprep.subr.mxu0 0.0
    %3099 = vmatpush2.msra.mxu0 0.0
    %3100 = vmatprep.subr.mxu0 0.0
    %3101 = vmatpush2.msra.mxu0 0.0
    %3102 = vmatprep.subr.mxu0 0.0
    %3103 = vmatpush2.msra.mxu0 0.0
    %3104 = vmatprep.subr.mxu0 0.0
    %3105 = vmatpush2.msra.mxu0 0.0
    %3106 = vmatprep.mubr.f32.mxu0 0.0
    %3107 = vmatmul.mubr.f32.gmra.mxu0 %v3040
    %v3108 = vpop.f32.mrf.mxu0
    %v3109 = vadd.f32 0.0, %v3108
    %v3110 = vpop.f32.mrf.mxu0
    %3111 = vdwg.mxu0
    %v3113 = vsel %vm1888, %v2600, 0
    %3115 = vmatprep.subr.mxu0 0.0
    %3116 = vmatpush1.msra.mxu0 0.0
    %3117 = vmatprep.subr.mxu0 0.0
    %3118 = vmatpush1.msra.mxu0 0.0
    %3119 = vmatprep.subr.mxu0 0.0
    %3120 = vmatpush1.msra.mxu0 0.0
    %3121 = vmatprep.subr.mxu0 0.0
    %3122 = vmatpush1.msra.mxu0 0.0
    %3123 = vmatprep.subr.mxu0 0.0
    %3124 = vmatpush1.msra.mxu0 0.0
    %3125 = vmatprep.subr.mxu0 0.0
    %3126 = vmatpush1.msra.mxu0 0.0
    %3127 = vmatprep.subr.mxu0 0.0
    %3128 = vmatpush1.msra.mxu0 0.0
    %3129 = vmatprep.subr.mxu0 0.0
    %3130 = vmatpush1.msra.mxu0 0.0
    %3131 = vmatprep.subr.mxu0 0.0
    %3132 = vmatpush1.msra.mxu0 0.0
    %3133 = vmatprep.subr.mxu0 0.0
    %3134 = vmatpush1.msra.mxu0 0.0
    %3135 = vmatprep.subr.mxu0 0.0
    %3136 = vmatpush1.msra.mxu0 0.0
    %3137 = vmatprep.subr.mxu0 0.0
    %3138 = vmatpush1.msra.mxu0 0.0
    %3139 = vmatprep.subr.mxu0 0.0
    %3140 = vmatpush1.msra.mxu0 0.0
    %3141 = vmatprep.subr.mxu0 0.0
    %3142 = vmatpush1.msra.mxu0 0.0
    %3143 = vmatprep.subr.mxu0 0.0
    %3144 = vmatpush1.msra.mxu0 0.0
    %3145 = vmatprep.subr.mxu0 0.0
    %3146 = vmatpush1.msra.mxu0 %v1885
    %3147 = vmatprep.subr.mxu0 0.0
    %3148 = vmatpush2.msra.mxu0 0.0
    %3149 = vmatprep.subr.mxu0 0.0
    %3150 = vmatpush2.msra.mxu0 0.0
    %3151 = vmatprep.subr.mxu0 0.0
    %3152 = vmatpush2.msra.mxu0 0.0
    %3153 = vmatprep.subr.mxu0 0.0
    %3154 = vmatpush2.msra.mxu0 0.0
    %3155 = vmatprep.subr.mxu0 0.0
    %3156 = vmatpush2.msra.mxu0 0.0
    %3157 = vmatprep.subr.mxu0 0.0
    %3158 = vmatpush2.msra.mxu0 0.0
    %3159 = vmatprep.subr.mxu0 0.0
    %3160 = vmatpush2.msra.mxu0 0.0
    %3161 = vmatprep.subr.mxu0 0.0
    %3162 = vmatpush2.msra.mxu0 0.0
    %3163 = vmatprep.subr.mxu0 0.0
    %3164 = vmatpush2.msra.mxu0 0.0
    %3165 = vmatprep.subr.mxu0 0.0
    %3166 = vmatpush2.msra.mxu0 0.0
    %3167 = vmatprep.subr.mxu0 0.0
    %3168 = vmatpush2.msra.mxu0 0.0
    %3169 = vmatprep.subr.mxu0 0.0
    %3170 = vmatpush2.msra.mxu0 0.0
    %3171 = vmatprep.subr.mxu0 0.0
    %3172 = vmatpush2.msra.mxu0 0.0
    %3173 = vmatprep.subr.mxu0 0.0
    %3174 = vmatpush2.msra.mxu0 0.0
    %3175 = vmatprep.subr.mxu0 0.0
    %3176 = vmatpush2.msra.mxu0 0.0
    %3177 = vmatprep.subr.mxu0 0.0
    %3178 = vmatpush2.msra.mxu0 0.0
    %3179 = vmatprep.mubr.f32.mxu0 0.0
    %3180 = vmatmul.mubr.f32.gmra.mxu0 %v3113
    %v3181 = vpop.f32.mrf.mxu0
    %v3182 = vadd.f32 0.0, %v3181
    %v3183 = vpop.f32.mrf.mxu0
    %3184 = vdwg.mxu0
    %v3186 = vsel %vm1888, %v2671, 0
    %3188 = vmatprep.subr.mxu0 0.0
    %3189 = vmatpush1.msra.mxu0 0.0
    %3190 = vmatprep.subr.mxu0 0.0
    %3191 = vmatpush1.msra.mxu0 0.0
    %3192 = vmatprep.subr.mxu0 0.0
    %3193 = vmatpush1.msra.mxu0 0.0
    %3194 = vmatprep.subr.mxu0 0.0
    %3195 = vmatpush1.msra.mxu0 0.0
    %3196 = vmatprep.subr.mxu0 0.0
    %3197 = vmatpush1.msra.mxu0 0.0
    %3198 = vmatprep.subr.mxu0 0.0
    %3199 = vmatpush1.msra.mxu0 0.0
    %3200 = vmatprep.subr.mxu0 0.0
    %3201 = vmatpush1.msra.mxu0 0.0
    %3202 = vmatprep.subr.mxu0 0.0
    %3203 = vmatpush1.msra.mxu0 0.0
    %3204 = vmatprep.subr.mxu0 0.0
    %3205 = vmatpush1.msra.mxu0 0.0
    %3206 = vmatprep.subr.mxu0 0.0
    %3207 = vmatpush1.msra.mxu0 0.0
    %3208 = vmatprep.subr.mxu0 0.0
    %3209 = vmatpush1.msra.mxu0 0.0
    %3210 = vmatprep.subr.mxu0 0.0
    %3211 = vmatpush1.msra.mxu0 0.0
    %3212 = vmatprep.subr.mxu0 0.0
    %3213 = vmatpush1.msra.mxu0 0.0
    %3214 = vmatprep.subr.mxu0 0.0
    %3215 = vmatpush1.msra.mxu0 0.0
    %3216 = vmatprep.subr.mxu0 0.0
    %3217 = vmatpush1.msra.mxu0 0.0
    %3218 = vmatprep.subr.mxu0 0.0
    %3219 = vmatpush1.msra.mxu0 %v120
    %3220 = vmatprep.subr.mxu0 0.0
    %3221 = vmatpush2.msra.mxu0 0.0
    %3222 = vmatprep.subr.mxu0 0.0
    %3223 = vmatpush2.msra.mxu0 0.0
    %3224 = vmatprep.subr.mxu0 0.0
    %3225 = vmatpush2.msra.mxu0 0.0
    %3226 = vmatprep.subr.mxu0 0.0
    %3227 = vmatpush2.msra.mxu0 0.0
    %3228 = vmatprep.subr.mxu0 0.0
    %3229 = vmatpush2.msra.mxu0 0.0
    %3230 = vmatprep.subr.mxu0 0.0
    %3231 = vmatpush2.msra.mxu0 0.0
    %3232 = vmatprep.subr.mxu0 0.0
    %3233 = vmatpush2.msra.mxu0 0.0
    %3234 = vmatprep.subr.mxu0 0.0
    %3235 = vmatpush2.msra.mxu0 0.0
    %3236 = vmatprep.subr.mxu0 0.0
    %3237 = vmatpush2.msra.mxu0 0.0
    %3238 = vmatprep.subr.mxu0 0.0
    %3239 = vmatpush2.msra.mxu0 0.0
    %3240 = vmatprep.subr.mxu0 0.0
    %3241 = vmatpush2.msra.mxu0 0.0
    %3242 = vmatprep.subr.mxu0 0.0
    %3243 = vmatpush2.msra.mxu0 0.0
    %3244 = vmatprep.subr.mxu0 0.0
    %3245 = vmatpush2.msra.mxu0 0.0
    %3246 = vmatprep.subr.mxu0 0.0
    %3247 = vmatpush2.msra.mxu0 0.0
    %3248 = vmatprep.subr.mxu0 0.0
    %3249 = vmatpush2.msra.mxu0 0.0
    %3250 = vmatprep.subr.mxu0 0.0
    %3251 = vmatpush2.msra.mxu0 0.0
    %3252 = vmatprep.mubr.f32.mxu0 0.0
    %3253 = vmatmul.mubr.f32.gmra.mxu0 %v3186
    %v3254 = vpop.f32.mrf.mxu0
    %v3255 = vadd.f32 0.0, %v3254
    %v3256 = vpop.f32.mrf.mxu0
    %3257 = vdwg.mxu0
    %v3259 = vsel %vm1888, %v2744, 0
    %3261 = vmatprep.subr.mxu0 0.0
    %3262 = vmatpush1.msra.mxu0 0.0
    %3263 = vmatprep.subr.mxu0 0.0
    %3264 = vmatpush1.msra.mxu0 0.0
    %3265 = vmatprep.subr.mxu0 0.0
    %3266 = vmatpush1.msra.mxu0 0.0
    %3267 = vmatprep.subr.mxu0 0.0
    %3268 = vmatpush1.msra.mxu0 0.0
    %3269 = vmatprep.subr.mxu0 0.0
    %3270 = vmatpush1.msra.mxu0 0.0
    %3271 = vmatprep.subr.mxu0 0.0
    %3272 = vmatpush1.msra.mxu0 0.0
    %3273 = vmatprep.subr.mxu0 0.0
    %3274 = vmatpush1.msra.mxu0 0.0
    %3275 = vmatprep.subr.mxu0 0.0
    %3276 = vmatpush1.msra.mxu0 0.0
    %3277 = vmatprep.subr.mxu0 0.0
    %3278 = vmatpush1.msra.mxu0 0.0
    %3279 = vmatprep.subr.mxu0 0.0
    %3280 = vmatpush1.msra.mxu0 0.0
    %3281 = vmatprep.subr.mxu0 0.0
    %3282 = vmatpush1.msra.mxu0 0.0
    %3283 = vmatprep.subr.mxu0 0.0
    %3284 = vmatpush1.msra.mxu0 0.0
    %3285 = vmatprep.subr.mxu0 0.0
    %3286 = vmatpush1.msra.mxu0 0.0
    %3287 = vmatprep.subr.mxu0 0.0
    %3288 = vmatpush1.msra.mxu0 0.0
    %3289 = vmatprep.subr.mxu0 0.0
    %3290 = vmatpush1.msra.mxu0 0.0
    %3291 = vmatprep.subr.mxu0 0.0
    %3292 = vmatpush1.msra.mxu0 %v121
    %3293 = vmatprep.subr.mxu0 0.0
    %3294 = vmatpush2.msra.mxu0 0.0
    %3295 = vmatprep.subr.mxu0 0.0
    %3296 = vmatpush2.msra.mxu0 0.0
    %3297 = vmatprep.subr.mxu0 0.0
    %3298 = vmatpush2.msra.mxu0 0.0
    %3299 = vmatprep.subr.mxu0 0.0
    %3300 = vmatpush2.msra.mxu0 0.0
    %3301 = vmatprep.subr.mxu0 0.0
    %3302 = vmatpush2.msra.mxu0 0.0
    %3303 = vmatprep.subr.mxu0 0.0
    %3304 = vmatpush2.msra.mxu0 0.0
    %3305 = vmatprep.subr.mxu0 0.0
    %3306 = vmatpush2.msra.mxu0 0.0
    %3307 = vmatprep.subr.mxu0 0.0
    %3308 = vmatpush2.msra.mxu0 0.0
    %3309 = vmatprep.subr.mxu0 0.0
    %3310 = vmatpush2.msra.mxu0 0.0
    %3311 = vmatprep.subr.mxu0 0.0
    %3312 = vmatpush2.msra.mxu0 0.0
    %3313 = vmatprep.subr.mxu0 0.0
    %3314 = vmatpush2.msra.mxu0 0.0
    %3315 = vmatprep.subr.mxu0 0.0
    %3316 = vmatpush2.msra.mxu0 0.0
    %3317 = vmatprep.subr.mxu0 0.0
    %3318 = vmatpush2.msra.mxu0 0.0
    %3319 = vmatprep.subr.mxu0 0.0
    %3320 = vmatpush2.msra.mxu0 0.0
    %3321 = vmatprep.subr.mxu0 0.0
    %3322 = vmatpush2.msra.mxu0 0.0
    %3323 = vmatprep.subr.mxu0 0.0
    %3324 = vmatpush2.msra.mxu0 0.0
    %3325 = vmatprep.mubr.f32.mxu0 0.0
    %3326 = vmatmul.mubr.f32.gmra.mxu0 %v3259
    %v3327 = vpop.f32.mrf.mxu0
    %v3328 = vadd.f32 0.0, %v3327
    %v3329 = vpop.f32.mrf.mxu0
    %3330 = vdwg.mxu0
    %v3332 = vsel %vm1888, %v2817, 0
    %3334 = vmatprep.subr.mxu0 0.0
    %3335 = vmatpush1.msra.mxu0 0.0
    %3336 = vmatprep.subr.mxu0 0.0
    %3337 = vmatpush1.msra.mxu0 0.0
    %3338 = vmatprep.subr.mxu0 0.0
    %3339 = vmatpush1.msra.mxu0 0.0
    %3340 = vmatprep.subr.mxu0 0.0
    %3341 = vmatpush1.msra.mxu0 0.0
    %3342 = vmatprep.subr.mxu0 0.0
    %3343 = vmatpush1.msra.mxu0 0.0
    %3344 = vmatprep.subr.mxu0 0.0
    %3345 = vmatpush1.msra.mxu0 0.0
    %3346 = vmatprep.subr.mxu0 0.0
    %3347 = vmatpush1.msra.mxu0 0.0
    %3348 = vmatprep.subr.mxu0 0.0
    %3349 = vmatpush1.msra.mxu0 0.0
    %3350 = vmatprep.subr.mxu0 0.0
    %3351 = vmatpush1.msra.mxu0 0.0
    %3352 = vmatprep.subr.mxu0 0.0
    %3353 = vmatpush1.msra.mxu0 0.0
    %3354 = vmatprep.subr.mxu0 0.0
    %3355 = vmatpush1.msra.mxu0 0.0
    %3356 = vmatprep.subr.mxu0 0.0
    %3357 = vmatpush1.msra.mxu0 0.0
    %3358 = vmatprep.subr.mxu0 0.0
    %3359 = vmatpush1.msra.mxu0 0.0
    %3360 = vmatprep.subr.mxu0 0.0
    %3361 = vmatpush1.msra.mxu0 0.0
    %3362 = vmatprep.subr.mxu0 0.0
    %3363 = vmatpush1.msra.mxu0 0.0
    %3364 = vmatprep.subr.mxu0 0.0
    %3365 = vmatpush1.msra.mxu0 %v122
    %3366 = vmatprep.subr.mxu0 0.0
    %3367 = vmatpush2.msra.mxu0 0.0
    %3368 = vmatprep.subr.mxu0 0.0
    %3369 = vmatpush2.msra.mxu0 0.0
    %3370 = vmatprep.subr.mxu0 0.0
    %3371 = vmatpush2.msra.mxu0 0.0
    %3372 = vmatprep.subr.mxu0 0.0
    %3373 = vmatpush2.msra.mxu0 0.0
    %3374 = vmatprep.subr.mxu0 0.0
    %3375 = vmatpush2.msra.mxu0 0.0
    %3376 = vmatprep.subr.mxu0 0.0
    %3377 = vmatpush2.msra.mxu0 0.0
    %3378 = vmatprep.subr.mxu0 0.0
    %3379 = vmatpush2.msra.mxu0 0.0
    %3380 = vmatprep.subr.mxu0 0.0
    %3381 = vmatpush2.msra.mxu0 0.0
    %3382 = vmatprep.subr.mxu0 0.0
    %3383 = vmatpush2.msra.mxu0 0.0
    %3384 = vmatprep.subr.mxu0 0.0
    %3385 = vmatpush2.msra.mxu0 0.0
    %3386 = vmatprep.subr.mxu0 0.0
    %3387 = vmatpush2.msra.mxu0 0.0
    %3388 = vmatprep.subr.mxu0 0.0
    %3389 = vmatpush2.msra.mxu0 0.0
    %3390 = vmatprep.subr.mxu0 0.0
    %3391 = vmatpush2.msra.mxu0 0.0
    %3392 = vmatprep.subr.mxu0 0.0
    %3393 = vmatpush2.msra.mxu0 0.0
    %3394 = vmatprep.subr.mxu0 0.0
    %3395 = vmatpush2.msra.mxu0 0.0
    %3396 = vmatprep.subr.mxu0 0.0
    %3397 = vmatpush2.msra.mxu0 0.0
    %3398 = vmatprep.mubr.f32.mxu0 0.0
    %3399 = vmatmul.mubr.f32.gmra.mxu0 %v3332
    %v3400 = vpop.f32.mrf.mxu0
    %v3401 = vadd.f32 0.0, %v3400
    %v3402 = vpop.f32.mrf.mxu0
    %3403 = vdwg.mxu0
    %v3405 = vsel %vm1888, %v2890, 0
    %3407 = vmatprep.subr.mxu0 0.0
    %3408 = vmatpush1.msra.mxu0 0.0
    %3409 = vmatprep.subr.mxu0 0.0
    %3410 = vmatpush1.msra.mxu0 0.0
    %3411 = vmatprep.subr.mxu0 0.0
    %3412 = vmatpush1.msra.mxu0 0.0
    %3413 = vmatprep.subr.mxu0 0.0
    %3414 = vmatpush1.msra.mxu0 0.0
    %3415 = vmatprep.subr.mxu0 0.0
    %3416 = vmatpush1.msra.mxu0 0.0
    %3417 = vmatprep.subr.mxu0 0.0
    %3418 = vmatpush1.msra.mxu0 0.0
    %3419 = vmatprep.subr.mxu0 0.0
    %3420 = vmatpush1.msra.mxu0 0.0
    %3421 = vmatprep.subr.mxu0 0.0
    %3422 = vmatpush1.msra.mxu0 0.0
    %3423 = vmatprep.subr.mxu0 0.0
    %3424 = vmatpush1.msra.mxu0 0.0
    %3425 = vmatprep.subr.mxu0 0.0
    %3426 = vmatpush1.msra.mxu0 0.0
    %3427 = vmatprep.subr.mxu0 0.0
    %3428 = vmatpush1.msra.mxu0 0.0
    %3429 = vmatprep.subr.mxu0 0.0
    %3430 = vmatpush1.msra.mxu0 0.0
    %3431 = vmatprep.subr.mxu0 0.0
    %3432 = vmatpush1.msra.mxu0 0.0
    %3433 = vmatprep.subr.mxu0 0.0
    %3434 = vmatpush1.msra.mxu0 0.0
    %3435 = vmatprep.subr.mxu0 0.0
    %3436 = vmatpush1.msra.mxu0 0.0
    %3437 = vmatprep.subr.mxu0 0.0
    %3438 = vmatpush1.msra.mxu0 %v123
    %3439 = vmatprep.subr.mxu0 0.0
    %3440 = vmatpush2.msra.mxu0 0.0
    %3441 = vmatprep.subr.mxu0 0.0
    %3442 = vmatpush2.msra.mxu0 0.0
    %3443 = vmatprep.subr.mxu0 0.0
    %3444 = vmatpush2.msra.mxu0 0.0
    %3445 = vmatprep.subr.mxu0 0.0
    %3446 = vmatpush2.msra.mxu0 0.0
    %3447 = vmatprep.subr.mxu0 0.0
    %3448 = vmatpush2.msra.mxu0 0.0
    %3449 = vmatprep.subr.mxu0 0.0
    %3450 = vmatpush2.msra.mxu0 0.0
    %3451 = vmatprep.subr.mxu0 0.0
    %3452 = vmatpush2.msra.mxu0 0.0
    %3453 = vmatprep.subr.mxu0 0.0
    %3454 = vmatpush2.msra.mxu0 0.0
    %3455 = vmatprep.subr.mxu0 0.0
    %3456 = vmatpush2.msra.mxu0 0.0
    %3457 = vmatprep.subr.mxu0 0.0
    %3458 = vmatpush2.msra.mxu0 0.0
    %3459 = vmatprep.subr.mxu0 0.0
    %3460 = vmatpush2.msra.mxu0 0.0
    %3461 = vmatprep.subr.mxu0 0.0
    %3462 = vmatpush2.msra.mxu0 0.0
    %3463 = vmatprep.subr.mxu0 0.0
    %3464 = vmatpush2.msra.mxu0 0.0
    %3465 = vmatprep.subr.mxu0 0.0
    %3466 = vmatpush2.msra.mxu0 0.0
    %3467 = vmatprep.subr.mxu0 0.0
    %3468 = vmatpush2.msra.mxu0 0.0
    %3469 = vmatprep.subr.mxu0 0.0
    %3470 = vmatpush2.msra.mxu0 0.0
    %3471 = vmatprep.mubr.f32.mxu0 0.0
    %3472 = vmatmul.mubr.f32.gmra.mxu0 %v3405
    %v3473 = vpop.f32.mrf.mxu0
    %v3474 = vadd.f32 0.0, %v3473
    %v3475 = vpop.f32.mrf.mxu0
    %3476 = vdwg.mxu0
    %v3478 = vsel %vm1888, %v2963, 0
    %3480 = vmatprep.subr.mxu0 0.0
    %3481 = vmatpush1.msra.mxu0 0.0
    %3482 = vmatprep.subr.mxu0 0.0
    %3483 = vmatpush1.msra.mxu0 0.0
    %3484 = vmatprep.subr.mxu0 0.0
    %3485 = vmatpush1.msra.mxu0 0.0
    %3486 = vmatprep.subr.mxu0 0.0
    %3487 = vmatpush1.msra.mxu0 0.0
    %3488 = vmatprep.subr.mxu0 0.0
    %3489 = vmatpush1.msra.mxu0 0.0
    %3490 = vmatprep.subr.mxu0 0.0
    %3491 = vmatpush1.msra.mxu0 0.0
    %3492 = vmatprep.subr.mxu0 0.0
    %3493 = vmatpush1.msra.mxu0 0.0
    %3494 = vmatprep.subr.mxu0 0.0
    %3495 = vmatpush1.msra.mxu0 0.0
    %3496 = vmatprep.subr.mxu0 0.0
    %3497 = vmatpush1.msra.mxu0 0.0
    %3498 = vmatprep.subr.mxu0 0.0
    %3499 = vmatpush1.msra.mxu0 0.0
    %3500 = vmatprep.subr.mxu0 0.0
    %3501 = vmatpush1.msra.mxu0 0.0
    %3502 = vmatprep.subr.mxu0 0.0
    %3503 = vmatpush1.msra.mxu0 0.0
    %3504 = vmatprep.subr.mxu0 0.0
    %3505 = vmatpush1.msra.mxu0 0.0
    %3506 = vmatprep.subr.mxu0 0.0
    %3507 = vmatpush1.msra.mxu0 0.0
    %3508 = vmatprep.subr.mxu0 0.0
    %3509 = vmatpush1.msra.mxu0 0.0
    %3510 = vmatprep.subr.mxu0 0.0
    %3511 = vmatpush1.msra.mxu0 %v124
    %3512 = vmatprep.subr.mxu0 0.0
    %3513 = vmatpush2.msra.mxu0 0.0
    %3514 = vmatprep.subr.mxu0 0.0
    %3515 = vmatpush2.msra.mxu0 0.0
    %3516 = vmatprep.subr.mxu0 0.0
    %3517 = vmatpush2.msra.mxu0 0.0
    %3518 = vmatprep.subr.mxu0 0.0
    %3519 = vmatpush2.msra.mxu0 0.0
    %3520 = vmatprep.subr.mxu0 0.0
    %3521 = vmatpush2.msra.mxu0 0.0
    %3522 = vmatprep.subr.mxu0 0.0
    %3523 = vmatpush2.msra.mxu0 0.0
    %3524 = vmatprep.subr.mxu0 0.0
    %3525 = vmatpush2.msra.mxu0 0.0
    %3526 = vmatprep.subr.mxu0 0.0
    %3527 = vmatpush2.msra.mxu0 0.0
    %3528 = vmatprep.subr.mxu0 0.0
    %3529 = vmatpush2.msra.mxu0 0.0
    %3530 = vmatprep.subr.mxu0 0.0
    %3531 = vmatpush2.msra.mxu0 0.0
    %3532 = vmatprep.subr.mxu0 0.0
    %3533 = vmatpush2.msra.mxu0 0.0
    %3534 = vmatprep.subr.mxu0 0.0
    %3535 = vmatpush2.msra.mxu0 0.0
    %3536 = vmatprep.subr.mxu0 0.0
    %3537 = vmatpush2.msra.mxu0 0.0
    %3538 = vmatprep.subr.mxu0 0.0
    %3539 = vmatpush2.msra.mxu0 0.0
    %3540 = vmatprep.subr.mxu0 0.0
    %3541 = vmatpush2.msra.mxu0 0.0
    %3542 = vmatprep.subr.mxu0 0.0
    %3543 = vmatpush2.msra.mxu0 0.0
    %3544 = vmatprep.mubr.f32.mxu0 0.0
    %3545 = vmatmul.mubr.f32.gmra.mxu0 %v3478
    %v3546 = vpop.f32.mrf.mxu0
    %v3547 = vadd.f32 0.0, %v3546
    %v3548 = vpop.f32.mrf.mxu0
    %3549 = vdwg.mxu0
    %v3551 = vsel %vm1888, %v3036, 0
    %3553 = vmatprep.subr.mxu0 0.0
    %3554 = vmatpush1.msra.mxu0 0.0
    %3555 = vmatprep.subr.mxu0 0.0
    %3556 = vmatpush1.msra.mxu0 0.0
    %3557 = vmatprep.subr.mxu0 0.0
    %3558 = vmatpush1.msra.mxu0 0.0
    %3559 = vmatprep.subr.mxu0 0.0
    %3560 = vmatpush1.msra.mxu0 0.0
    %3561 = vmatprep.subr.mxu0 0.0
    %3562 = vmatpush1.msra.mxu0 0.0
    %3563 = vmatprep.subr.mxu0 0.0
    %3564 = vmatpush1.msra.mxu0 0.0
    %3565 = vmatprep.subr.mxu0 0.0
    %3566 = vmatpush1.msra.mxu0 0.0
    %3567 = vmatprep.subr.mxu0 0.0
    %3568 = vmatpush1.msra.mxu0 0.0
    %3569 = vmatprep.subr.mxu0 0.0
    %3570 = vmatpush1.msra.mxu0 0.0
    %3571 = vmatprep.subr.mxu0 0.0
    %3572 = vmatpush1.msra.mxu0 0.0
    %3573 = vmatprep.subr.mxu0 0.0
    %3574 = vmatpush1.msra.mxu0 0.0
    %3575 = vmatprep.subr.mxu0 0.0
    %3576 = vmatpush1.msra.mxu0 0.0
    %3577 = vmatprep.subr.mxu0 0.0
    %3578 = vmatpush1.msra.mxu0 0.0
    %3579 = vmatprep.subr.mxu0 0.0
    %3580 = vmatpush1.msra.mxu0 0.0
    %3581 = vmatprep.subr.mxu0 0.0
    %3582 = vmatpush1.msra.mxu0 0.0
    %3583 = vmatprep.subr.mxu0 0.0
    %3584 = vmatpush1.msra.mxu0 %v125
    %3585 = vmatprep.subr.mxu0 0.0
    %3586 = vmatpush2.msra.mxu0 0.0
    %3587 = vmatprep.subr.mxu0 0.0
    %3588 = vmatpush2.msra.mxu0 0.0
    %3589 = vmatprep.subr.mxu0 0.0
    %3590 = vmatpush2.msra.mxu0 0.0
    %3591 = vmatprep.subr.mxu0 0.0
    %3592 = vmatpush2.msra.mxu0 0.0
    %3593 = vmatprep.subr.mxu0 0.0
    %3594 = vmatpush2.msra.mxu0 0.0
    %3595 = vmatprep.subr.mxu0 0.0
    %3596 = vmatpush2.msra.mxu0 0.0
    %3597 = vmatprep.subr.mxu0 0.0
    %3598 = vmatpush2.msra.mxu0 0.0
    %3599 = vmatprep.subr.mxu0 0.0
    %3600 = vmatpush2.msra.mxu0 0.0
    %3601 = vmatprep.subr.mxu0 0.0
    %3602 = vmatpush2.msra.mxu0 0.0
    %3603 = vmatprep.subr.mxu0 0.0
    %3604 = vmatpush2.msra.mxu0 0.0
    %3605 = vmatprep.subr.mxu0 0.0
    %3606 = vmatpush2.msra.mxu0 0.0
    %3607 = vmatprep.subr.mxu0 0.0
    %3608 = vmatpush2.msra.mxu0 0.0
    %3609 = vmatprep.subr.mxu0 0.0
    %3610 = vmatpush2.msra.mxu0 0.0
    %3611 = vmatprep.subr.mxu0 0.0
    %3612 = vmatpush2.msra.mxu0 0.0
    %3613 = vmatprep.subr.mxu0 0.0
    %3614 = vmatpush2.msra.mxu0 0.0
    %3615 = vmatprep.subr.mxu0 0.0
    %3616 = vmatpush2.msra.mxu0 0.0
    %3617 = vmatprep.mubr.f32.mxu0 0.0
    %3618 = vmatmul.mubr.f32.gmra.mxu0 %v3551
    %v3619 = vpop.f32.mrf.mxu0
    %v3620 = vadd.f32 0.0, %v3619
    %v3621 = vpop.f32.mrf.mxu0
    %3622 = vdwg.mxu0
    %v3624 = vsel %vm1888, %v3109, 0
    %3626 = vmatprep.subr.mxu0 0.0
    %3627 = vmatpush1.msra.mxu0 0.0
    %3628 = vmatprep.subr.mxu0 0.0
    %3629 = vmatpush1.msra.mxu0 0.0
    %3630 = vmatprep.subr.mxu0 0.0
    %3631 = vmatpush1.msra.mxu0 0.0
    %3632 = vmatprep.subr.mxu0 0.0
    %3633 = vmatpush1.msra.mxu0 0.0
    %3634 = vmatprep.subr.mxu0 0.0
    %3635 = vmatpush1.msra.mxu0 0.0
    %3636 = vmatprep.subr.mxu0 0.0
    %3637 = vmatpush1.msra.mxu0 0.0
    %3638 = vmatprep.subr.mxu0 0.0
    %3639 = vmatpush1.msra.mxu0 0.0
    %3640 = vmatprep.subr.mxu0 0.0
    %3641 = vmatpush1.msra.mxu0 0.0
    %3642 = vmatprep.subr.mxu0 0.0
    %3643 = vmatpush1.msra.mxu0 0.0
    %3644 = vmatprep.subr.mxu0 0.0
    %3645 = vmatpush1.msra.mxu0 0.0
    %3646 = vmatprep.subr.mxu0 0.0
    %3647 = vmatpush1.msra.mxu0 0.0
    %3648 = vmatprep.subr.mxu0 0.0
    %3649 = vmatpush1.msra.mxu0 0.0
    %3650 = vmatprep.subr.mxu0 0.0
    %3651 = vmatpush1.msra.mxu0 0.0
    %3652 = vmatprep.subr.mxu0 0.0
    %3653 = vmatpush1.msra.mxu0 0.0
    %3654 = vmatprep.subr.mxu0 0.0
    %3655 = vmatpush1.msra.mxu0 0.0
    %3656 = vmatprep.subr.mxu0 0.0
    %3657 = vmatpush1.msra.mxu0 %v126
    %3658 = vmatprep.subr.mxu0 0.0
    %3659 = vmatpush2.msra.mxu0 0.0
    %3660 = vmatprep.subr.mxu0 0.0
    %3661 = vmatpush2.msra.mxu0 0.0
    %3662 = vmatprep.subr.mxu0 0.0
    %3663 = vmatpush2.msra.mxu0 0.0
    %3664 = vmatprep.subr.mxu0 0.0
    %3665 = vmatpush2.msra.mxu0 0.0
    %3666 = vmatprep.subr.mxu0 0.0
    %3667 = vmatpush2.msra.mxu0 0.0
    %3668 = vmatprep.subr.mxu0 0.0
    %3669 = vmatpush2.msra.mxu0 0.0
    %3670 = vmatprep.subr.mxu0 0.0
    %3671 = vmatpush2.msra.mxu0 0.0
    %3672 = vmatprep.subr.mxu0 0.0
    %3673 = vmatpush2.msra.mxu0 0.0
    %3674 = vmatprep.subr.mxu0 0.0
    %3675 = vmatpush2.msra.mxu0 0.0
    %3676 = vmatprep.subr.mxu0 0.0
    %3677 = vmatpush2.msra.mxu0 0.0
    %3678 = vmatprep.subr.mxu0 0.0
    %3679 = vmatpush2.msra.mxu0 0.0
    %3680 = vmatprep.subr.mxu0 0.0
    %3681 = vmatpush2.msra.mxu0 0.0
    %3682 = vmatprep.subr.mxu0 0.0
    %3683 = vmatpush2.msra.mxu0 0.0
    %3684 = vmatprep.subr.mxu0 0.0
    %3685 = vmatpush2.msra.mxu0 0.0
    %3686 = vmatprep.subr.mxu0 0.0
    %3687 = vmatpush2.msra.mxu0 0.0
    %3688 = vmatprep.subr.mxu0 0.0
    %3689 = vmatpush2.msra.mxu0 0.0
    %3690 = vmatprep.mubr.f32.mxu0 0.0
    %3691 = vmatmul.mubr.f32.gmra.mxu0 %v3624
    %v3692 = vpop.f32.mrf.mxu0
    %v3693 = vadd.f32 0.0, %v3692
    %v3694 = vpop.f32.mrf.mxu0
    %3695 = vdwg.mxu0
    %v3697 = vsel %vm1888, %v3182, 0
    %3699 = vmatprep.subr.mxu0 0.0
    %3700 = vmatpush1.msra.mxu0 0.0
    %3701 = vmatprep.subr.mxu0 0.0
    %3702 = vmatpush1.msra.mxu0 0.0
    %3703 = vmatprep.subr.mxu0 0.0
    %3704 = vmatpush1.msra.mxu0 0.0
    %3705 = vmatprep.subr.mxu0 0.0
    %3706 = vmatpush1.msra.mxu0 0.0
    %3707 = vmatprep.subr.mxu0 0.0
    %3708 = vmatpush1.msra.mxu0 0.0
    %3709 = vmatprep.subr.mxu0 0.0
    %3710 = vmatpush1.msra.mxu0 0.0
    %3711 = vmatprep.subr.mxu0 0.0
    %3712 = vmatpush1.msra.mxu0 0.0
    %3713 = vmatprep.subr.mxu0 0.0
    %3714 = vmatpush1.msra.mxu0 0.0
    %3715 = vmatprep.subr.mxu0 0.0
    %3716 = vmatpush1.msra.mxu0 0.0
    %3717 = vmatprep.subr.mxu0 0.0
    %3718 = vmatpush1.msra.mxu0 0.0
    %3719 = vmatprep.subr.mxu0 0.0
    %3720 = vmatpush1.msra.mxu0 0.0
    %3721 = vmatprep.subr.mxu0 0.0
    %3722 = vmatpush1.msra.mxu0 0.0
    %3723 = vmatprep.subr.mxu0 0.0
    %3724 = vmatpush1.msra.mxu0 0.0
    %3725 = vmatprep.subr.mxu0 0.0
    %3726 = vmatpush1.msra.mxu0 0.0
    %3727 = vmatprep.subr.mxu0 0.0
    %3728 = vmatpush1.msra.mxu0 0.0
    %3729 = vmatprep.subr.mxu0 0.0
    %3730 = vmatpush1.msra.mxu0 %v127
    %3731 = vmatprep.subr.mxu0 0.0
    %3732 = vmatpush2.msra.mxu0 0.0
    %3733 = vmatprep.subr.mxu0 0.0
    %3734 = vmatpush2.msra.mxu0 0.0
    %3735 = vmatprep.subr.mxu0 0.0
    %3736 = vmatpush2.msra.mxu0 0.0
    %3737 = vmatprep.subr.mxu0 0.0
    %3738 = vmatpush2.msra.mxu0 0.0
    %3739 = vmatprep.subr.mxu0 0.0
    %3740 = vmatpush2.msra.mxu0 0.0
    %3741 = vmatprep.subr.mxu0 0.0
    %3742 = vmatpush2.msra.mxu0 0.0
    %3743 = vmatprep.subr.mxu0 0.0
    %3744 = vmatpush2.msra.mxu0 0.0
    %3745 = vmatprep.subr.mxu0 0.0
    %3746 = vmatpush2.msra.mxu0 0.0
    %3747 = vmatprep.subr.mxu0 0.0
    %3748 = vmatpush2.msra.mxu0 0.0
    %3749 = vmatprep.subr.mxu0 0.0
    %3750 = vmatpush2.msra.mxu0 0.0
    %3751 = vmatprep.subr.mxu0 0.0
    %3752 = vmatpush2.msra.mxu0 0.0
    %3753 = vmatprep.subr.mxu0 0.0
    %3754 = vmatpush2.msra.mxu0 0.0
    %3755 = vmatprep.subr.mxu0 0.0
    %3756 = vmatpush2.msra.mxu0 0.0
    %3757 = vmatprep.subr.mxu0 0.0
    %3758 = vmatpush2.msra.mxu0 0.0
    %3759 = vmatprep.subr.mxu0 0.0
    %3760 = vmatpush2.msra.mxu0 0.0
    %3761 = vmatprep.subr.mxu0 0.0
    %3762 = vmatpush2.msra.mxu0 0.0
    %3763 = vmatprep.mubr.f32.mxu0 0.0
    %3764 = vmatmul.mubr.f32.gmra.mxu0 %v3697
    %v3765 = vpop.f32.mrf.mxu0
    %v3766 = vadd.f32 0.0, %v3765
    %v3767 = vpop.f32.mrf.mxu0
    %3768 = vdwg.mxu0
    %v3769 = vadd.f32 %v3255, %v3401
    %v3770 = vadd.f32 %v3328, %v3474
    %v3771 = vadd.f32 %v3769, %v3547
    %v3772 = vadd.f32 %v3770, %v3620
    %v3773 = vadd.f32 %v3771, %v3693
    %v3774 = vadd.f32 %v3772, %v3766
    %v3775 = vlaneseq
    %v3776 = vshrl.u32 %v3775, 7
    %v3777 = vsub.s32 6, %v3776
    %v3778 = vrot.slane %v36, %v3777
    %v3779 = vadd.f32 %v3773, %v3778
    %v3780 = vadd.f32 %v3774, %v3778
    %v3781 = vadd.f32 %v30, %v3779
    %v3782 = vadd.f32 %v31, %v3780
    %v3783 = vsel %vm37, %v3781, 0.0
    %3784 = vadd.xlane.f32.xlu0 %v3783
    %v3785 = vpop.xlane.xlu0 %3784
    %v3786 = vsel %vm37, %v3782, 0.0
    %3787 = vadd.xlane.f32.xlu0 %v3786
    %v3788 = vpop.xlane.xlu0 %3787
    %v3789 = vmul.f32 %v3785, %v44
    %v3790 = vmul.f32 %v3788, %v44
    %v3791 = vsub.f32 %v3781, %v3789
    %v3792 = vsub.f32 %v3782, %v3790
    %v3793 = vmul.f32 %v3791, %v3791
    %v3794 = vmul.f32 %v3792, %v3792
    %v3795 = vsel %vm37, %v3793, 0.0
    %3796 = vadd.xlane.f32.xlu0 %v3795
    %v3797 = vpop.xlane.xlu0 %3796
    %v3798 = vsel %vm37, %v3794, 0.0
    %3799 = vadd.xlane.f32.xlu0 %v3798
    %v3800 = vpop.xlane.xlu0 %3799
    %v3801 = vmul.f32 %v3797, 0.032258064
    %v3802 = vmul.f32 %v3800, 0.032258064
    %v3803 = vrsqrt.pop %v3801
    %v3804 = vmul.f32 %v3801, %v3803
    %vm3805 = vcmp.eq.f32.partialorder %v3801, inf
    %v3806 = vsel %vm3805, %v3801, %v3804
    %vm3807 = vcmp.eq.f32.partialorder %v3801, 0.0
    %v3808 = vand.u32 %v3801, 2147483648
    %v3809 = vsel %vm3807, %v3808, %v3806
    %v3810 = vrsqrt.pop %v3802
    %v3811 = vmul.f32 %v3802, %v3810
    %vm3812 = vcmp.eq.f32.partialorder %v3802, inf
    %v3813 = vsel %vm3812, %v3802, %v3811
    %vm3814 = vcmp.eq.f32.partialorder %v3802, 0.0
    %v3815 = vand.u32 %v3802, 2147483648
    %v3816 = vsel %vm3814, %v3815, %v3813
    %v3817 = vadd.f32 %v3809, 1e-06
    %v3818 = vadd.f32 %v3816, 1e-06
    %v3819 = vrcp.pop %v3817
    %v3820 = vrcp.pop %v3818
    %v3821 = vmul.f32 %v3791, %v3819
    %v3822 = vmul.f32 %v3792, %v3820
    %v3823 = vlaneseq
    %v3824 = vshrl.u32 %v3823, 7
    %v3825 = vsub.s32 2, %v3824
    %v3826 = vrot.slane %v36, %v3825
    %v3827 = vmul.f32 %v3826, %v3821
    %v3828 = vmul.f32 %v3826, %v3822
    %v3829 = vlaneseq
    %v3830 = vshrl.u32 %v3829, 7
    %v3831 = vsub.s32 3, %v3830
    %v3832 = vrot.slane %v36, %v3831
    %v3833 = vadd.f32 %v3827, %v3832
    %v3834 = vadd.f32 %v3828, %v3832
    %v3835 = vsel %vm37, %v3833, 1.0
    %v3836 = vsel %vm37, %v3834, 1.0
    %v3837 = vsel %vm37, %v32, 1.0
    %v3838 = vsel %vm37, %v33, 1.0
    %v3839 = vsel %vm37, %v34, 1.0
    %v3840 = vsel %vm37, %v35, 1.0
    %s3841 = scalar_lea.vmem %s4, 256
    %v3842 = vld [vmem:[%s3841] sm:$0xff]
    %v3843 = vld [vmem:[%s3841 + $0x8] sm:$0xff]
    %v3844 = vld [vmem:[%s3841 + $0x10] sm:$0xff]
    %v3845 = vld [vmem:[%s3841 + $0x18] sm:$0xff]
    %v3846 = vld [vmem:[%s3841 + $0x20] sm:$0xff]
    %v3847 = vld [vmem:[%s3841 + $0x28] sm:$0xff]
    %v3848 = vld [vmem:[%s3841 + $0x30] sm:$0xff]
    %v3849 = vld [vmem:[%s3841 + $0x38] sm:$0xff]
    %s3850 = scalar_lea.vmem %s4, 320
    %v3851 = vld [vmem:[%s3850] sm:$0xff]
    %v3852 = vld [vmem:[%s3850 + $0x8] sm:$0xff]
    %v3853 = vld [vmem:[%s3850 + $0x10] sm:$0xff]
    %v3854 = vld [vmem:[%s3850 + $0x18] sm:$0xff]
    %v3855 = vld [vmem:[%s3850 + $0x20] sm:$0xff]
    %v3856 = vld [vmem:[%s3850 + $0x28] sm:$0xff]
    %v3857 = vld [vmem:[%s3850 + $0x30] sm:$0xff]
    %v3858 = vld [vmem:[%s3850 + $0x38] sm:$0xff]
    %s3859 = scalar_lea.vmem %s4, 384
    %v3860 = vld [vmem:[%s3859] sm:$0xff]
    %v3861 = vld [vmem:[%s3859 + $0x8] sm:$0xff]
    %v3862 = vld [vmem:[%s3859 + $0x10] sm:$0xff]
    %v3863 = vld [vmem:[%s3859 + $0x18] sm:$0xff]
    %v3864 = vld [vmem:[%s3859 + $0x20] sm:$0xff]
    %v3865 = vld [vmem:[%s3859 + $0x28] sm:$0xff]
    %v3866 = vld [vmem:[%s3859 + $0x30] sm:$0xff]
    %v3867 = vld [vmem:[%s3859 + $0x38] sm:$0xff]
    %s3868 = scalar_lea.vmem %s4, 448
    %v3869 = vld [vmem:[%s3868] sm:$0xff]
    %v3870 = vld [vmem:[%s3868 + $0x8] sm:$0xff]
    %v3871 = vld [vmem:[%s3868 + $0x10] sm:$0xff]
    %v3872 = vld [vmem:[%s3868 + $0x18] sm:$0xff]
    %v3873 = vld [vmem:[%s3868 + $0x20] sm:$0xff]
    %v3874 = vld [vmem:[%s3868 + $0x28] sm:$0xff]
    %v3875 = vld [vmem:[%s3868 + $0x30] sm:$0xff]
    %v3876 = vld [vmem:[%s3868 + $0x38] sm:$0xff]
    %v3877 = vld [vmem:[%s3] sm:$0x1]
    %v3878 = vld [vmem:[%s3 + $0x1] sm:$0x1]
    %v3879 = vld [vmem:[%s3 + $0x2] sm:$0x1]
    %v3880 = vld [vmem:[%s3 + $0x3] sm:$0x1]
    %v3881 = vld [vmem:[%s3 + $0x4] sm:$0x1]
    %v3882 = vld [vmem:[%s3 + $0x5] sm:$0x1]
    %v3883 = vld [vmem:[%s3 + $0x6] sm:$0x1]
    %v3884 = vld [vmem:[%s3 + $0x7] sm:$0x1]
    %v3886 = vsel %vm129, %v3835, 0
    %v3889 = vsel %vm129, %v3842, 0
    %3891 = vmatprep.subr.mxu0 0.0
    %3892 = vmatpush1.xpose.msra.mxu0 0.0
    %3893 = vmatprep.subr.mxu0 0.0
    %3894 = vmatpush1.xpose.msra.mxu0 0.0
    %3895 = vmatprep.subr.mxu0 0.0
    %3896 = vmatpush1.xpose.msra.mxu0 0.0
    %3897 = vmatprep.subr.mxu0 0.0
    %3898 = vmatpush1.xpose.msra.mxu0 0.0
    %3899 = vmatprep.subr.mxu0 0.0
    %3900 = vmatpush1.xpose.msra.mxu0 0.0
    %3901 = vmatprep.subr.mxu0 0.0
    %3902 = vmatpush1.xpose.msra.mxu0 0.0
    %3903 = vmatprep.subr.mxu0 0.0
    %3904 = vmatpush1.xpose.msra.mxu0 0.0
    %3905 = vmatprep.subr.mxu0 0.0
    %3906 = vmatpush1.xpose.msra.mxu0 0.0
    %3907 = vmatprep.subr.mxu0 0.0
    %3908 = vmatpush1.xpose.msra.mxu0 0.0
    %3909 = vmatprep.subr.mxu0 0.0
    %3910 = vmatpush1.xpose.msra.mxu0 0.0
    %3911 = vmatprep.subr.mxu0 0.0
    %3912 = vmatpush1.xpose.msra.mxu0 0.0
    %3913 = vmatprep.subr.mxu0 0.0
    %3914 = vmatpush1.xpose.msra.mxu0 0.0
    %3915 = vmatprep.subr.mxu0 0.0
    %3916 = vmatpush1.xpose.msra.mxu0 0.0
    %3917 = vmatprep.subr.mxu0 0.0
    %3918 = vmatpush1.xpose.msra.mxu0 0.0
    %3919 = vmatprep.subr.mxu0 0.0
    %3920 = vmatpush1.xpose.msra.mxu0 0.0
    %3921 = vmatprep.subr.mxu0 0.0
    %3922 = vmatpush1.xpose.msra.mxu0 %v3889
    %3923 = vmatprep.subr.mxu0 0.0
    %3924 = vmatpush2.xpose.msra.mxu0 0.0
    %3925 = vmatprep.subr.mxu0 0.0
    %3926 = vmatpush2.xpose.msra.mxu0 0.0
    %3927 = vmatprep.subr.mxu0 0.0
    %3928 = vmatpush2.xpose.msra.mxu0 0.0
    %3929 = vmatprep.subr.mxu0 0.0
    %3930 = vmatpush2.xpose.msra.mxu0 0.0
    %3931 = vmatprep.subr.mxu0 0.0
    %3932 = vmatpush2.xpose.msra.mxu0 0.0
    %3933 = vmatprep.subr.mxu0 0.0
    %3934 = vmatpush2.xpose.msra.mxu0 0.0
    %3935 = vmatprep.subr.mxu0 0.0
    %3936 = vmatpush2.xpose.msra.mxu0 0.0
    %3937 = vmatprep.subr.mxu0 0.0
    %3938 = vmatpush2.xpose.msra.mxu0 0.0
    %3939 = vmatprep.subr.mxu0 0.0
    %3940 = vmatpush2.xpose.msra.mxu0 0.0
    %3941 = vmatprep.subr.mxu0 0.0
    %3942 = vmatpush2.xpose.msra.mxu0 0.0
    %3943 = vmatprep.subr.mxu0 0.0
    %3944 = vmatpush2.xpose.msra.mxu0 0.0
    %3945 = vmatprep.subr.mxu0 0.0
    %3946 = vmatpush2.xpose.msra.mxu0 0.0
    %3947 = vmatprep.subr.mxu0 0.0
    %3948 = vmatpush2.xpose.msra.mxu0 0.0
    %3949 = vmatprep.subr.mxu0 0.0
    %3950 = vmatpush2.xpose.msra.mxu0 0.0
    %3951 = vmatprep.subr.mxu0 0.0
    %3952 = vmatpush2.xpose.msra.mxu0 0.0
    %3953 = vmatprep.subr.mxu0 0.0
    %3954 = vmatpush2.xpose.msra.mxu0 0.0
    %3955 = vmatprep.mubr.f32.mxu0 0.0
    %3956 = vmatmul.mubr.f32.gmra.mxu0 %v3886
    %v3957 = vpop.f32.mrf.mxu0
    %v3958 = vadd.f32 0.0, %v3957
    %v3959 = vpop.f32.mrf.mxu0
    %3960 = vdwg.mxu0
    %v3962 = vsel %vm129, %v3836, 0
    %v3965 = vsel %vm129, %v3843, 0
    %3967 = vmatprep.subr.mxu0 0.0
    %3968 = vmatpush1.xpose.msra.mxu0 0.0
    %3969 = vmatprep.subr.mxu0 0.0
    %3970 = vmatpush1.xpose.msra.mxu0 0.0
    %3971 = vmatprep.subr.mxu0 0.0
    %3972 = vmatpush1.xpose.msra.mxu0 0.0
    %3973 = vmatprep.subr.mxu0 0.0
    %3974 = vmatpush1.xpose.msra.mxu0 0.0
    %3975 = vmatprep.subr.mxu0 0.0
    %3976 = vmatpush1.xpose.msra.mxu0 0.0
    %3977 = vmatprep.subr.mxu0 0.0
    %3978 = vmatpush1.xpose.msra.mxu0 0.0
    %3979 = vmatprep.subr.mxu0 0.0
    %3980 = vmatpush1.xpose.msra.mxu0 0.0
    %3981 = vmatprep.subr.mxu0 0.0
    %3982 = vmatpush1.xpose.msra.mxu0 0.0
    %3983 = vmatprep.subr.mxu0 0.0
    %3984 = vmatpush1.xpose.msra.mxu0 0.0
    %3985 = vmatprep.subr.mxu0 0.0
    %3986 = vmatpush1.xpose.msra.mxu0 0.0
    %3987 = vmatprep.subr.mxu0 0.0
    %3988 = vmatpush1.xpose.msra.mxu0 0.0
    %3989 = vmatprep.subr.mxu0 0.0
    %3990 = vmatpush1.xpose.msra.mxu0 0.0
    %3991 = vmatprep.subr.mxu0 0.0
    %3992 = vmatpush1.xpose.msra.mxu0 0.0
    %3993 = vmatprep.subr.mxu0 0.0
    %3994 = vmatpush1.xpose.msra.mxu0 0.0
    %3995 = vmatprep.subr.mxu0 0.0
    %3996 = vmatpush1.xpose.msra.mxu0 0.0
    %3997 = vmatprep.subr.mxu0 0.0
    %3998 = vmatpush1.xpose.msra.mxu0 %v3965
    %3999 = vmatprep.subr.mxu0 0.0
    %4000 = vmatpush2.xpose.msra.mxu0 0.0
    %4001 = vmatprep.subr.mxu0 0.0
    %4002 = vmatpush2.xpose.msra.mxu0 0.0
    %4003 = vmatprep.subr.mxu0 0.0
    %4004 = vmatpush2.xpose.msra.mxu0 0.0
    %4005 = vmatprep.subr.mxu0 0.0
    %4006 = vmatpush2.xpose.msra.mxu0 0.0
    %4007 = vmatprep.subr.mxu0 0.0
    %4008 = vmatpush2.xpose.msra.mxu0 0.0
    %4009 = vmatprep.subr.mxu0 0.0
    %4010 = vmatpush2.xpose.msra.mxu0 0.0
    %4011 = vmatprep.subr.mxu0 0.0
    %4012 = vmatpush2.xpose.msra.mxu0 0.0
    %4013 = vmatprep.subr.mxu0 0.0
    %4014 = vmatpush2.xpose.msra.mxu0 0.0
    %4015 = vmatprep.subr.mxu0 0.0
    %4016 = vmatpush2.xpose.msra.mxu0 0.0
    %4017 = vmatprep.subr.mxu0 0.0
    %4018 = vmatpush2.xpose.msra.mxu0 0.0
    %4019 = vmatprep.subr.mxu0 0.0
    %4020 = vmatpush2.xpose.msra.mxu0 0.0
    %4021 = vmatprep.subr.mxu0 0.0
    %4022 = vmatpush2.xpose.msra.mxu0 0.0
    %4023 = vmatprep.subr.mxu0 0.0
    %4024 = vmatpush2.xpose.msra.mxu0 0.0
    %4025 = vmatprep.subr.mxu0 0.0
    %4026 = vmatpush2.xpose.msra.mxu0 0.0
    %4027 = vmatprep.subr.mxu0 0.0
    %4028 = vmatpush2.xpose.msra.mxu0 0.0
    %4029 = vmatprep.subr.mxu0 0.0
    %4030 = vmatpush2.xpose.msra.mxu0 0.0
    %4031 = vmatprep.mubr.f32.mxu0 0.0
    %4032 = vmatmul.mubr.f32.gmra.mxu0 %v3962
    %v4033 = vpop.f32.mrf.mxu0
    %v4034 = vadd.f32 0.0, %v4033
    %v4035 = vpop.f32.mrf.mxu0
    %4036 = vdwg.mxu0
    %v4038 = vsel %vm129, %v3844, 0
    %4040 = vmatprep.subr.mxu0 0.0
    %4041 = vmatpush1.xpose.msra.mxu0 0.0
    %4042 = vmatprep.subr.mxu0 0.0
    %4043 = vmatpush1.xpose.msra.mxu0 0.0
    %4044 = vmatprep.subr.mxu0 0.0
    %4045 = vmatpush1.xpose.msra.mxu0 0.0
    %4046 = vmatprep.subr.mxu0 0.0
    %4047 = vmatpush1.xpose.msra.mxu0 0.0
    %4048 = vmatprep.subr.mxu0 0.0
    %4049 = vmatpush1.xpose.msra.mxu0 0.0
    %4050 = vmatprep.subr.mxu0 0.0
    %4051 = vmatpush1.xpose.msra.mxu0 0.0
    %4052 = vmatprep.subr.mxu0 0.0
    %4053 = vmatpush1.xpose.msra.mxu0 0.0
    %4054 = vmatprep.subr.mxu0 0.0
    %4055 = vmatpush1.xpose.msra.mxu0 0.0
    %4056 = vmatprep.subr.mxu0 0.0
    %4057 = vmatpush1.xpose.msra.mxu0 0.0
    %4058 = vmatprep.subr.mxu0 0.0
    %4059 = vmatpush1.xpose.msra.mxu0 0.0
    %4060 = vmatprep.subr.mxu0 0.0
    %4061 = vmatpush1.xpose.msra.mxu0 0.0
    %4062 = vmatprep.subr.mxu0 0.0
    %4063 = vmatpush1.xpose.msra.mxu0 0.0
    %4064 = vmatprep.subr.mxu0 0.0
    %4065 = vmatpush1.xpose.msra.mxu0 0.0
    %4066 = vmatprep.subr.mxu0 0.0
    %4067 = vmatpush1.xpose.msra.mxu0 0.0
    %4068 = vmatprep.subr.mxu0 0.0
    %4069 = vmatpush1.xpose.msra.mxu0 0.0
    %4070 = vmatprep.subr.mxu0 0.0
    %4071 = vmatpush1.xpose.msra.mxu0 %v4038
    %4072 = vmatprep.subr.mxu0 0.0
    %4073 = vmatpush2.xpose.msra.mxu0 0.0
    %4074 = vmatprep.subr.mxu0 0.0
    %4075 = vmatpush2.xpose.msra.mxu0 0.0
    %4076 = vmatprep.subr.mxu0 0.0
    %4077 = vmatpush2.xpose.msra.mxu0 0.0
    %4078 = vmatprep.subr.mxu0 0.0
    %4079 = vmatpush2.xpose.msra.mxu0 0.0
    %4080 = vmatprep.subr.mxu0 0.0
    %4081 = vmatpush2.xpose.msra.mxu0 0.0
    %4082 = vmatprep.subr.mxu0 0.0
    %4083 = vmatpush2.xpose.msra.mxu0 0.0
    %4084 = vmatprep.subr.mxu0 0.0
    %4085 = vmatpush2.xpose.msra.mxu0 0.0
    %4086 = vmatprep.subr.mxu0 0.0
    %4087 = vmatpush2.xpose.msra.mxu0 0.0
    %4088 = vmatprep.subr.mxu0 0.0
    %4089 = vmatpush2.xpose.msra.mxu0 0.0
    %4090 = vmatprep.subr.mxu0 0.0
    %4091 = vmatpush2.xpose.msra.mxu0 0.0
    %4092 = vmatprep.subr.mxu0 0.0
    %4093 = vmatpush2.xpose.msra.mxu0 0.0
    %4094 = vmatprep.subr.mxu0 0.0
    %4095 = vmatpush2.xpose.msra.mxu0 0.0
    %4096 = vmatprep.subr.mxu0 0.0
    %4097 = vmatpush2.xpose.msra.mxu0 0.0
    %4098 = vmatprep.subr.mxu0 0.0
    %4099 = vmatpush2.xpose.msra.mxu0 0.0
    %4100 = vmatprep.subr.mxu0 0.0
    %4101 = vmatpush2.xpose.msra.mxu0 0.0
    %4102 = vmatprep.subr.mxu0 0.0
    %4103 = vmatpush2.xpose.msra.mxu0 0.0
    %4104 = vmatprep.mubr.f32.mxu0 0.0
    %4105 = vmatmul.mubr.f32.gmra.mxu0 %v3886
    %v4106 = vpop.f32.mrf.mxu0
    %v4107 = vadd.f32 0.0, %v4106
    %v4108 = vpop.f32.mrf.mxu0
    %4109 = vdwg.mxu0
    %v4111 = vsel %vm129, %v3845, 0
    %4113 = vmatprep.subr.mxu0 0.0
    %4114 = vmatpush1.xpose.msra.mxu0 0.0
    %4115 = vmatprep.subr.mxu0 0.0
    %4116 = vmatpush1.xpose.msra.mxu0 0.0
    %4117 = vmatprep.subr.mxu0 0.0
    %4118 = vmatpush1.xpose.msra.mxu0 0.0
    %4119 = vmatprep.subr.mxu0 0.0
    %4120 = vmatpush1.xpose.msra.mxu0 0.0
    %4121 = vmatprep.subr.mxu0 0.0
    %4122 = vmatpush1.xpose.msra.mxu0 0.0
    %4123 = vmatprep.subr.mxu0 0.0
    %4124 = vmatpush1.xpose.msra.mxu0 0.0
    %4125 = vmatprep.subr.mxu0 0.0
    %4126 = vmatpush1.xpose.msra.mxu0 0.0
    %4127 = vmatprep.subr.mxu0 0.0
    %4128 = vmatpush1.xpose.msra.mxu0 0.0
    %4129 = vmatprep.subr.mxu0 0.0
    %4130 = vmatpush1.xpose.msra.mxu0 0.0
    %4131 = vmatprep.subr.mxu0 0.0
    %4132 = vmatpush1.xpose.msra.mxu0 0.0
    %4133 = vmatprep.subr.mxu0 0.0
    %4134 = vmatpush1.xpose.msra.mxu0 0.0
    %4135 = vmatprep.subr.mxu0 0.0
    %4136 = vmatpush1.xpose.msra.mxu0 0.0
    %4137 = vmatprep.subr.mxu0 0.0
    %4138 = vmatpush1.xpose.msra.mxu0 0.0
    %4139 = vmatprep.subr.mxu0 0.0
    %4140 = vmatpush1.xpose.msra.mxu0 0.0
    %4141 = vmatprep.subr.mxu0 0.0
    %4142 = vmatpush1.xpose.msra.mxu0 0.0
    %4143 = vmatprep.subr.mxu0 0.0
    %4144 = vmatpush1.xpose.msra.mxu0 %v4111
    %4145 = vmatprep.subr.mxu0 0.0
    %4146 = vmatpush2.xpose.msra.mxu0 0.0
    %4147 = vmatprep.subr.mxu0 0.0
    %4148 = vmatpush2.xpose.msra.mxu0 0.0
    %4149 = vmatprep.subr.mxu0 0.0
    %4150 = vmatpush2.xpose.msra.mxu0 0.0
    %4151 = vmatprep.subr.mxu0 0.0
    %4152 = vmatpush2.xpose.msra.mxu0 0.0
    %4153 = vmatprep.subr.mxu0 0.0
    %4154 = vmatpush2.xpose.msra.mxu0 0.0
    %4155 = vmatprep.subr.mxu0 0.0
    %4156 = vmatpush2.xpose.msra.mxu0 0.0
    %4157 = vmatprep.subr.mxu0 0.0
    %4158 = vmatpush2.xpose.msra.mxu0 0.0
    %4159 = vmatprep.subr.mxu0 0.0
    %4160 = vmatpush2.xpose.msra.mxu0 0.0
    %4161 = vmatprep.subr.mxu0 0.0
    %4162 = vmatpush2.xpose.msra.mxu0 0.0
    %4163 = vmatprep.subr.mxu0 0.0
    %4164 = vmatpush2.xpose.msra.mxu0 0.0
    %4165 = vmatprep.subr.mxu0 0.0
    %4166 = vmatpush2.xpose.msra.mxu0 0.0
    %4167 = vmatprep.subr.mxu0 0.0
    %4168 = vmatpush2.xpose.msra.mxu0 0.0
    %4169 = vmatprep.subr.mxu0 0.0
    %4170 = vmatpush2.xpose.msra.mxu0 0.0
    %4171 = vmatprep.subr.mxu0 0.0
    %4172 = vmatpush2.xpose.msra.mxu0 0.0
    %4173 = vmatprep.subr.mxu0 0.0
    %4174 = vmatpush2.xpose.msra.mxu0 0.0
    %4175 = vmatprep.subr.mxu0 0.0
    %4176 = vmatpush2.xpose.msra.mxu0 0.0
    %4177 = vmatprep.mubr.f32.mxu0 0.0
    %4178 = vmatmul.mubr.f32.gmra.mxu0 %v3962
    %v4179 = vpop.f32.mrf.mxu0
    %v4180 = vadd.f32 0.0, %v4179
    %v4181 = vpop.f32.mrf.mxu0
    %4182 = vdwg.mxu0
    %v4184 = vsel %vm129, %v3846, 0
    %4186 = vmatprep.subr.mxu0 0.0
    %4187 = vmatpush1.xpose.msra.mxu0 0.0
    %4188 = vmatprep.subr.mxu0 0.0
    %4189 = vmatpush1.xpose.msra.mxu0 0.0
    %4190 = vmatprep.subr.mxu0 0.0
    %4191 = vmatpush1.xpose.msra.mxu0 0.0
    %4192 = vmatprep.subr.mxu0 0.0
    %4193 = vmatpush1.xpose.msra.mxu0 0.0
    %4194 = vmatprep.subr.mxu0 0.0
    %4195 = vmatpush1.xpose.msra.mxu0 0.0
    %4196 = vmatprep.subr.mxu0 0.0
    %4197 = vmatpush1.xpose.msra.mxu0 0.0
    %4198 = vmatprep.subr.mxu0 0.0
    %4199 = vmatpush1.xpose.msra.mxu0 0.0
    %4200 = vmatprep.subr.mxu0 0.0
    %4201 = vmatpush1.xpose.msra.mxu0 0.0
    %4202 = vmatprep.subr.mxu0 0.0
    %4203 = vmatpush1.xpose.msra.mxu0 0.0
    %4204 = vmatprep.subr.mxu0 0.0
    %4205 = vmatpush1.xpose.msra.mxu0 0.0
    %4206 = vmatprep.subr.mxu0 0.0
    %4207 = vmatpush1.xpose.msra.mxu0 0.0
    %4208 = vmatprep.subr.mxu0 0.0
    %4209 = vmatpush1.xpose.msra.mxu0 0.0
    %4210 = vmatprep.subr.mxu0 0.0
    %4211 = vmatpush1.xpose.msra.mxu0 0.0
    %4212 = vmatprep.subr.mxu0 0.0
    %4213 = vmatpush1.xpose.msra.mxu0 0.0
    %4214 = vmatprep.subr.mxu0 0.0
    %4215 = vmatpush1.xpose.msra.mxu0 0.0
    %4216 = vmatprep.subr.mxu0 0.0
    %4217 = vmatpush1.xpose.msra.mxu0 %v4184
    %4218 = vmatprep.subr.mxu0 0.0
    %4219 = vmatpush2.xpose.msra.mxu0 0.0
    %4220 = vmatprep.subr.mxu0 0.0
    %4221 = vmatpush2.xpose.msra.mxu0 0.0
    %4222 = vmatprep.subr.mxu0 0.0
    %4223 = vmatpush2.xpose.msra.mxu0 0.0
    %4224 = vmatprep.subr.mxu0 0.0
    %4225 = vmatpush2.xpose.msra.mxu0 0.0
    %4226 = vmatprep.subr.mxu0 0.0
    %4227 = vmatpush2.xpose.msra.mxu0 0.0
    %4228 = vmatprep.subr.mxu0 0.0
    %4229 = vmatpush2.xpose.msra.mxu0 0.0
    %4230 = vmatprep.subr.mxu0 0.0
    %4231 = vmatpush2.xpose.msra.mxu0 0.0
    %4232 = vmatprep.subr.mxu0 0.0
    %4233 = vmatpush2.xpose.msra.mxu0 0.0
    %4234 = vmatprep.subr.mxu0 0.0
    %4235 = vmatpush2.xpose.msra.mxu0 0.0
    %4236 = vmatprep.subr.mxu0 0.0
    %4237 = vmatpush2.xpose.msra.mxu0 0.0
    %4238 = vmatprep.subr.mxu0 0.0
    %4239 = vmatpush2.xpose.msra.mxu0 0.0
    %4240 = vmatprep.subr.mxu0 0.0
    %4241 = vmatpush2.xpose.msra.mxu0 0.0
    %4242 = vmatprep.subr.mxu0 0.0
    %4243 = vmatpush2.xpose.msra.mxu0 0.0
    %4244 = vmatprep.subr.mxu0 0.0
    %4245 = vmatpush2.xpose.msra.mxu0 0.0
    %4246 = vmatprep.subr.mxu0 0.0
    %4247 = vmatpush2.xpose.msra.mxu0 0.0
    %4248 = vmatprep.subr.mxu0 0.0
    %4249 = vmatpush2.xpose.msra.mxu0 0.0
    %4250 = vmatprep.mubr.f32.mxu0 0.0
    %4251 = vmatmul.mubr.f32.gmra.mxu0 %v3886
    %v4252 = vpop.f32.mrf.mxu0
    %v4253 = vadd.f32 0.0, %v4252
    %v4254 = vpop.f32.mrf.mxu0
    %4255 = vdwg.mxu0
    %v4257 = vsel %vm129, %v3847, 0
    %4259 = vmatprep.subr.mxu0 0.0
    %4260 = vmatpush1.xpose.msra.mxu0 0.0
    %4261 = vmatprep.subr.mxu0 0.0
    %4262 = vmatpush1.xpose.msra.mxu0 0.0
    %4263 = vmatprep.subr.mxu0 0.0
    %4264 = vmatpush1.xpose.msra.mxu0 0.0
    %4265 = vmatprep.subr.mxu0 0.0
    %4266 = vmatpush1.xpose.msra.mxu0 0.0
    %4267 = vmatprep.subr.mxu0 0.0
    %4268 = vmatpush1.xpose.msra.mxu0 0.0
    %4269 = vmatprep.subr.mxu0 0.0
    %4270 = vmatpush1.xpose.msra.mxu0 0.0
    %4271 = vmatprep.subr.mxu0 0.0
    %4272 = vmatpush1.xpose.msra.mxu0 0.0
    %4273 = vmatprep.subr.mxu0 0.0
    %4274 = vmatpush1.xpose.msra.mxu0 0.0
    %4275 = vmatprep.subr.mxu0 0.0
    %4276 = vmatpush1.xpose.msra.mxu0 0.0
    %4277 = vmatprep.subr.mxu0 0.0
    %4278 = vmatpush1.xpose.msra.mxu0 0.0
    %4279 = vmatprep.subr.mxu0 0.0
    %4280 = vmatpush1.xpose.msra.mxu0 0.0
    %4281 = vmatprep.subr.mxu0 0.0
    %4282 = vmatpush1.xpose.msra.mxu0 0.0
    %4283 = vmatprep.subr.mxu0 0.0
    %4284 = vmatpush1.xpose.msra.mxu0 0.0
    %4285 = vmatprep.subr.mxu0 0.0
    %4286 = vmatpush1.xpose.msra.mxu0 0.0
    %4287 = vmatprep.subr.mxu0 0.0
    %4288 = vmatpush1.xpose.msra.mxu0 0.0
    %4289 = vmatprep.subr.mxu0 0.0
    %4290 = vmatpush1.xpose.msra.mxu0 %v4257
    %4291 = vmatprep.subr.mxu0 0.0
    %4292 = vmatpush2.xpose.msra.mxu0 0.0
    %4293 = vmatprep.subr.mxu0 0.0
    %4294 = vmatpush2.xpose.msra.mxu0 0.0
    %4295 = vmatprep.subr.mxu0 0.0
    %4296 = vmatpush2.xpose.msra.mxu0 0.0
    %4297 = vmatprep.subr.mxu0 0.0
    %4298 = vmatpush2.xpose.msra.mxu0 0.0
    %4299 = vmatprep.subr.mxu0 0.0
    %4300 = vmatpush2.xpose.msra.mxu0 0.0
    %4301 = vmatprep.subr.mxu0 0.0
    %4302 = vmatpush2.xpose.msra.mxu0 0.0
    %4303 = vmatprep.subr.mxu0 0.0
    %4304 = vmatpush2.xpose.msra.mxu0 0.0
    %4305 = vmatprep.subr.mxu0 0.0
    %4306 = vmatpush2.xpose.msra.mxu0 0.0
    %4307 = vmatprep.subr.mxu0 0.0
    %4308 = vmatpush2.xpose.msra.mxu0 0.0
    %4309 = vmatprep.subr.mxu0 0.0
    %4310 = vmatpush2.xpose.msra.mxu0 0.0
    %4311 = vmatprep.subr.mxu0 0.0
    %4312 = vmatpush2.xpose.msra.mxu0 0.0
    %4313 = vmatprep.subr.mxu0 0.0
    %4314 = vmatpush2.xpose.msra.mxu0 0.0
    %4315 = vmatprep.subr.mxu0 0.0
    %4316 = vmatpush2.xpose.msra.mxu0 0.0
    %4317 = vmatprep.subr.mxu0 0.0
    %4318 = vmatpush2.xpose.msra.mxu0 0.0
    %4319 = vmatprep.subr.mxu0 0.0
    %4320 = vmatpush2.xpose.msra.mxu0 0.0
    %4321 = vmatprep.subr.mxu0 0.0
    %4322 = vmatpush2.xpose.msra.mxu0 0.0
    %4323 = vmatprep.mubr.f32.mxu0 0.0
    %4324 = vmatmul.mubr.f32.gmra.mxu0 %v3962
    %v4325 = vpop.f32.mrf.mxu0
    %v4326 = vadd.f32 0.0, %v4325
    %v4327 = vpop.f32.mrf.mxu0
    %4328 = vdwg.mxu0
    %v4330 = vsel %vm129, %v3848, 0
    %4332 = vmatprep.subr.mxu0 0.0
    %4333 = vmatpush1.xpose.msra.mxu0 0.0
    %4334 = vmatprep.subr.mxu0 0.0
    %4335 = vmatpush1.xpose.msra.mxu0 0.0
    %4336 = vmatprep.subr.mxu0 0.0
    %4337 = vmatpush1.xpose.msra.mxu0 0.0
    %4338 = vmatprep.subr.mxu0 0.0
    %4339 = vmatpush1.xpose.msra.mxu0 0.0
    %4340 = vmatprep.subr.mxu0 0.0
    %4341 = vmatpush1.xpose.msra.mxu0 0.0
    %4342 = vmatprep.subr.mxu0 0.0
    %4343 = vmatpush1.xpose.msra.mxu0 0.0
    %4344 = vmatprep.subr.mxu0 0.0
    %4345 = vmatpush1.xpose.msra.mxu0 0.0
    %4346 = vmatprep.subr.mxu0 0.0
    %4347 = vmatpush1.xpose.msra.mxu0 0.0
    %4348 = vmatprep.subr.mxu0 0.0
    %4349 = vmatpush1.xpose.msra.mxu0 0.0
    %4350 = vmatprep.subr.mxu0 0.0
    %4351 = vmatpush1.xpose.msra.mxu0 0.0
    %4352 = vmatprep.subr.mxu0 0.0
    %4353 = vmatpush1.xpose.msra.mxu0 0.0
    %4354 = vmatprep.subr.mxu0 0.0
    %4355 = vmatpush1.xpose.msra.mxu0 0.0
    %4356 = vmatprep.subr.mxu0 0.0
    %4357 = vmatpush1.xpose.msra.mxu0 0.0
    %4358 = vmatprep.subr.mxu0 0.0
    %4359 = vmatpush1.xpose.msra.mxu0 0.0
    %4360 = vmatprep.subr.mxu0 0.0
    %4361 = vmatpush1.xpose.msra.mxu0 0.0
    %4362 = vmatprep.subr.mxu0 0.0
    %4363 = vmatpush1.xpose.msra.mxu0 %v4330
    %4364 = vmatprep.subr.mxu0 0.0
    %4365 = vmatpush2.xpose.msra.mxu0 0.0
    %4366 = vmatprep.subr.mxu0 0.0
    %4367 = vmatpush2.xpose.msra.mxu0 0.0
    %4368 = vmatprep.subr.mxu0 0.0
    %4369 = vmatpush2.xpose.msra.mxu0 0.0
    %4370 = vmatprep.subr.mxu0 0.0
    %4371 = vmatpush2.xpose.msra.mxu0 0.0
    %4372 = vmatprep.subr.mxu0 0.0
    %4373 = vmatpush2.xpose.msra.mxu0 0.0
    %4374 = vmatprep.subr.mxu0 0.0
    %4375 = vmatpush2.xpose.msra.mxu0 0.0
    %4376 = vmatprep.subr.mxu0 0.0
    %4377 = vmatpush2.xpose.msra.mxu0 0.0
    %4378 = vmatprep.subr.mxu0 0.0
    %4379 = vmatpush2.xpose.msra.mxu0 0.0
    %4380 = vmatprep.subr.mxu0 0.0
    %4381 = vmatpush2.xpose.msra.mxu0 0.0
    %4382 = vmatprep.subr.mxu0 0.0
    %4383 = vmatpush2.xpose.msra.mxu0 0.0
    %4384 = vmatprep.subr.mxu0 0.0
    %4385 = vmatpush2.xpose.msra.mxu0 0.0
    %4386 = vmatprep.subr.mxu0 0.0
    %4387 = vmatpush2.xpose.msra.mxu0 0.0
    %4388 = vmatprep.subr.mxu0 0.0
    %4389 = vmatpush2.xpose.msra.mxu0 0.0
    %4390 = vmatprep.subr.mxu0 0.0
    %4391 = vmatpush2.xpose.msra.mxu0 0.0
    %4392 = vmatprep.subr.mxu0 0.0
    %4393 = vmatpush2.xpose.msra.mxu0 0.0
    %4394 = vmatprep.subr.mxu0 0.0
    %4395 = vmatpush2.xpose.msra.mxu0 0.0
    %4396 = vmatprep.mubr.f32.mxu0 0.0
    %4397 = vmatmul.mubr.f32.gmra.mxu0 %v3886
    %v4398 = vpop.f32.mrf.mxu0
    %v4399 = vadd.f32 0.0, %v4398
    %v4400 = vpop.f32.mrf.mxu0
    %4401 = vdwg.mxu0
    %v4403 = vsel %vm129, %v3849, 0
    %4405 = vmatprep.subr.mxu0 0.0
    %4406 = vmatpush1.xpose.msra.mxu0 0.0
    %4407 = vmatprep.subr.mxu0 0.0
    %4408 = vmatpush1.xpose.msra.mxu0 0.0
    %4409 = vmatprep.subr.mxu0 0.0
    %4410 = vmatpush1.xpose.msra.mxu0 0.0
    %4411 = vmatprep.subr.mxu0 0.0
    %4412 = vmatpush1.xpose.msra.mxu0 0.0
    %4413 = vmatprep.subr.mxu0 0.0
    %4414 = vmatpush1.xpose.msra.mxu0 0.0
    %4415 = vmatprep.subr.mxu0 0.0
    %4416 = vmatpush1.xpose.msra.mxu0 0.0
    %4417 = vmatprep.subr.mxu0 0.0
    %4418 = vmatpush1.xpose.msra.mxu0 0.0
    %4419 = vmatprep.subr.mxu0 0.0
    %4420 = vmatpush1.xpose.msra.mxu0 0.0
    %4421 = vmatprep.subr.mxu0 0.0
    %4422 = vmatpush1.xpose.msra.mxu0 0.0
    %4423 = vmatprep.subr.mxu0 0.0
    %4424 = vmatpush1.xpose.msra.mxu0 0.0
    %4425 = vmatprep.subr.mxu0 0.0
    %4426 = vmatpush1.xpose.msra.mxu0 0.0
    %4427 = vmatprep.subr.mxu0 0.0
    %4428 = vmatpush1.xpose.msra.mxu0 0.0
    %4429 = vmatprep.subr.mxu0 0.0
    %4430 = vmatpush1.xpose.msra.mxu0 0.0
    %4431 = vmatprep.subr.mxu0 0.0
    %4432 = vmatpush1.xpose.msra.mxu0 0.0
    %4433 = vmatprep.subr.mxu0 0.0
    %4434 = vmatpush1.xpose.msra.mxu0 0.0
    %4435 = vmatprep.subr.mxu0 0.0
    %4436 = vmatpush1.xpose.msra.mxu0 %v4403
    %4437 = vmatprep.subr.mxu0 0.0
    %4438 = vmatpush2.xpose.msra.mxu0 0.0
    %4439 = vmatprep.subr.mxu0 0.0
    %4440 = vmatpush2.xpose.msra.mxu0 0.0
    %4441 = vmatprep.subr.mxu0 0.0
    %4442 = vmatpush2.xpose.msra.mxu0 0.0
    %4443 = vmatprep.subr.mxu0 0.0
    %4444 = vmatpush2.xpose.msra.mxu0 0.0
    %4445 = vmatprep.subr.mxu0 0.0
    %4446 = vmatpush2.xpose.msra.mxu0 0.0
    %4447 = vmatprep.subr.mxu0 0.0
    %4448 = vmatpush2.xpose.msra.mxu0 0.0
    %4449 = vmatprep.subr.mxu0 0.0
    %4450 = vmatpush2.xpose.msra.mxu0 0.0
    %4451 = vmatprep.subr.mxu0 0.0
    %4452 = vmatpush2.xpose.msra.mxu0 0.0
    %4453 = vmatprep.subr.mxu0 0.0
    %4454 = vmatpush2.xpose.msra.mxu0 0.0
    %4455 = vmatprep.subr.mxu0 0.0
    %4456 = vmatpush2.xpose.msra.mxu0 0.0
    %4457 = vmatprep.subr.mxu0 0.0
    %4458 = vmatpush2.xpose.msra.mxu0 0.0
    %4459 = vmatprep.subr.mxu0 0.0
    %4460 = vmatpush2.xpose.msra.mxu0 0.0
    %4461 = vmatprep.subr.mxu0 0.0
    %4462 = vmatpush2.xpose.msra.mxu0 0.0
    %4463 = vmatprep.subr.mxu0 0.0
    %4464 = vmatpush2.xpose.msra.mxu0 0.0
    %4465 = vmatprep.subr.mxu0 0.0
    %4466 = vmatpush2.xpose.msra.mxu0 0.0
    %4467 = vmatprep.subr.mxu0 0.0
    %4468 = vmatpush2.xpose.msra.mxu0 0.0
    %4469 = vmatprep.mubr.f32.mxu0 0.0
    %4470 = vmatmul.mubr.f32.gmra.mxu0 %v3962
    %v4471 = vpop.f32.mrf.mxu0
    %v4472 = vadd.f32 0.0, %v4471
    %v4473 = vpop.f32.mrf.mxu0
    %4474 = vdwg.mxu0
    %v4476 = vsel %vm129, %v3837, 0
    %v4479 = vsel %vm129, %v3838, 0
    %v4482 = vsel %vm129, %v3851, 0
    %4484 = vmatprep.subr.mxu0 0.0
    %4485 = vmatpush1.xpose.msra.mxu0 0.0
    %4486 = vmatprep.subr.mxu0 0.0
    %4487 = vmatpush1.xpose.msra.mxu0 0.0
    %4488 = vmatprep.subr.mxu0 0.0
    %4489 = vmatpush1.xpose.msra.mxu0 0.0
    %4490 = vmatprep.subr.mxu0 0.0
    %4491 = vmatpush1.xpose.msra.mxu0 0.0
    %4492 = vmatprep.subr.mxu0 0.0
    %4493 = vmatpush1.xpose.msra.mxu0 0.0
    %4494 = vmatprep.subr.mxu0 0.0
    %4495 = vmatpush1.xpose.msra.mxu0 0.0
    %4496 = vmatprep.subr.mxu0 0.0
    %4497 = vmatpush1.xpose.msra.mxu0 0.0
    %4498 = vmatprep.subr.mxu0 0.0
    %4499 = vmatpush1.xpose.msra.mxu0 0.0
    %4500 = vmatprep.subr.mxu0 0.0
    %4501 = vmatpush1.xpose.msra.mxu0 0.0
    %4502 = vmatprep.subr.mxu0 0.0
    %4503 = vmatpush1.xpose.msra.mxu0 0.0
    %4504 = vmatprep.subr.mxu0 0.0
    %4505 = vmatpush1.xpose.msra.mxu0 0.0
    %4506 = vmatprep.subr.mxu0 0.0
    %4507 = vmatpush1.xpose.msra.mxu0 0.0
    %4508 = vmatprep.subr.mxu0 0.0
    %4509 = vmatpush1.xpose.msra.mxu0 0.0
    %4510 = vmatprep.subr.mxu0 0.0
    %4511 = vmatpush1.xpose.msra.mxu0 0.0
    %4512 = vmatprep.subr.mxu0 0.0
    %4513 = vmatpush1.xpose.msra.mxu0 0.0
    %4514 = vmatprep.subr.mxu0 0.0
    %4515 = vmatpush1.xpose.msra.mxu0 %v4482
    %4516 = vmatprep.subr.mxu0 0.0
    %4517 = vmatpush2.xpose.msra.mxu0 0.0
    %4518 = vmatprep.subr.mxu0 0.0
    %4519 = vmatpush2.xpose.msra.mxu0 0.0
    %4520 = vmatprep.subr.mxu0 0.0
    %4521 = vmatpush2.xpose.msra.mxu0 0.0
    %4522 = vmatprep.subr.mxu0 0.0
    %4523 = vmatpush2.xpose.msra.mxu0 0.0
    %4524 = vmatprep.subr.mxu0 0.0
    %4525 = vmatpush2.xpose.msra.mxu0 0.0
    %4526 = vmatprep.subr.mxu0 0.0
    %4527 = vmatpush2.xpose.msra.mxu0 0.0
    %4528 = vmatprep.subr.mxu0 0.0
    %4529 = vmatpush2.xpose.msra.mxu0 0.0
    %4530 = vmatprep.subr.mxu0 0.0
    %4531 = vmatpush2.xpose.msra.mxu0 0.0
    %4532 = vmatprep.subr.mxu0 0.0
    %4533 = vmatpush2.xpose.msra.mxu0 0.0
    %4534 = vmatprep.subr.mxu0 0.0
    %4535 = vmatpush2.xpose.msra.mxu0 0.0
    %4536 = vmatprep.subr.mxu0 0.0
    %4537 = vmatpush2.xpose.msra.mxu0 0.0
    %4538 = vmatprep.subr.mxu0 0.0
    %4539 = vmatpush2.xpose.msra.mxu0 0.0
    %4540 = vmatprep.subr.mxu0 0.0
    %4541 = vmatpush2.xpose.msra.mxu0 0.0
    %4542 = vmatprep.subr.mxu0 0.0
    %4543 = vmatpush2.xpose.msra.mxu0 0.0
    %4544 = vmatprep.subr.mxu0 0.0
    %4545 = vmatpush2.xpose.msra.mxu0 0.0
    %4546 = vmatprep.subr.mxu0 0.0
    %4547 = vmatpush2.xpose.msra.mxu0 0.0
    %4548 = vmatprep.mubr.f32.mxu0 0.0
    %4549 = vmatmul.mubr.f32.gmra.mxu0 %v4476
    %v4550 = vpop.f32.mrf.mxu0
    %v4551 = vadd.f32 0.0, %v4550
    %v4552 = vpop.f32.mrf.mxu0
    %4553 = vmatprep.mubr.f32.mxu0 0.0
    %4554 = vmatmul.mubr.f32.gmra.mxu0 %v4479
    %v4555 = vpop.f32.mrf.mxu0
    %v4556 = vadd.f32 0.0, %v4555
    %v4557 = vpop.f32.mrf.mxu0
    %4558 = vdwg.mxu0
    %v4560 = vsel %vm129, %v3839, 0
    %v4563 = vsel %vm129, %v3840, 0
    %v4566 = vsel %vm129, %v3852, 0
    %4568 = vmatprep.subr.mxu0 0.0
    %4569 = vmatpush1.xpose.msra.mxu0 0.0
    %4570 = vmatprep.subr.mxu0 0.0
    %4571 = vmatpush1.xpose.msra.mxu0 0.0
    %4572 = vmatprep.subr.mxu0 0.0
    %4573 = vmatpush1.xpose.msra.mxu0 0.0
    %4574 = vmatprep.subr.mxu0 0.0
    %4575 = vmatpush1.xpose.msra.mxu0 0.0
    %4576 = vmatprep.subr.mxu0 0.0
    %4577 = vmatpush1.xpose.msra.mxu0 0.0
    %4578 = vmatprep.subr.mxu0 0.0
    %4579 = vmatpush1.xpose.msra.mxu0 0.0
    %4580 = vmatprep.subr.mxu0 0.0
    %4581 = vmatpush1.xpose.msra.mxu0 0.0
    %4582 = vmatprep.subr.mxu0 0.0
    %4583 = vmatpush1.xpose.msra.mxu0 0.0
    %4584 = vmatprep.subr.mxu0 0.0
    %4585 = vmatpush1.xpose.msra.mxu0 0.0
    %4586 = vmatprep.subr.mxu0 0.0
    %4587 = vmatpush1.xpose.msra.mxu0 0.0
    %4588 = vmatprep.subr.mxu0 0.0
    %4589 = vmatpush1.xpose.msra.mxu0 0.0
    %4590 = vmatprep.subr.mxu0 0.0
    %4591 = vmatpush1.xpose.msra.mxu0 0.0
    %4592 = vmatprep.subr.mxu0 0.0
    %4593 = vmatpush1.xpose.msra.mxu0 0.0
    %4594 = vmatprep.subr.mxu0 0.0
    %4595 = vmatpush1.xpose.msra.mxu0 0.0
    %4596 = vmatprep.subr.mxu0 0.0
    %4597 = vmatpush1.xpose.msra.mxu0 0.0
    %4598 = vmatprep.subr.mxu0 0.0
    %4599 = vmatpush1.xpose.msra.mxu0 %v4566
    %4600 = vmatprep.subr.mxu0 0.0
    %4601 = vmatpush2.xpose.msra.mxu0 0.0
    %4602 = vmatprep.subr.mxu0 0.0
    %4603 = vmatpush2.xpose.msra.mxu0 0.0
    %4604 = vmatprep.subr.mxu0 0.0
    %4605 = vmatpush2.xpose.msra.mxu0 0.0
    %4606 = vmatprep.subr.mxu0 0.0
    %4607 = vmatpush2.xpose.msra.mxu0 0.0
    %4608 = vmatprep.subr.mxu0 0.0
    %4609 = vmatpush2.xpose.msra.mxu0 0.0
    %4610 = vmatprep.subr.mxu0 0.0
    %4611 = vmatpush2.xpose.msra.mxu0 0.0
    %4612 = vmatprep.subr.mxu0 0.0
    %4613 = vmatpush2.xpose.msra.mxu0 0.0
    %4614 = vmatprep.subr.mxu0 0.0
    %4615 = vmatpush2.xpose.msra.mxu0 0.0
    %4616 = vmatprep.subr.mxu0 0.0
    %4617 = vmatpush2.xpose.msra.mxu0 0.0
    %4618 = vmatprep.subr.mxu0 0.0
    %4619 = vmatpush2.xpose.msra.mxu0 0.0
    %4620 = vmatprep.subr.mxu0 0.0
    %4621 = vmatpush2.xpose.msra.mxu0 0.0
    %4622 = vmatprep.subr.mxu0 0.0
    %4623 = vmatpush2.xpose.msra.mxu0 0.0
    %4624 = vmatprep.subr.mxu0 0.0
    %4625 = vmatpush2.xpose.msra.mxu0 0.0
    %4626 = vmatprep.subr.mxu0 0.0
    %4627 = vmatpush2.xpose.msra.mxu0 0.0
    %4628 = vmatprep.subr.mxu0 0.0
    %4629 = vmatpush2.xpose.msra.mxu0 0.0
    %4630 = vmatprep.subr.mxu0 0.0
    %4631 = vmatpush2.xpose.msra.mxu0 0.0
    %4632 = vmatprep.mubr.f32.mxu0 0.0
    %4633 = vmatmul.mubr.f32.gmra.mxu0 %v4560
    %v4634 = vpop.f32.mrf.mxu0
    %v4635 = vadd.f32 0.0, %v4634
    %v4636 = vpop.f32.mrf.mxu0
    %4637 = vmatprep.mubr.f32.mxu0 0.0
    %4638 = vmatmul.mubr.f32.gmra.mxu0 %v4563
    %v4639 = vpop.f32.mrf.mxu0
    %v4640 = vadd.f32 0.0, %v4639
    %v4641 = vpop.f32.mrf.mxu0
    %4642 = vdwg.mxu0
    %v4644 = vsel %vm129, %v3853, 0
    %4646 = vmatprep.subr.mxu0 0.0
    %4647 = vmatpush1.xpose.msra.mxu0 0.0
    %4648 = vmatprep.subr.mxu0 0.0
    %4649 = vmatpush1.xpose.msra.mxu0 0.0
    %4650 = vmatprep.subr.mxu0 0.0
    %4651 = vmatpush1.xpose.msra.mxu0 0.0
    %4652 = vmatprep.subr.mxu0 0.0
    %4653 = vmatpush1.xpose.msra.mxu0 0.0
    %4654 = vmatprep.subr.mxu0 0.0
    %4655 = vmatpush1.xpose.msra.mxu0 0.0
    %4656 = vmatprep.subr.mxu0 0.0
    %4657 = vmatpush1.xpose.msra.mxu0 0.0
    %4658 = vmatprep.subr.mxu0 0.0
    %4659 = vmatpush1.xpose.msra.mxu0 0.0
    %4660 = vmatprep.subr.mxu0 0.0
    %4661 = vmatpush1.xpose.msra.mxu0 0.0
    %4662 = vmatprep.subr.mxu0 0.0
    %4663 = vmatpush1.xpose.msra.mxu0 0.0
    %4664 = vmatprep.subr.mxu0 0.0
    %4665 = vmatpush1.xpose.msra.mxu0 0.0
    %4666 = vmatprep.subr.mxu0 0.0
    %4667 = vmatpush1.xpose.msra.mxu0 0.0
    %4668 = vmatprep.subr.mxu0 0.0
    %4669 = vmatpush1.xpose.msra.mxu0 0.0
    %4670 = vmatprep.subr.mxu0 0.0
    %4671 = vmatpush1.xpose.msra.mxu0 0.0
    %4672 = vmatprep.subr.mxu0 0.0
    %4673 = vmatpush1.xpose.msra.mxu0 0.0
    %4674 = vmatprep.subr.mxu0 0.0
    %4675 = vmatpush1.xpose.msra.mxu0 0.0
    %4676 = vmatprep.subr.mxu0 0.0
    %4677 = vmatpush1.xpose.msra.mxu0 %v4644
    %4678 = vmatprep.subr.mxu0 0.0
    %4679 = vmatpush2.xpose.msra.mxu0 0.0
    %4680 = vmatprep.subr.mxu0 0.0
    %4681 = vmatpush2.xpose.msra.mxu0 0.0
    %4682 = vmatprep.subr.mxu0 0.0
    %4683 = vmatpush2.xpose.msra.mxu0 0.0
    %4684 = vmatprep.subr.mxu0 0.0
    %4685 = vmatpush2.xpose.msra.mxu0 0.0
    %4686 = vmatprep.subr.mxu0 0.0
    %4687 = vmatpush2.xpose.msra.mxu0 0.0
    %4688 = vmatprep.subr.mxu0 0.0
    %4689 = vmatpush2.xpose.msra.mxu0 0.0
    %4690 = vmatprep.subr.mxu0 0.0
    %4691 = vmatpush2.xpose.msra.mxu0 0.0
    %4692 = vmatprep.subr.mxu0 0.0
    %4693 = vmatpush2.xpose.msra.mxu0 0.0
    %4694 = vmatprep.subr.mxu0 0.0
    %4695 = vmatpush2.xpose.msra.mxu0 0.0
    %4696 = vmatprep.subr.mxu0 0.0
    %4697 = vmatpush2.xpose.msra.mxu0 0.0
    %4698 = vmatprep.subr.mxu0 0.0
    %4699 = vmatpush2.xpose.msra.mxu0 0.0
    %4700 = vmatprep.subr.mxu0 0.0
    %4701 = vmatpush2.xpose.msra.mxu0 0.0
    %4702 = vmatprep.subr.mxu0 0.0
    %4703 = vmatpush2.xpose.msra.mxu0 0.0
    %4704 = vmatprep.subr.mxu0 0.0
    %4705 = vmatpush2.xpose.msra.mxu0 0.0
    %4706 = vmatprep.subr.mxu0 0.0
    %4707 = vmatpush2.xpose.msra.mxu0 0.0
    %4708 = vmatprep.subr.mxu0 0.0
    %4709 = vmatpush2.xpose.msra.mxu0 0.0
    %4710 = vmatprep.mubr.f32.mxu0 0.0
    %4711 = vmatmul.mubr.f32.gmra.mxu0 %v4476
    %v4712 = vpop.f32.mrf.mxu0
    %v4713 = vadd.f32 0.0, %v4712
    %v4714 = vpop.f32.mrf.mxu0
    %4715 = vmatprep.mubr.f32.mxu0 0.0
    %4716 = vmatmul.mubr.f32.gmra.mxu0 %v4479
    %v4717 = vpop.f32.mrf.mxu0
    %v4718 = vadd.f32 0.0, %v4717
    %v4719 = vpop.f32.mrf.mxu0
    %4720 = vdwg.mxu0
    %v4722 = vsel %vm129, %v3854, 0
    %4724 = vmatprep.subr.mxu0 0.0
    %4725 = vmatpush1.xpose.msra.mxu0 0.0
    %4726 = vmatprep.subr.mxu0 0.0
    %4727 = vmatpush1.xpose.msra.mxu0 0.0
    %4728 = vmatprep.subr.mxu0 0.0
    %4729 = vmatpush1.xpose.msra.mxu0 0.0
    %4730 = vmatprep.subr.mxu0 0.0
    %4731 = vmatpush1.xpose.msra.mxu0 0.0
    %4732 = vmatprep.subr.mxu0 0.0
    %4733 = vmatpush1.xpose.msra.mxu0 0.0
    %4734 = vmatprep.subr.mxu0 0.0
    %4735 = vmatpush1.xpose.msra.mxu0 0.0
    %4736 = vmatprep.subr.mxu0 0.0
    %4737 = vmatpush1.xpose.msra.mxu0 0.0
    %4738 = vmatprep.subr.mxu0 0.0
    %4739 = vmatpush1.xpose.msra.mxu0 0.0
    %4740 = vmatprep.subr.mxu0 0.0
    %4741 = vmatpush1.xpose.msra.mxu0 0.0
    %4742 = vmatprep.subr.mxu0 0.0
    %4743 = vmatpush1.xpose.msra.mxu0 0.0
    %4744 = vmatprep.subr.mxu0 0.0
    %4745 = vmatpush1.xpose.msra.mxu0 0.0
    %4746 = vmatprep.subr.mxu0 0.0
    %4747 = vmatpush1.xpose.msra.mxu0 0.0
    %4748 = vmatprep.subr.mxu0 0.0
    %4749 = vmatpush1.xpose.msra.mxu0 0.0
    %4750 = vmatprep.subr.mxu0 0.0
    %4751 = vmatpush1.xpose.msra.mxu0 0.0
    %4752 = vmatprep.subr.mxu0 0.0
    %4753 = vmatpush1.xpose.msra.mxu0 0.0
    %4754 = vmatprep.subr.mxu0 0.0
    %4755 = vmatpush1.xpose.msra.mxu0 %v4722
    %4756 = vmatprep.subr.mxu0 0.0
    %4757 = vmatpush2.xpose.msra.mxu0 0.0
    %4758 = vmatprep.subr.mxu0 0.0
    %4759 = vmatpush2.xpose.msra.mxu0 0.0
    %4760 = vmatprep.subr.mxu0 0.0
    %4761 = vmatpush2.xpose.msra.mxu0 0.0
    %4762 = vmatprep.subr.mxu0 0.0
    %4763 = vmatpush2.xpose.msra.mxu0 0.0
    %4764 = vmatprep.subr.mxu0 0.0
    %4765 = vmatpush2.xpose.msra.mxu0 0.0
    %4766 = vmatprep.subr.mxu0 0.0
    %4767 = vmatpush2.xpose.msra.mxu0 0.0
    %4768 = vmatprep.subr.mxu0 0.0
    %4769 = vmatpush2.xpose.msra.mxu0 0.0
    %4770 = vmatprep.subr.mxu0 0.0
    %4771 = vmatpush2.xpose.msra.mxu0 0.0
    %4772 = vmatprep.subr.mxu0 0.0
    %4773 = vmatpush2.xpose.msra.mxu0 0.0
    %4774 = vmatprep.subr.mxu0 0.0
    %4775 = vmatpush2.xpose.msra.mxu0 0.0
    %4776 = vmatprep.subr.mxu0 0.0
    %4777 = vmatpush2.xpose.msra.mxu0 0.0
    %4778 = vmatprep.subr.mxu0 0.0
    %4779 = vmatpush2.xpose.msra.mxu0 0.0
    %4780 = vmatprep.subr.mxu0 0.0
    %4781 = vmatpush2.xpose.msra.mxu0 0.0
    %4782 = vmatprep.subr.mxu0 0.0
    %4783 = vmatpush2.xpose.msra.mxu0 0.0
    %4784 = vmatprep.subr.mxu0 0.0
    %4785 = vmatpush2.xpose.msra.mxu0 0.0
    %4786 = vmatprep.subr.mxu0 0.0
    %4787 = vmatpush2.xpose.msra.mxu0 0.0
    %4788 = vmatprep.mubr.f32.mxu0 0.0
    %4789 = vmatmul.mubr.f32.gmra.mxu0 %v4560
    %v4790 = vpop.f32.mrf.mxu0
    %v4791 = vadd.f32 0.0, %v4790
    %v4792 = vpop.f32.mrf.mxu0
    %4793 = vmatprep.mubr.f32.mxu0 0.0
    %4794 = vmatmul.mubr.f32.gmra.mxu0 %v4563
    %v4795 = vpop.f32.mrf.mxu0
    %v4796 = vadd.f32 0.0, %v4795
    %v4797 = vpop.f32.mrf.mxu0
    %4798 = vdwg.mxu0
    %v4800 = vsel %vm129, %v3855, 0
    %4802 = vmatprep.subr.mxu0 0.0
    %4803 = vmatpush1.xpose.msra.mxu0 0.0
    %4804 = vmatprep.subr.mxu0 0.0
    %4805 = vmatpush1.xpose.msra.mxu0 0.0
    %4806 = vmatprep.subr.mxu0 0.0
    %4807 = vmatpush1.xpose.msra.mxu0 0.0
    %4808 = vmatprep.subr.mxu0 0.0
    %4809 = vmatpush1.xpose.msra.mxu0 0.0
    %4810 = vmatprep.subr.mxu0 0.0
    %4811 = vmatpush1.xpose.msra.mxu0 0.0
    %4812 = vmatprep.subr.mxu0 0.0
    %4813 = vmatpush1.xpose.msra.mxu0 0.0
    %4814 = vmatprep.subr.mxu0 0.0
    %4815 = vmatpush1.xpose.msra.mxu0 0.0
    %4816 = vmatprep.subr.mxu0 0.0
    %4817 = vmatpush1.xpose.msra.mxu0 0.0
    %4818 = vmatprep.subr.mxu0 0.0
    %4819 = vmatpush1.xpose.msra.mxu0 0.0
    %4820 = vmatprep.subr.mxu0 0.0
    %4821 = vmatpush1.xpose.msra.mxu0 0.0
    %4822 = vmatprep.subr.mxu0 0.0
    %4823 = vmatpush1.xpose.msra.mxu0 0.0
    %4824 = vmatprep.subr.mxu0 0.0
    %4825 = vmatpush1.xpose.msra.mxu0 0.0
    %4826 = vmatprep.subr.mxu0 0.0
    %4827 = vmatpush1.xpose.msra.mxu0 0.0
    %4828 = vmatprep.subr.mxu0 0.0
    %4829 = vmatpush1.xpose.msra.mxu0 0.0
    %4830 = vmatprep.subr.mxu0 0.0
    %4831 = vmatpush1.xpose.msra.mxu0 0.0
    %4832 = vmatprep.subr.mxu0 0.0
    %4833 = vmatpush1.xpose.msra.mxu0 %v4800
    %4834 = vmatprep.subr.mxu0 0.0
    %4835 = vmatpush2.xpose.msra.mxu0 0.0
    %4836 = vmatprep.subr.mxu0 0.0
    %4837 = vmatpush2.xpose.msra.mxu0 0.0
    %4838 = vmatprep.subr.mxu0 0.0
    %4839 = vmatpush2.xpose.msra.mxu0 0.0
    %4840 = vmatprep.subr.mxu0 0.0
    %4841 = vmatpush2.xpose.msra.mxu0 0.0
    %4842 = vmatprep.subr.mxu0 0.0
    %4843 = vmatpush2.xpose.msra.mxu0 0.0
    %4844 = vmatprep.subr.mxu0 0.0
    %4845 = vmatpush2.xpose.msra.mxu0 0.0
    %4846 = vmatprep.subr.mxu0 0.0
    %4847 = vmatpush2.xpose.msra.mxu0 0.0
    %4848 = vmatprep.subr.mxu0 0.0
    %4849 = vmatpush2.xpose.msra.mxu0 0.0
    %4850 = vmatprep.subr.mxu0 0.0
    %4851 = vmatpush2.xpose.msra.mxu0 0.0
    %4852 = vmatprep.subr.mxu0 0.0
    %4853 = vmatpush2.xpose.msra.mxu0 0.0
    %4854 = vmatprep.subr.mxu0 0.0
    %4855 = vmatpush2.xpose.msra.mxu0 0.0
    %4856 = vmatprep.subr.mxu0 0.0
    %4857 = vmatpush2.xpose.msra.mxu0 0.0
    %4858 = vmatprep.subr.mxu0 0.0
    %4859 = vmatpush2.xpose.msra.mxu0 0.0
    %4860 = vmatprep.subr.mxu0 0.0
    %4861 = vmatpush2.xpose.msra.mxu0 0.0
    %4862 = vmatprep.subr.mxu0 0.0
    %4863 = vmatpush2.xpose.msra.mxu0 0.0
    %4864 = vmatprep.subr.mxu0 0.0
    %4865 = vmatpush2.xpose.msra.mxu0 0.0
    %4866 = vmatprep.mubr.f32.mxu0 0.0
    %4867 = vmatmul.mubr.f32.gmra.mxu0 %v4476
    %v4868 = vpop.f32.mrf.mxu0
    %v4869 = vadd.f32 0.0, %v4868
    %v4870 = vpop.f32.mrf.mxu0
    %4871 = vmatprep.mubr.f32.mxu0 0.0
    %4872 = vmatmul.mubr.f32.gmra.mxu0 %v4479
    %v4873 = vpop.f32.mrf.mxu0
    %v4874 = vadd.f32 0.0, %v4873
    %v4875 = vpop.f32.mrf.mxu0
    %4876 = vdwg.mxu0
    %v4878 = vsel %vm129, %v3856, 0
    %4880 = vmatprep.subr.mxu0 0.0
    %4881 = vmatpush1.xpose.msra.mxu0 0.0
    %4882 = vmatprep.subr.mxu0 0.0
    %4883 = vmatpush1.xpose.msra.mxu0 0.0
    %4884 = vmatprep.subr.mxu0 0.0
    %4885 = vmatpush1.xpose.msra.mxu0 0.0
    %4886 = vmatprep.subr.mxu0 0.0
    %4887 = vmatpush1.xpose.msra.mxu0 0.0
    %4888 = vmatprep.subr.mxu0 0.0
    %4889 = vmatpush1.xpose.msra.mxu0 0.0
    %4890 = vmatprep.subr.mxu0 0.0
    %4891 = vmatpush1.xpose.msra.mxu0 0.0
    %4892 = vmatprep.subr.mxu0 0.0
    %4893 = vmatpush1.xpose.msra.mxu0 0.0
    %4894 = vmatprep.subr.mxu0 0.0
    %4895 = vmatpush1.xpose.msra.mxu0 0.0
    %4896 = vmatprep.subr.mxu0 0.0
    %4897 = vmatpush1.xpose.msra.mxu0 0.0
    %4898 = vmatprep.subr.mxu0 0.0
    %4899 = vmatpush1.xpose.msra.mxu0 0.0
    %4900 = vmatprep.subr.mxu0 0.0
    %4901 = vmatpush1.xpose.msra.mxu0 0.0
    %4902 = vmatprep.subr.mxu0 0.0
    %4903 = vmatpush1.xpose.msra.mxu0 0.0
    %4904 = vmatprep.subr.mxu0 0.0
    %4905 = vmatpush1.xpose.msra.mxu0 0.0
    %4906 = vmatprep.subr.mxu0 0.0
    %4907 = vmatpush1.xpose.msra.mxu0 0.0
    %4908 = vmatprep.subr.mxu0 0.0
    %4909 = vmatpush1.xpose.msra.mxu0 0.0
    %4910 = vmatprep.subr.mxu0 0.0
    %4911 = vmatpush1.xpose.msra.mxu0 %v4878
    %4912 = vmatprep.subr.mxu0 0.0
    %4913 = vmatpush2.xpose.msra.mxu0 0.0
    %4914 = vmatprep.subr.mxu0 0.0
    %4915 = vmatpush2.xpose.msra.mxu0 0.0
    %4916 = vmatprep.subr.mxu0 0.0
    %4917 = vmatpush2.xpose.msra.mxu0 0.0
    %4918 = vmatprep.subr.mxu0 0.0
    %4919 = vmatpush2.xpose.msra.mxu0 0.0
    %4920 = vmatprep.subr.mxu0 0.0
    %4921 = vmatpush2.xpose.msra.mxu0 0.0
    %4922 = vmatprep.subr.mxu0 0.0
    %4923 = vmatpush2.xpose.msra.mxu0 0.0
    %4924 = vmatprep.subr.mxu0 0.0
    %4925 = vmatpush2.xpose.msra.mxu0 0.0
    %4926 = vmatprep.subr.mxu0 0.0
    %4927 = vmatpush2.xpose.msra.mxu0 0.0
    %4928 = vmatprep.subr.mxu0 0.0
    %4929 = vmatpush2.xpose.msra.mxu0 0.0
    %4930 = vmatprep.subr.mxu0 0.0
    %4931 = vmatpush2.xpose.msra.mxu0 0.0
    %4932 = vmatprep.subr.mxu0 0.0
    %4933 = vmatpush2.xpose.msra.mxu0 0.0
    %4934 = vmatprep.subr.mxu0 0.0
    %4935 = vmatpush2.xpose.msra.mxu0 0.0
    %4936 = vmatprep.subr.mxu0 0.0
    %4937 = vmatpush2.xpose.msra.mxu0 0.0
    %4938 = vmatprep.subr.mxu0 0.0
    %4939 = vmatpush2.xpose.msra.mxu0 0.0
    %4940 = vmatprep.subr.mxu0 0.0
    %4941 = vmatpush2.xpose.msra.mxu0 0.0
    %4942 = vmatprep.subr.mxu0 0.0
    %4943 = vmatpush2.xpose.msra.mxu0 0.0
    %4944 = vmatprep.mubr.f32.mxu0 0.0
    %4945 = vmatmul.mubr.f32.gmra.mxu0 %v4560
    %v4946 = vpop.f32.mrf.mxu0
    %v4947 = vadd.f32 0.0, %v4946
    %v4948 = vpop.f32.mrf.mxu0
    %4949 = vmatprep.mubr.f32.mxu0 0.0
    %4950 = vmatmul.mubr.f32.gmra.mxu0 %v4563
    %v4951 = vpop.f32.mrf.mxu0
    %v4952 = vadd.f32 0.0, %v4951
    %v4953 = vpop.f32.mrf.mxu0
    %4954 = vdwg.mxu0
    %v4956 = vsel %vm129, %v3857, 0
    %4958 = vmatprep.subr.mxu0 0.0
    %4959 = vmatpush1.xpose.msra.mxu0 0.0
    %4960 = vmatprep.subr.mxu0 0.0
    %4961 = vmatpush1.xpose.msra.mxu0 0.0
    %4962 = vmatprep.subr.mxu0 0.0
    %4963 = vmatpush1.xpose.msra.mxu0 0.0
    %4964 = vmatprep.subr.mxu0 0.0
    %4965 = vmatpush1.xpose.msra.mxu0 0.0
    %4966 = vmatprep.subr.mxu0 0.0
    %4967 = vmatpush1.xpose.msra.mxu0 0.0
    %4968 = vmatprep.subr.mxu0 0.0
    %4969 = vmatpush1.xpose.msra.mxu0 0.0
    %4970 = vmatprep.subr.mxu0 0.0
    %4971 = vmatpush1.xpose.msra.mxu0 0.0
    %4972 = vmatprep.subr.mxu0 0.0
    %4973 = vmatpush1.xpose.msra.mxu0 0.0
    %4974 = vmatprep.subr.mxu0 0.0
    %4975 = vmatpush1.xpose.msra.mxu0 0.0
    %4976 = vmatprep.subr.mxu0 0.0
    %4977 = vmatpush1.xpose.msra.mxu0 0.0
    %4978 = vmatprep.subr.mxu0 0.0
    %4979 = vmatpush1.xpose.msra.mxu0 0.0
    %4980 = vmatprep.subr.mxu0 0.0
    %4981 = vmatpush1.xpose.msra.mxu0 0.0
    %4982 = vmatprep.subr.mxu0 0.0
    %4983 = vmatpush1.xpose.msra.mxu0 0.0
    %4984 = vmatprep.subr.mxu0 0.0
    %4985 = vmatpush1.xpose.msra.mxu0 0.0
    %4986 = vmatprep.subr.mxu0 0.0
    %4987 = vmatpush1.xpose.msra.mxu0 0.0
    %4988 = vmatprep.subr.mxu0 0.0
    %4989 = vmatpush1.xpose.msra.mxu0 %v4956
    %4990 = vmatprep.subr.mxu0 0.0
    %4991 = vmatpush2.xpose.msra.mxu0 0.0
    %4992 = vmatprep.subr.mxu0 0.0
    %4993 = vmatpush2.xpose.msra.mxu0 0.0
    %4994 = vmatprep.subr.mxu0 0.0
    %4995 = vmatpush2.xpose.msra.mxu0 0.0
    %4996 = vmatprep.subr.mxu0 0.0
    %4997 = vmatpush2.xpose.msra.mxu0 0.0
    %4998 = vmatprep.subr.mxu0 0.0
    %4999 = vmatpush2.xpose.msra.mxu0 0.0
    %5000 = vmatprep.subr.mxu0 0.0
    %5001 = vmatpush2.xpose.msra.mxu0 0.0
    %5002 = vmatprep.subr.mxu0 0.0
    %5003 = vmatpush2.xpose.msra.mxu0 0.0
    %5004 = vmatprep.subr.mxu0 0.0
    %5005 = vmatpush2.xpose.msra.mxu0 0.0
    %5006 = vmatprep.subr.mxu0 0.0
    %5007 = vmatpush2.xpose.msra.mxu0 0.0
    %5008 = vmatprep.subr.mxu0 0.0
    %5009 = vmatpush2.xpose.msra.mxu0 0.0
    %5010 = vmatprep.subr.mxu0 0.0
    %5011 = vmatpush2.xpose.msra.mxu0 0.0
    %5012 = vmatprep.subr.mxu0 0.0
    %5013 = vmatpush2.xpose.msra.mxu0 0.0
    %5014 = vmatprep.subr.mxu0 0.0
    %5015 = vmatpush2.xpose.msra.mxu0 0.0
    %5016 = vmatprep.subr.mxu0 0.0
    %5017 = vmatpush2.xpose.msra.mxu0 0.0
    %5018 = vmatprep.subr.mxu0 0.0
    %5019 = vmatpush2.xpose.msra.mxu0 0.0
    %5020 = vmatprep.subr.mxu0 0.0
    %5021 = vmatpush2.xpose.msra.mxu0 0.0
    %5022 = vmatprep.mubr.f32.mxu0 0.0
    %5023 = vmatmul.mubr.f32.gmra.mxu0 %v4476
    %v5024 = vpop.f32.mrf.mxu0
    %v5025 = vadd.f32 0.0, %v5024
    %v5026 = vpop.f32.mrf.mxu0
    %5027 = vmatprep.mubr.f32.mxu0 0.0
    %5028 = vmatmul.mubr.f32.gmra.mxu0 %v4479
    %v5029 = vpop.f32.mrf.mxu0
    %v5030 = vadd.f32 0.0, %v5029
    %v5031 = vpop.f32.mrf.mxu0
    %5032 = vdwg.mxu0
    %v5034 = vsel %vm129, %v3858, 0
    %5036 = vmatprep.subr.mxu0 0.0
    %5037 = vmatpush1.xpose.msra.mxu0 0.0
    %5038 = vmatprep.subr.mxu0 0.0
    %5039 = vmatpush1.xpose.msra.mxu0 0.0
    %5040 = vmatprep.subr.mxu0 0.0
    %5041 = vmatpush1.xpose.msra.mxu0 0.0
    %5042 = vmatprep.subr.mxu0 0.0
    %5043 = vmatpush1.xpose.msra.mxu0 0.0
    %5044 = vmatprep.subr.mxu0 0.0
    %5045 = vmatpush1.xpose.msra.mxu0 0.0
    %5046 = vmatprep.subr.mxu0 0.0
    %5047 = vmatpush1.xpose.msra.mxu0 0.0
    %5048 = vmatprep.subr.mxu0 0.0
    %5049 = vmatpush1.xpose.msra.mxu0 0.0
    %5050 = vmatprep.subr.mxu0 0.0
    %5051 = vmatpush1.xpose.msra.mxu0 0.0
    %5052 = vmatprep.subr.mxu0 0.0
    %5053 = vmatpush1.xpose.msra.mxu0 0.0
    %5054 = vmatprep.subr.mxu0 0.0
    %5055 = vmatpush1.xpose.msra.mxu0 0.0
    %5056 = vmatprep.subr.mxu0 0.0
    %5057 = vmatpush1.xpose.msra.mxu0 0.0
    %5058 = vmatprep.subr.mxu0 0.0
    %5059 = vmatpush1.xpose.msra.mxu0 0.0
    %5060 = vmatprep.subr.mxu0 0.0
    %5061 = vmatpush1.xpose.msra.mxu0 0.0
    %5062 = vmatprep.subr.mxu0 0.0
    %5063 = vmatpush1.xpose.msra.mxu0 0.0
    %5064 = vmatprep.subr.mxu0 0.0
    %5065 = vmatpush1.xpose.msra.mxu0 0.0
    %5066 = vmatprep.subr.mxu0 0.0
    %5067 = vmatpush1.xpose.msra.mxu0 %v5034
    %5068 = vmatprep.subr.mxu0 0.0
    %5069 = vmatpush2.xpose.msra.mxu0 0.0
    %5070 = vmatprep.subr.mxu0 0.0
    %5071 = vmatpush2.xpose.msra.mxu0 0.0
    %5072 = vmatprep.subr.mxu0 0.0
    %5073 = vmatpush2.xpose.msra.mxu0 0.0
    %5074 = vmatprep.subr.mxu0 0.0
    %5075 = vmatpush2.xpose.msra.mxu0 0.0
    %5076 = vmatprep.subr.mxu0 0.0
    %5077 = vmatpush2.xpose.msra.mxu0 0.0
    %5078 = vmatprep.subr.mxu0 0.0
    %5079 = vmatpush2.xpose.msra.mxu0 0.0
    %5080 = vmatprep.subr.mxu0 0.0
    %5081 = vmatpush2.xpose.msra.mxu0 0.0
    %5082 = vmatprep.subr.mxu0 0.0
    %5083 = vmatpush2.xpose.msra.mxu0 0.0
    %5084 = vmatprep.subr.mxu0 0.0
    %5085 = vmatpush2.xpose.msra.mxu0 0.0
    %5086 = vmatprep.subr.mxu0 0.0
    %5087 = vmatpush2.xpose.msra.mxu0 0.0
    %5088 = vmatprep.subr.mxu0 0.0
    %5089 = vmatpush2.xpose.msra.mxu0 0.0
    %5090 = vmatprep.subr.mxu0 0.0
    %5091 = vmatpush2.xpose.msra.mxu0 0.0
    %5092 = vmatprep.subr.mxu0 0.0
    %5093 = vmatpush2.xpose.msra.mxu0 0.0
    %5094 = vmatprep.subr.mxu0 0.0
    %5095 = vmatpush2.xpose.msra.mxu0 0.0
    %5096 = vmatprep.subr.mxu0 0.0
    %5097 = vmatpush2.xpose.msra.mxu0 0.0
    %5098 = vmatprep.subr.mxu0 0.0
    %5099 = vmatpush2.xpose.msra.mxu0 0.0
    %5100 = vmatprep.mubr.f32.mxu0 0.0
    %5101 = vmatmul.mubr.f32.gmra.mxu0 %v4560
    %v5102 = vpop.f32.mrf.mxu0
    %v5103 = vadd.f32 0.0, %v5102
    %v5104 = vpop.f32.mrf.mxu0
    %5105 = vmatprep.mubr.f32.mxu0 0.0
    %5106 = vmatmul.mubr.f32.gmra.mxu0 %v4563
    %v5107 = vpop.f32.mrf.mxu0
    %v5108 = vadd.f32 0.0, %v5107
    %v5109 = vpop.f32.mrf.mxu0
    %5110 = vdwg.mxu0
    %v5112 = vsel %vm129, %v3860, 0
    %5114 = vmatprep.subr.mxu0 0.0
    %5115 = vmatpush1.xpose.msra.mxu0 0.0
    %5116 = vmatprep.subr.mxu0 0.0
    %5117 = vmatpush1.xpose.msra.mxu0 0.0
    %5118 = vmatprep.subr.mxu0 0.0
    %5119 = vmatpush1.xpose.msra.mxu0 0.0
    %5120 = vmatprep.subr.mxu0 0.0
    %5121 = vmatpush1.xpose.msra.mxu0 0.0
    %5122 = vmatprep.subr.mxu0 0.0
    %5123 = vmatpush1.xpose.msra.mxu0 0.0
    %5124 = vmatprep.subr.mxu0 0.0
    %5125 = vmatpush1.xpose.msra.mxu0 0.0
    %5126 = vmatprep.subr.mxu0 0.0
    %5127 = vmatpush1.xpose.msra.mxu0 0.0
    %5128 = vmatprep.subr.mxu0 0.0
    %5129 = vmatpush1.xpose.msra.mxu0 0.0
    %5130 = vmatprep.subr.mxu0 0.0
    %5131 = vmatpush1.xpose.msra.mxu0 0.0
    %5132 = vmatprep.subr.mxu0 0.0
    %5133 = vmatpush1.xpose.msra.mxu0 0.0
    %5134 = vmatprep.subr.mxu0 0.0
    %5135 = vmatpush1.xpose.msra.mxu0 0.0
    %5136 = vmatprep.subr.mxu0 0.0
    %5137 = vmatpush1.xpose.msra.mxu0 0.0
    %5138 = vmatprep.subr.mxu0 0.0
    %5139 = vmatpush1.xpose.msra.mxu0 0.0
    %5140 = vmatprep.subr.mxu0 0.0
    %5141 = vmatpush1.xpose.msra.mxu0 0.0
    %5142 = vmatprep.subr.mxu0 0.0
    %5143 = vmatpush1.xpose.msra.mxu0 0.0
    %5144 = vmatprep.subr.mxu0 0.0
    %5145 = vmatpush1.xpose.msra.mxu0 %v5112
    %5146 = vmatprep.subr.mxu0 0.0
    %5147 = vmatpush2.xpose.msra.mxu0 0.0
    %5148 = vmatprep.subr.mxu0 0.0
    %5149 = vmatpush2.xpose.msra.mxu0 0.0
    %5150 = vmatprep.subr.mxu0 0.0
    %5151 = vmatpush2.xpose.msra.mxu0 0.0
    %5152 = vmatprep.subr.mxu0 0.0
    %5153 = vmatpush2.xpose.msra.mxu0 0.0
    %5154 = vmatprep.subr.mxu0 0.0
    %5155 = vmatpush2.xpose.msra.mxu0 0.0
    %5156 = vmatprep.subr.mxu0 0.0
    %5157 = vmatpush2.xpose.msra.mxu0 0.0
    %5158 = vmatprep.subr.mxu0 0.0
    %5159 = vmatpush2.xpose.msra.mxu0 0.0
    %5160 = vmatprep.subr.mxu0 0.0
    %5161 = vmatpush2.xpose.msra.mxu0 0.0
    %5162 = vmatprep.subr.mxu0 0.0
    %5163 = vmatpush2.xpose.msra.mxu0 0.0
    %5164 = vmatprep.subr.mxu0 0.0
    %5165 = vmatpush2.xpose.msra.mxu0 0.0
    %5166 = vmatprep.subr.mxu0 0.0
    %5167 = vmatpush2.xpose.msra.mxu0 0.0
    %5168 = vmatprep.subr.mxu0 0.0
    %5169 = vmatpush2.xpose.msra.mxu0 0.0
    %5170 = vmatprep.subr.mxu0 0.0
    %5171 = vmatpush2.xpose.msra.mxu0 0.0
    %5172 = vmatprep.subr.mxu0 0.0
    %5173 = vmatpush2.xpose.msra.mxu0 0.0
    %5174 = vmatprep.subr.mxu0 0.0
    %5175 = vmatpush2.xpose.msra.mxu0 0.0
    %5176 = vmatprep.subr.mxu0 0.0
    %5177 = vmatpush2.xpose.msra.mxu0 0.0
    %5178 = vmatprep.mubr.f32.mxu0 0.0
    %5179 = vmatmul.mubr.f32.gmra.mxu0 %v4476
    %v5180 = vpop.f32.mrf.mxu0
    %v5181 = vadd.f32 0.0, %v5180
    %v5182 = vpop.f32.mrf.mxu0
    %5183 = vmatprep.mubr.f32.mxu0 0.0
    %5184 = vmatmul.mubr.f32.gmra.mxu0 %v4479
    %v5185 = vpop.f32.mrf.mxu0
    %v5186 = vadd.f32 0.0, %v5185
    %v5187 = vpop.f32.mrf.mxu0
    %5188 = vdwg.mxu0
    %v5190 = vsel %vm129, %v3861, 0
    %5192 = vmatprep.subr.mxu0 0.0
    %5193 = vmatpush1.xpose.msra.mxu0 0.0
    %5194 = vmatprep.subr.mxu0 0.0
    %5195 = vmatpush1.xpose.msra.mxu0 0.0
    %5196 = vmatprep.subr.mxu0 0.0
    %5197 = vmatpush1.xpose.msra.mxu0 0.0
    %5198 = vmatprep.subr.mxu0 0.0
    %5199 = vmatpush1.xpose.msra.mxu0 0.0
    %5200 = vmatprep.subr.mxu0 0.0
    %5201 = vmatpush1.xpose.msra.mxu0 0.0
    %5202 = vmatprep.subr.mxu0 0.0
    %5203 = vmatpush1.xpose.msra.mxu0 0.0
    %5204 = vmatprep.subr.mxu0 0.0
    %5205 = vmatpush1.xpose.msra.mxu0 0.0
    %5206 = vmatprep.subr.mxu0 0.0
    %5207 = vmatpush1.xpose.msra.mxu0 0.0
    %5208 = vmatprep.subr.mxu0 0.0
    %5209 = vmatpush1.xpose.msra.mxu0 0.0
    %5210 = vmatprep.subr.mxu0 0.0
    %5211 = vmatpush1.xpose.msra.mxu0 0.0
    %5212 = vmatprep.subr.mxu0 0.0
    %5213 = vmatpush1.xpose.msra.mxu0 0.0
    %5214 = vmatprep.subr.mxu0 0.0
    %5215 = vmatpush1.xpose.msra.mxu0 0.0
    %5216 = vmatprep.subr.mxu0 0.0
    %5217 = vmatpush1.xpose.msra.mxu0 0.0
    %5218 = vmatprep.subr.mxu0 0.0
    %5219 = vmatpush1.xpose.msra.mxu0 0.0
    %5220 = vmatprep.subr.mxu0 0.0
    %5221 = vmatpush1.xpose.msra.mxu0 0.0
    %5222 = vmatprep.subr.mxu0 0.0
    %5223 = vmatpush1.xpose.msra.mxu0 %v5190
    %5224 = vmatprep.subr.mxu0 0.0
    %5225 = vmatpush2.xpose.msra.mxu0 0.0
    %5226 = vmatprep.subr.mxu0 0.0
    %5227 = vmatpush2.xpose.msra.mxu0 0.0
    %5228 = vmatprep.subr.mxu0 0.0
    %5229 = vmatpush2.xpose.msra.mxu0 0.0
    %5230 = vmatprep.subr.mxu0 0.0
    %5231 = vmatpush2.xpose.msra.mxu0 0.0
    %5232 = vmatprep.subr.mxu0 0.0
    %5233 = vmatpush2.xpose.msra.mxu0 0.0
    %5234 = vmatprep.subr.mxu0 0.0
    %5235 = vmatpush2.xpose.msra.mxu0 0.0
    %5236 = vmatprep.subr.mxu0 0.0
    %5237 = vmatpush2.xpose.msra.mxu0 0.0
    %5238 = vmatprep.subr.mxu0 0.0
    %5239 = vmatpush2.xpose.msra.mxu0 0.0
    %5240 = vmatprep.subr.mxu0 0.0
    %5241 = vmatpush2.xpose.msra.mxu0 0.0
    %5242 = vmatprep.subr.mxu0 0.0
    %5243 = vmatpush2.xpose.msra.mxu0 0.0
    %5244 = vmatprep.subr.mxu0 0.0
    %5245 = vmatpush2.xpose.msra.mxu0 0.0
    %5246 = vmatprep.subr.mxu0 0.0
    %5247 = vmatpush2.xpose.msra.mxu0 0.0
    %5248 = vmatprep.subr.mxu0 0.0
    %5249 = vmatpush2.xpose.msra.mxu0 0.0
    %5250 = vmatprep.subr.mxu0 0.0
    %5251 = vmatpush2.xpose.msra.mxu0 0.0
    %5252 = vmatprep.subr.mxu0 0.0
    %5253 = vmatpush2.xpose.msra.mxu0 0.0
    %5254 = vmatprep.subr.mxu0 0.0
    %5255 = vmatpush2.xpose.msra.mxu0 0.0
    %5256 = vmatprep.mubr.f32.mxu0 0.0
    %5257 = vmatmul.mubr.f32.gmra.mxu0 %v4560
    %v5258 = vpop.f32.mrf.mxu0
    %v5259 = vadd.f32 0.0, %v5258
    %v5260 = vpop.f32.mrf.mxu0
    %5261 = vmatprep.mubr.f32.mxu0 0.0
    %5262 = vmatmul.mubr.f32.gmra.mxu0 %v4563
    %v5263 = vpop.f32.mrf.mxu0
    %v5264 = vadd.f32 0.0, %v5263
    %v5265 = vpop.f32.mrf.mxu0
    %5266 = vdwg.mxu0
    %v5268 = vsel %vm129, %v3862, 0
    %5270 = vmatprep.subr.mxu0 0.0
    %5271 = vmatpush1.xpose.msra.mxu0 0.0
    %5272 = vmatprep.subr.mxu0 0.0
    %5273 = vmatpush1.xpose.msra.mxu0 0.0
    %5274 = vmatprep.subr.mxu0 0.0
    %5275 = vmatpush1.xpose.msra.mxu0 0.0
    %5276 = vmatprep.subr.mxu0 0.0
    %5277 = vmatpush1.xpose.msra.mxu0 0.0
    %5278 = vmatprep.subr.mxu0 0.0
    %5279 = vmatpush1.xpose.msra.mxu0 0.0
    %5280 = vmatprep.subr.mxu0 0.0
    %5281 = vmatpush1.xpose.msra.mxu0 0.0
    %5282 = vmatprep.subr.mxu0 0.0
    %5283 = vmatpush1.xpose.msra.mxu0 0.0
    %5284 = vmatprep.subr.mxu0 0.0
    %5285 = vmatpush1.xpose.msra.mxu0 0.0
    %5286 = vmatprep.subr.mxu0 0.0
    %5287 = vmatpush1.xpose.msra.mxu0 0.0
    %5288 = vmatprep.subr.mxu0 0.0
    %5289 = vmatpush1.xpose.msra.mxu0 0.0
    %5290 = vmatprep.subr.mxu0 0.0
    %5291 = vmatpush1.xpose.msra.mxu0 0.0
    %5292 = vmatprep.subr.mxu0 0.0
    %5293 = vmatpush1.xpose.msra.mxu0 0.0
    %5294 = vmatprep.subr.mxu0 0.0
    %5295 = vmatpush1.xpose.msra.mxu0 0.0
    %5296 = vmatprep.subr.mxu0 0.0
    %5297 = vmatpush1.xpose.msra.mxu0 0.0
    %5298 = vmatprep.subr.mxu0 0.0
    %5299 = vmatpush1.xpose.msra.mxu0 0.0
    %5300 = vmatprep.subr.mxu0 0.0
    %5301 = vmatpush1.xpose.msra.mxu0 %v5268
    %5302 = vmatprep.subr.mxu0 0.0
    %5303 = vmatpush2.xpose.msra.mxu0 0.0
    %5304 = vmatprep.subr.mxu0 0.0
    %5305 = vmatpush2.xpose.msra.mxu0 0.0
    %5306 = vmatprep.subr.mxu0 0.0
    %5307 = vmatpush2.xpose.msra.mxu0 0.0
    %5308 = vmatprep.subr.mxu0 0.0
    %5309 = vmatpush2.xpose.msra.mxu0 0.0
    %5310 = vmatprep.subr.mxu0 0.0
    %5311 = vmatpush2.xpose.msra.mxu0 0.0
    %5312 = vmatprep.subr.mxu0 0.0
    %5313 = vmatpush2.xpose.msra.mxu0 0.0
    %5314 = vmatprep.subr.mxu0 0.0
    %5315 = vmatpush2.xpose.msra.mxu0 0.0
    %5316 = vmatprep.subr.mxu0 0.0
    %5317 = vmatpush2.xpose.msra.mxu0 0.0
    %5318 = vmatprep.subr.mxu0 0.0
    %5319 = vmatpush2.xpose.msra.mxu0 0.0
    %5320 = vmatprep.subr.mxu0 0.0
    %5321 = vmatpush2.xpose.msra.mxu0 0.0
    %5322 = vmatprep.subr.mxu0 0.0
    %5323 = vmatpush2.xpose.msra.mxu0 0.0
    %5324 = vmatprep.subr.mxu0 0.0
    %5325 = vmatpush2.xpose.msra.mxu0 0.0
    %5326 = vmatprep.subr.mxu0 0.0
    %5327 = vmatpush2.xpose.msra.mxu0 0.0
    %5328 = vmatprep.subr.mxu0 0.0
    %5329 = vmatpush2.xpose.msra.mxu0 0.0
    %5330 = vmatprep.subr.mxu0 0.0
    %5331 = vmatpush2.xpose.msra.mxu0 0.0
    %5332 = vmatprep.subr.mxu0 0.0
    %5333 = vmatpush2.xpose.msra.mxu0 0.0
    %5334 = vmatprep.mubr.f32.mxu0 0.0
    %5335 = vmatmul.mubr.f32.gmra.mxu0 %v4476
    %v5336 = vpop.f32.mrf.mxu0
    %v5337 = vadd.f32 0.0, %v5336
    %v5338 = vpop.f32.mrf.mxu0
    %5339 = vmatprep.mubr.f32.mxu0 0.0
    %5340 = vmatmul.mubr.f32.gmra.mxu0 %v4479
    %v5341 = vpop.f32.mrf.mxu0
    %v5342 = vadd.f32 0.0, %v5341
    %v5343 = vpop.f32.mrf.mxu0
    %5344 = vdwg.mxu0
    %v5346 = vsel %vm129, %v3863, 0
    %5348 = vmatprep.subr.mxu0 0.0
    %5349 = vmatpush1.xpose.msra.mxu0 0.0
    %5350 = vmatprep.subr.mxu0 0.0
    %5351 = vmatpush1.xpose.msra.mxu0 0.0
    %5352 = vmatprep.subr.mxu0 0.0
    %5353 = vmatpush1.xpose.msra.mxu0 0.0
    %5354 = vmatprep.subr.mxu0 0.0
    %5355 = vmatpush1.xpose.msra.mxu0 0.0
    %5356 = vmatprep.subr.mxu0 0.0
    %5357 = vmatpush1.xpose.msra.mxu0 0.0
    %5358 = vmatprep.subr.mxu0 0.0
    %5359 = vmatpush1.xpose.msra.mxu0 0.0
    %5360 = vmatprep.subr.mxu0 0.0
    %5361 = vmatpush1.xpose.msra.mxu0 0.0
    %5362 = vmatprep.subr.mxu0 0.0
    %5363 = vmatpush1.xpose.msra.mxu0 0.0
    %5364 = vmatprep.subr.mxu0 0.0
    %5365 = vmatpush1.xpose.msra.mxu0 0.0
    %5366 = vmatprep.subr.mxu0 0.0
    %5367 = vmatpush1.xpose.msra.mxu0 0.0
    %5368 = vmatprep.subr.mxu0 0.0
    %5369 = vmatpush1.xpose.msra.mxu0 0.0
    %5370 = vmatprep.subr.mxu0 0.0
    %5371 = vmatpush1.xpose.msra.mxu0 0.0
    %5372 = vmatprep.subr.mxu0 0.0
    %5373 = vmatpush1.xpose.msra.mxu0 0.0
    %5374 = vmatprep.subr.mxu0 0.0
    %5375 = vmatpush1.xpose.msra.mxu0 0.0
    %5376 = vmatprep.subr.mxu0 0.0
    %5377 = vmatpush1.xpose.msra.mxu0 0.0
    %5378 = vmatprep.subr.mxu0 0.0
    %5379 = vmatpush1.xpose.msra.mxu0 %v5346
    %5380 = vmatprep.subr.mxu0 0.0
    %5381 = vmatpush2.xpose.msra.mxu0 0.0
    %5382 = vmatprep.subr.mxu0 0.0
    %5383 = vmatpush2.xpose.msra.mxu0 0.0
    %5384 = vmatprep.subr.mxu0 0.0
    %5385 = vmatpush2.xpose.msra.mxu0 0.0
    %5386 = vmatprep.subr.mxu0 0.0
    %5387 = vmatpush2.xpose.msra.mxu0 0.0
    %5388 = vmatprep.subr.mxu0 0.0
    %5389 = vmatpush2.xpose.msra.mxu0 0.0
    %5390 = vmatprep.subr.mxu0 0.0
    %5391 = vmatpush2.xpose.msra.mxu0 0.0
    %5392 = vmatprep.subr.mxu0 0.0
    %5393 = vmatpush2.xpose.msra.mxu0 0.0
    %5394 = vmatprep.subr.mxu0 0.0
    %5395 = vmatpush2.xpose.msra.mxu0 0.0
    %5396 = vmatprep.subr.mxu0 0.0
    %5397 = vmatpush2.xpose.msra.mxu0 0.0
    %5398 = vmatprep.subr.mxu0 0.0
    %5399 = vmatpush2.xpose.msra.mxu0 0.0
    %5400 = vmatprep.subr.mxu0 0.0
    %5401 = vmatpush2.xpose.msra.mxu0 0.0
    %5402 = vmatprep.subr.mxu0 0.0
    %5403 = vmatpush2.xpose.msra.mxu0 0.0
    %5404 = vmatprep.subr.mxu0 0.0
    %5405 = vmatpush2.xpose.msra.mxu0 0.0
    %5406 = vmatprep.subr.mxu0 0.0
    %5407 = vmatpush2.xpose.msra.mxu0 0.0
    %5408 = vmatprep.subr.mxu0 0.0
    %5409 = vmatpush2.xpose.msra.mxu0 0.0
    %5410 = vmatprep.subr.mxu0 0.0
    %5411 = vmatpush2.xpose.msra.mxu0 0.0
    %5412 = vmatprep.mubr.f32.mxu0 0.0
    %5413 = vmatmul.mubr.f32.gmra.mxu0 %v4560
    %v5414 = vpop.f32.mrf.mxu0
    %v5415 = vadd.f32 0.0, %v5414
    %v5416 = vpop.f32.mrf.mxu0
    %5417 = vmatprep.mubr.f32.mxu0 0.0
    %5418 = vmatmul.mubr.f32.gmra.mxu0 %v4563
    %v5419 = vpop.f32.mrf.mxu0
    %v5420 = vadd.f32 0.0, %v5419
    %v5421 = vpop.f32.mrf.mxu0
    %5422 = vdwg.mxu0
    %v5424 = vsel %vm129, %v3864, 0
    %5426 = vmatprep.subr.mxu0 0.0
    %5427 = vmatpush1.xpose.msra.mxu0 0.0
    %5428 = vmatprep.subr.mxu0 0.0
    %5429 = vmatpush1.xpose.msra.mxu0 0.0
    %5430 = vmatprep.subr.mxu0 0.0
    %5431 = vmatpush1.xpose.msra.mxu0 0.0
    %5432 = vmatprep.subr.mxu0 0.0
    %5433 = vmatpush1.xpose.msra.mxu0 0.0
    %5434 = vmatprep.subr.mxu0 0.0
    %5435 = vmatpush1.xpose.msra.mxu0 0.0
    %5436 = vmatprep.subr.mxu0 0.0
    %5437 = vmatpush1.xpose.msra.mxu0 0.0
    %5438 = vmatprep.subr.mxu0 0.0
    %5439 = vmatpush1.xpose.msra.mxu0 0.0
    %5440 = vmatprep.subr.mxu0 0.0
    %5441 = vmatpush1.xpose.msra.mxu0 0.0
    %5442 = vmatprep.subr.mxu0 0.0
    %5443 = vmatpush1.xpose.msra.mxu0 0.0
    %5444 = vmatprep.subr.mxu0 0.0
    %5445 = vmatpush1.xpose.msra.mxu0 0.0
    %5446 = vmatprep.subr.mxu0 0.0
    %5447 = vmatpush1.xpose.msra.mxu0 0.0
    %5448 = vmatprep.subr.mxu0 0.0
    %5449 = vmatpush1.xpose.msra.mxu0 0.0
    %5450 = vmatprep.subr.mxu0 0.0
    %5451 = vmatpush1.xpose.msra.mxu0 0.0
    %5452 = vmatprep.subr.mxu0 0.0
    %5453 = vmatpush1.xpose.msra.mxu0 0.0
    %5454 = vmatprep.subr.mxu0 0.0
    %5455 = vmatpush1.xpose.msra.mxu0 0.0
    %5456 = vmatprep.subr.mxu0 0.0
    %5457 = vmatpush1.xpose.msra.mxu0 %v5424
    %5458 = vmatprep.subr.mxu0 0.0
    %5459 = vmatpush2.xpose.msra.mxu0 0.0
    %5460 = vmatprep.subr.mxu0 0.0
    %5461 = vmatpush2.xpose.msra.mxu0 0.0
    %5462 = vmatprep.subr.mxu0 0.0
    %5463 = vmatpush2.xpose.msra.mxu0 0.0
    %5464 = vmatprep.subr.mxu0 0.0
    %5465 = vmatpush2.xpose.msra.mxu0 0.0
    %5466 = vmatprep.subr.mxu0 0.0
    %5467 = vmatpush2.xpose.msra.mxu0 0.0
    %5468 = vmatprep.subr.mxu0 0.0
    %5469 = vmatpush2.xpose.msra.mxu0 0.0
    %5470 = vmatprep.subr.mxu0 0.0
    %5471 = vmatpush2.xpose.msra.mxu0 0.0
    %5472 = vmatprep.subr.mxu0 0.0
    %5473 = vmatpush2.xpose.msra.mxu0 0.0
    %5474 = vmatprep.subr.mxu0 0.0
    %5475 = vmatpush2.xpose.msra.mxu0 0.0
    %5476 = vmatprep.subr.mxu0 0.0
    %5477 = vmatpush2.xpose.msra.mxu0 0.0
    %5478 = vmatprep.subr.mxu0 0.0
    %5479 = vmatpush2.xpose.msra.mxu0 0.0
    %5480 = vmatprep.subr.mxu0 0.0
    %5481 = vmatpush2.xpose.msra.mxu0 0.0
    %5482 = vmatprep.subr.mxu0 0.0
    %5483 = vmatpush2.xpose.msra.mxu0 0.0
    %5484 = vmatprep.subr.mxu0 0.0
    %5485 = vmatpush2.xpose.msra.mxu0 0.0
    %5486 = vmatprep.subr.mxu0 0.0
    %5487 = vmatpush2.xpose.msra.mxu0 0.0
    %5488 = vmatprep.subr.mxu0 0.0
    %5489 = vmatpush2.xpose.msra.mxu0 0.0
    %5490 = vmatprep.mubr.f32.mxu0 0.0
    %5491 = vmatmul.mubr.f32.gmra.mxu0 %v4476
    %v5492 = vpop.f32.mrf.mxu0
    %v5493 = vadd.f32 0.0, %v5492
    %v5494 = vpop.f32.mrf.mxu0
    %5495 = vmatprep.mubr.f32.mxu0 0.0
    %5496 = vmatmul.mubr.f32.gmra.mxu0 %v4479
    %v5497 = vpop.f32.mrf.mxu0
    %v5498 = vadd.f32 0.0, %v5497
    %v5499 = vpop.f32.mrf.mxu0
    %5500 = vdwg.mxu0
    %v5502 = vsel %vm129, %v3865, 0
    %5504 = vmatprep.subr.mxu0 0.0
    %5505 = vmatpush1.xpose.msra.mxu0 0.0
    %5506 = vmatprep.subr.mxu0 0.0
    %5507 = vmatpush1.xpose.msra.mxu0 0.0
    %5508 = vmatprep.subr.mxu0 0.0
    %5509 = vmatpush1.xpose.msra.mxu0 0.0
    %5510 = vmatprep.subr.mxu0 0.0
    %5511 = vmatpush1.xpose.msra.mxu0 0.0
    %5512 = vmatprep.subr.mxu0 0.0
    %5513 = vmatpush1.xpose.msra.mxu0 0.0
    %5514 = vmatprep.subr.mxu0 0.0
    %5515 = vmatpush1.xpose.msra.mxu0 0.0
    %5516 = vmatprep.subr.mxu0 0.0
    %5517 = vmatpush1.xpose.msra.mxu0 0.0
    %5518 = vmatprep.subr.mxu0 0.0
    %5519 = vmatpush1.xpose.msra.mxu0 0.0
    %5520 = vmatprep.subr.mxu0 0.0
    %5521 = vmatpush1.xpose.msra.mxu0 0.0
    %5522 = vmatprep.subr.mxu0 0.0
    %5523 = vmatpush1.xpose.msra.mxu0 0.0
    %5524 = vmatprep.subr.mxu0 0.0
    %5525 = vmatpush1.xpose.msra.mxu0 0.0
    %5526 = vmatprep.subr.mxu0 0.0
    %5527 = vmatpush1.xpose.msra.mxu0 0.0
    %5528 = vmatprep.subr.mxu0 0.0
    %5529 = vmatpush1.xpose.msra.mxu0 0.0
    %5530 = vmatprep.subr.mxu0 0.0
    %5531 = vmatpush1.xpose.msra.mxu0 0.0
    %5532 = vmatprep.subr.mxu0 0.0
    %5533 = vmatpush1.xpose.msra.mxu0 0.0
    %5534 = vmatprep.subr.mxu0 0.0
    %5535 = vmatpush1.xpose.msra.mxu0 %v5502
    %5536 = vmatprep.subr.mxu0 0.0
    %5537 = vmatpush2.xpose.msra.mxu0 0.0
    %5538 = vmatprep.subr.mxu0 0.0
    %5539 = vmatpush2.xpose.msra.mxu0 0.0
    %5540 = vmatprep.subr.mxu0 0.0
    %5541 = vmatpush2.xpose.msra.mxu0 0.0
    %5542 = vmatprep.subr.mxu0 0.0
    %5543 = vmatpush2.xpose.msra.mxu0 0.0
    %5544 = vmatprep.subr.mxu0 0.0
    %5545 = vmatpush2.xpose.msra.mxu0 0.0
    %5546 = vmatprep.subr.mxu0 0.0
    %5547 = vmatpush2.xpose.msra.mxu0 0.0
    %5548 = vmatprep.subr.mxu0 0.0
    %5549 = vmatpush2.xpose.msra.mxu0 0.0
    %5550 = vmatprep.subr.mxu0 0.0
    %5551 = vmatpush2.xpose.msra.mxu0 0.0
    %5552 = vmatprep.subr.mxu0 0.0
    %5553 = vmatpush2.xpose.msra.mxu0 0.0
    %5554 = vmatprep.subr.mxu0 0.0
    %5555 = vmatpush2.xpose.msra.mxu0 0.0
    %5556 = vmatprep.subr.mxu0 0.0
    %5557 = vmatpush2.xpose.msra.mxu0 0.0
    %5558 = vmatprep.subr.mxu0 0.0
    %5559 = vmatpush2.xpose.msra.mxu0 0.0
    %5560 = vmatprep.subr.mxu0 0.0
    %5561 = vmatpush2.xpose.msra.mxu0 0.0
    %5562 = vmatprep.subr.mxu0 0.0
    %5563 = vmatpush2.xpose.msra.mxu0 0.0
    %5564 = vmatprep.subr.mxu0 0.0
    %5565 = vmatpush2.xpose.msra.mxu0 0.0
    %5566 = vmatprep.subr.mxu0 0.0
    %5567 = vmatpush2.xpose.msra.mxu0 0.0
    %5568 = vmatprep.mubr.f32.mxu0 0.0
    %5569 = vmatmul.mubr.f32.gmra.mxu0 %v4560
    %v5570 = vpop.f32.mrf.mxu0
    %v5571 = vadd.f32 0.0, %v5570
    %v5572 = vpop.f32.mrf.mxu0
    %5573 = vmatprep.mubr.f32.mxu0 0.0
    %5574 = vmatmul.mubr.f32.gmra.mxu0 %v4563
    %v5575 = vpop.f32.mrf.mxu0
    %v5576 = vadd.f32 0.0, %v5575
    %v5577 = vpop.f32.mrf.mxu0
    %5578 = vdwg.mxu0
    %v5580 = vsel %vm129, %v3866, 0
    %5582 = vmatprep.subr.mxu0 0.0
    %5583 = vmatpush1.xpose.msra.mxu0 0.0
    %5584 = vmatprep.subr.mxu0 0.0
    %5585 = vmatpush1.xpose.msra.mxu0 0.0
    %5586 = vmatprep.subr.mxu0 0.0
    %5587 = vmatpush1.xpose.msra.mxu0 0.0
    %5588 = vmatprep.subr.mxu0 0.0
    %5589 = vmatpush1.xpose.msra.mxu0 0.0
    %5590 = vmatprep.subr.mxu0 0.0
    %5591 = vmatpush1.xpose.msra.mxu0 0.0
    %5592 = vmatprep.subr.mxu0 0.0
    %5593 = vmatpush1.xpose.msra.mxu0 0.0
    %5594 = vmatprep.subr.mxu0 0.0
    %5595 = vmatpush1.xpose.msra.mxu0 0.0
    %5596 = vmatprep.subr.mxu0 0.0
    %5597 = vmatpush1.xpose.msra.mxu0 0.0
    %5598 = vmatprep.subr.mxu0 0.0
    %5599 = vmatpush1.xpose.msra.mxu0 0.0
    %5600 = vmatprep.subr.mxu0 0.0
    %5601 = vmatpush1.xpose.msra.mxu0 0.0
    %5602 = vmatprep.subr.mxu0 0.0
    %5603 = vmatpush1.xpose.msra.mxu0 0.0
    %5604 = vmatprep.subr.mxu0 0.0
    %5605 = vmatpush1.xpose.msra.mxu0 0.0
    %5606 = vmatprep.subr.mxu0 0.0
    %5607 = vmatpush1.xpose.msra.mxu0 0.0
    %5608 = vmatprep.subr.mxu0 0.0
    %5609 = vmatpush1.xpose.msra.mxu0 0.0
    %5610 = vmatprep.subr.mxu0 0.0
    %5611 = vmatpush1.xpose.msra.mxu0 0.0
    %5612 = vmatprep.subr.mxu0 0.0
    %5613 = vmatpush1.xpose.msra.mxu0 %v5580
    %5614 = vmatprep.subr.mxu0 0.0
    %5615 = vmatpush2.xpose.msra.mxu0 0.0
    %5616 = vmatprep.subr.mxu0 0.0
    %5617 = vmatpush2.xpose.msra.mxu0 0.0
    %5618 = vmatprep.subr.mxu0 0.0
    %5619 = vmatpush2.xpose.msra.mxu0 0.0
    %5620 = vmatprep.subr.mxu0 0.0
    %5621 = vmatpush2.xpose.msra.mxu0 0.0
    %5622 = vmatprep.subr.mxu0 0.0
    %5623 = vmatpush2.xpose.msra.mxu0 0.0
    %5624 = vmatprep.subr.mxu0 0.0
    %5625 = vmatpush2.xpose.msra.mxu0 0.0
    %5626 = vmatprep.subr.mxu0 0.0
    %5627 = vmatpush2.xpose.msra.mxu0 0.0
    %5628 = vmatprep.subr.mxu0 0.0
    %5629 = vmatpush2.xpose.msra.mxu0 0.0
    %5630 = vmatprep.subr.mxu0 0.0
    %5631 = vmatpush2.xpose.msra.mxu0 0.0
    %5632 = vmatprep.subr.mxu0 0.0
    %5633 = vmatpush2.xpose.msra.mxu0 0.0
    %5634 = vmatprep.subr.mxu0 0.0
    %5635 = vmatpush2.xpose.msra.mxu0 0.0
    %5636 = vmatprep.subr.mxu0 0.0
    %5637 = vmatpush2.xpose.msra.mxu0 0.0
    %5638 = vmatprep.subr.mxu0 0.0
    %5639 = vmatpush2.xpose.msra.mxu0 0.0
    %5640 = vmatprep.subr.mxu0 0.0
    %5641 = vmatpush2.xpose.msra.mxu0 0.0
    %5642 = vmatprep.subr.mxu0 0.0
    %5643 = vmatpush2.xpose.msra.mxu0 0.0
    %5644 = vmatprep.subr.mxu0 0.0
    %5645 = vmatpush2.xpose.msra.mxu0 0.0
    %5646 = vmatprep.mubr.f32.mxu0 0.0
    %5647 = vmatmul.mubr.f32.gmra.mxu0 %v4476
    %v5648 = vpop.f32.mrf.mxu0
    %v5649 = vadd.f32 0.0, %v5648
    %v5650 = vpop.f32.mrf.mxu0
    %5651 = vmatprep.mubr.f32.mxu0 0.0
    %5652 = vmatmul.mubr.f32.gmra.mxu0 %v4479
    %v5653 = vpop.f32.mrf.mxu0
    %v5654 = vadd.f32 0.0, %v5653
    %v5655 = vpop.f32.mrf.mxu0
    %5656 = vdwg.mxu0
    %v5658 = vsel %vm129, %v3867, 0
    %5660 = vmatprep.subr.mxu0 0.0
    %5661 = vmatpush1.xpose.msra.mxu0 0.0
    %5662 = vmatprep.subr.mxu0 0.0
    %5663 = vmatpush1.xpose.msra.mxu0 0.0
    %5664 = vmatprep.subr.mxu0 0.0
    %5665 = vmatpush1.xpose.msra.mxu0 0.0
    %5666 = vmatprep.subr.mxu0 0.0
    %5667 = vmatpush1.xpose.msra.mxu0 0.0
    %5668 = vmatprep.subr.mxu0 0.0
    %5669 = vmatpush1.xpose.msra.mxu0 0.0
    %5670 = vmatprep.subr.mxu0 0.0
    %5671 = vmatpush1.xpose.msra.mxu0 0.0
    %5672 = vmatprep.subr.mxu0 0.0
    %5673 = vmatpush1.xpose.msra.mxu0 0.0
    %5674 = vmatprep.subr.mxu0 0.0
    %5675 = vmatpush1.xpose.msra.mxu0 0.0
    %5676 = vmatprep.subr.mxu0 0.0
    %5677 = vmatpush1.xpose.msra.mxu0 0.0
    %5678 = vmatprep.subr.mxu0 0.0
    %5679 = vmatpush1.xpose.msra.mxu0 0.0
    %5680 = vmatprep.subr.mxu0 0.0
    %5681 = vmatpush1.xpose.msra.mxu0 0.0
    %5682 = vmatprep.subr.mxu0 0.0
    %5683 = vmatpush1.xpose.msra.mxu0 0.0
    %5684 = vmatprep.subr.mxu0 0.0
    %5685 = vmatpush1.xpose.msra.mxu0 0.0
    %5686 = vmatprep.subr.mxu0 0.0
    %5687 = vmatpush1.xpose.msra.mxu0 0.0
    %5688 = vmatprep.subr.mxu0 0.0
    %5689 = vmatpush1.xpose.msra.mxu0 0.0
    %5690 = vmatprep.subr.mxu0 0.0
    %5691 = vmatpush1.xpose.msra.mxu0 %v5658
    %5692 = vmatprep.subr.mxu0 0.0
    %5693 = vmatpush2.xpose.msra.mxu0 0.0
    %5694 = vmatprep.subr.mxu0 0.0
    %5695 = vmatpush2.xpose.msra.mxu0 0.0
    %5696 = vmatprep.subr.mxu0 0.0
    %5697 = vmatpush2.xpose.msra.mxu0 0.0
    %5698 = vmatprep.subr.mxu0 0.0
    %5699 = vmatpush2.xpose.msra.mxu0 0.0
    %5700 = vmatprep.subr.mxu0 0.0
    %5701 = vmatpush2.xpose.msra.mxu0 0.0
    %5702 = vmatprep.subr.mxu0 0.0
    %5703 = vmatpush2.xpose.msra.mxu0 0.0
    %5704 = vmatprep.subr.mxu0 0.0
    %5705 = vmatpush2.xpose.msra.mxu0 0.0
    %5706 = vmatprep.subr.mxu0 0.0
    %5707 = vmatpush2.xpose.msra.mxu0 0.0
    %5708 = vmatprep.subr.mxu0 0.0
    %5709 = vmatpush2.xpose.msra.mxu0 0.0
    %5710 = vmatprep.subr.mxu0 0.0
    %5711 = vmatpush2.xpose.msra.mxu0 0.0
    %5712 = vmatprep.subr.mxu0 0.0
    %5713 = vmatpush2.xpose.msra.mxu0 0.0
    %5714 = vmatprep.subr.mxu0 0.0
    %5715 = vmatpush2.xpose.msra.mxu0 0.0
    %5716 = vmatprep.subr.mxu0 0.0
    %5717 = vmatpush2.xpose.msra.mxu0 0.0
    %5718 = vmatprep.subr.mxu0 0.0
    %5719 = vmatpush2.xpose.msra.mxu0 0.0
    %5720 = vmatprep.subr.mxu0 0.0
    %5721 = vmatpush2.xpose.msra.mxu0 0.0
    %5722 = vmatprep.subr.mxu0 0.0
    %5723 = vmatpush2.xpose.msra.mxu0 0.0
    %5724 = vmatprep.mubr.f32.mxu0 0.0
    %5725 = vmatmul.mubr.f32.gmra.mxu0 %v4560
    %v5726 = vpop.f32.mrf.mxu0
    %v5727 = vadd.f32 0.0, %v5726
    %v5728 = vpop.f32.mrf.mxu0
    %5729 = vmatprep.mubr.f32.mxu0 0.0
    %5730 = vmatmul.mubr.f32.gmra.mxu0 %v4563
    %v5731 = vpop.f32.mrf.mxu0
    %v5732 = vadd.f32 0.0, %v5731
    %v5733 = vpop.f32.mrf.mxu0
    %5734 = vdwg.mxu0
    %v5736 = vsel %vm1888, %v3958, 0
    %v5739 = vsel %vm1888, %v4551, 0
    %v5742 = vsel %vm1888, %v4556, 0
    %5744 = vmatprep.subr.mxu0 0.0
    %5745 = vmatpush1.xpose.msra.mxu0 0.0
    %5746 = vmatprep.subr.mxu0 0.0
    %5747 = vmatpush1.xpose.msra.mxu0 0.0
    %5748 = vmatprep.subr.mxu0 0.0
    %5749 = vmatpush1.xpose.msra.mxu0 0.0
    %5750 = vmatprep.subr.mxu0 0.0
    %5751 = vmatpush1.xpose.msra.mxu0 0.0
    %5752 = vmatprep.subr.mxu0 0.0
    %5753 = vmatpush1.xpose.msra.mxu0 0.0
    %5754 = vmatprep.subr.mxu0 0.0
    %5755 = vmatpush1.xpose.msra.mxu0 0.0
    %5756 = vmatprep.subr.mxu0 0.0
    %5757 = vmatpush1.xpose.msra.mxu0 0.0
    %5758 = vmatprep.subr.mxu0 0.0
    %5759 = vmatpush1.xpose.msra.mxu0 0.0
    %5760 = vmatprep.subr.mxu0 0.0
    %5761 = vmatpush1.xpose.msra.mxu0 0.0
    %5762 = vmatprep.subr.mxu0 0.0
    %5763 = vmatpush1.xpose.msra.mxu0 0.0
    %5764 = vmatprep.subr.mxu0 0.0
    %5765 = vmatpush1.xpose.msra.mxu0 0.0
    %5766 = vmatprep.subr.mxu0 0.0
    %5767 = vmatpush1.xpose.msra.mxu0 0.0
    %5768 = vmatprep.subr.mxu0 0.0
    %5769 = vmatpush1.xpose.msra.mxu0 0.0
    %5770 = vmatprep.subr.mxu0 0.0
    %5771 = vmatpush1.xpose.msra.mxu0 0.0
    %5772 = vmatprep.subr.mxu0 0.0
    %5773 = vmatpush1.xpose.msra.mxu0 %v5742
    %5774 = vmatprep.subr.mxu0 0.0
    %5775 = vmatpush1.xpose.msra.mxu0 %v5739
    %5776 = vmatprep.subr.mxu0 0.0
    %5777 = vmatpush2.xpose.msra.mxu0 0.0
    %5778 = vmatprep.subr.mxu0 0.0
    %5779 = vmatpush2.xpose.msra.mxu0 0.0
    %5780 = vmatprep.subr.mxu0 0.0
    %5781 = vmatpush2.xpose.msra.mxu0 0.0
    %5782 = vmatprep.subr.mxu0 0.0
    %5783 = vmatpush2.xpose.msra.mxu0 0.0
    %5784 = vmatprep.subr.mxu0 0.0
    %5785 = vmatpush2.xpose.msra.mxu0 0.0
    %5786 = vmatprep.subr.mxu0 0.0
    %5787 = vmatpush2.xpose.msra.mxu0 0.0
    %5788 = vmatprep.subr.mxu0 0.0
    %5789 = vmatpush2.xpose.msra.mxu0 0.0
    %5790 = vmatprep.subr.mxu0 0.0
    %5791 = vmatpush2.xpose.msra.mxu0 0.0
    %5792 = vmatprep.subr.mxu0 0.0
    %5793 = vmatpush2.xpose.msra.mxu0 0.0
    %5794 = vmatprep.subr.mxu0 0.0
    %5795 = vmatpush2.xpose.msra.mxu0 0.0
    %5796 = vmatprep.subr.mxu0 0.0
    %5797 = vmatpush2.xpose.msra.mxu0 0.0
    %5798 = vmatprep.subr.mxu0 0.0
    %5799 = vmatpush2.xpose.msra.mxu0 0.0
    %5800 = vmatprep.subr.mxu0 0.0
    %5801 = vmatpush2.xpose.msra.mxu0 0.0
    %5802 = vmatprep.subr.mxu0 0.0
    %5803 = vmatpush2.xpose.msra.mxu0 0.0
    %5804 = vmatprep.subr.mxu0 0.0
    %5805 = vmatpush2.xpose.msra.mxu0 0.0
    %5806 = vmatprep.subr.mxu0 0.0
    %5807 = vmatpush2.xpose.msra.mxu0 0.0
    %5808 = vmatprep.mubr.f32.mxu0 0.0
    %5809 = vmatmul.mubr.f32.gmra.mxu0 %v5736
    %v5810 = vpop.f32.mrf.mxu0
    %v5811 = vadd.f32 0.0, %v5810
    %v5812 = vpop.f32.mrf.mxu0
    %5813 = vdwg.mxu0
    %v5815 = vsel %vm1888, %v4034, 0
    %v5818 = vsel %vm1888, %v4635, 0
    %v5821 = vsel %vm1888, %v4640, 0
    %5823 = vmatprep.subr.mxu0 0.0
    %5824 = vmatpush1.xpose.msra.mxu0 0.0
    %5825 = vmatprep.subr.mxu0 0.0
    %5826 = vmatpush1.xpose.msra.mxu0 0.0
    %5827 = vmatprep.subr.mxu0 0.0
    %5828 = vmatpush1.xpose.msra.mxu0 0.0
    %5829 = vmatprep.subr.mxu0 0.0
    %5830 = vmatpush1.xpose.msra.mxu0 0.0
    %5831 = vmatprep.subr.mxu0 0.0
    %5832 = vmatpush1.xpose.msra.mxu0 0.0
    %5833 = vmatprep.subr.mxu0 0.0
    %5834 = vmatpush1.xpose.msra.mxu0 0.0
    %5835 = vmatprep.subr.mxu0 0.0
    %5836 = vmatpush1.xpose.msra.mxu0 0.0
    %5837 = vmatprep.subr.mxu0 0.0
    %5838 = vmatpush1.xpose.msra.mxu0 0.0
    %5839 = vmatprep.subr.mxu0 0.0
    %5840 = vmatpush1.xpose.msra.mxu0 0.0
    %5841 = vmatprep.subr.mxu0 0.0
    %5842 = vmatpush1.xpose.msra.mxu0 0.0
    %5843 = vmatprep.subr.mxu0 0.0
    %5844 = vmatpush1.xpose.msra.mxu0 0.0
    %5845 = vmatprep.subr.mxu0 0.0
    %5846 = vmatpush1.xpose.msra.mxu0 0.0
    %5847 = vmatprep.subr.mxu0 0.0
    %5848 = vmatpush1.xpose.msra.mxu0 0.0
    %5849 = vmatprep.subr.mxu0 0.0
    %5850 = vmatpush1.xpose.msra.mxu0 0.0
    %5851 = vmatprep.subr.mxu0 0.0
    %5852 = vmatpush1.xpose.msra.mxu0 %v5821
    %5853 = vmatprep.subr.mxu0 0.0
    %5854 = vmatpush1.xpose.msra.mxu0 %v5818
    %5855 = vmatprep.subr.mxu0 0.0
    %5856 = vmatpush2.xpose.msra.mxu0 0.0
    %5857 = vmatprep.subr.mxu0 0.0
    %5858 = vmatpush2.xpose.msra.mxu0 0.0
    %5859 = vmatprep.subr.mxu0 0.0
    %5860 = vmatpush2.xpose.msra.mxu0 0.0
    %5861 = vmatprep.subr.mxu0 0.0
    %5862 = vmatpush2.xpose.msra.mxu0 0.0
    %5863 = vmatprep.subr.mxu0 0.0
    %5864 = vmatpush2.xpose.msra.mxu0 0.0
    %5865 = vmatprep.subr.mxu0 0.0
    %5866 = vmatpush2.xpose.msra.mxu0 0.0
    %5867 = vmatprep.subr.mxu0 0.0
    %5868 = vmatpush2.xpose.msra.mxu0 0.0
    %5869 = vmatprep.subr.mxu0 0.0
    %5870 = vmatpush2.xpose.msra.mxu0 0.0
    %5871 = vmatprep.subr.mxu0 0.0
    %5872 = vmatpush2.xpose.msra.mxu0 0.0
    %5873 = vmatprep.subr.mxu0 0.0
    %5874 = vmatpush2.xpose.msra.mxu0 0.0
    %5875 = vmatprep.subr.mxu0 0.0
    %5876 = vmatpush2.xpose.msra.mxu0 0.0
    %5877 = vmatprep.subr.mxu0 0.0
    %5878 = vmatpush2.xpose.msra.mxu0 0.0
    %5879 = vmatprep.subr.mxu0 0.0
    %5880 = vmatpush2.xpose.msra.mxu0 0.0
    %5881 = vmatprep.subr.mxu0 0.0
    %5882 = vmatpush2.xpose.msra.mxu0 0.0
    %5883 = vmatprep.subr.mxu0 0.0
    %5884 = vmatpush2.xpose.msra.mxu0 0.0
    %5885 = vmatprep.subr.mxu0 0.0
    %5886 = vmatpush2.xpose.msra.mxu0 0.0
    %5887 = vmatprep.mubr.f32.mxu0 0.0
    %5888 = vmatmul.mubr.f32.gmra.mxu0 %v5815
    %v5889 = vpop.f32.mrf.mxu0
    %v5890 = vadd.f32 0.0, %v5889
    %v5891 = vpop.f32.mrf.mxu0
    %5892 = vdwg.mxu0
    %v5894 = vsel %vm1888, %v4107, 0
    %v5897 = vsel %vm1888, %v4713, 0
    %v5900 = vsel %vm1888, %v4718, 0
    %5902 = vmatprep.subr.mxu0 0.0
    %5903 = vmatpush1.xpose.msra.mxu0 0.0
    %5904 = vmatprep.subr.mxu0 0.0
    %5905 = vmatpush1.xpose.msra.mxu0 0.0
    %5906 = vmatprep.subr.mxu0 0.0
    %5907 = vmatpush1.xpose.msra.mxu0 0.0
    %5908 = vmatprep.subr.mxu0 0.0
    %5909 = vmatpush1.xpose.msra.mxu0 0.0
    %5910 = vmatprep.subr.mxu0 0.0
    %5911 = vmatpush1.xpose.msra.mxu0 0.0
    %5912 = vmatprep.subr.mxu0 0.0
    %5913 = vmatpush1.xpose.msra.mxu0 0.0
    %5914 = vmatprep.subr.mxu0 0.0
    %5915 = vmatpush1.xpose.msra.mxu0 0.0
    %5916 = vmatprep.subr.mxu0 0.0
    %5917 = vmatpush1.xpose.msra.mxu0 0.0
    %5918 = vmatprep.subr.mxu0 0.0
    %5919 = vmatpush1.xpose.msra.mxu0 0.0
    %5920 = vmatprep.subr.mxu0 0.0
    %5921 = vmatpush1.xpose.msra.mxu0 0.0
    %5922 = vmatprep.subr.mxu0 0.0
    %5923 = vmatpush1.xpose.msra.mxu0 0.0
    %5924 = vmatprep.subr.mxu0 0.0
    %5925 = vmatpush1.xpose.msra.mxu0 0.0
    %5926 = vmatprep.subr.mxu0 0.0
    %5927 = vmatpush1.xpose.msra.mxu0 0.0
    %5928 = vmatprep.subr.mxu0 0.0
    %5929 = vmatpush1.xpose.msra.mxu0 0.0
    %5930 = vmatprep.subr.mxu0 0.0
    %5931 = vmatpush1.xpose.msra.mxu0 %v5900
    %5932 = vmatprep.subr.mxu0 0.0
    %5933 = vmatpush1.xpose.msra.mxu0 %v5897
    %5934 = vmatprep.subr.mxu0 0.0
    %5935 = vmatpush2.xpose.msra.mxu0 0.0
    %5936 = vmatprep.subr.mxu0 0.0
    %5937 = vmatpush2.xpose.msra.mxu0 0.0
    %5938 = vmatprep.subr.mxu0 0.0
    %5939 = vmatpush2.xpose.msra.mxu0 0.0
    %5940 = vmatprep.subr.mxu0 0.0
    %5941 = vmatpush2.xpose.msra.mxu0 0.0
    %5942 = vmatprep.subr.mxu0 0.0
    %5943 = vmatpush2.xpose.msra.mxu0 0.0
    %5944 = vmatprep.subr.mxu0 0.0
    %5945 = vmatpush2.xpose.msra.mxu0 0.0
    %5946 = vmatprep.subr.mxu0 0.0
    %5947 = vmatpush2.xpose.msra.mxu0 0.0
    %5948 = vmatprep.subr.mxu0 0.0
    %5949 = vmatpush2.xpose.msra.mxu0 0.0
    %5950 = vmatprep.subr.mxu0 0.0
    %5951 = vmatpush2.xpose.msra.mxu0 0.0
    %5952 = vmatprep.subr.mxu0 0.0
    %5953 = vmatpush2.xpose.msra.mxu0 0.0
    %5954 = vmatprep.subr.mxu0 0.0
    %5955 = vmatpush2.xpose.msra.mxu0 0.0
    %5956 = vmatprep.subr.mxu0 0.0
    %5957 = vmatpush2.xpose.msra.mxu0 0.0
    %5958 = vmatprep.subr.mxu0 0.0
    %5959 = vmatpush2.xpose.msra.mxu0 0.0
    %5960 = vmatprep.subr.mxu0 0.0
    %5961 = vmatpush2.xpose.msra.mxu0 0.0
    %5962 = vmatprep.subr.mxu0 0.0
    %5963 = vmatpush2.xpose.msra.mxu0 0.0
    %5964 = vmatprep.subr.mxu0 0.0
    %5965 = vmatpush2.xpose.msra.mxu0 0.0
    %5966 = vmatprep.mubr.f32.mxu0 0.0
    %5967 = vmatmul.mubr.f32.gmra.mxu0 %v5894
    %v5968 = vpop.f32.mrf.mxu0
    %v5969 = vadd.f32 0.0, %v5968
    %v5970 = vpop.f32.mrf.mxu0
    %5971 = vdwg.mxu0
    %v5973 = vsel %vm1888, %v4180, 0
    %v5976 = vsel %vm1888, %v4791, 0
    %v5979 = vsel %vm1888, %v4796, 0
    %5981 = vmatprep.subr.mxu0 0.0
    %5982 = vmatpush1.xpose.msra.mxu0 0.0
    %5983 = vmatprep.subr.mxu0 0.0
    %5984 = vmatpush1.xpose.msra.mxu0 0.0
    %5985 = vmatprep.subr.mxu0 0.0
    %5986 = vmatpush1.xpose.msra.mxu0 0.0
    %5987 = vmatprep.subr.mxu0 0.0
    %5988 = vmatpush1.xpose.msra.mxu0 0.0
    %5989 = vmatprep.subr.mxu0 0.0
    %5990 = vmatpush1.xpose.msra.mxu0 0.0
    %5991 = vmatprep.subr.mxu0 0.0
    %5992 = vmatpush1.xpose.msra.mxu0 0.0
    %5993 = vmatprep.subr.mxu0 0.0
    %5994 = vmatpush1.xpose.msra.mxu0 0.0
    %5995 = vmatprep.subr.mxu0 0.0
    %5996 = vmatpush1.xpose.msra.mxu0 0.0
    %5997 = vmatprep.subr.mxu0 0.0
    %5998 = vmatpush1.xpose.msra.mxu0 0.0
    %5999 = vmatprep.subr.mxu0 0.0
    %6000 = vmatpush1.xpose.msra.mxu0 0.0
    %6001 = vmatprep.subr.mxu0 0.0
    %6002 = vmatpush1.xpose.msra.mxu0 0.0
    %6003 = vmatprep.subr.mxu0 0.0
    %6004 = vmatpush1.xpose.msra.mxu0 0.0
    %6005 = vmatprep.subr.mxu0 0.0
    %6006 = vmatpush1.xpose.msra.mxu0 0.0
    %6007 = vmatprep.subr.mxu0 0.0
    %6008 = vmatpush1.xpose.msra.mxu0 0.0
    %6009 = vmatprep.subr.mxu0 0.0
    %6010 = vmatpush1.xpose.msra.mxu0 %v5979
    %6011 = vmatprep.subr.mxu0 0.0
    %6012 = vmatpush1.xpose.msra.mxu0 %v5976
    %6013 = vmatprep.subr.mxu0 0.0
    %6014 = vmatpush2.xpose.msra.mxu0 0.0
    %6015 = vmatprep.subr.mxu0 0.0
    %6016 = vmatpush2.xpose.msra.mxu0 0.0
    %6017 = vmatprep.subr.mxu0 0.0
    %6018 = vmatpush2.xpose.msra.mxu0 0.0
    %6019 = vmatprep.subr.mxu0 0.0
    %6020 = vmatpush2.xpose.msra.mxu0 0.0
    %6021 = vmatprep.subr.mxu0 0.0
    %6022 = vmatpush2.xpose.msra.mxu0 0.0
    %6023 = vmatprep.subr.mxu0 0.0
    %6024 = vmatpush2.xpose.msra.mxu0 0.0
    %6025 = vmatprep.subr.mxu0 0.0
    %6026 = vmatpush2.xpose.msra.mxu0 0.0
    %6027 = vmatprep.subr.mxu0 0.0
    %6028 = vmatpush2.xpose.msra.mxu0 0.0
    %6029 = vmatprep.subr.mxu0 0.0
    %6030 = vmatpush2.xpose.msra.mxu0 0.0
    %6031 = vmatprep.subr.mxu0 0.0
    %6032 = vmatpush2.xpose.msra.mxu0 0.0
    %6033 = vmatprep.subr.mxu0 0.0
    %6034 = vmatpush2.xpose.msra.mxu0 0.0
    %6035 = vmatprep.subr.mxu0 0.0
    %6036 = vmatpush2.xpose.msra.mxu0 0.0
    %6037 = vmatprep.subr.mxu0 0.0
    %6038 = vmatpush2.xpose.msra.mxu0 0.0
    %6039 = vmatprep.subr.mxu0 0.0
    %6040 = vmatpush2.xpose.msra.mxu0 0.0
    %6041 = vmatprep.subr.mxu0 0.0
    %6042 = vmatpush2.xpose.msra.mxu0 0.0
    %6043 = vmatprep.subr.mxu0 0.0
    %6044 = vmatpush2.xpose.msra.mxu0 0.0
    %6045 = vmatprep.mubr.f32.mxu0 0.0
    %6046 = vmatmul.mubr.f32.gmra.mxu0 %v5973
    %v6047 = vpop.f32.mrf.mxu0
    %v6048 = vadd.f32 0.0, %v6047
    %v6049 = vpop.f32.mrf.mxu0
    %6050 = vdwg.mxu0
    %v6052 = vsel %vm1888, %v4253, 0
    %v6055 = vsel %vm1888, %v4869, 0
    %v6058 = vsel %vm1888, %v4874, 0
    %6060 = vmatprep.subr.mxu0 0.0
    %6061 = vmatpush1.xpose.msra.mxu0 0.0
    %6062 = vmatprep.subr.mxu0 0.0
    %6063 = vmatpush1.xpose.msra.mxu0 0.0
    %6064 = vmatprep.subr.mxu0 0.0
    %6065 = vmatpush1.xpose.msra.mxu0 0.0
    %6066 = vmatprep.subr.mxu0 0.0
    %6067 = vmatpush1.xpose.msra.mxu0 0.0
    %6068 = vmatprep.subr.mxu0 0.0
    %6069 = vmatpush1.xpose.msra.mxu0 0.0
    %6070 = vmatprep.subr.mxu0 0.0
    %6071 = vmatpush1.xpose.msra.mxu0 0.0
    %6072 = vmatprep.subr.mxu0 0.0
    %6073 = vmatpush1.xpose.msra.mxu0 0.0
    %6074 = vmatprep.subr.mxu0 0.0
    %6075 = vmatpush1.xpose.msra.mxu0 0.0
    %6076 = vmatprep.subr.mxu0 0.0
    %6077 = vmatpush1.xpose.msra.mxu0 0.0
    %6078 = vmatprep.subr.mxu0 0.0
    %6079 = vmatpush1.xpose.msra.mxu0 0.0
    %6080 = vmatprep.subr.mxu0 0.0
    %6081 = vmatpush1.xpose.msra.mxu0 0.0
    %6082 = vmatprep.subr.mxu0 0.0
    %6083 = vmatpush1.xpose.msra.mxu0 0.0
    %6084 = vmatprep.subr.mxu0 0.0
    %6085 = vmatpush1.xpose.msra.mxu0 0.0
    %6086 = vmatprep.subr.mxu0 0.0
    %6087 = vmatpush1.xpose.msra.mxu0 0.0
    %6088 = vmatprep.subr.mxu0 0.0
    %6089 = vmatpush1.xpose.msra.mxu0 %v6058
    %6090 = vmatprep.subr.mxu0 0.0
    %6091 = vmatpush1.xpose.msra.mxu0 %v6055
    %6092 = vmatprep.subr.mxu0 0.0
    %6093 = vmatpush2.xpose.msra.mxu0 0.0
    %6094 = vmatprep.subr.mxu0 0.0
    %6095 = vmatpush2.xpose.msra.mxu0 0.0
    %6096 = vmatprep.subr.mxu0 0.0
    %6097 = vmatpush2.xpose.msra.mxu0 0.0
    %6098 = vmatprep.subr.mxu0 0.0
    %6099 = vmatpush2.xpose.msra.mxu0 0.0
    %6100 = vmatprep.subr.mxu0 0.0
    %6101 = vmatpush2.xpose.msra.mxu0 0.0
    %6102 = vmatprep.subr.mxu0 0.0
    %6103 = vmatpush2.xpose.msra.mxu0 0.0
    %6104 = vmatprep.subr.mxu0 0.0
    %6105 = vmatpush2.xpose.msra.mxu0 0.0
    %6106 = vmatprep.subr.mxu0 0.0
    %6107 = vmatpush2.xpose.msra.mxu0 0.0
    %6108 = vmatprep.subr.mxu0 0.0
    %6109 = vmatpush2.xpose.msra.mxu0 0.0
    %6110 = vmatprep.subr.mxu0 0.0
    %6111 = vmatpush2.xpose.msra.mxu0 0.0
    %6112 = vmatprep.subr.mxu0 0.0
    %6113 = vmatpush2.xpose.msra.mxu0 0.0
    %6114 = vmatprep.subr.mxu0 0.0
    %6115 = vmatpush2.xpose.msra.mxu0 0.0
    %6116 = vmatprep.subr.mxu0 0.0
    %6117 = vmatpush2.xpose.msra.mxu0 0.0
    %6118 = vmatprep.subr.mxu0 0.0
    %6119 = vmatpush2.xpose.msra.mxu0 0.0
    %6120 = vmatprep.subr.mxu0 0.0
    %6121 = vmatpush2.xpose.msra.mxu0 0.0
    %6122 = vmatprep.subr.mxu0 0.0
    %6123 = vmatpush2.xpose.msra.mxu0 0.0
    %6124 = vmatprep.mubr.f32.mxu0 0.0
    %6125 = vmatmul.mubr.f32.gmra.mxu0 %v6052
    %v6126 = vpop.f32.mrf.mxu0
    %v6127 = vadd.f32 0.0, %v6126
    %v6128 = vpop.f32.mrf.mxu0
    %6129 = vdwg.mxu0
    %v6131 = vsel %vm1888, %v4326, 0
    %v6134 = vsel %vm1888, %v4947, 0
    %v6137 = vsel %vm1888, %v4952, 0
    %6139 = vmatprep.subr.mxu0 0.0
    %6140 = vmatpush1.xpose.msra.mxu0 0.0
    %6141 = vmatprep.subr.mxu0 0.0
    %6142 = vmatpush1.xpose.msra.mxu0 0.0
    %6143 = vmatprep.subr.mxu0 0.0
    %6144 = vmatpush1.xpose.msra.mxu0 0.0
    %6145 = vmatprep.subr.mxu0 0.0
    %6146 = vmatpush1.xpose.msra.mxu0 0.0
    %6147 = vmatprep.subr.mxu0 0.0
    %6148 = vmatpush1.xpose.msra.mxu0 0.0
    %6149 = vmatprep.subr.mxu0 0.0
    %6150 = vmatpush1.xpose.msra.mxu0 0.0
    %6151 = vmatprep.subr.mxu0 0.0
    %6152 = vmatpush1.xpose.msra.mxu0 0.0
    %6153 = vmatprep.subr.mxu0 0.0
    %6154 = vmatpush1.xpose.msra.mxu0 0.0
    %6155 = vmatprep.subr.mxu0 0.0
    %6156 = vmatpush1.xpose.msra.mxu0 0.0
    %6157 = vmatprep.subr.mxu0 0.0
    %6158 = vmatpush1.xpose.msra.mxu0 0.0
    %6159 = vmatprep.subr.mxu0 0.0
    %6160 = vmatpush1.xpose.msra.mxu0 0.0
    %6161 = vmatprep.subr.mxu0 0.0
    %6162 = vmatpush1.xpose.msra.mxu0 0.0
    %6163 = vmatprep.subr.mxu0 0.0
    %6164 = vmatpush1.xpose.msra.mxu0 0.0
    %6165 = vmatprep.subr.mxu0 0.0
    %6166 = vmatpush1.xpose.msra.mxu0 0.0
    %6167 = vmatprep.subr.mxu0 0.0
    %6168 = vmatpush1.xpose.msra.mxu0 %v6137
    %6169 = vmatprep.subr.mxu0 0.0
    %6170 = vmatpush1.xpose.msra.mxu0 %v6134
    %6171 = vmatprep.subr.mxu0 0.0
    %6172 = vmatpush2.xpose.msra.mxu0 0.0
    %6173 = vmatprep.subr.mxu0 0.0
    %6174 = vmatpush2.xpose.msra.mxu0 0.0
    %6175 = vmatprep.subr.mxu0 0.0
    %6176 = vmatpush2.xpose.msra.mxu0 0.0
    %6177 = vmatprep.subr.mxu0 0.0
    %6178 = vmatpush2.xpose.msra.mxu0 0.0
    %6179 = vmatprep.subr.mxu0 0.0
    %6180 = vmatpush2.xpose.msra.mxu0 0.0
    %6181 = vmatprep.subr.mxu0 0.0
    %6182 = vmatpush2.xpose.msra.mxu0 0.0
    %6183 = vmatprep.subr.mxu0 0.0
    %6184 = vmatpush2.xpose.msra.mxu0 0.0
    %6185 = vmatprep.subr.mxu0 0.0
    %6186 = vmatpush2.xpose.msra.mxu0 0.0
    %6187 = vmatprep.subr.mxu0 0.0
    %6188 = vmatpush2.xpose.msra.mxu0 0.0
    %6189 = vmatprep.subr.mxu0 0.0
    %6190 = vmatpush2.xpose.msra.mxu0 0.0
    %6191 = vmatprep.subr.mxu0 0.0
    %6192 = vmatpush2.xpose.msra.mxu0 0.0
    %6193 = vmatprep.subr.mxu0 0.0
    %6194 = vmatpush2.xpose.msra.mxu0 0.0
    %6195 = vmatprep.subr.mxu0 0.0
    %6196 = vmatpush2.xpose.msra.mxu0 0.0
    %6197 = vmatprep.subr.mxu0 0.0
    %6198 = vmatpush2.xpose.msra.mxu0 0.0
    %6199 = vmatprep.subr.mxu0 0.0
    %6200 = vmatpush2.xpose.msra.mxu0 0.0
    %6201 = vmatprep.subr.mxu0 0.0
    %6202 = vmatpush2.xpose.msra.mxu0 0.0
    %6203 = vmatprep.mubr.f32.mxu0 0.0
    %6204 = vmatmul.mubr.f32.gmra.mxu0 %v6131
    %v6205 = vpop.f32.mrf.mxu0
    %v6206 = vadd.f32 0.0, %v6205
    %v6207 = vpop.f32.mrf.mxu0
    %6208 = vdwg.mxu0
    %v6210 = vsel %vm1888, %v4399, 0
    %v6213 = vsel %vm1888, %v5025, 0
    %v6216 = vsel %vm1888, %v5030, 0
    %6218 = vmatprep.subr.mxu0 0.0
    %6219 = vmatpush1.xpose.msra.mxu0 0.0
    %6220 = vmatprep.subr.mxu0 0.0
    %6221 = vmatpush1.xpose.msra.mxu0 0.0
    %6222 = vmatprep.subr.mxu0 0.0
    %6223 = vmatpush1.xpose.msra.mxu0 0.0
    %6224 = vmatprep.subr.mxu0 0.0
    %6225 = vmatpush1.xpose.msra.mxu0 0.0
    %6226 = vmatprep.subr.mxu0 0.0
    %6227 = vmatpush1.xpose.msra.mxu0 0.0
    %6228 = vmatprep.subr.mxu0 0.0
    %6229 = vmatpush1.xpose.msra.mxu0 0.0
    %6230 = vmatprep.subr.mxu0 0.0
    %6231 = vmatpush1.xpose.msra.mxu0 0.0
    %6232 = vmatprep.subr.mxu0 0.0
    %6233 = vmatpush1.xpose.msra.mxu0 0.0
    %6234 = vmatprep.subr.mxu0 0.0
    %6235 = vmatpush1.xpose.msra.mxu0 0.0
    %6236 = vmatprep.subr.mxu0 0.0
    %6237 = vmatpush1.xpose.msra.mxu0 0.0
    %6238 = vmatprep.subr.mxu0 0.0
    %6239 = vmatpush1.xpose.msra.mxu0 0.0
    %6240 = vmatprep.subr.mxu0 0.0
    %6241 = vmatpush1.xpose.msra.mxu0 0.0
    %6242 = vmatprep.subr.mxu0 0.0
    %6243 = vmatpush1.xpose.msra.mxu0 0.0
    %6244 = vmatprep.subr.mxu0 0.0
    %6245 = vmatpush1.xpose.msra.mxu0 0.0
    %6246 = vmatprep.subr.mxu0 0.0
    %6247 = vmatpush1.xpose.msra.mxu0 %v6216
    %6248 = vmatprep.subr.mxu0 0.0
    %6249 = vmatpush1.xpose.msra.mxu0 %v6213
    %6250 = vmatprep.subr.mxu0 0.0
    %6251 = vmatpush2.xpose.msra.mxu0 0.0
    %6252 = vmatprep.subr.mxu0 0.0
    %6253 = vmatpush2.xpose.msra.mxu0 0.0
    %6254 = vmatprep.subr.mxu0 0.0
    %6255 = vmatpush2.xpose.msra.mxu0 0.0
    %6256 = vmatprep.subr.mxu0 0.0
    %6257 = vmatpush2.xpose.msra.mxu0 0.0
    %6258 = vmatprep.subr.mxu0 0.0
    %6259 = vmatpush2.xpose.msra.mxu0 0.0
    %6260 = vmatprep.subr.mxu0 0.0
    %6261 = vmatpush2.xpose.msra.mxu0 0.0
    %6262 = vmatprep.subr.mxu0 0.0
    %6263 = vmatpush2.xpose.msra.mxu0 0.0
    %6264 = vmatprep.subr.mxu0 0.0
    %6265 = vmatpush2.xpose.msra.mxu0 0.0
    %6266 = vmatprep.subr.mxu0 0.0
    %6267 = vmatpush2.xpose.msra.mxu0 0.0
    %6268 = vmatprep.subr.mxu0 0.0
    %6269 = vmatpush2.xpose.msra.mxu0 0.0
    %6270 = vmatprep.subr.mxu0 0.0
    %6271 = vmatpush2.xpose.msra.mxu0 0.0
    %6272 = vmatprep.subr.mxu0 0.0
    %6273 = vmatpush2.xpose.msra.mxu0 0.0
    %6274 = vmatprep.subr.mxu0 0.0
    %6275 = vmatpush2.xpose.msra.mxu0 0.0
    %6276 = vmatprep.subr.mxu0 0.0
    %6277 = vmatpush2.xpose.msra.mxu0 0.0
    %6278 = vmatprep.subr.mxu0 0.0
    %6279 = vmatpush2.xpose.msra.mxu0 0.0
    %6280 = vmatprep.subr.mxu0 0.0
    %6281 = vmatpush2.xpose.msra.mxu0 0.0
    %6282 = vmatprep.mubr.f32.mxu0 0.0
    %6283 = vmatmul.mubr.f32.gmra.mxu0 %v6210
    %v6284 = vpop.f32.mrf.mxu0
    %v6285 = vadd.f32 0.0, %v6284
    %v6286 = vpop.f32.mrf.mxu0
    %6287 = vdwg.mxu0
    %v6289 = vsel %vm1888, %v4472, 0
    %v6292 = vsel %vm1888, %v5103, 0
    %v6295 = vsel %vm1888, %v5108, 0
    %6297 = vmatprep.subr.mxu0 0.0
    %6298 = vmatpush1.xpose.msra.mxu0 0.0
    %6299 = vmatprep.subr.mxu0 0.0
    %6300 = vmatpush1.xpose.msra.mxu0 0.0
    %6301 = vmatprep.subr.mxu0 0.0
    %6302 = vmatpush1.xpose.msra.mxu0 0.0
    %6303 = vmatprep.subr.mxu0 0.0
    %6304 = vmatpush1.xpose.msra.mxu0 0.0
    %6305 = vmatprep.subr.mxu0 0.0
    %6306 = vmatpush1.xpose.msra.mxu0 0.0
    %6307 = vmatprep.subr.mxu0 0.0
    %6308 = vmatpush1.xpose.msra.mxu0 0.0
    %6309 = vmatprep.subr.mxu0 0.0
    %6310 = vmatpush1.xpose.msra.mxu0 0.0
    %6311 = vmatprep.subr.mxu0 0.0
    %6312 = vmatpush1.xpose.msra.mxu0 0.0
    %6313 = vmatprep.subr.mxu0 0.0
    %6314 = vmatpush1.xpose.msra.mxu0 0.0
    %6315 = vmatprep.subr.mxu0 0.0
    %6316 = vmatpush1.xpose.msra.mxu0 0.0
    %6317 = vmatprep.subr.mxu0 0.0
    %6318 = vmatpush1.xpose.msra.mxu0 0.0
    %6319 = vmatprep.subr.mxu0 0.0
    %6320 = vmatpush1.xpose.msra.mxu0 0.0
    %6321 = vmatprep.subr.mxu0 0.0
    %6322 = vmatpush1.xpose.msra.mxu0 0.0
    %6323 = vmatprep.subr.mxu0 0.0
    %6324 = vmatpush1.xpose.msra.mxu0 0.0
    %6325 = vmatprep.subr.mxu0 0.0
    %6326 = vmatpush1.xpose.msra.mxu0 %v6295
    %6327 = vmatprep.subr.mxu0 0.0
    %6328 = vmatpush1.xpose.msra.mxu0 %v6292
    %6329 = vmatprep.subr.mxu0 0.0
    %6330 = vmatpush2.xpose.msra.mxu0 0.0
    %6331 = vmatprep.subr.mxu0 0.0
    %6332 = vmatpush2.xpose.msra.mxu0 0.0
    %6333 = vmatprep.subr.mxu0 0.0
    %6334 = vmatpush2.xpose.msra.mxu0 0.0
    %6335 = vmatprep.subr.mxu0 0.0
    %6336 = vmatpush2.xpose.msra.mxu0 0.0
    %6337 = vmatprep.subr.mxu0 0.0
    %6338 = vmatpush2.xpose.msra.mxu0 0.0
    %6339 = vmatprep.subr.mxu0 0.0
    %6340 = vmatpush2.xpose.msra.mxu0 0.0
    %6341 = vmatprep.subr.mxu0 0.0
    %6342 = vmatpush2.xpose.msra.mxu0 0.0
    %6343 = vmatprep.subr.mxu0 0.0
    %6344 = vmatpush2.xpose.msra.mxu0 0.0
    %6345 = vmatprep.subr.mxu0 0.0
    %6346 = vmatpush2.xpose.msra.mxu0 0.0
    %6347 = vmatprep.subr.mxu0 0.0
    %6348 = vmatpush2.xpose.msra.mxu0 0.0
    %6349 = vmatprep.subr.mxu0 0.0
    %6350 = vmatpush2.xpose.msra.mxu0 0.0
    %6351 = vmatprep.subr.mxu0 0.0
    %6352 = vmatpush2.xpose.msra.mxu0 0.0
    %6353 = vmatprep.subr.mxu0 0.0
    %6354 = vmatpush2.xpose.msra.mxu0 0.0
    %6355 = vmatprep.subr.mxu0 0.0
    %6356 = vmatpush2.xpose.msra.mxu0 0.0
    %6357 = vmatprep.subr.mxu0 0.0
    %6358 = vmatpush2.xpose.msra.mxu0 0.0
    %6359 = vmatprep.subr.mxu0 0.0
    %6360 = vmatpush2.xpose.msra.mxu0 0.0
    %6361 = vmatprep.mubr.f32.mxu0 0.0
    %6362 = vmatmul.mubr.f32.gmra.mxu0 %v6289
    %v6363 = vpop.f32.mrf.mxu0
    %v6364 = vadd.f32 0.0, %v6363
    %v6365 = vpop.f32.mrf.mxu0
    %6366 = vdwg.mxu0
    %v6367 = vmul.f32 %v5811, 0.35355338
    %v6368 = vmul.f32 %v5890, 0.35355338
    %v6369 = vmul.f32 %v5969, 0.35355338
    %v6370 = vmul.f32 %v6048, 0.35355338
    %v6371 = vmul.f32 %v6127, 0.35355338
    %v6372 = vmul.f32 %v6206, 0.35355338
    %v6373 = vmul.f32 %v6285, 0.35355338
    %v6374 = vmul.f32 %v6364, 0.35355338
    %v6383 = vlaneseq
    %v6384 = vshrl.u32 %v6383, 7
    %v6385 = vsub.s32 0, %v6384
    %v6386 = vrot.slane %v3877, %v6385
    %v6387 = vlaneseq
    %v6388 = vshrl.u32 %v6387, 7
    %v6389 = vsub.s32 0, %v6388
    %v6390 = vrot.slane %v3878, %v6389
    %v6391 = vlaneseq
    %v6392 = vshrl.u32 %v6391, 7
    %v6393 = vsub.s32 0, %v6392
    %v6394 = vrot.slane %v3879, %v6393
    %v6395 = vlaneseq
    %v6396 = vshrl.u32 %v6395, 7
    %v6397 = vsub.s32 0, %v6396
    %v6398 = vrot.slane %v3880, %v6397
    %v6399 = vlaneseq
    %v6400 = vshrl.u32 %v6399, 7
    %v6401 = vsub.s32 0, %v6400
    %v6402 = vrot.slane %v3881, %v6401
    %v6403 = vlaneseq
    %v6404 = vshrl.u32 %v6403, 7
    %v6405 = vsub.s32 0, %v6404
    %v6406 = vrot.slane %v3882, %v6405
    %v6407 = vlaneseq
    %v6408 = vshrl.u32 %v6407, 7
    %v6409 = vsub.s32 0, %v6408
    %v6410 = vrot.slane %v3883, %v6409
    %v6411 = vlaneseq
    %v6412 = vshrl.u32 %v6411, 7
    %v6413 = vsub.s32 0, %v6412
    %v6414 = vrot.slane %v3884, %v6413
    %v6423 = vadd.f32 %v6367, %v6386
    %v6424 = vadd.f32 %v6368, %v6390
    %v6425 = vadd.f32 %v6369, %v6394
    %v6426 = vadd.f32 %v6370, %v6398
    %v6427 = vadd.f32 %v6371, %v6402
    %v6428 = vadd.f32 %v6372, %v6406
    %v6429 = vadd.f32 %v6373, %v6410
    %v6430 = vadd.f32 %v6374, %v6414
    %vm6431 = vcmask 130048
    %v6432 = vsel %vm6431, %v6423, -inf
    %6433 = vmax.xlane.f32.xlu0 %v6432
    %v6434 = vpop.xlane.xlu0 %6433
    %v6435 = vsel %vm6431, %v6424, -inf
    %6436 = vmax.xlane.f32.xlu0 %v6435
    %v6437 = vpop.xlane.xlu0 %6436
    %v6438 = vsel %vm6431, %v6425, -inf
    %6439 = vmax.xlane.f32.xlu0 %v6438
    %v6440 = vpop.xlane.xlu0 %6439
    %v6441 = vsel %vm6431, %v6426, -inf
    %6442 = vmax.xlane.f32.xlu0 %v6441
    %v6443 = vpop.xlane.xlu0 %6442
    %v6444 = vsel %vm6431, %v6427, -inf
    %6445 = vmax.xlane.f32.xlu0 %v6444
    %v6446 = vpop.xlane.xlu0 %6445
    %v6447 = vsel %vm6431, %v6428, -inf
    %6448 = vmax.xlane.f32.xlu0 %v6447
    %v6449 = vpop.xlane.xlu0 %6448
    %v6450 = vsel %vm6431, %v6429, -inf
    %6451 = vmax.xlane.f32.xlu0 %v6450
    %v6452 = vpop.xlane.xlu0 %6451
    %v6453 = vsel %vm6431, %v6430, -inf
    %6454 = vmax.xlane.f32.xlu0 %v6453
    %v6455 = vpop.xlane.xlu0 %6454
    %v6456 = vsub.f32 %v6423, %v6434
    %v6457 = vsub.f32 %v6424, %v6437
    %v6458 = vsub.f32 %v6425, %v6440
    %v6459 = vsub.f32 %v6426, %v6443
    %v6460 = vsub.f32 %v6427, %v6446
    %v6461 = vsub.f32 %v6428, %v6449
    %v6462 = vsub.f32 %v6429, %v6452
    %v6463 = vsub.f32 %v6430, %v6455
    %v6464 = vmul.f32 %v6456, 1.442695
    %v6465 = vpow.pop %v6464
    %v6466 = vmul.f32 %v6457, 1.442695
    %v6467 = vpow.pop %v6466
    %v6468 = vmul.f32 %v6458, 1.442695
    %v6469 = vpow.pop %v6468
    %v6470 = vmul.f32 %v6459, 1.442695
    %v6471 = vpow.pop %v6470
    %v6472 = vmul.f32 %v6460, 1.442695
    %v6473 = vpow.pop %v6472
    %v6474 = vmul.f32 %v6461, 1.442695
    %v6475 = vpow.pop %v6474
    %v6476 = vmul.f32 %v6462, 1.442695
    %v6477 = vpow.pop %v6476
    %v6478 = vmul.f32 %v6463, 1.442695
    %v6479 = vpow.pop %v6478
    %v6480 = vsel %vm6431, %v6465, 0.0
    %6481 = vadd.xlane.f32.xlu0 %v6480
    %v6482 = vpop.xlane.xlu0 %6481
    %v6483 = vsel %vm6431, %v6467, 0.0
    %6484 = vadd.xlane.f32.xlu0 %v6483
    %v6485 = vpop.xlane.xlu0 %6484
    %v6486 = vsel %vm6431, %v6469, 0.0
    %6487 = vadd.xlane.f32.xlu0 %v6486
    %v6488 = vpop.xlane.xlu0 %6487
    %v6489 = vsel %vm6431, %v6471, 0.0
    %6490 = vadd.xlane.f32.xlu0 %v6489
    %v6491 = vpop.xlane.xlu0 %6490
    %v6492 = vsel %vm6431, %v6473, 0.0
    %6493 = vadd.xlane.f32.xlu0 %v6492
    %v6494 = vpop.xlane.xlu0 %6493
    %v6495 = vsel %vm6431, %v6475, 0.0
    %6496 = vadd.xlane.f32.xlu0 %v6495
    %v6497 = vpop.xlane.xlu0 %6496
    %v6498 = vsel %vm6431, %v6477, 0.0
    %6499 = vadd.xlane.f32.xlu0 %v6498
    %v6500 = vpop.xlane.xlu0 %6499
    %v6501 = vsel %vm6431, %v6479, 0.0
    %6502 = vadd.xlane.f32.xlu0 %v6501
    %v6503 = vpop.xlane.xlu0 %6502
    %v6504 = vrcp.pop %v6482
    %v6505 = vrcp.pop %v6485
    %v6506 = vrcp.pop %v6488
    %v6507 = vrcp.pop %v6491
    %v6508 = vrcp.pop %v6494
    %v6509 = vrcp.pop %v6497
    %v6510 = vrcp.pop %v6500
    %v6511 = vrcp.pop %v6503
    %v6512 = vmul.f32 %v6465, %v6504
    %v6513 = vmul.f32 %v6467, %v6505
    %v6514 = vmul.f32 %v6469, %v6506
    %v6515 = vmul.f32 %v6471, %v6507
    %v6516 = vmul.f32 %v6473, %v6508
    %v6517 = vmul.f32 %v6475, %v6509
    %v6518 = vmul.f32 %v6477, %v6510
    %v6519 = vmul.f32 %v6479, %v6511
    %v6521 = vsel %vm6431, %v6512, 0
    %6523 = vmatprep.subr.mxu0 0.0
    %6524 = vmatpush1.msra.mxu0 0.0
    %6525 = vmatprep.subr.mxu0 0.0
    %6526 = vmatpush1.msra.mxu0 0.0
    %6527 = vmatprep.subr.mxu0 0.0
    %6528 = vmatpush1.msra.mxu0 0.0
    %6529 = vmatprep.subr.mxu0 0.0
    %6530 = vmatpush1.msra.mxu0 0.0
    %6531 = vmatprep.subr.mxu0 0.0
    %6532 = vmatpush1.msra.mxu0 0.0
    %6533 = vmatprep.subr.mxu0 0.0
    %6534 = vmatpush1.msra.mxu0 0.0
    %6535 = vmatprep.subr.mxu0 0.0
    %6536 = vmatpush1.msra.mxu0 0.0
    %6537 = vmatprep.subr.mxu0 0.0
    %6538 = vmatpush1.msra.mxu0 0.0
    %6539 = vmatprep.subr.mxu0 0.0
    %6540 = vmatpush1.msra.mxu0 0.0
    %6541 = vmatprep.subr.mxu0 0.0
    %6542 = vmatpush1.msra.mxu0 0.0
    %6543 = vmatprep.subr.mxu0 0.0
    %6544 = vmatpush1.msra.mxu0 0.0
    %6545 = vmatprep.subr.mxu0 0.0
    %6546 = vmatpush1.msra.mxu0 0.0
    %6547 = vmatprep.subr.mxu0 0.0
    %6548 = vmatpush1.msra.mxu0 0.0
    %6549 = vmatprep.subr.mxu0 0.0
    %6550 = vmatpush1.msra.mxu0 0.0
    %6551 = vmatprep.subr.mxu0 0.0
    %6552 = vmatpush1.msra.mxu0 %v5186
    %6553 = vmatprep.subr.mxu0 0.0
    %6554 = vmatpush1.msra.mxu0 %v5181
    %6555 = vmatprep.subr.mxu0 0.0
    %6556 = vmatpush2.msra.mxu0 0.0
    %6557 = vmatprep.subr.mxu0 0.0
    %6558 = vmatpush2.msra.mxu0 0.0
    %6559 = vmatprep.subr.mxu0 0.0
    %6560 = vmatpush2.msra.mxu0 0.0
    %6561 = vmatprep.subr.mxu0 0.0
    %6562 = vmatpush2.msra.mxu0 0.0
    %6563 = vmatprep.subr.mxu0 0.0
    %6564 = vmatpush2.msra.mxu0 0.0
    %6565 = vmatprep.subr.mxu0 0.0
    %6566 = vmatpush2.msra.mxu0 0.0
    %6567 = vmatprep.subr.mxu0 0.0
    %6568 = vmatpush2.msra.mxu0 0.0
    %6569 = vmatprep.subr.mxu0 0.0
    %6570 = vmatpush2.msra.mxu0 0.0
    %6571 = vmatprep.subr.mxu0 0.0
    %6572 = vmatpush2.msra.mxu0 0.0
    %6573 = vmatprep.subr.mxu0 0.0
    %6574 = vmatpush2.msra.mxu0 0.0
    %6575 = vmatprep.subr.mxu0 0.0
    %6576 = vmatpush2.msra.mxu0 0.0
    %6577 = vmatprep.subr.mxu0 0.0
    %6578 = vmatpush2.msra.mxu0 0.0
    %6579 = vmatprep.subr.mxu0 0.0
    %6580 = vmatpush2.msra.mxu0 0.0
    %6581 = vmatprep.subr.mxu0 0.0
    %6582 = vmatpush2.msra.mxu0 0.0
    %6583 = vmatprep.subr.mxu0 0.0
    %6584 = vmatpush2.msra.mxu0 0.0
    %6585 = vmatprep.subr.mxu0 0.0
    %6586 = vmatpush2.msra.mxu0 0.0
    %6587 = vmatprep.mubr.f32.mxu0 0.0
    %6588 = vmatmul.mubr.f32.gmra.mxu0 %v6521
    %v6589 = vpop.f32.mrf.mxu0
    %v6590 = vadd.f32 0.0, %v6589
    %v6591 = vpop.f32.mrf.mxu0
    %6592 = vdwg.mxu0
    %v6594 = vsel %vm6431, %v6513, 0
    %6596 = vmatprep.subr.mxu0 0.0
    %6597 = vmatpush1.msra.mxu0 0.0
    %6598 = vmatprep.subr.mxu0 0.0
    %6599 = vmatpush1.msra.mxu0 0.0
    %6600 = vmatprep.subr.mxu0 0.0
    %6601 = vmatpush1.msra.mxu0 0.0
    %6602 = vmatprep.subr.mxu0 0.0
    %6603 = vmatpush1.msra.mxu0 0.0
    %6604 = vmatprep.subr.mxu0 0.0
    %6605 = vmatpush1.msra.mxu0 0.0
    %6606 = vmatprep.subr.mxu0 0.0
    %6607 = vmatpush1.msra.mxu0 0.0
    %6608 = vmatprep.subr.mxu0 0.0
    %6609 = vmatpush1.msra.mxu0 0.0
    %6610 = vmatprep.subr.mxu0 0.0
    %6611 = vmatpush1.msra.mxu0 0.0
    %6612 = vmatprep.subr.mxu0 0.0
    %6613 = vmatpush1.msra.mxu0 0.0
    %6614 = vmatprep.subr.mxu0 0.0
    %6615 = vmatpush1.msra.mxu0 0.0
    %6616 = vmatprep.subr.mxu0 0.0
    %6617 = vmatpush1.msra.mxu0 0.0
    %6618 = vmatprep.subr.mxu0 0.0
    %6619 = vmatpush1.msra.mxu0 0.0
    %6620 = vmatprep.subr.mxu0 0.0
    %6621 = vmatpush1.msra.mxu0 0.0
    %6622 = vmatprep.subr.mxu0 0.0
    %6623 = vmatpush1.msra.mxu0 0.0
    %6624 = vmatprep.subr.mxu0 0.0
    %6625 = vmatpush1.msra.mxu0 %v5264
    %6626 = vmatprep.subr.mxu0 0.0
    %6627 = vmatpush1.msra.mxu0 %v5259
    %6628 = vmatprep.subr.mxu0 0.0
    %6629 = vmatpush2.msra.mxu0 0.0
    %6630 = vmatprep.subr.mxu0 0.0
    %6631 = vmatpush2.msra.mxu0 0.0
    %6632 = vmatprep.subr.mxu0 0.0
    %6633 = vmatpush2.msra.mxu0 0.0
    %6634 = vmatprep.subr.mxu0 0.0
    %6635 = vmatpush2.msra.mxu0 0.0
    %6636 = vmatprep.subr.mxu0 0.0
    %6637 = vmatpush2.msra.mxu0 0.0
    %6638 = vmatprep.subr.mxu0 0.0
    %6639 = vmatpush2.msra.mxu0 0.0
    %6640 = vmatprep.subr.mxu0 0.0
    %6641 = vmatpush2.msra.mxu0 0.0
    %6642 = vmatprep.subr.mxu0 0.0
    %6643 = vmatpush2.msra.mxu0 0.0
    %6644 = vmatprep.subr.mxu0 0.0
    %6645 = vmatpush2.msra.mxu0 0.0
    %6646 = vmatprep.subr.mxu0 0.0
    %6647 = vmatpush2.msra.mxu0 0.0
    %6648 = vmatprep.subr.mxu0 0.0
    %6649 = vmatpush2.msra.mxu0 0.0
    %6650 = vmatprep.subr.mxu0 0.0
    %6651 = vmatpush2.msra.mxu0 0.0
    %6652 = vmatprep.subr.mxu0 0.0
    %6653 = vmatpush2.msra.mxu0 0.0
    %6654 = vmatprep.subr.mxu0 0.0
    %6655 = vmatpush2.msra.mxu0 0.0
    %6656 = vmatprep.subr.mxu0 0.0
    %6657 = vmatpush2.msra.mxu0 0.0
    %6658 = vmatprep.subr.mxu0 0.0
    %6659 = vmatpush2.msra.mxu0 0.0
    %6660 = vmatprep.mubr.f32.mxu0 0.0
    %6661 = vmatmul.mubr.f32.gmra.mxu0 %v6594
    %v6662 = vpop.f32.mrf.mxu0
    %v6663 = vadd.f32 0.0, %v6662
    %v6664 = vpop.f32.mrf.mxu0
    %6665 = vdwg.mxu0
    %v6667 = vsel %vm6431, %v6514, 0
    %6669 = vmatprep.subr.mxu0 0.0
    %6670 = vmatpush1.msra.mxu0 0.0
    %6671 = vmatprep.subr.mxu0 0.0
    %6672 = vmatpush1.msra.mxu0 0.0
    %6673 = vmatprep.subr.mxu0 0.0
    %6674 = vmatpush1.msra.mxu0 0.0
    %6675 = vmatprep.subr.mxu0 0.0
    %6676 = vmatpush1.msra.mxu0 0.0
    %6677 = vmatprep.subr.mxu0 0.0
    %6678 = vmatpush1.msra.mxu0 0.0
    %6679 = vmatprep.subr.mxu0 0.0
    %6680 = vmatpush1.msra.mxu0 0.0
    %6681 = vmatprep.subr.mxu0 0.0
    %6682 = vmatpush1.msra.mxu0 0.0
    %6683 = vmatprep.subr.mxu0 0.0
    %6684 = vmatpush1.msra.mxu0 0.0
    %6685 = vmatprep.subr.mxu0 0.0
    %6686 = vmatpush1.msra.mxu0 0.0
    %6687 = vmatprep.subr.mxu0 0.0
    %6688 = vmatpush1.msra.mxu0 0.0
    %6689 = vmatprep.subr.mxu0 0.0
    %6690 = vmatpush1.msra.mxu0 0.0
    %6691 = vmatprep.subr.mxu0 0.0
    %6692 = vmatpush1.msra.mxu0 0.0
    %6693 = vmatprep.subr.mxu0 0.0
    %6694 = vmatpush1.msra.mxu0 0.0
    %6695 = vmatprep.subr.mxu0 0.0
    %6696 = vmatpush1.msra.mxu0 0.0
    %6697 = vmatprep.subr.mxu0 0.0
    %6698 = vmatpush1.msra.mxu0 %v5342
    %6699 = vmatprep.subr.mxu0 0.0
    %6700 = vmatpush1.msra.mxu0 %v5337
    %6701 = vmatprep.subr.mxu0 0.0
    %6702 = vmatpush2.msra.mxu0 0.0
    %6703 = vmatprep.subr.mxu0 0.0
    %6704 = vmatpush2.msra.mxu0 0.0
    %6705 = vmatprep.subr.mxu0 0.0
    %6706 = vmatpush2.msra.mxu0 0.0
    %6707 = vmatprep.subr.mxu0 0.0
    %6708 = vmatpush2.msra.mxu0 0.0
    %6709 = vmatprep.subr.mxu0 0.0
    %6710 = vmatpush2.msra.mxu0 0.0
    %6711 = vmatprep.subr.mxu0 0.0
    %6712 = vmatpush2.msra.mxu0 0.0
    %6713 = vmatprep.subr.mxu0 0.0
    %6714 = vmatpush2.msra.mxu0 0.0
    %6715 = vmatprep.subr.mxu0 0.0
    %6716 = vmatpush2.msra.mxu0 0.0
    %6717 = vmatprep.subr.mxu0 0.0
    %6718 = vmatpush2.msra.mxu0 0.0
    %6719 = vmatprep.subr.mxu0 0.0
    %6720 = vmatpush2.msra.mxu0 0.0
    %6721 = vmatprep.subr.mxu0 0.0
    %6722 = vmatpush2.msra.mxu0 0.0
    %6723 = vmatprep.subr.mxu0 0.0
    %6724 = vmatpush2.msra.mxu0 0.0
    %6725 = vmatprep.subr.mxu0 0.0
    %6726 = vmatpush2.msra.mxu0 0.0
    %6727 = vmatprep.subr.mxu0 0.0
    %6728 = vmatpush2.msra.mxu0 0.0
    %6729 = vmatprep.subr.mxu0 0.0
    %6730 = vmatpush2.msra.mxu0 0.0
    %6731 = vmatprep.subr.mxu0 0.0
    %6732 = vmatpush2.msra.mxu0 0.0
    %6733 = vmatprep.mubr.f32.mxu0 0.0
    %6734 = vmatmul.mubr.f32.gmra.mxu0 %v6667
    %v6735 = vpop.f32.mrf.mxu0
    %v6736 = vadd.f32 0.0, %v6735
    %v6737 = vpop.f32.mrf.mxu0
    %6738 = vdwg.mxu0
    %v6740 = vsel %vm6431, %v6515, 0
    %6742 = vmatprep.subr.mxu0 0.0
    %6743 = vmatpush1.msra.mxu0 0.0
    %6744 = vmatprep.subr.mxu0 0.0
    %6745 = vmatpush1.msra.mxu0 0.0
    %6746 = vmatprep.subr.mxu0 0.0
    %6747 = vmatpush1.msra.mxu0 0.0
    %6748 = vmatprep.subr.mxu0 0.0
    %6749 = vmatpush1.msra.mxu0 0.0
    %6750 = vmatprep.subr.mxu0 0.0
    %6751 = vmatpush1.msra.mxu0 0.0
    %6752 = vmatprep.subr.mxu0 0.0
    %6753 = vmatpush1.msra.mxu0 0.0
    %6754 = vmatprep.subr.mxu0 0.0
    %6755 = vmatpush1.msra.mxu0 0.0
    %6756 = vmatprep.subr.mxu0 0.0
    %6757 = vmatpush1.msra.mxu0 0.0
    %6758 = vmatprep.subr.mxu0 0.0
    %6759 = vmatpush1.msra.mxu0 0.0
    %6760 = vmatprep.subr.mxu0 0.0
    %6761 = vmatpush1.msra.mxu0 0.0
    %6762 = vmatprep.subr.mxu0 0.0
    %6763 = vmatpush1.msra.mxu0 0.0
    %6764 = vmatprep.subr.mxu0 0.0
    %6765 = vmatpush1.msra.mxu0 0.0
    %6766 = vmatprep.subr.mxu0 0.0
    %6767 = vmatpush1.msra.mxu0 0.0
    %6768 = vmatprep.subr.mxu0 0.0
    %6769 = vmatpush1.msra.mxu0 0.0
    %6770 = vmatprep.subr.mxu0 0.0
    %6771 = vmatpush1.msra.mxu0 %v5420
    %6772 = vmatprep.subr.mxu0 0.0
    %6773 = vmatpush1.msra.mxu0 %v5415
    %6774 = vmatprep.subr.mxu0 0.0
    %6775 = vmatpush2.msra.mxu0 0.0
    %6776 = vmatprep.subr.mxu0 0.0
    %6777 = vmatpush2.msra.mxu0 0.0
    %6778 = vmatprep.subr.mxu0 0.0
    %6779 = vmatpush2.msra.mxu0 0.0
    %6780 = vmatprep.subr.mxu0 0.0
    %6781 = vmatpush2.msra.mxu0 0.0
    %6782 = vmatprep.subr.mxu0 0.0
    %6783 = vmatpush2.msra.mxu0 0.0
    %6784 = vmatprep.subr.mxu0 0.0
    %6785 = vmatpush2.msra.mxu0 0.0
    %6786 = vmatprep.subr.mxu0 0.0
    %6787 = vmatpush2.msra.mxu0 0.0
    %6788 = vmatprep.subr.mxu0 0.0
    %6789 = vmatpush2.msra.mxu0 0.0
    %6790 = vmatprep.subr.mxu0 0.0
    %6791 = vmatpush2.msra.mxu0 0.0
    %6792 = vmatprep.subr.mxu0 0.0
    %6793 = vmatpush2.msra.mxu0 0.0
    %6794 = vmatprep.subr.mxu0 0.0
    %6795 = vmatpush2.msra.mxu0 0.0
    %6796 = vmatprep.subr.mxu0 0.0
    %6797 = vmatpush2.msra.mxu0 0.0
    %6798 = vmatprep.subr.mxu0 0.0
    %6799 = vmatpush2.msra.mxu0 0.0
    %6800 = vmatprep.subr.mxu0 0.0
    %6801 = vmatpush2.msra.mxu0 0.0
    %6802 = vmatprep.subr.mxu0 0.0
    %6803 = vmatpush2.msra.mxu0 0.0
    %6804 = vmatprep.subr.mxu0 0.0
    %6805 = vmatpush2.msra.mxu0 0.0
    %6806 = vmatprep.mubr.f32.mxu0 0.0
    %6807 = vmatmul.mubr.f32.gmra.mxu0 %v6740
    %v6808 = vpop.f32.mrf.mxu0
    %v6809 = vadd.f32 0.0, %v6808
    %v6810 = vpop.f32.mrf.mxu0
    %6811 = vdwg.mxu0
    %v6813 = vsel %vm6431, %v6516, 0
    %6815 = vmatprep.subr.mxu0 0.0
    %6816 = vmatpush1.msra.mxu0 0.0
    %6817 = vmatprep.subr.mxu0 0.0
    %6818 = vmatpush1.msra.mxu0 0.0
    %6819 = vmatprep.subr.mxu0 0.0
    %6820 = vmatpush1.msra.mxu0 0.0
    %6821 = vmatprep.subr.mxu0 0.0
    %6822 = vmatpush1.msra.mxu0 0.0
    %6823 = vmatprep.subr.mxu0 0.0
    %6824 = vmatpush1.msra.mxu0 0.0
    %6825 = vmatprep.subr.mxu0 0.0
    %6826 = vmatpush1.msra.mxu0 0.0
    %6827 = vmatprep.subr.mxu0 0.0
    %6828 = vmatpush1.msra.mxu0 0.0
    %6829 = vmatprep.subr.mxu0 0.0
    %6830 = vmatpush1.msra.mxu0 0.0
    %6831 = vmatprep.subr.mxu0 0.0
    %6832 = vmatpush1.msra.mxu0 0.0
    %6833 = vmatprep.subr.mxu0 0.0
    %6834 = vmatpush1.msra.mxu0 0.0
    %6835 = vmatprep.subr.mxu0 0.0
    %6836 = vmatpush1.msra.mxu0 0.0
    %6837 = vmatprep.subr.mxu0 0.0
    %6838 = vmatpush1.msra.mxu0 0.0
    %6839 = vmatprep.subr.mxu0 0.0
    %6840 = vmatpush1.msra.mxu0 0.0
    %6841 = vmatprep.subr.mxu0 0.0
    %6842 = vmatpush1.msra.mxu0 0.0
    %6843 = vmatprep.subr.mxu0 0.0
    %6844 = vmatpush1.msra.mxu0 %v5498
    %6845 = vmatprep.subr.mxu0 0.0
    %6846 = vmatpush1.msra.mxu0 %v5493
    %6847 = vmatprep.subr.mxu0 0.0
    %6848 = vmatpush2.msra.mxu0 0.0
    %6849 = vmatprep.subr.mxu0 0.0
    %6850 = vmatpush2.msra.mxu0 0.0
    %6851 = vmatprep.subr.mxu0 0.0
    %6852 = vmatpush2.msra.mxu0 0.0
    %6853 = vmatprep.subr.mxu0 0.0
    %6854 = vmatpush2.msra.mxu0 0.0
    %6855 = vmatprep.subr.mxu0 0.0
    %6856 = vmatpush2.msra.mxu0 0.0
    %6857 = vmatprep.subr.mxu0 0.0
    %6858 = vmatpush2.msra.mxu0 0.0
    %6859 = vmatprep.subr.mxu0 0.0
    %6860 = vmatpush2.msra.mxu0 0.0
    %6861 = vmatprep.subr.mxu0 0.0
    %6862 = vmatpush2.msra.mxu0 0.0
    %6863 = vmatprep.subr.mxu0 0.0
    %6864 = vmatpush2.msra.mxu0 0.0
    %6865 = vmatprep.subr.mxu0 0.0
    %6866 = vmatpush2.msra.mxu0 0.0
    %6867 = vmatprep.subr.mxu0 0.0
    %6868 = vmatpush2.msra.mxu0 0.0
    %6869 = vmatprep.subr.mxu0 0.0
    %6870 = vmatpush2.msra.mxu0 0.0
    %6871 = vmatprep.subr.mxu0 0.0
    %6872 = vmatpush2.msra.mxu0 0.0
    %6873 = vmatprep.subr.mxu0 0.0
    %6874 = vmatpush2.msra.mxu0 0.0
    %6875 = vmatprep.subr.mxu0 0.0
    %6876 = vmatpush2.msra.mxu0 0.0
    %6877 = vmatprep.subr.mxu0 0.0
    %6878 = vmatpush2.msra.mxu0 0.0
    %6879 = vmatprep.mubr.f32.mxu0 0.0
    %6880 = vmatmul.mubr.f32.gmra.mxu0 %v6813
    %v6881 = vpop.f32.mrf.mxu0
    %v6882 = vadd.f32 0.0, %v6881
    %v6883 = vpop.f32.mrf.mxu0
    %6884 = vdwg.mxu0
    %v6886 = vsel %vm6431, %v6517, 0
    %6888 = vmatprep.subr.mxu0 0.0
    %6889 = vmatpush1.msra.mxu0 0.0
    %6890 = vmatprep.subr.mxu0 0.0
    %6891 = vmatpush1.msra.mxu0 0.0
    %6892 = vmatprep.subr.mxu0 0.0
    %6893 = vmatpush1.msra.mxu0 0.0
    %6894 = vmatprep.subr.mxu0 0.0
    %6895 = vmatpush1.msra.mxu0 0.0
    %6896 = vmatprep.subr.mxu0 0.0
    %6897 = vmatpush1.msra.mxu0 0.0
    %6898 = vmatprep.subr.mxu0 0.0
    %6899 = vmatpush1.msra.mxu0 0.0
    %6900 = vmatprep.subr.mxu0 0.0
    %6901 = vmatpush1.msra.mxu0 0.0
    %6902 = vmatprep.subr.mxu0 0.0
    %6903 = vmatpush1.msra.mxu0 0.0
    %6904 = vmatprep.subr.mxu0 0.0
    %6905 = vmatpush1.msra.mxu0 0.0
    %6906 = vmatprep.subr.mxu0 0.0
    %6907 = vmatpush1.msra.mxu0 0.0
    %6908 = vmatprep.subr.mxu0 0.0
    %6909 = vmatpush1.msra.mxu0 0.0
    %6910 = vmatprep.subr.mxu0 0.0
    %6911 = vmatpush1.msra.mxu0 0.0
    %6912 = vmatprep.subr.mxu0 0.0
    %6913 = vmatpush1.msra.mxu0 0.0
    %6914 = vmatprep.subr.mxu0 0.0
    %6915 = vmatpush1.msra.mxu0 0.0
    %6916 = vmatprep.subr.mxu0 0.0
    %6917 = vmatpush1.msra.mxu0 %v5576
    %6918 = vmatprep.subr.mxu0 0.0
    %6919 = vmatpush1.msra.mxu0 %v5571
    %6920 = vmatprep.subr.mxu0 0.0
    %6921 = vmatpush2.msra.mxu0 0.0
    %6922 = vmatprep.subr.mxu0 0.0
    %6923 = vmatpush2.msra.mxu0 0.0
    %6924 = vmatprep.subr.mxu0 0.0
    %6925 = vmatpush2.msra.mxu0 0.0
    %6926 = vmatprep.subr.mxu0 0.0
    %6927 = vmatpush2.msra.mxu0 0.0
    %6928 = vmatprep.subr.mxu0 0.0
    %6929 = vmatpush2.msra.mxu0 0.0
    %6930 = vmatprep.subr.mxu0 0.0
    %6931 = vmatpush2.msra.mxu0 0.0
    %6932 = vmatprep.subr.mxu0 0.0
    %6933 = vmatpush2.msra.mxu0 0.0
    %6934 = vmatprep.subr.mxu0 0.0
    %6935 = vmatpush2.msra.mxu0 0.0
    %6936 = vmatprep.subr.mxu0 0.0
    %6937 = vmatpush2.msra.mxu0 0.0
    %6938 = vmatprep.subr.mxu0 0.0
    %6939 = vmatpush2.msra.mxu0 0.0
    %6940 = vmatprep.subr.mxu0 0.0
    %6941 = vmatpush2.msra.mxu0 0.0
    %6942 = vmatprep.subr.mxu0 0.0
    %6943 = vmatpush2.msra.mxu0 0.0
    %6944 = vmatprep.subr.mxu0 0.0
    %6945 = vmatpush2.msra.mxu0 0.0
    %6946 = vmatprep.subr.mxu0 0.0
    %6947 = vmatpush2.msra.mxu0 0.0
    %6948 = vmatprep.subr.mxu0 0.0
    %6949 = vmatpush2.msra.mxu0 0.0
    %6950 = vmatprep.subr.mxu0 0.0
    %6951 = vmatpush2.msra.mxu0 0.0
    %6952 = vmatprep.mubr.f32.mxu0 0.0
    %6953 = vmatmul.mubr.f32.gmra.mxu0 %v6886
    %v6954 = vpop.f32.mrf.mxu0
    %v6955 = vadd.f32 0.0, %v6954
    %v6956 = vpop.f32.mrf.mxu0
    %6957 = vdwg.mxu0
    %v6959 = vsel %vm6431, %v6518, 0
    %6961 = vmatprep.subr.mxu0 0.0
    %6962 = vmatpush1.msra.mxu0 0.0
    %6963 = vmatprep.subr.mxu0 0.0
    %6964 = vmatpush1.msra.mxu0 0.0
    %6965 = vmatprep.subr.mxu0 0.0
    %6966 = vmatpush1.msra.mxu0 0.0
    %6967 = vmatprep.subr.mxu0 0.0
    %6968 = vmatpush1.msra.mxu0 0.0
    %6969 = vmatprep.subr.mxu0 0.0
    %6970 = vmatpush1.msra.mxu0 0.0
    %6971 = vmatprep.subr.mxu0 0.0
    %6972 = vmatpush1.msra.mxu0 0.0
    %6973 = vmatprep.subr.mxu0 0.0
    %6974 = vmatpush1.msra.mxu0 0.0
    %6975 = vmatprep.subr.mxu0 0.0
    %6976 = vmatpush1.msra.mxu0 0.0
    %6977 = vmatprep.subr.mxu0 0.0
    %6978 = vmatpush1.msra.mxu0 0.0
    %6979 = vmatprep.subr.mxu0 0.0
    %6980 = vmatpush1.msra.mxu0 0.0
    %6981 = vmatprep.subr.mxu0 0.0
    %6982 = vmatpush1.msra.mxu0 0.0
    %6983 = vmatprep.subr.mxu0 0.0
    %6984 = vmatpush1.msra.mxu0 0.0
    %6985 = vmatprep.subr.mxu0 0.0
    %6986 = vmatpush1.msra.mxu0 0.0
    %6987 = vmatprep.subr.mxu0 0.0
    %6988 = vmatpush1.msra.mxu0 0.0
    %6989 = vmatprep.subr.mxu0 0.0
    %6990 = vmatpush1.msra.mxu0 %v5654
    %6991 = vmatprep.subr.mxu0 0.0
    %6992 = vmatpush1.msra.mxu0 %v5649
    %6993 = vmatprep.subr.mxu0 0.0
    %6994 = vmatpush2.msra.mxu0 0.0
    %6995 = vmatprep.subr.mxu0 0.0
    %6996 = vmatpush2.msra.mxu0 0.0
    %6997 = vmatprep.subr.mxu0 0.0
    %6998 = vmatpush2.msra.mxu0 0.0
    %6999 = vmatprep.subr.mxu0 0.0
    %7000 = vmatpush2.msra.mxu0 0.0
    %7001 = vmatprep.subr.mxu0 0.0
    %7002 = vmatpush2.msra.mxu0 0.0
    %7003 = vmatprep.subr.mxu0 0.0
    %7004 = vmatpush2.msra.mxu0 0.0
    %7005 = vmatprep.subr.mxu0 0.0
    %7006 = vmatpush2.msra.mxu0 0.0
    %7007 = vmatprep.subr.mxu0 0.0
    %7008 = vmatpush2.msra.mxu0 0.0
    %7009 = vmatprep.subr.mxu0 0.0
    %7010 = vmatpush2.msra.mxu0 0.0
    %7011 = vmatprep.subr.mxu0 0.0
    %7012 = vmatpush2.msra.mxu0 0.0
    %7013 = vmatprep.subr.mxu0 0.0
    %7014 = vmatpush2.msra.mxu0 0.0
    %7015 = vmatprep.subr.mxu0 0.0
    %7016 = vmatpush2.msra.mxu0 0.0
    %7017 = vmatprep.subr.mxu0 0.0
    %7018 = vmatpush2.msra.mxu0 0.0
    %7019 = vmatprep.subr.mxu0 0.0
    %7020 = vmatpush2.msra.mxu0 0.0
    %7021 = vmatprep.subr.mxu0 0.0
    %7022 = vmatpush2.msra.mxu0 0.0
    %7023 = vmatprep.subr.mxu0 0.0
    %7024 = vmatpush2.msra.mxu0 0.0
    %7025 = vmatprep.mubr.f32.mxu0 0.0
    %7026 = vmatmul.mubr.f32.gmra.mxu0 %v6959
    %v7027 = vpop.f32.mrf.mxu0
    %v7028 = vadd.f32 0.0, %v7027
    %v7029 = vpop.f32.mrf.mxu0
    %7030 = vdwg.mxu0
    %v7032 = vsel %vm6431, %v6519, 0
    %7034 = vmatprep.subr.mxu0 0.0
    %7035 = vmatpush1.msra.mxu0 0.0
    %7036 = vmatprep.subr.mxu0 0.0
    %7037 = vmatpush1.msra.mxu0 0.0
    %7038 = vmatprep.subr.mxu0 0.0
    %7039 = vmatpush1.msra.mxu0 0.0
    %7040 = vmatprep.subr.mxu0 0.0
    %7041 = vmatpush1.msra.mxu0 0.0
    %7042 = vmatprep.subr.mxu0 0.0
    %7043 = vmatpush1.msra.mxu0 0.0
    %7044 = vmatprep.subr.mxu0 0.0
    %7045 = vmatpush1.msra.mxu0 0.0
    %7046 = vmatprep.subr.mxu0 0.0
    %7047 = vmatpush1.msra.mxu0 0.0
    %7048 = vmatprep.subr.mxu0 0.0
    %7049 = vmatpush1.msra.mxu0 0.0
    %7050 = vmatprep.subr.mxu0 0.0
    %7051 = vmatpush1.msra.mxu0 0.0
    %7052 = vmatprep.subr.mxu0 0.0
    %7053 = vmatpush1.msra.mxu0 0.0
    %7054 = vmatprep.subr.mxu0 0.0
    %7055 = vmatpush1.msra.mxu0 0.0
    %7056 = vmatprep.subr.mxu0 0.0
    %7057 = vmatpush1.msra.mxu0 0.0
    %7058 = vmatprep.subr.mxu0 0.0
    %7059 = vmatpush1.msra.mxu0 0.0
    %7060 = vmatprep.subr.mxu0 0.0
    %7061 = vmatpush1.msra.mxu0 0.0
    %7062 = vmatprep.subr.mxu0 0.0
    %7063 = vmatpush1.msra.mxu0 %v5732
    %7064 = vmatprep.subr.mxu0 0.0
    %7065 = vmatpush1.msra.mxu0 %v5727
    %7066 = vmatprep.subr.mxu0 0.0
    %7067 = vmatpush2.msra.mxu0 0.0
    %7068 = vmatprep.subr.mxu0 0.0
    %7069 = vmatpush2.msra.mxu0 0.0
    %7070 = vmatprep.subr.mxu0 0.0
    %7071 = vmatpush2.msra.mxu0 0.0
    %7072 = vmatprep.subr.mxu0 0.0
    %7073 = vmatpush2.msra.mxu0 0.0
    %7074 = vmatprep.subr.mxu0 0.0
    %7075 = vmatpush2.msra.mxu0 0.0
    %7076 = vmatprep.subr.mxu0 0.0
    %7077 = vmatpush2.msra.mxu0 0.0
    %7078 = vmatprep.subr.mxu0 0.0
    %7079 = vmatpush2.msra.mxu0 0.0
    %7080 = vmatprep.subr.mxu0 0.0
    %7081 = vmatpush2.msra.mxu0 0.0
    %7082 = vmatprep.subr.mxu0 0.0
    %7083 = vmatpush2.msra.mxu0 0.0
    %7084 = vmatprep.subr.mxu0 0.0
    %7085 = vmatpush2.msra.mxu0 0.0
    %7086 = vmatprep.subr.mxu0 0.0
    %7087 = vmatpush2.msra.mxu0 0.0
    %7088 = vmatprep.subr.mxu0 0.0
    %7089 = vmatpush2.msra.mxu0 0.0
    %7090 = vmatprep.subr.mxu0 0.0
    %7091 = vmatpush2.msra.mxu0 0.0
    %7092 = vmatprep.subr.mxu0 0.0
    %7093 = vmatpush2.msra.mxu0 0.0
    %7094 = vmatprep.subr.mxu0 0.0
    %7095 = vmatpush2.msra.mxu0 0.0
    %7096 = vmatprep.subr.mxu0 0.0
    %7097 = vmatpush2.msra.mxu0 0.0
    %7098 = vmatprep.mubr.f32.mxu0 0.0
    %7099 = vmatmul.mubr.f32.gmra.mxu0 %v7032
    %v7100 = vpop.f32.mrf.mxu0
    %v7101 = vadd.f32 0.0, %v7100
    %v7102 = vpop.f32.mrf.mxu0
    %7103 = vdwg.mxu0
    %v7105 = vsel %vm1888, %v6590, 0
    %7107 = vmatprep.subr.mxu0 0.0
    %7108 = vmatpush1.msra.mxu0 0.0
    %7109 = vmatprep.subr.mxu0 0.0
    %7110 = vmatpush1.msra.mxu0 0.0
    %7111 = vmatprep.subr.mxu0 0.0
    %7112 = vmatpush1.msra.mxu0 0.0
    %7113 = vmatprep.subr.mxu0 0.0
    %7114 = vmatpush1.msra.mxu0 0.0
    %7115 = vmatprep.subr.mxu0 0.0
    %7116 = vmatpush1.msra.mxu0 0.0
    %7117 = vmatprep.subr.mxu0 0.0
    %7118 = vmatpush1.msra.mxu0 0.0
    %7119 = vmatprep.subr.mxu0 0.0
    %7120 = vmatpush1.msra.mxu0 0.0
    %7121 = vmatprep.subr.mxu0 0.0
    %7122 = vmatpush1.msra.mxu0 0.0
    %7123 = vmatprep.subr.mxu0 0.0
    %7124 = vmatpush1.msra.mxu0 0.0
    %7125 = vmatprep.subr.mxu0 0.0
    %7126 = vmatpush1.msra.mxu0 0.0
    %7127 = vmatprep.subr.mxu0 0.0
    %7128 = vmatpush1.msra.mxu0 0.0
    %7129 = vmatprep.subr.mxu0 0.0
    %7130 = vmatpush1.msra.mxu0 0.0
    %7131 = vmatprep.subr.mxu0 0.0
    %7132 = vmatpush1.msra.mxu0 0.0
    %7133 = vmatprep.subr.mxu0 0.0
    %7134 = vmatpush1.msra.mxu0 0.0
    %7135 = vmatprep.subr.mxu0 0.0
    %7136 = vmatpush1.msra.mxu0 0.0
    %7137 = vmatprep.subr.mxu0 0.0
    %7138 = vmatpush1.msra.mxu0 %v3869
    %7139 = vmatprep.subr.mxu0 0.0
    %7140 = vmatpush2.msra.mxu0 0.0
    %7141 = vmatprep.subr.mxu0 0.0
    %7142 = vmatpush2.msra.mxu0 0.0
    %7143 = vmatprep.subr.mxu0 0.0
    %7144 = vmatpush2.msra.mxu0 0.0
    %7145 = vmatprep.subr.mxu0 0.0
    %7146 = vmatpush2.msra.mxu0 0.0
    %7147 = vmatprep.subr.mxu0 0.0
    %7148 = vmatpush2.msra.mxu0 0.0
    %7149 = vmatprep.subr.mxu0 0.0
    %7150 = vmatpush2.msra.mxu0 0.0
    %7151 = vmatprep.subr.mxu0 0.0
    %7152 = vmatpush2.msra.mxu0 0.0
    %7153 = vmatprep.subr.mxu0 0.0
    %7154 = vmatpush2.msra.mxu0 0.0
    %7155 = vmatprep.subr.mxu0 0.0
    %7156 = vmatpush2.msra.mxu0 0.0
    %7157 = vmatprep.subr.mxu0 0.0
    %7158 = vmatpush2.msra.mxu0 0.0
    %7159 = vmatprep.subr.mxu0 0.0
    %7160 = vmatpush2.msra.mxu0 0.0
    %7161 = vmatprep.subr.mxu0 0.0
    %7162 = vmatpush2.msra.mxu0 0.0
    %7163 = vmatprep.subr.mxu0 0.0
    %7164 = vmatpush2.msra.mxu0 0.0
    %7165 = vmatprep.subr.mxu0 0.0
    %7166 = vmatpush2.msra.mxu0 0.0
    %7167 = vmatprep.subr.mxu0 0.0
    %7168 = vmatpush2.msra.mxu0 0.0
    %7169 = vmatprep.subr.mxu0 0.0
    %7170 = vmatpush2.msra.mxu0 0.0
    %7171 = vmatprep.mubr.f32.mxu0 0.0
    %7172 = vmatmul.mubr.f32.gmra.mxu0 %v7105
    %v7173 = vpop.f32.mrf.mxu0
    %v7174 = vadd.f32 0.0, %v7173
    %v7175 = vpop.f32.mrf.mxu0
    %7176 = vdwg.mxu0
    %v7178 = vsel %vm1888, %v6663, 0
    %7180 = vmatprep.subr.mxu0 0.0
    %7181 = vmatpush1.msra.mxu0 0.0
    %7182 = vmatprep.subr.mxu0 0.0
    %7183 = vmatpush1.msra.mxu0 0.0
    %7184 = vmatprep.subr.mxu0 0.0
    %7185 = vmatpush1.msra.mxu0 0.0
    %7186 = vmatprep.subr.mxu0 0.0
    %7187 = vmatpush1.msra.mxu0 0.0
    %7188 = vmatprep.subr.mxu0 0.0
    %7189 = vmatpush1.msra.mxu0 0.0
    %7190 = vmatprep.subr.mxu0 0.0
    %7191 = vmatpush1.msra.mxu0 0.0
    %7192 = vmatprep.subr.mxu0 0.0
    %7193 = vmatpush1.msra.mxu0 0.0
    %7194 = vmatprep.subr.mxu0 0.0
    %7195 = vmatpush1.msra.mxu0 0.0
    %7196 = vmatprep.subr.mxu0 0.0
    %7197 = vmatpush1.msra.mxu0 0.0
    %7198 = vmatprep.subr.mxu0 0.0
    %7199 = vmatpush1.msra.mxu0 0.0
    %7200 = vmatprep.subr.mxu0 0.0
    %7201 = vmatpush1.msra.mxu0 0.0
    %7202 = vmatprep.subr.mxu0 0.0
    %7203 = vmatpush1.msra.mxu0 0.0
    %7204 = vmatprep.subr.mxu0 0.0
    %7205 = vmatpush1.msra.mxu0 0.0
    %7206 = vmatprep.subr.mxu0 0.0
    %7207 = vmatpush1.msra.mxu0 0.0
    %7208 = vmatprep.subr.mxu0 0.0
    %7209 = vmatpush1.msra.mxu0 0.0
    %7210 = vmatprep.subr.mxu0 0.0
    %7211 = vmatpush1.msra.mxu0 %v3870
    %7212 = vmatprep.subr.mxu0 0.0
    %7213 = vmatpush2.msra.mxu0 0.0
    %7214 = vmatprep.subr.mxu0 0.0
    %7215 = vmatpush2.msra.mxu0 0.0
    %7216 = vmatprep.subr.mxu0 0.0
    %7217 = vmatpush2.msra.mxu0 0.0
    %7218 = vmatprep.subr.mxu0 0.0
    %7219 = vmatpush2.msra.mxu0 0.0
    %7220 = vmatprep.subr.mxu0 0.0
    %7221 = vmatpush2.msra.mxu0 0.0
    %7222 = vmatprep.subr.mxu0 0.0
    %7223 = vmatpush2.msra.mxu0 0.0
    %7224 = vmatprep.subr.mxu0 0.0
    %7225 = vmatpush2.msra.mxu0 0.0
    %7226 = vmatprep.subr.mxu0 0.0
    %7227 = vmatpush2.msra.mxu0 0.0
    %7228 = vmatprep.subr.mxu0 0.0
    %7229 = vmatpush2.msra.mxu0 0.0
    %7230 = vmatprep.subr.mxu0 0.0
    %7231 = vmatpush2.msra.mxu0 0.0
    %7232 = vmatprep.subr.mxu0 0.0
    %7233 = vmatpush2.msra.mxu0 0.0
    %7234 = vmatprep.subr.mxu0 0.0
    %7235 = vmatpush2.msra.mxu0 0.0
    %7236 = vmatprep.subr.mxu0 0.0
    %7237 = vmatpush2.msra.mxu0 0.0
    %7238 = vmatprep.subr.mxu0 0.0
    %7239 = vmatpush2.msra.mxu0 0.0
    %7240 = vmatprep.subr.mxu0 0.0
    %7241 = vmatpush2.msra.mxu0 0.0
    %7242 = vmatprep.subr.mxu0 0.0
    %7243 = vmatpush2.msra.mxu0 0.0
    %7244 = vmatprep.mubr.f32.mxu0 0.0
    %7245 = vmatmul.mubr.f32.gmra.mxu0 %v7178
    %v7246 = vpop.f32.mrf.mxu0
    %v7247 = vadd.f32 0.0, %v7246
    %v7248 = vpop.f32.mrf.mxu0
    %7249 = vdwg.mxu0
    %v7251 = vsel %vm1888, %v6736, 0
    %7253 = vmatprep.subr.mxu0 0.0
    %7254 = vmatpush1.msra.mxu0 0.0
    %7255 = vmatprep.subr.mxu0 0.0
    %7256 = vmatpush1.msra.mxu0 0.0
    %7257 = vmatprep.subr.mxu0 0.0
    %7258 = vmatpush1.msra.mxu0 0.0
    %7259 = vmatprep.subr.mxu0 0.0
    %7260 = vmatpush1.msra.mxu0 0.0
    %7261 = vmatprep.subr.mxu0 0.0
    %7262 = vmatpush1.msra.mxu0 0.0
    %7263 = vmatprep.subr.mxu0 0.0
    %7264 = vmatpush1.msra.mxu0 0.0
    %7265 = vmatprep.subr.mxu0 0.0
    %7266 = vmatpush1.msra.mxu0 0.0
    %7267 = vmatprep.subr.mxu0 0.0
    %7268 = vmatpush1.msra.mxu0 0.0
    %7269 = vmatprep.subr.mxu0 0.0
    %7270 = vmatpush1.msra.mxu0 0.0
    %7271 = vmatprep.subr.mxu0 0.0
    %7272 = vmatpush1.msra.mxu0 0.0
    %7273 = vmatprep.subr.mxu0 0.0
    %7274 = vmatpush1.msra.mxu0 0.0
    %7275 = vmatprep.subr.mxu0 0.0
    %7276 = vmatpush1.msra.mxu0 0.0
    %7277 = vmatprep.subr.mxu0 0.0
    %7278 = vmatpush1.msra.mxu0 0.0
    %7279 = vmatprep.subr.mxu0 0.0
    %7280 = vmatpush1.msra.mxu0 0.0
    %7281 = vmatprep.subr.mxu0 0.0
    %7282 = vmatpush1.msra.mxu0 0.0
    %7283 = vmatprep.subr.mxu0 0.0
    %7284 = vmatpush1.msra.mxu0 %v3871
    %7285 = vmatprep.subr.mxu0 0.0
    %7286 = vmatpush2.msra.mxu0 0.0
    %7287 = vmatprep.subr.mxu0 0.0
    %7288 = vmatpush2.msra.mxu0 0.0
    %7289 = vmatprep.subr.mxu0 0.0
    %7290 = vmatpush2.msra.mxu0 0.0
    %7291 = vmatprep.subr.mxu0 0.0
    %7292 = vmatpush2.msra.mxu0 0.0
    %7293 = vmatprep.subr.mxu0 0.0
    %7294 = vmatpush2.msra.mxu0 0.0
    %7295 = vmatprep.subr.mxu0 0.0
    %7296 = vmatpush2.msra.mxu0 0.0
    %7297 = vmatprep.subr.mxu0 0.0
    %7298 = vmatpush2.msra.mxu0 0.0
    %7299 = vmatprep.subr.mxu0 0.0
    %7300 = vmatpush2.msra.mxu0 0.0
    %7301 = vmatprep.subr.mxu0 0.0
    %7302 = vmatpush2.msra.mxu0 0.0
    %7303 = vmatprep.subr.mxu0 0.0
    %7304 = vmatpush2.msra.mxu0 0.0
    %7305 = vmatprep.subr.mxu0 0.0
    %7306 = vmatpush2.msra.mxu0 0.0
    %7307 = vmatprep.subr.mxu0 0.0
    %7308 = vmatpush2.msra.mxu0 0.0
    %7309 = vmatprep.subr.mxu0 0.0
    %7310 = vmatpush2.msra.mxu0 0.0
    %7311 = vmatprep.subr.mxu0 0.0
    %7312 = vmatpush2.msra.mxu0 0.0
    %7313 = vmatprep.subr.mxu0 0.0
    %7314 = vmatpush2.msra.mxu0 0.0
    %7315 = vmatprep.subr.mxu0 0.0
    %7316 = vmatpush2.msra.mxu0 0.0
    %7317 = vmatprep.mubr.f32.mxu0 0.0
    %7318 = vmatmul.mubr.f32.gmra.mxu0 %v7251
    %v7319 = vpop.f32.mrf.mxu0
    %v7320 = vadd.f32 0.0, %v7319
    %v7321 = vpop.f32.mrf.mxu0
    %7322 = vdwg.mxu0
    %v7324 = vsel %vm1888, %v6809, 0
    %7326 = vmatprep.subr.mxu0 0.0
    %7327 = vmatpush1.msra.mxu0 0.0
    %7328 = vmatprep.subr.mxu0 0.0
    %7329 = vmatpush1.msra.mxu0 0.0
    %7330 = vmatprep.subr.mxu0 0.0
    %7331 = vmatpush1.msra.mxu0 0.0
    %7332 = vmatprep.subr.mxu0 0.0
    %7333 = vmatpush1.msra.mxu0 0.0
    %7334 = vmatprep.subr.mxu0 0.0
    %7335 = vmatpush1.msra.mxu0 0.0
    %7336 = vmatprep.subr.mxu0 0.0
    %7337 = vmatpush1.msra.mxu0 0.0
    %7338 = vmatprep.subr.mxu0 0.0
    %7339 = vmatpush1.msra.mxu0 0.0
    %7340 = vmatprep.subr.mxu0 0.0
    %7341 = vmatpush1.msra.mxu0 0.0
    %7342 = vmatprep.subr.mxu0 0.0
    %7343 = vmatpush1.msra.mxu0 0.0
    %7344 = vmatprep.subr.mxu0 0.0
    %7345 = vmatpush1.msra.mxu0 0.0
    %7346 = vmatprep.subr.mxu0 0.0
    %7347 = vmatpush1.msra.mxu0 0.0
    %7348 = vmatprep.subr.mxu0 0.0
    %7349 = vmatpush1.msra.mxu0 0.0
    %7350 = vmatprep.subr.mxu0 0.0
    %7351 = vmatpush1.msra.mxu0 0.0
    %7352 = vmatprep.subr.mxu0 0.0
    %7353 = vmatpush1.msra.mxu0 0.0
    %7354 = vmatprep.subr.mxu0 0.0
    %7355 = vmatpush1.msra.mxu0 0.0
    %7356 = vmatprep.subr.mxu0 0.0
    %7357 = vmatpush1.msra.mxu0 %v3872
    %7358 = vmatprep.subr.mxu0 0.0
    %7359 = vmatpush2.msra.mxu0 0.0
    %7360 = vmatprep.subr.mxu0 0.0
    %7361 = vmatpush2.msra.mxu0 0.0
    %7362 = vmatprep.subr.mxu0 0.0
    %7363 = vmatpush2.msra.mxu0 0.0
    %7364 = vmatprep.subr.mxu0 0.0
    %7365 = vmatpush2.msra.mxu0 0.0
    %7366 = vmatprep.subr.mxu0 0.0
    %7367 = vmatpush2.msra.mxu0 0.0
    %7368 = vmatprep.subr.mxu0 0.0
    %7369 = vmatpush2.msra.mxu0 0.0
    %7370 = vmatprep.subr.mxu0 0.0
    %7371 = vmatpush2.msra.mxu0 0.0
    %7372 = vmatprep.subr.mxu0 0.0
    %7373 = vmatpush2.msra.mxu0 0.0
    %7374 = vmatprep.subr.mxu0 0.0
    %7375 = vmatpush2.msra.mxu0 0.0
    %7376 = vmatprep.subr.mxu0 0.0
    %7377 = vmatpush2.msra.mxu0 0.0
    %7378 = vmatprep.subr.mxu0 0.0
    %7379 = vmatpush2.msra.mxu0 0.0
    %7380 = vmatprep.subr.mxu0 0.0
    %7381 = vmatpush2.msra.mxu0 0.0
    %7382 = vmatprep.subr.mxu0 0.0
    %7383 = vmatpush2.msra.mxu0 0.0
    %7384 = vmatprep.subr.mxu0 0.0
    %7385 = vmatpush2.msra.mxu0 0.0
    %7386 = vmatprep.subr.mxu0 0.0
    %7387 = vmatpush2.msra.mxu0 0.0
    %7388 = vmatprep.subr.mxu0 0.0
    %7389 = vmatpush2.msra.mxu0 0.0
    %7390 = vmatprep.mubr.f32.mxu0 0.0
    %7391 = vmatmul.mubr.f32.gmra.mxu0 %v7324
    %v7392 = vpop.f32.mrf.mxu0
    %v7393 = vadd.f32 0.0, %v7392
    %v7394 = vpop.f32.mrf.mxu0
    %7395 = vdwg.mxu0
    %v7397 = vsel %vm1888, %v6882, 0
    %7399 = vmatprep.subr.mxu0 0.0
    %7400 = vmatpush1.msra.mxu0 0.0
    %7401 = vmatprep.subr.mxu0 0.0
    %7402 = vmatpush1.msra.mxu0 0.0
    %7403 = vmatprep.subr.mxu0 0.0
    %7404 = vmatpush1.msra.mxu0 0.0
    %7405 = vmatprep.subr.mxu0 0.0
    %7406 = vmatpush1.msra.mxu0 0.0
    %7407 = vmatprep.subr.mxu0 0.0
    %7408 = vmatpush1.msra.mxu0 0.0
    %7409 = vmatprep.subr.mxu0 0.0
    %7410 = vmatpush1.msra.mxu0 0.0
    %7411 = vmatprep.subr.mxu0 0.0
    %7412 = vmatpush1.msra.mxu0 0.0
    %7413 = vmatprep.subr.mxu0 0.0
    %7414 = vmatpush1.msra.mxu0 0.0
    %7415 = vmatprep.subr.mxu0 0.0
    %7416 = vmatpush1.msra.mxu0 0.0
    %7417 = vmatprep.subr.mxu0 0.0
    %7418 = vmatpush1.msra.mxu0 0.0
    %7419 = vmatprep.subr.mxu0 0.0
    %7420 = vmatpush1.msra.mxu0 0.0
    %7421 = vmatprep.subr.mxu0 0.0
    %7422 = vmatpush1.msra.mxu0 0.0
    %7423 = vmatprep.subr.mxu0 0.0
    %7424 = vmatpush1.msra.mxu0 0.0
    %7425 = vmatprep.subr.mxu0 0.0
    %7426 = vmatpush1.msra.mxu0 0.0
    %7427 = vmatprep.subr.mxu0 0.0
    %7428 = vmatpush1.msra.mxu0 0.0
    %7429 = vmatprep.subr.mxu0 0.0
    %7430 = vmatpush1.msra.mxu0 %v3873
    %7431 = vmatprep.subr.mxu0 0.0
    %7432 = vmatpush2.msra.mxu0 0.0
    %7433 = vmatprep.subr.mxu0 0.0
    %7434 = vmatpush2.msra.mxu0 0.0
    %7435 = vmatprep.subr.mxu0 0.0
    %7436 = vmatpush2.msra.mxu0 0.0
    %7437 = vmatprep.subr.mxu0 0.0
    %7438 = vmatpush2.msra.mxu0 0.0
    %7439 = vmatprep.subr.mxu0 0.0
    %7440 = vmatpush2.msra.mxu0 0.0
    %7441 = vmatprep.subr.mxu0 0.0
    %7442 = vmatpush2.msra.mxu0 0.0
    %7443 = vmatprep.subr.mxu0 0.0
    %7444 = vmatpush2.msra.mxu0 0.0
    %7445 = vmatprep.subr.mxu0 0.0
    %7446 = vmatpush2.msra.mxu0 0.0
    %7447 = vmatprep.subr.mxu0 0.0
    %7448 = vmatpush2.msra.mxu0 0.0
    %7449 = vmatprep.subr.mxu0 0.0
    %7450 = vmatpush2.msra.mxu0 0.0
    %7451 = vmatprep.subr.mxu0 0.0
    %7452 = vmatpush2.msra.mxu0 0.0
    %7453 = vmatprep.subr.mxu0 0.0
    %7454 = vmatpush2.msra.mxu0 0.0
    %7455 = vmatprep.subr.mxu0 0.0
    %7456 = vmatpush2.msra.mxu0 0.0
    %7457 = vmatprep.subr.mxu0 0.0
    %7458 = vmatpush2.msra.mxu0 0.0
    %7459 = vmatprep.subr.mxu0 0.0
    %7460 = vmatpush2.msra.mxu0 0.0
    %7461 = vmatprep.subr.mxu0 0.0
    %7462 = vmatpush2.msra.mxu0 0.0
    %7463 = vmatprep.mubr.f32.mxu0 0.0
    %7464 = vmatmul.mubr.f32.gmra.mxu0 %v7397
    %v7465 = vpop.f32.mrf.mxu0
    %v7466 = vadd.f32 0.0, %v7465
    %v7467 = vpop.f32.mrf.mxu0
    %7468 = vdwg.mxu0
    %v7470 = vsel %vm1888, %v6955, 0
    %7472 = vmatprep.subr.mxu0 0.0
    %7473 = vmatpush1.msra.mxu0 0.0
    %7474 = vmatprep.subr.mxu0 0.0
    %7475 = vmatpush1.msra.mxu0 0.0
    %7476 = vmatprep.subr.mxu0 0.0
    %7477 = vmatpush1.msra.mxu0 0.0
    %7478 = vmatprep.subr.mxu0 0.0
    %7479 = vmatpush1.msra.mxu0 0.0
    %7480 = vmatprep.subr.mxu0 0.0
    %7481 = vmatpush1.msra.mxu0 0.0
    %7482 = vmatprep.subr.mxu0 0.0
    %7483 = vmatpush1.msra.mxu0 0.0
    %7484 = vmatprep.subr.mxu0 0.0
    %7485 = vmatpush1.msra.mxu0 0.0
    %7486 = vmatprep.subr.mxu0 0.0
    %7487 = vmatpush1.msra.mxu0 0.0
    %7488 = vmatprep.subr.mxu0 0.0
    %7489 = vmatpush1.msra.mxu0 0.0
    %7490 = vmatprep.subr.mxu0 0.0
    %7491 = vmatpush1.msra.mxu0 0.0
    %7492 = vmatprep.subr.mxu0 0.0
    %7493 = vmatpush1.msra.mxu0 0.0
    %7494 = vmatprep.subr.mxu0 0.0
    %7495 = vmatpush1.msra.mxu0 0.0
    %7496 = vmatprep.subr.mxu0 0.0
    %7497 = vmatpush1.msra.mxu0 0.0
    %7498 = vmatprep.subr.mxu0 0.0
    %7499 = vmatpush1.msra.mxu0 0.0
    %7500 = vmatprep.subr.mxu0 0.0
    %7501 = vmatpush1.msra.mxu0 0.0
    %7502 = vmatprep.subr.mxu0 0.0
    %7503 = vmatpush1.msra.mxu0 %v3874
    %7504 = vmatprep.subr.mxu0 0.0
    %7505 = vmatpush2.msra.mxu0 0.0
    %7506 = vmatprep.subr.mxu0 0.0
    %7507 = vmatpush2.msra.mxu0 0.0
    %7508 = vmatprep.subr.mxu0 0.0
    %7509 = vmatpush2.msra.mxu0 0.0
    %7510 = vmatprep.subr.mxu0 0.0
    %7511 = vmatpush2.msra.mxu0 0.0
    %7512 = vmatprep.subr.mxu0 0.0
    %7513 = vmatpush2.msra.mxu0 0.0
    %7514 = vmatprep.subr.mxu0 0.0
    %7515 = vmatpush2.msra.mxu0 0.0
    %7516 = vmatprep.subr.mxu0 0.0
    %7517 = vmatpush2.msra.mxu0 0.0
    %7518 = vmatprep.subr.mxu0 0.0
    %7519 = vmatpush2.msra.mxu0 0.0
    %7520 = vmatprep.subr.mxu0 0.0
    %7521 = vmatpush2.msra.mxu0 0.0
    %7522 = vmatprep.subr.mxu0 0.0
    %7523 = vmatpush2.msra.mxu0 0.0
    %7524 = vmatprep.subr.mxu0 0.0
    %7525 = vmatpush2.msra.mxu0 0.0
    %7526 = vmatprep.subr.mxu0 0.0
    %7527 = vmatpush2.msra.mxu0 0.0
    %7528 = vmatprep.subr.mxu0 0.0
    %7529 = vmatpush2.msra.mxu0 0.0
    %7530 = vmatprep.subr.mxu0 0.0
    %7531 = vmatpush2.msra.mxu0 0.0
    %7532 = vmatprep.subr.mxu0 0.0
    %7533 = vmatpush2.msra.mxu0 0.0
    %7534 = vmatprep.subr.mxu0 0.0
    %7535 = vmatpush2.msra.mxu0 0.0
    %7536 = vmatprep.mubr.f32.mxu0 0.0
    %7537 = vmatmul.mubr.f32.gmra.mxu0 %v7470
    %v7538 = vpop.f32.mrf.mxu0
    %v7539 = vadd.f32 0.0, %v7538
    %v7540 = vpop.f32.mrf.mxu0
    %7541 = vdwg.mxu0
    %v7543 = vsel %vm1888, %v7028, 0
    %7545 = vmatprep.subr.mxu0 0.0
    %7546 = vmatpush1.msra.mxu0 0.0
    %7547 = vmatprep.subr.mxu0 0.0
    %7548 = vmatpush1.msra.mxu0 0.0
    %7549 = vmatprep.subr.mxu0 0.0
    %7550 = vmatpush1.msra.mxu0 0.0
    %7551 = vmatprep.subr.mxu0 0.0
    %7552 = vmatpush1.msra.mxu0 0.0
    %7553 = vmatprep.subr.mxu0 0.0
    %7554 = vmatpush1.msra.mxu0 0.0
    %7555 = vmatprep.subr.mxu0 0.0
    %7556 = vmatpush1.msra.mxu0 0.0
    %7557 = vmatprep.subr.mxu0 0.0
    %7558 = vmatpush1.msra.mxu0 0.0
    %7559 = vmatprep.subr.mxu0 0.0
    %7560 = vmatpush1.msra.mxu0 0.0
    %7561 = vmatprep.subr.mxu0 0.0
    %7562 = vmatpush1.msra.mxu0 0.0
    %7563 = vmatprep.subr.mxu0 0.0
    %7564 = vmatpush1.msra.mxu0 0.0
    %7565 = vmatprep.subr.mxu0 0.0
    %7566 = vmatpush1.msra.mxu0 0.0
    %7567 = vmatprep.subr.mxu0 0.0
    %7568 = vmatpush1.msra.mxu0 0.0
    %7569 = vmatprep.subr.mxu0 0.0
    %7570 = vmatpush1.msra.mxu0 0.0
    %7571 = vmatprep.subr.mxu0 0.0
    %7572 = vmatpush1.msra.mxu0 0.0
    %7573 = vmatprep.subr.mxu0 0.0
    %7574 = vmatpush1.msra.mxu0 0.0
    %7575 = vmatprep.subr.mxu0 0.0
    %7576 = vmatpush1.msra.mxu0 %v3875
    %7577 = vmatprep.subr.mxu0 0.0
    %7578 = vmatpush2.msra.mxu0 0.0
    %7579 = vmatprep.subr.mxu0 0.0
    %7580 = vmatpush2.msra.mxu0 0.0
    %7581 = vmatprep.subr.mxu0 0.0
    %7582 = vmatpush2.msra.mxu0 0.0
    %7583 = vmatprep.subr.mxu0 0.0
    %7584 = vmatpush2.msra.mxu0 0.0
    %7585 = vmatprep.subr.mxu0 0.0
    %7586 = vmatpush2.msra.mxu0 0.0
    %7587 = vmatprep.subr.mxu0 0.0
    %7588 = vmatpush2.msra.mxu0 0.0
    %7589 = vmatprep.subr.mxu0 0.0
    %7590 = vmatpush2.msra.mxu0 0.0
    %7591 = vmatprep.subr.mxu0 0.0
    %7592 = vmatpush2.msra.mxu0 0.0
    %7593 = vmatprep.subr.mxu0 0.0
    %7594 = vmatpush2.msra.mxu0 0.0
    %7595 = vmatprep.subr.mxu0 0.0
    %7596 = vmatpush2.msra.mxu0 0.0
    %7597 = vmatprep.subr.mxu0 0.0
    %7598 = vmatpush2.msra.mxu0 0.0
    %7599 = vmatprep.subr.mxu0 0.0
    %7600 = vmatpush2.msra.mxu0 0.0
    %7601 = vmatprep.subr.mxu0 0.0
    %7602 = vmatpush2.msra.mxu0 0.0
    %7603 = vmatprep.subr.mxu0 0.0
    %7604 = vmatpush2.msra.mxu0 0.0
    %7605 = vmatprep.subr.mxu0 0.0
    %7606 = vmatpush2.msra.mxu0 0.0
    %7607 = vmatprep.subr.mxu0 0.0
    %7608 = vmatpush2.msra.mxu0 0.0
    %7609 = vmatprep.mubr.f32.mxu0 0.0
    %7610 = vmatmul.mubr.f32.gmra.mxu0 %v7543
    %v7611 = vpop.f32.mrf.mxu0
    %v7612 = vadd.f32 0.0, %v7611
    %v7613 = vpop.f32.mrf.mxu0
    %7614 = vdwg.mxu0
    %v7616 = vsel %vm1888, %v7101, 0
    %7618 = vmatprep.subr.mxu0 0.0
    %7619 = vmatpush1.msra.mxu0 0.0
    %7620 = vmatprep.subr.mxu0 0.0
    %7621 = vmatpush1.msra.mxu0 0.0
    %7622 = vmatprep.subr.mxu0 0.0
    %7623 = vmatpush1.msra.mxu0 0.0
    %7624 = vmatprep.subr.mxu0 0.0
    %7625 = vmatpush1.msra.mxu0 0.0
    %7626 = vmatprep.subr.mxu0 0.0
    %7627 = vmatpush1.msra.mxu0 0.0
    %7628 = vmatprep.subr.mxu0 0.0
    %7629 = vmatpush1.msra.mxu0 0.0
    %7630 = vmatprep.subr.mxu0 0.0
    %7631 = vmatpush1.msra.mxu0 0.0
    %7632 = vmatprep.subr.mxu0 0.0
    %7633 = vmatpush1.msra.mxu0 0.0
    %7634 = vmatprep.subr.mxu0 0.0
    %7635 = vmatpush1.msra.mxu0 0.0
    %7636 = vmatprep.subr.mxu0 0.0
    %7637 = vmatpush1.msra.mxu0 0.0
    %7638 = vmatprep.subr.mxu0 0.0
    %7639 = vmatpush1.msra.mxu0 0.0
    %7640 = vmatprep.subr.mxu0 0.0
    %7641 = vmatpush1.msra.mxu0 0.0
    %7642 = vmatprep.subr.mxu0 0.0
    %7643 = vmatpush1.msra.mxu0 0.0
    %7644 = vmatprep.subr.mxu0 0.0
    %7645 = vmatpush1.msra.mxu0 0.0
    %7646 = vmatprep.subr.mxu0 0.0
    %7647 = vmatpush1.msra.mxu0 0.0
    %7648 = vmatprep.subr.mxu0 0.0
    %7649 = vmatpush1.msra.mxu0 %v3876
    %7650 = vmatprep.subr.mxu0 0.0
    %7651 = vmatpush2.msra.mxu0 0.0
    %7652 = vmatprep.subr.mxu0 0.0
    %7653 = vmatpush2.msra.mxu0 0.0
    %7654 = vmatprep.subr.mxu0 0.0
    %7655 = vmatpush2.msra.mxu0 0.0
    %7656 = vmatprep.subr.mxu0 0.0
    %7657 = vmatpush2.msra.mxu0 0.0
    %7658 = vmatprep.subr.mxu0 0.0
    %7659 = vmatpush2.msra.mxu0 0.0
    %7660 = vmatprep.subr.mxu0 0.0
    %7661 = vmatpush2.msra.mxu0 0.0
    %7662 = vmatprep.subr.mxu0 0.0
    %7663 = vmatpush2.msra.mxu0 0.0
    %7664 = vmatprep.subr.mxu0 0.0
    %7665 = vmatpush2.msra.mxu0 0.0
    %7666 = vmatprep.subr.mxu0 0.0
    %7667 = vmatpush2.msra.mxu0 0.0
    %7668 = vmatprep.subr.mxu0 0.0
    %7669 = vmatpush2.msra.mxu0 0.0
    %7670 = vmatprep.subr.mxu0 0.0
    %7671 = vmatpush2.msra.mxu0 0.0
    %7672 = vmatprep.subr.mxu0 0.0
    %7673 = vmatpush2.msra.mxu0 0.0
    %7674 = vmatprep.subr.mxu0 0.0
    %7675 = vmatpush2.msra.mxu0 0.0
    %7676 = vmatprep.subr.mxu0 0.0
    %7677 = vmatpush2.msra.mxu0 0.0
    %7678 = vmatprep.subr.mxu0 0.0
    %7679 = vmatpush2.msra.mxu0 0.0
    %7680 = vmatprep.subr.mxu0 0.0
    %7681 = vmatpush2.msra.mxu0 0.0
    %7682 = vmatprep.mubr.f32.mxu0 0.0
    %7683 = vmatmul.mubr.f32.gmra.mxu0 %v7616
    %v7684 = vpop.f32.mrf.mxu0
    %v7685 = vadd.f32 0.0, %v7684
    %v7686 = vpop.f32.mrf.mxu0
    %7687 = vdwg.mxu0
    %v7688 = vadd.f32 %v7174, %v7320
    %v7689 = vadd.f32 %v7247, %v7393
    %v7690 = vadd.f32 %v7688, %v7466
    %v7691 = vadd.f32 %v7689, %v7539
    %v7692 = vadd.f32 %v7690, %v7612
    %v7693 = vadd.f32 %v7691, %v7685
    %v7694 = vlaneseq
    %v7695 = vshrl.u32 %v7694, 7
    %v7696 = vsub.s32 7, %v7695
    %v7697 = vrot.slane %v36, %v7696
    %v7698 = vadd.f32 %v7692, %v7697
    %v7699 = vadd.f32 %v7693, %v7697
    %v7700 = vadd.f32 %v3781, %v7698
    %v7701 = vadd.f32 %v3782, %v7699
    %v7702 = vsel %vm37, %v7700, 0.0
    %7703 = vadd.xlane.f32.xlu0 %v7702
    %v7704 = vpop.xlane.xlu0 %7703
    %v7705 = vsel %vm37, %v7701, 0.0
    %7706 = vadd.xlane.f32.xlu0 %v7705
    %v7707 = vpop.xlane.xlu0 %7706
    %v7708 = vmul.f32 %v7704, %v44
    %v7709 = vmul.f32 %v7707, %v44
    %v7710 = vsub.f32 %v7700, %v7708
    %v7711 = vsub.f32 %v7701, %v7709
    %v7712 = vmul.f32 %v7710, %v7710
    %v7713 = vmul.f32 %v7711, %v7711
    %v7714 = vsel %vm37, %v7712, 0.0
    %7715 = vadd.xlane.f32.xlu0 %v7714
    %v7716 = vpop.xlane.xlu0 %7715
    %v7717 = vsel %vm37, %v7713, 0.0
    %7718 = vadd.xlane.f32.xlu0 %v7717
    %v7719 = vpop.xlane.xlu0 %7718
    %v7720 = vmul.f32 %v7716, 0.032258064
    %v7721 = vmul.f32 %v7719, 0.032258064
    %v7722 = vrsqrt.pop %v7720
    %v7723 = vmul.f32 %v7720, %v7722
    %vm7724 = vcmp.eq.f32.partialorder %v7720, inf
    %v7725 = vsel %vm7724, %v7720, %v7723
    %vm7726 = vcmp.eq.f32.partialorder %v7720, 0.0
    %v7727 = vand.u32 %v7720, 2147483648
    %v7728 = vsel %vm7726, %v7727, %v7725
    %v7729 = vrsqrt.pop %v7721
    %v7730 = vmul.f32 %v7721, %v7729
    %vm7731 = vcmp.eq.f32.partialorder %v7721, inf
    %v7732 = vsel %vm7731, %v7721, %v7730
    %vm7733 = vcmp.eq.f32.partialorder %v7721, 0.0
    %v7734 = vand.u32 %v7721, 2147483648
    %v7735 = vsel %vm7733, %v7734, %v7732
    %v7736 = vadd.f32 %v7728, 1e-06
    %v7737 = vadd.f32 %v7735, 1e-06
    %v7738 = vrcp.pop %v7736
    %v7739 = vrcp.pop %v7737
    %v7740 = vmul.f32 %v7710, %v7738
    %v7741 = vmul.f32 %v7711, %v7739
    %v7742 = vlaneseq
    %v7743 = vshrl.u32 %v7742, 7
    %v7744 = vsub.s32 4, %v7743
    %v7745 = vrot.slane %v36, %v7744
    %v7746 = vmul.f32 %v7745, %v7740
    %v7747 = vmul.f32 %v7745, %v7741
    %v7748 = vlaneseq
    %v7749 = vshrl.u32 %v7748, 7
    %v7750 = vsub.s32 5, %v7749
    %v7751 = vrot.slane %v36, %v7750
    %v7752 = vadd.f32 %v7746, %v7751
    %v7753 = vadd.f32 %v7747, %v7751
    %v7754 = vsel %vm37, %v7752, 1.0
    %v7755 = vsel %vm37, %v7753, 1.0
    %v7756 = vld [vmem:[%s6] sm:$0xff]
    %v7757 = vld [vmem:[%s6 + $0x8] sm:$0xff]
    %v7758 = vld [vmem:[%s6 + $0x10] sm:$0xff]
    %v7759 = vld [vmem:[%s6 + $0x18] sm:$0xff]
    %v7760 = vld [vmem:[%s6 + $0x20] sm:$0x1]
    %v7762 = vsel %vm129, %v7754, 0
    %v7765 = vsel %vm129, %v7755, 0
    %vm7767 = vcmask 1040384
    %v7769 = vsel %vm7767, %v7760, 0
    %7771 = vmatprep.subr.mxu0 0.0
    %7772 = vmatpush1.msra.mxu0 0.0
    %7773 = vmatprep.subr.mxu0 0.0
    %7774 = vmatpush1.msra.mxu0 0.0
    %7775 = vmatprep.subr.mxu0 0.0
    %7776 = vmatpush1.msra.mxu0 0.0
    %7777 = vmatprep.subr.mxu0 0.0
    %7778 = vmatpush1.msra.mxu0 0.0
    %7779 = vmatprep.subr.mxu0 0.0
    %7780 = vmatpush1.msra.mxu0 0.0
    %7781 = vmatprep.subr.mxu0 0.0
    %7782 = vmatpush1.msra.mxu0 0.0
    %7783 = vmatprep.subr.mxu0 0.0
    %7784 = vmatpush1.msra.mxu0 0.0
    %7785 = vmatprep.subr.mxu0 0.0
    %7786 = vmatpush1.msra.mxu0 0.0
    %7787 = vmatprep.subr.mxu0 0.0
    %7788 = vmatpush1.msra.mxu0 0.0
    %7789 = vmatprep.subr.mxu0 0.0
    %7790 = vmatpush1.msra.mxu0 0.0
    %7791 = vmatprep.subr.mxu0 0.0
    %7792 = vmatpush1.msra.mxu0 0.0
    %7793 = vmatprep.subr.mxu0 0.0
    %7794 = vmatpush1.msra.mxu0 %v7769
    %7795 = vmatprep.subr.mxu0 0.0
    %7796 = vmatpush1.msra.mxu0 %v7759
    %7797 = vmatprep.subr.mxu0 0.0
    %7798 = vmatpush1.msra.mxu0 %v7758
    %7799 = vmatprep.subr.mxu0 0.0
    %7800 = vmatpush1.msra.mxu0 %v7757
    %7801 = vmatprep.subr.mxu0 0.0
    %7802 = vmatpush1.msra.mxu0 %v7756
    %7803 = vmatprep.subr.mxu0 0.0
    %7804 = vmatpush2.msra.mxu0 0.0
    %7805 = vmatprep.subr.mxu0 0.0
    %7806 = vmatpush2.msra.mxu0 0.0
    %7807 = vmatprep.subr.mxu0 0.0
    %7808 = vmatpush2.msra.mxu0 0.0
    %7809 = vmatprep.subr.mxu0 0.0
    %7810 = vmatpush2.msra.mxu0 0.0
    %7811 = vmatprep.subr.mxu0 0.0
    %7812 = vmatpush2.msra.mxu0 0.0
    %7813 = vmatprep.subr.mxu0 0.0
    %7814 = vmatpush2.msra.mxu0 0.0
    %7815 = vmatprep.subr.mxu0 0.0
    %7816 = vmatpush2.msra.mxu0 0.0
    %7817 = vmatprep.subr.mxu0 0.0
    %7818 = vmatpush2.msra.mxu0 0.0
    %7819 = vmatprep.subr.mxu0 0.0
    %7820 = vmatpush2.msra.mxu0 0.0
    %7821 = vmatprep.subr.mxu0 0.0
    %7822 = vmatpush2.msra.mxu0 0.0
    %7823 = vmatprep.subr.mxu0 0.0
    %7824 = vmatpush2.msra.mxu0 0.0
    %7825 = vmatprep.subr.mxu0 0.0
    %7826 = vmatpush2.msra.mxu0 0.0
    %7827 = vmatprep.subr.mxu0 0.0
    %7828 = vmatpush2.msra.mxu0 0.0
    %7829 = vmatprep.subr.mxu0 0.0
    %7830 = vmatpush2.msra.mxu0 0.0
    %7831 = vmatprep.subr.mxu0 0.0
    %7832 = vmatpush2.msra.mxu0 0.0
    %7833 = vmatprep.subr.mxu0 0.0
    %7834 = vmatpush2.msra.mxu0 0.0
    %7835 = vmatprep.mubr.f32.mxu0 0.0
    %7836 = vmatmul.mubr.f32.gmra.mxu0 %v7762
    %v7837 = vpop.f32.mrf.mxu0
    %v7838 = vadd.f32 0.0, %v7837
    %v7839 = vpop.f32.mrf.mxu0
    %7840 = vmatprep.mubr.f32.mxu0 0.0
    %7841 = vmatmul.mubr.f32.gmra.mxu0 %v7765
    %v7842 = vpop.f32.mrf.mxu0
    %v7843 = vadd.f32 0.0, %v7842
    %v7844 = vpop.f32.mrf.mxu0
    %7845 = vdwg.mxu0
    %v7846 = vmax.f32 %v7838, 0.0
    %v7847 = vmax.f32 %v7843, 0.0
    %vm7848 = vcmask 523264
    %v7849 = vsel %vm7848, %v7846, 1.0
    %v7850 = vsel %vm7848, %v7847, 1.0
    %v7851 = vld [vmem:[%s7] sm:$0xff]
    %v7852 = vld [vmem:[%s7 + $0x8] sm:$0xff]
    %v7853 = vld [vmem:[%s7 + $0x10] sm:$0xff]
    %v7854 = vld [vmem:[%s7 + $0x18] sm:$0xff]
    %v7855 = vld [vmem:[%s7 + $0x20] sm:$0xff]
    %v7856 = vld [vmem:[%s7 + $0x28] sm:$0xff]
    %v7857 = vld [vmem:[%s7 + $0x30] sm:$0xff]
    %v7858 = vld [vmem:[%s7 + $0x38] sm:$0xff]
    %v7859 = vld [vmem:[%s7 + $0x40] sm:$0x1]
    %vm7860 = vcmask 531456
    %v7862 = vsel %vm7860, %v7849, 0
    %v7865 = vsel %vm7860, %v7850, 0
    %v7868 = vsel %vm7767, %v7859, 0
    %7870 = vmatprep.subr.mxu0 0.0
    %7871 = vmatpush1.msra.mxu0 0.0
    %7872 = vmatprep.subr.mxu0 0.0
    %7873 = vmatpush1.msra.mxu0 0.0
    %7874 = vmatprep.subr.mxu0 0.0
    %7875 = vmatpush1.msra.mxu0 0.0
    %7876 = vmatprep.subr.mxu0 0.0
    %7877 = vmatpush1.msra.mxu0 0.0
    %7878 = vmatprep.subr.mxu0 0.0
    %7879 = vmatpush1.msra.mxu0 0.0
    %7880 = vmatprep.subr.mxu0 0.0
    %7881 = vmatpush1.msra.mxu0 0.0
    %7882 = vmatprep.subr.mxu0 0.0
    %7883 = vmatpush1.msra.mxu0 0.0
    %7884 = vmatprep.subr.mxu0 0.0
    %7885 = vmatpush1.msra.mxu0 %v7868
    %7886 = vmatprep.subr.mxu0 0.0
    %7887 = vmatpush1.msra.mxu0 %v7858
    %7888 = vmatprep.subr.mxu0 0.0
    %7889 = vmatpush1.msra.mxu0 %v7857
    %7890 = vmatprep.subr.mxu0 0.0
    %7891 = vmatpush1.msra.mxu0 %v7856
    %7892 = vmatprep.subr.mxu0 0.0
    %7893 = vmatpush1.msra.mxu0 %v7855
    %7894 = vmatprep.subr.mxu0 0.0
    %7895 = vmatpush1.msra.mxu0 %v7854
    %7896 = vmatprep.subr.mxu0 0.0
    %7897 = vmatpush1.msra.mxu0 %v7853
    %7898 = vmatprep.subr.mxu0 0.0
    %7899 = vmatpush1.msra.mxu0 %v7852
    %7900 = vmatprep.subr.mxu0 0.0
    %7901 = vmatpush1.msra.mxu0 %v7851
    %7902 = vmatprep.subr.mxu0 0.0
    %7903 = vmatpush2.msra.mxu0 0.0
    %7904 = vmatprep.subr.mxu0 0.0
    %7905 = vmatpush2.msra.mxu0 0.0
    %7906 = vmatprep.subr.mxu0 0.0
    %7907 = vmatpush2.msra.mxu0 0.0
    %7908 = vmatprep.subr.mxu0 0.0
    %7909 = vmatpush2.msra.mxu0 0.0
    %7910 = vmatprep.subr.mxu0 0.0
    %7911 = vmatpush2.msra.mxu0 0.0
    %7912 = vmatprep.subr.mxu0 0.0
    %7913 = vmatpush2.msra.mxu0 0.0
    %7914 = vmatprep.subr.mxu0 0.0
    %7915 = vmatpush2.msra.mxu0 0.0
    %7916 = vmatprep.subr.mxu0 0.0
    %7917 = vmatpush2.msra.mxu0 0.0
    %7918 = vmatprep.subr.mxu0 0.0
    %7919 = vmatpush2.msra.mxu0 0.0
    %7920 = vmatprep.subr.mxu0 0.0
    %7921 = vmatpush2.msra.mxu0 0.0
    %7922 = vmatprep.subr.mxu0 0.0
    %7923 = vmatpush2.msra.mxu0 0.0
    %7924 = vmatprep.subr.mxu0 0.0
    %7925 = vmatpush2.msra.mxu0 0.0
    %7926 = vmatprep.subr.mxu0 0.0
    %7927 = vmatpush2.msra.mxu0 0.0
    %7928 = vmatprep.subr.mxu0 0.0
    %7929 = vmatpush2.msra.mxu0 0.0
    %7930 = vmatprep.subr.mxu0 0.0
    %7931 = vmatpush2.msra.mxu0 0.0
    %7932 = vmatprep.subr.mxu0 0.0
    %7933 = vmatpush2.msra.mxu0 0.0
    %7934 = vmatprep.mubr.f32.mxu0 0.0
    %7935 = vmatmul.mubr.f32.gmra.mxu0 %v7862
    %v7936 = vpop.f32.mrf.mxu0
    %v7937 = vadd.f32 0.0, %v7936
    %v7938 = vpop.f32.mrf.mxu0
    %7939 = vmatprep.mubr.f32.mxu0 0.0
    %7940 = vmatmul.mubr.f32.gmra.mxu0 %v7865
    %v7941 = vpop.f32.mrf.mxu0
    %v7942 = vadd.f32 0.0, %v7941
    %v7943 = vpop.f32.mrf.mxu0
    %7944 = vdwg.mxu0
    %v7945 = vadd.f32 %v7700, %v7937
    %v7946 = vadd.f32 %v7701, %v7942
    %7947 = vst.msk [vmem:[#allocation2] sm:$0xff] %vm37, %v7945
    %7948 = vst.msk [vmem:[#allocation2 + $0x8] sm:$0xff] %vm37, %v7946
    // Predicated region
    $region34: #{decoder_layer_forward.1} parent=1 // pred_check
      _
    $region35: #{decoder_layer_forward.1} parent=1 // pred_check_branch
      %7950 = sbr.rel (0) target = $region37
    $region36: #{decoder_layer_forward.1} parent=1 // pred_region
      %s7952 = ssub.s32 256, 256
      %7953 = vsyncadd [#allocation3], %s7952
      %s7954 = sshll.u32 [#allocation2], 4
      %s7955 = int_to_ptr.vmem [resolvable:$true] %s7954
      %7960 = dma.vmem_to_hbm [thread:$0]  %s7955, 256, %s8, [#allocation3], 128, 128, 8
    $region37: #{decoder_layer_forward.1} parent=1 // pred_fallthru
      _
    // Predicated region
    $region38: #{decoder_layer_forward.1} parent=1 // pred_check
      _
    $region39: #{decoder_layer_forward.1} parent=1 // pred_check_branch
      %7962 = sbr.rel (0) target = $region41
    $region40: #{decoder_layer_forward.1} parent=1 // pred_region
      %7963 = dma.done [#allocation3], 256
    $region41: #{decoder_layer_forward.1} parent=1 // pred_fallthru
      _
    %7964 = vsyncpa [#allocation3], 1

</llo_original>
